<compile_context>
chip_gen: v7x
topology: tpu7x:2x2x1
jax: 0.10.0
libtpu: 0.0.40
codegen_flags: <defaults>
</compile_context>

<pallas_src>
import functools

import jax
import jax.numpy as jnp
from jax.experimental import pallas as pl
from jax.experimental.pallas import tpu as pltpu

LANE = 128  # TPU lane width; Cout tiles are this wide.


def _round_up(x, m):
    return (x + m - 1) // m * m


# ---------------------------------------------------------------------------
# Conv 3x3 (padding=1, stride=1) + bias + ReLU.
# One grid step = (one image, one 128-wide Cout tile).
# ---------------------------------------------------------------------------
def _conv3x3_relu_kernel(x_ref, w_ref, b_ref, o_ref, acc_ref, *, pad_output):
    # x_ref:   (1, H+2, W+2, Cin)  zero-haloed input for one image
    # w_ref:   (3, 3, Cin, TC)     HWIO weights for this Cout tile
    # b_ref:   (1, TC)             bias for this Cout tile (f32)
    # o_ref:   (1, H+2, W+2, TC)   if pad_output else (1, H, W, TC)
    # acc_ref: (H*W, TC) f32       VMEM accumulator
    H = x_ref.shape[1] - 2
    W = x_ref.shape[2] - 2
    Cin = x_ref.shape[3]
    TC = o_ref.shape[-1]

    acc_ref[...] = jnp.zeros_like(acc_ref)
    # 3x3 taps: each tap is one big (H*W, Cin) x (Cin, TC) MXU matmul.
    for dy in range(3):
        for dx in range(3):
            slab = x_ref[0, dy:dy + H, dx:dx + W, :].reshape(H * W, Cin)
            acc_ref[...] += jnp.dot(slab, w_ref[dy, dx],
                                    preferred_element_type=jnp.float32)

    bias = b_ref[...]                                   # (1, TC), applied once
    act = jnp.maximum(acc_ref[...] + bias, 0.0)
    act3 = act.reshape(H, W, TC).astype(o_ref.dtype)

    if pad_output:
        # Emit directly in the next conv's zero-haloed layout (no host-side jnp.pad).
        o_ref[...] = jnp.zeros_like(o_ref)
        o_ref[0, 1:H + 1, 1:W + 1, :] = act3
    else:
        o_ref[0] = act3


def conv3x3_relu(x_halo, w, b, *, pad_output):
    """x_halo: (N, H+2, W+2, Cin) with a zero 1-pixel halo; w: (3,3,Cin,Cout_p);
    b: (1, Cout_p) f32; Cout_p is a multiple of 128."""
    N, Hp, Wp, Cin = x_halo.shape
    H, W = Hp - 2, Wp - 2
    Cout_p = w.shape[-1]
    TC = LANE
    n_ct = Cout_p // TC

    if pad_output:
        out_shape = jax.ShapeDtypeStruct((N, Hp, Wp, Cout_p), x_halo.dtype)
        out_spec = pl.BlockSpec((1, Hp, Wp, TC), lambda n, c: (n, 0, 0, c))
    else:
        out_shape = jax.ShapeDtypeStruct((N, H, W, Cout_p), x_halo.dtype)
        out_spec = pl.BlockSpec((1, H, W, TC), lambda n, c: (n, 0, 0, c))

    kernel = functools.partial(_conv3x3_relu_kernel, pad_output=pad_output)
    return pl.pallas_call(
        kernel,
        out_shape=out_shape,
        grid=(N, n_ct),
        in_specs=[
            pl.BlockSpec((1, Hp, Wp, Cin), lambda n, c: (n, 0, 0, 0)),
            pl.BlockSpec((3, 3, Cin, TC), lambda n, c: (0, 0, 0, c)),
            pl.BlockSpec((1, TC), lambda n, c: (0, c)),
        ],
        out_specs=out_spec,
        scratch_shapes=[pltpu.VMEM((H * W, TC), jnp.float32)],
        compiler_params=pltpu.CompilerParams(
            dimension_semantics=("parallel", "parallel")),
    )(x_halo, w, b)


# ---------------------------------------------------------------------------
# MaxPool2d(kernel_size=2, stride=2).
# Input is viewed as (N, H/2, 2, W/2, 2*C) (free metadata reshape in the wrapper):
# the height pair sits on an outer dim, the width pair is folded into the lane dim,
# so the block is fully lane-dense with no size-2 sublane dim and no strided access.
# ---------------------------------------------------------------------------
def _maxpool2x2_kernel(x_ref, o_ref):
    # x_ref: (1, H2, 2, W2, 2*C)    o_ref: (1, H2, W2, C)
    C = o_ref.shape[-1]
    v = jnp.maximum(x_ref[0, :, 0, :, :], x_ref[0, :, 1, :, :])   # height pair -> (H2, W2, 2C)
    o_ref[0] = jnp.maximum(v[..., :C], v[..., C:]).astype(o_ref.dtype)  # width pair


def maxpool2x2(x_nhwc):
    N, H, W, C = x_nhwc.shape
    H2, W2 = H // 2, W // 2
    x5 = x_nhwc.reshape(N, H2, 2, W2, 2 * C)            # metadata-only reshape
    return pl.pallas_call(
        _maxpool2x2_kernel,
        out_shape=jax.ShapeDtypeStruct((N, H2, W2, C), x_nhwc.dtype),
        grid=(N,),
        in_specs=[pl.BlockSpec((1, H2, 2, W2, 2 * C),
                               lambda n: (n, 0, 0, 0, 0))],
        out_specs=pl.BlockSpec((1, H2, W2, C), lambda n: (n, 0, 0, 0)),
        compiler_params=pltpu.CompilerParams(
            dimension_semantics=("parallel",)),
    )(x5)


# ---------------------------------------------------------------------------
# VGGBlock: parameters + forward
# ---------------------------------------------------------------------------
def init_vgg_block_params(key, num_convs, in_channels, out_channels):
    """Conv2d-style init (uniform +/- 1/sqrt(fan_in)), HWIO layout, true (unpadded) shapes."""
    params = []
    cin = in_channels
    for _ in range(num_convs):
        key, kw, kb = jax.random.split(key, 3)
        fan_in = cin * 9
        bound = 1.0 / (fan_in ** 0.5)
        w = jax.random.uniform(kw, (3, 3, cin, out_channels),
                               jnp.float32, -bound, bound)
        b = jax.random.uniform(kb, (out_channels,), jnp.float32, -bound, bound)
        params.append((w, b))
        cin = out_channels
    return params


def vgg_block_forward(x_nchw, params, compute_dtype=jnp.float32):
    """num_convs x (conv3x3 pad=1 + ReLU) followed by maxpool 2x2 stride 2 (Pallas kernels)."""
    N, _, H, W = x_nchw.shape
    # NOTE: like the reshape-based pool, this assumes even H, W (PyTorch floor mode otherwise
    # drops the last row/col).
    assert H % 2 == 0 and W % 2 == 0, "MaxPool2d(2,2) path assumes even H, W"
    out_channels = params[-1][0].shape[-1]

    x = jnp.transpose(x_nchw, (0, 2, 3, 1)).astype(compute_dtype)   # NCHW -> NHWC
    x = jnp.pad(x, ((0, 0), (1, 1), (1, 1), (0, 0)))                # halo only for layer 0

    n_layers = len(params)
    for li, (w, b) in enumerate(params):
        cin_act = x.shape[-1]                      # activation channels (128-padded for li > 0)
        cin_true, cout = w.shape[2], w.shape[3]
        cout_p = _round_up(cout, LANE)
        w_p = jnp.zeros((3, 3, cin_act, cout_p), compute_dtype)
        w_p = w_p.at[:, :, :cin_true, :cout].set(w.astype(compute_dtype))
        b_p = jnp.zeros((1, cout_p), jnp.float32).at[0, :cout].set(b)
        x = conv3x3_relu(x, w_p, b_p, pad_output=(li < n_layers - 1))

    y = maxpool2x2(x)                              # (N, H/2, W/2, Cout_p)
    y = y[..., :out_channels]
    return jnp.transpose(y, (0, 3, 1, 2))          # NHWC -> NCHW


# Pure-JAX reference for verification.
def vgg_block_reference(x_nchw, params):
    x = jnp.transpose(x_nchw, (0, 2, 3, 1))
    for w, b in params:
        x = jax.lax.conv_general_dilated(
            x, w, window_strides=(1, 1), padding="SAME",
            dimension_numbers=("NHWC", "HWIO", "NHWC"))
        x = jnp.maximum(x + b, 0.0)
    x = jax.lax.reduce_window(x, -jnp.inf, jax.lax.max,
                              (1, 2, 2, 1), (1, 2, 2, 1), "VALID")
    return jnp.transpose(x, (0, 3, 1, 2))


if __name__ == "__main__":
    key = jax.random.PRNGKey(0)
    kx, kp = jax.random.split(key)

    num_convs, in_channels, out_channels = 2, 4, 8
    batch, spatial = 2, 16

    x = jax.random.normal(kx, (batch, in_channels, spatial, spatial), jnp.float32)
    params = init_vgg_block_params(kp, num_convs, in_channels, out_channels)

    ref = vgg_block_reference(x, params)

    # float32 path
    fwd_f32 = jax.jit(functools.partial(vgg_block_forward, compute_dtype=jnp.float32))
    out = fwd_f32(x, params)
    jax.block_until_ready(out)
    assert out.shape == (batch, out_channels, spatial // 2, spatial // 2), out.shape
    err = float(jnp.max(jnp.abs(out.astype(jnp.float32) - ref)))
    assert err < 1e-3, err

    # bf16 path: half the HBM/VMEM traffic, f32 accumulation on the MXU.
    fwd_bf16 = jax.jit(functools.partial(vgg_block_forward, compute_dtype=jnp.bfloat16))
    out_bf16 = fwd_bf16(x, params)
    jax.block_until_ready(out_bf16)
    err_bf16 = float(jnp.max(jnp.abs(out_bf16.astype(jnp.float32) - ref)))
    assert err_bf16 < 1e-1, err_bf16

    print("KERNEL_OK")
</pallas_src>

<mosaic_0001>
module attributes {stable_mosaic.version = 11 : i64} {
  func.func @_conv3x3_relu_kernel(%arg0: i32, %arg1: i32, %arg2: memref<1x18x18x128xf32, #tpu.memory_space<vmem>>, %arg3: memref<3x3x128x128xf32, #tpu.memory_space<vmem>>, %arg4: memref<1x128xf32, #tpu.memory_space<vmem>>, %arg5: memref<1x16x16x128xf32, #tpu.memory_space<vmem>>, %arg6: memref<256x128xf32, #tpu.memory_space<vmem>>) attributes {dimension_semantics = [#tpu.dimension_semantics<parallel>, #tpu.dimension_semantics<parallel>], iteration_bounds = array<i64: 2, 1>, scalar_prefetch = 0 : i64, scratch_operands = 1 : i64, tpu.core_type = #tpu.core_type<tc>, window_params = [{transform_indices = @transform_0, window_bounds = array<i64: 1, 18, 18, 128>}, {transform_indices = @transform_1, window_bounds = array<i64: 3, 3, 128, 128>}, {transform_indices = @transform_2, window_bounds = array<i64: 1, 128>}, {transform_indices = @transform_3, window_bounds = array<i64: 1, 16, 16, 128>}]} {
    %cst = arith.constant 0.000000e+00 : f32
    %0 = vector.broadcast %cst : f32 to vector<256x128xf32>
    %c0 = arith.constant 0 : index
    %c0_0 = arith.constant 0 : index
    %1 = vector.load %arg6[%c0, %c0_0] : memref<256x128xf32, #tpu.memory_space<vmem>>, vector<256x128xf32>
    tpu.vector_store %arg6[%c0, %c0_0], %0 {strides = array<i32>} : memref<256x128xf32, #tpu.memory_space<vmem>>, vector<256x128xf32>,
    %c0_1 = arith.constant 0 : index
    %c0_2 = arith.constant 0 : index
    %c0_3 = arith.constant 0 : index
    %c0_4 = arith.constant 0 : index
    %2 = vector.load %arg2[%c0_1, %c0_2, %c0_3, %c0_4] : memref<1x18x18x128xf32, #tpu.memory_space<vmem>>, vector<1x16x16x128xf32>
    %3 = vector.shape_cast %2 : vector<1x16x16x128xf32> to vector<16x16x128xf32>
    %4 = vector.shape_cast %3 : vector<16x16x128xf32> to vector<256x128xf32>
    %c0_5 = arith.constant 0 : index
    %c0_6 = arith.constant 0 : index
    %5 = vector.load %arg6[%c0_5, %c0_6] : memref<256x128xf32, #tpu.memory_space<vmem>>, vector<256x128xf32>
    %c0_7 = arith.constant 0 : index
    %c0_8 = arith.constant 0 : index
    %c0_9 = arith.constant 0 : index
    %c0_10 = arith.constant 0 : index
    %6 = vector.load %arg3[%c0_7, %c0_8, %c0_9, %c0_10] : memref<3x3x128x128xf32, #tpu.memory_space<vmem>>, vector<1x1x128x128xf32>
    %7 = vector.shape_cast %6 : vector<1x1x128x128xf32> to vector<128x128xf32>
    %cst_11 = arith.constant dense<0.000000e+00> : vector<256x128xf32>
    %8 = tpu.matmul %4, %7, %cst_11 {dimension_numbers = #tpu.dot_dimension_numbers<[1], [0], [0], [1], [0, 0, 1, 1], [], []>} : vector<256x128xf32>, vector<128x128xf32>, vector<256x128xf32> -> vector<256x128xf32>
    %9 = arith.addf %5, %8 : vector<256x128xf32>
    %c0_12 = arith.constant 0 : index
    %c0_13 = arith.constant 0 : index
    %10 = vector.load %arg6[%c0_12, %c0_13] : memref<256x128xf32, #tpu.memory_space<vmem>>, vector<256x128xf32>
    tpu.vector_store %arg6[%c0_12, %c0_13], %9 {strides = array<i32>} : memref<256x128xf32, #tpu.memory_space<vmem>>, vector<256x128xf32>,
    %c0_14 = arith.constant 0 : index
    %c0_15 = arith.constant 0 : index
    %c1 = arith.constant 1 : index
    %c0_16 = arith.constant 0 : index
    %11 = vector.load %arg2[%c0_14, %c0_15, %c1, %c0_16] : memref<1x18x18x128xf32, #tpu.memory_space<vmem>>, vector<1x16x16x128xf32>
    %12 = vector.shape_cast %11 : vector<1x16x16x128xf32> to vector<16x16x128xf32>
    %13 = vector.shape_cast %12 : vector<16x16x128xf32> to vector<256x128xf32>
    %c0_17 = arith.constant 0 : index
    %c0_18 = arith.constant 0 : index
    %14 = vector.load %arg6[%c0_17, %c0_18] : memref<256x128xf32, #tpu.memory_space<vmem>>, vector<256x128xf32>
    %c0_19 = arith.constant 0 : index
    %c1_20 = arith.constant 1 : index
    %c0_21 = arith.constant 0 : index
    %c0_22 = arith.constant 0 : index
    %15 = vector.load %arg3[%c0_19, %c1_20, %c0_21, %c0_22] : memref<3x3x128x128xf32, #tpu.memory_space<vmem>>, vector<1x1x128x128xf32>
    %16 = vector.shape_cast %15 : vector<1x1x128x128xf32> to vector<128x128xf32>
    %cst_23 = arith.constant dense<0.000000e+00> : vector<256x128xf32>
    %17 = tpu.matmul %13, %16, %cst_23 {dimension_numbers = #tpu.dot_dimension_numbers<[1], [0], [0], [1], [0, 0, 1, 1], [], []>} : vector<256x128xf32>, vector<128x128xf32>, vector<256x128xf32> -> vector<256x128xf32>
    %18 = arith.addf %14, %17 : vector<256x128xf32>
    %c0_24 = arith.constant 0 : index
    %c0_25 = arith.constant 0 : index
    %19 = vector.load %arg6[%c0_24, %c0_25] : memref<256x128xf32, #tpu.memory_space<vmem>>, vector<256x128xf32>
    tpu.vector_store %arg6[%c0_24, %c0_25], %18 {strides = array<i32>} : memref<256x128xf32, #tpu.memory_space<vmem>>, vector<256x128xf32>,
    %c0_26 = arith.constant 0 : index
    %c0_27 = arith.constant 0 : index
    %c2 = arith.constant 2 : index
    %c0_28 = arith.constant 0 : index
    %20 = vector.load %arg2[%c0_26, %c0_27, %c2, %c0_28] : memref<1x18x18x128xf32, #tpu.memory_space<vmem>>, vector<1x16x16x128xf32>
    %21 = vector.shape_cast %20 : vector<1x16x16x128xf32> to vector<16x16x128xf32>
    %22 = vector.shape_cast %21 : vector<16x16x128xf32> to vector<256x128xf32>
    %c0_29 = arith.constant 0 : index
    %c0_30 = arith.constant 0 : index
    %23 = vector.load %arg6[%c0_29, %c0_30] : memref<256x128xf32, #tpu.memory_space<vmem>>, vector<256x128xf32>
    %c0_31 = arith.constant 0 : index
    %c2_32 = arith.constant 2 : index
    %c0_33 = arith.constant 0 : index
    %c0_34 = arith.constant 0 : index
    %24 = vector.load %arg3[%c0_31, %c2_32, %c0_33, %c0_34] : memref<3x3x128x128xf32, #tpu.memory_space<vmem>>, vector<1x1x128x128xf32>
    %25 = vector.shape_cast %24 : vector<1x1x128x128xf32> to vector<128x128xf32>
    %cst_35 = arith.constant dense<0.000000e+00> : vector<256x128xf32>
    %26 = tpu.matmul %22, %25, %cst_35 {dimension_numbers = #tpu.dot_dimension_numbers<[1], [0], [0], [1], [0, 0, 1, 1], [], []>} : vector<256x128xf32>, vector<128x128xf32>, vector<256x128xf32> -> vector<256x128xf32>
    %27 = arith.addf %23, %26 : vector<256x128xf32>
    %c0_36 = arith.constant 0 : index
    %c0_37 = arith.constant 0 : index
    %28 = vector.load %arg6[%c0_36, %c0_37] : memref<256x128xf32, #tpu.memory_space<vmem>>, vector<256x128xf32>
    tpu.vector_store %arg6[%c0_36, %c0_37], %27 {strides = array<i32>} : memref<256x128xf32, #tpu.memory_space<vmem>>, vector<256x128xf32>,
    %c0_38 = arith.constant 0 : index
    %c1_39 = arith.constant 1 : index
    %c0_40 = arith.constant 0 : index
    %c0_41 = arith.constant 0 : index
    %29 = vector.load %arg2[%c0_38, %c1_39, %c0_40, %c0_41] : memref<1x18x18x128xf32, #tpu.memory_space<vmem>>, vector<1x16x16x128xf32>
    %30 = vector.shape_cast %29 : vector<1x16x16x128xf32> to vector<16x16x128xf32>
    %31 = vector.shape_cast %30 : vector<16x16x128xf32> to vector<256x128xf32>
    %c0_42 = arith.constant 0 : index
    %c0_43 = arith.constant 0 : index
    %32 = vector.load %arg6[%c0_42, %c0_43] : memref<256x128xf32, #tpu.memory_space<vmem>>, vector<256x128xf32>
    %c1_44 = arith.constant 1 : index
    %c0_45 = arith.constant 0 : index
    %c0_46 = arith.constant 0 : index
    %c0_47 = arith.constant 0 : index
    %33 = vector.load %arg3[%c1_44, %c0_45, %c0_46, %c0_47] : memref<3x3x128x128xf32, #tpu.memory_space<vmem>>, vector<1x1x128x128xf32>
    %34 = vector.shape_cast %33 : vector<1x1x128x128xf32> to vector<128x128xf32>
    %cst_48 = arith.constant dense<0.000000e+00> : vector<256x128xf32>
    %35 = tpu.matmul %31, %34, %cst_48 {dimension_numbers = #tpu.dot_dimension_numbers<[1], [0], [0], [1], [0, 0, 1, 1], [], []>} : vector<256x128xf32>, vector<128x128xf32>, vector<256x128xf32> -> vector<256x128xf32>
    %36 = arith.addf %32, %35 : vector<256x128xf32>
    %c0_49 = arith.constant 0 : index
    %c0_50 = arith.constant 0 : index
    %37 = vector.load %arg6[%c0_49, %c0_50] : memref<256x128xf32, #tpu.memory_space<vmem>>, vector<256x128xf32>
    tpu.vector_store %arg6[%c0_49, %c0_50], %36 {strides = array<i32>} : memref<256x128xf32, #tpu.memory_space<vmem>>, vector<256x128xf32>,
    %c0_51 = arith.constant 0 : index
    %c1_52 = arith.constant 1 : index
    %c1_53 = arith.constant 1 : index
    %c0_54 = arith.constant 0 : index
    %38 = vector.load %arg2[%c0_51, %c1_52, %c1_53, %c0_54] : memref<1x18x18x128xf32, #tpu.memory_space<vmem>>, vector<1x16x16x128xf32>
    %39 = vector.shape_cast %38 : vector<1x16x16x128xf32> to vector<16x16x128xf32>
    %40 = vector.shape_cast %39 : vector<16x16x128xf32> to vector<256x128xf32>
    %c0_55 = arith.constant 0 : index
    %c0_56 = arith.constant 0 : index
    %41 = vector.load %arg6[%c0_55, %c0_56] : memref<256x128xf32, #tpu.memory_space<vmem>>, vector<256x128xf32>
    %c1_57 = arith.constant 1 : index
    %c1_58 = arith.constant 1 : index
    %c0_59 = arith.constant 0 : index
    %c0_60 = arith.constant 0 : index
    %42 = vector.load %arg3[%c1_57, %c1_58, %c0_59, %c0_60] : memref<3x3x128x128xf32, #tpu.memory_space<vmem>>, vector<1x1x128x128xf32>
    %43 = vector.shape_cast %42 : vector<1x1x128x128xf32> to vector<128x128xf32>
    %cst_61 = arith.constant dense<0.000000e+00> : vector<256x128xf32>
    %44 = tpu.matmul %40, %43, %cst_61 {dimension_numbers = #tpu.dot_dimension_numbers<[1], [0], [0], [1], [0, 0, 1, 1], [], []>} : vector<256x128xf32>, vector<128x128xf32>, vector<256x128xf32> -> vector<256x128xf32>
    %45 = arith.addf %41, %44 : vector<256x128xf32>
    %c0_62 = arith.constant 0 : index
    %c0_63 = arith.constant 0 : index
    %46 = vector.load %arg6[%c0_62, %c0_63] : memref<256x128xf32, #tpu.memory_space<vmem>>, vector<256x128xf32>
    tpu.vector_store %arg6[%c0_62, %c0_63], %45 {strides = array<i32>} : memref<256x128xf32, #tpu.memory_space<vmem>>, vector<256x128xf32>,
    %c0_64 = arith.constant 0 : index
    %c1_65 = arith.constant 1 : index
    %c2_66 = arith.constant 2 : index
    %c0_67 = arith.constant 0 : index
    %47 = vector.load %arg2[%c0_64, %c1_65, %c2_66, %c0_67] : memref<1x18x18x128xf32, #tpu.memory_space<vmem>>, vector<1x16x16x128xf32>
    %48 = vector.shape_cast %47 : vector<1x16x16x128xf32> to vector<16x16x128xf32>
    %49 = vector.shape_cast %48 : vector<16x16x128xf32> to vector<256x128xf32>
    %c0_68 = arith.constant 0 : index
    %c0_69 = arith.constant 0 : index
    %50 = vector.load %arg6[%c0_68, %c0_69] : memref<256x128xf32, #tpu.memory_space<vmem>>, vector<256x128xf32>
    %c1_70 = arith.constant 1 : index
    %c2_71 = arith.constant 2 : index
    %c0_72 = arith.constant 0 : index
    %c0_73 = arith.constant 0 : index
    %51 = vector.load %arg3[%c1_70, %c2_71, %c0_72, %c0_73] : memref<3x3x128x128xf32, #tpu.memory_space<vmem>>, vector<1x1x128x128xf32>
    %52 = vector.shape_cast %51 : vector<1x1x128x128xf32> to vector<128x128xf32>
    %cst_74 = arith.constant dense<0.000000e+00> : vector<256x128xf32>
    %53 = tpu.matmul %49, %52, %cst_74 {dimension_numbers = #tpu.dot_dimension_numbers<[1], [0], [0], [1], [0, 0, 1, 1], [], []>} : vector<256x128xf32>, vector<128x128xf32>, vector<256x128xf32> -> vector<256x128xf32>
    %54 = arith.addf %50, %53 : vector<256x128xf32>
    %c0_75 = arith.constant 0 : index
    %c0_76 = arith.constant 0 : index
    %55 = vector.load %arg6[%c0_75, %c0_76] : memref<256x128xf32, #tpu.memory_space<vmem>>, vector<256x128xf32>
    tpu.vector_store %arg6[%c0_75, %c0_76], %54 {strides = array<i32>} : memref<256x128xf32, #tpu.memory_space<vmem>>, vector<256x128xf32>,
    %c0_77 = arith.constant 0 : index
    %c2_78 = arith.constant 2 : index
    %c0_79 = arith.constant 0 : index
    %c0_80 = arith.constant 0 : index
    %56 = vector.load %arg2[%c0_77, %c2_78, %c0_79, %c0_80] : memref<1x18x18x128xf32, #tpu.memory_space<vmem>>, vector<1x16x16x128xf32>
    %57 = vector.shape_cast %56 : vector<1x16x16x128xf32> to vector<16x16x128xf32>
    %58 = vector.shape_cast %57 : vector<16x16x128xf32> to vector<256x128xf32>
    %c0_81 = arith.constant 0 : index
    %c0_82 = arith.constant 0 : index
    %59 = vector.load %arg6[%c0_81, %c0_82] : memref<256x128xf32, #tpu.memory_space<vmem>>, vector<256x128xf32>
    %c2_83 = arith.constant 2 : index
    %c0_84 = arith.constant 0 : index
    %c0_85 = arith.constant 0 : index
    %c0_86 = arith.constant 0 : index
    %60 = vector.load %arg3[%c2_83, %c0_84, %c0_85, %c0_86] : memref<3x3x128x128xf32, #tpu.memory_space<vmem>>, vector<1x1x128x128xf32>
    %61 = vector.shape_cast %60 : vector<1x1x128x128xf32> to vector<128x128xf32>
    %cst_87 = arith.constant dense<0.000000e+00> : vector<256x128xf32>
    %62 = tpu.matmul %58, %61, %cst_87 {dimension_numbers = #tpu.dot_dimension_numbers<[1], [0], [0], [1], [0, 0, 1, 1], [], []>} : vector<256x128xf32>, vector<128x128xf32>, vector<256x128xf32> -> vector<256x128xf32>
    %63 = arith.addf %59, %62 : vector<256x128xf32>
    %c0_88 = arith.constant 0 : index
    %c0_89 = arith.constant 0 : index
    %64 = vector.load %arg6[%c0_88, %c0_89] : memref<256x128xf32, #tpu.memory_space<vmem>>, vector<256x128xf32>
    tpu.vector_store %arg6[%c0_88, %c0_89], %63 {strides = array<i32>} : memref<256x128xf32, #tpu.memory_space<vmem>>, vector<256x128xf32>,
    %c0_90 = arith.constant 0 : index
    %c2_91 = arith.constant 2 : index
    %c1_92 = arith.constant 1 : index
    %c0_93 = arith.constant 0 : index
    %65 = vector.load %arg2[%c0_90, %c2_91, %c1_92, %c0_93] : memref<1x18x18x128xf32, #tpu.memory_space<vmem>>, vector<1x16x16x128xf32>
    %66 = vector.shape_cast %65 : vector<1x16x16x128xf32> to vector<16x16x128xf32>
    %67 = vector.shape_cast %66 : vector<16x16x128xf32> to vector<256x128xf32>
    %c0_94 = arith.constant 0 : index
    %c0_95 = arith.constant 0 : index
    %68 = vector.load %arg6[%c0_94, %c0_95] : memref<256x128xf32, #tpu.memory_space<vmem>>, vector<256x128xf32>
    %c2_96 = arith.constant 2 : index
    %c1_97 = arith.constant 1 : index
    %c0_98 = arith.constant 0 : index
    %c0_99 = arith.constant 0 : index
    %69 = vector.load %arg3[%c2_96, %c1_97, %c0_98, %c0_99] : memref<3x3x128x128xf32, #tpu.memory_space<vmem>>, vector<1x1x128x128xf32>
    %70 = vector.shape_cast %69 : vector<1x1x128x128xf32> to vector<128x128xf32>
    %cst_100 = arith.constant dense<0.000000e+00> : vector<256x128xf32>
    %71 = tpu.matmul %67, %70, %cst_100 {dimension_numbers = #tpu.dot_dimension_numbers<[1], [0], [0], [1], [0, 0, 1, 1], [], []>} : vector<256x128xf32>, vector<128x128xf32>, vector<256x128xf32> -> vector<256x128xf32>
    %72 = arith.addf %68, %71 : vector<256x128xf32>
    %c0_101 = arith.constant 0 : index
    %c0_102 = arith.constant 0 : index
    %73 = vector.load %arg6[%c0_101, %c0_102] : memref<256x128xf32, #tpu.memory_space<vmem>>, vector<256x128xf32>
    tpu.vector_store %arg6[%c0_101, %c0_102], %72 {strides = array<i32>} : memref<256x128xf32, #tpu.memory_space<vmem>>, vector<256x128xf32>,
    %c0_103 = arith.constant 0 : index
    %c2_104 = arith.constant 2 : index
    %c2_105 = arith.constant 2 : index
    %c0_106 = arith.constant 0 : index
    %74 = vector.load %arg2[%c0_103, %c2_104, %c2_105, %c0_106] : memref<1x18x18x128xf32, #tpu.memory_space<vmem>>, vector<1x16x16x128xf32>
    %75 = vector.shape_cast %74 : vector<1x16x16x128xf32> to vector<16x16x128xf32>
    %76 = vector.shape_cast %75 : vector<16x16x128xf32> to vector<256x128xf32>
    %c0_107 = arith.constant 0 : index
    %c0_108 = arith.constant 0 : index
    %77 = vector.load %arg6[%c0_107, %c0_108] : memref<256x128xf32, #tpu.memory_space<vmem>>, vector<256x128xf32>
    %c2_109 = arith.constant 2 : index
    %c2_110 = arith.constant 2 : index
    %c0_111 = arith.constant 0 : index
    %c0_112 = arith.constant 0 : index
    %78 = vector.load %arg3[%c2_109, %c2_110, %c0_111, %c0_112] : memref<3x3x128x128xf32, #tpu.memory_space<vmem>>, vector<1x1x128x128xf32>
    %79 = vector.shape_cast %78 : vector<1x1x128x128xf32> to vector<128x128xf32>
    %cst_113 = arith.constant dense<0.000000e+00> : vector<256x128xf32>
    %80 = tpu.matmul %76, %79, %cst_113 {dimension_numbers = #tpu.dot_dimension_numbers<[1], [0], [0], [1], [0, 0, 1, 1], [], []>} : vector<256x128xf32>, vector<128x128xf32>, vector<256x128xf32> -> vector<256x128xf32>
    %81 = arith.addf %77, %80 : vector<256x128xf32>
    %c0_114 = arith.constant 0 : index
    %c0_115 = arith.constant 0 : index
    %82 = vector.load %arg6[%c0_114, %c0_115] : memref<256x128xf32, #tpu.memory_space<vmem>>, vector<256x128xf32>
    tpu.vector_store %arg6[%c0_114, %c0_115], %81 {strides = array<i32>} : memref<256x128xf32, #tpu.memory_space<vmem>>, vector<256x128xf32>,
    %c0_116 = arith.constant 0 : index
    %c0_117 = arith.constant 0 : index
    %83 = vector.load %arg4[%c0_116, %c0_117] : memref<1x128xf32, #tpu.memory_space<vmem>>, vector<1x128xf32>
    %c0_118 = arith.constant 0 : index
    %c0_119 = arith.constant 0 : index
    %84 = vector.load %arg6[%c0_118, %c0_119] : memref<256x128xf32, #tpu.memory_space<vmem>>, vector<256x128xf32>
    %85 = vector.broadcast %83 : vector<1x128xf32> to vector<256x128xf32>
    %86 = arith.addf %84, %85 : vector<256x128xf32>
    %cst_120 = arith.constant 0.000000e+00 : f32
    %87 = vector.broadcast %cst_120 : f32 to vector<256x128xf32>
    %88 = arith.maximumf %86, %87 : vector<256x128xf32>
    %89 = vector.shape_cast %88 : vector<256x128xf32> to vector<16x16x128xf32>
    %c0_121 = arith.constant 0 : index
    %c0_122 = arith.constant 0 : index
    %c0_123 = arith.constant 0 : index
    %c0_124 = arith.constant 0 : index
    %90 = vector.load %arg5[%c0_121, %c0_122, %c0_123, %c0_124] : memref<1x16x16x128xf32, #tpu.memory_space<vmem>>, vector<1x16x16x128xf32>
    %91 = vector.shape_cast %90 : vector<1x16x16x128xf32> to vector<16x16x128xf32>
    %92 = vector.shape_cast %89 : vector<16x16x128xf32> to vector<1x16x16x128xf32>
    tpu.vector_store %arg5[%c0_121, %c0_122, %c0_123, %c0_124], %92 {strides = array<i32>} : memref<1x16x16x128xf32, #tpu.memory_space<vmem>>, vector<1x16x16x128xf32>,
    return
  }
  func.func @transform_0(%arg0: i32, %arg1: i32) -> (i32, i32, i32, i32) {
    %c0_i32 = arith.constant 0 : i32
    %c0_i32_0 = arith.constant 0 : i32
    %c0_i32_1 = arith.constant 0 : i32
    %c0_i32_2 = arith.constant 0 : i32
    return %arg0, %c0_i32, %c0_i32_0, %c0_i32_1 : i32, i32, i32, i32
  }
  func.func @transform_1(%arg0: i32, %arg1: i32) -> (i32, i32, i32, i32) {
    %c0_i32 = arith.constant 0 : i32
    %c0_i32_0 = arith.constant 0 : i32
    %c0_i32_1 = arith.constant 0 : i32
    %c0_i32_2 = arith.constant 0 : i32
    return %c0_i32, %c0_i32_0, %c0_i32_1, %arg1 : i32, i32, i32, i32
  }
  func.func @transform_2(%arg0: i32, %arg1: i32) -> (i32, i32) {
    %c0_i32 = arith.constant 0 : i32
    %c0_i32_0 = arith.constant 0 : i32
    return %c0_i32, %arg1 : i32, i32
  }
  func.func @transform_3(%arg0: i32, %arg1: i32) -> (i32, i32, i32, i32) {
    %c0_i32 = arith.constant 0 : i32
    %c0_i32_0 = arith.constant 0 : i32
    %c0_i32_1 = arith.constant 0 : i32
    return %arg0, %c0_i32, %c0_i32_0, %arg1 : i32, i32, i32, i32
  }
}

module attributes {stable_mosaic.version = 11 : i64} {
  func.func @_conv3x3_relu_kernel(%arg0: i32, %arg1: i32, %arg2: memref<1x18x18x4xf32, #tpu.memory_space<vmem>>, %arg3: memref<3x3x4x128xf32, #tpu.memory_space<vmem>>, %arg4: memref<1x128xf32, #tpu.memory_space<vmem>>, %arg5: memref<1x18x18x128xf32, #tpu.memory_space<vmem>>, %arg6: memref<256x128xf32, #tpu.memory_space<vmem>>) attributes {dimension_semantics = [#tpu.dimension_semantics<parallel>, #tpu.dimension_semantics<parallel>], iteration_bounds = array<i64: 2, 1>, scalar_prefetch = 0 : i64, scratch_operands = 1 : i64, tpu.core_type = #tpu.core_type<tc>, window_params = [{transform_indices = @transform_0, window_bounds = array<i64: 1, 18, 18, 4>}, {transform_indices = @transform_1, window_bounds = array<i64: 3, 3, 4, 128>}, {transform_indices = @transform_2, window_bounds = array<i64: 1, 128>}, {transform_indices = @transform_3, window_bounds = array<i64: 1, 18, 18, 128>}]} {
    %cst = arith.constant 0.000000e+00 : f32
    %0 = vector.broadcast %cst : f32 to vector<256x128xf32>
    %c0 = arith.constant 0 : index
    %c0_0 = arith.constant 0 : index
    %1 = vector.load %arg6[%c0, %c0_0] : memref<256x128xf32, #tpu.memory_space<vmem>>, vector<256x128xf32>
    tpu.vector_store %arg6[%c0, %c0_0], %0 {strides = array<i32>} : memref<256x128xf32, #tpu.memory_space<vmem>>, vector<256x128xf32>,
    %c0_1 = arith.constant 0 : index
    %c0_2 = arith.constant 0 : index
    %c0_3 = arith.constant 0 : index
    %c0_4 = arith.constant 0 : index
    %2 = vector.load %arg2[%c0_1, %c0_2, %c0_3, %c0_4] : memref<1x18x18x4xf32, #tpu.memory_space<vmem>>, vector<1x16x16x4xf32>
    %3 = vector.shape_cast %2 : vector<1x16x16x4xf32> to vector<16x16x4xf32>
    %4 = vector.shape_cast %3 : vector<16x16x4xf32> to vector<256x4xf32>
    %c0_5 = arith.constant 0 : index
    %c0_6 = arith.constant 0 : index
    %5 = vector.load %arg6[%c0_5, %c0_6] : memref<256x128xf32, #tpu.memory_space<vmem>>, vector<256x128xf32>
    %c0_7 = arith.constant 0 : index
    %c0_8 = arith.constant 0 : index
    %c0_9 = arith.constant 0 : index
    %c0_10 = arith.constant 0 : index
    %6 = vector.load %arg3[%c0_7, %c0_8, %c0_9, %c0_10] : memref<3x3x4x128xf32, #tpu.memory_space<vmem>>, vector<1x1x4x128xf32>
    %7 = vector.shape_cast %6 : vector<1x1x4x128xf32> to vector<4x128xf32>
    %cst_11 = arith.constant dense<0.000000e+00> : vector<256x128xf32>
    %8 = tpu.matmul %4, %7, %cst_11 {dimension_numbers = #tpu.dot_dimension_numbers<[1], [0], [0], [1], [0, 0, 1, 1], [], []>} : vector<256x4xf32>, vector<4x128xf32>, vector<256x128xf32> -> vector<256x128xf32>
    %9 = arith.addf %5, %8 : vector<256x128xf32>
    %c0_12 = arith.constant 0 : index
    %c0_13 = arith.constant 0 : index
    %10 = vector.load %arg6[%c0_12, %c0_13] : memref<256x128xf32, #tpu.memory_space<vmem>>, vector<256x128xf32>
    tpu.vector_store %arg6[%c0_12, %c0_13], %9 {strides = array<i32>} : memref<256x128xf32, #tpu.memory_space<vmem>>, vector<256x128xf32>,
    %c0_14 = arith.constant 0 : index
    %c0_15 = arith.constant 0 : index
    %c1 = arith.constant 1 : index
    %c0_16 = arith.constant 0 : index
    %11 = vector.load %arg2[%c0_14, %c0_15, %c1, %c0_16] : memref<1x18x18x4xf32, #tpu.memory_space<vmem>>, vector<1x16x16x4xf32>
    %12 = vector.shape_cast %11 : vector<1x16x16x4xf32> to vector<16x16x4xf32>
    %13 = vector.shape_cast %12 : vector<16x16x4xf32> to vector<256x4xf32>
    %c0_17 = arith.constant 0 : index
    %c0_18 = arith.constant 0 : index
    %14 = vector.load %arg6[%c0_17, %c0_18] : memref<256x128xf32, #tpu.memory_space<vmem>>, vector<256x128xf32>
    %c0_19 = arith.constant 0 : index
    %c1_20 = arith.constant 1 : index
    %c0_21 = arith.constant 0 : index
    %c0_22 = arith.constant 0 : index
    %15 = vector.load %arg3[%c0_19, %c1_20, %c0_21, %c0_22] : memref<3x3x4x128xf32, #tpu.memory_space<vmem>>, vector<1x1x4x128xf32>
    %16 = vector.shape_cast %15 : vector<1x1x4x128xf32> to vector<4x128xf32>
    %cst_23 = arith.constant dense<0.000000e+00> : vector<256x128xf32>
    %17 = tpu.matmul %13, %16, %cst_23 {dimension_numbers = #tpu.dot_dimension_numbers<[1], [0], [0], [1], [0, 0, 1, 1], [], []>} : vector<256x4xf32>, vector<4x128xf32>, vector<256x128xf32> -> vector<256x128xf32>
    %18 = arith.addf %14, %17 : vector<256x128xf32>
    %c0_24 = arith.constant 0 : index
    %c0_25 = arith.constant 0 : index
    %19 = vector.load %arg6[%c0_24, %c0_25] : memref<256x128xf32, #tpu.memory_space<vmem>>, vector<256x128xf32>
    tpu.vector_store %arg6[%c0_24, %c0_25], %18 {strides = array<i32>} : memref<256x128xf32, #tpu.memory_space<vmem>>, vector<256x128xf32>,
    %c0_26 = arith.constant 0 : index
    %c0_27 = arith.constant 0 : index
    %c2 = arith.constant 2 : index
    %c0_28 = arith.constant 0 : index
    %20 = vector.load %arg2[%c0_26, %c0_27, %c2, %c0_28] : memref<1x18x18x4xf32, #tpu.memory_space<vmem>>, vector<1x16x16x4xf32>
    %21 = vector.shape_cast %20 : vector<1x16x16x4xf32> to vector<16x16x4xf32>
    %22 = vector.shape_cast %21 : vector<16x16x4xf32> to vector<256x4xf32>
    %c0_29 = arith.constant 0 : index
    %c0_30 = arith.constant 0 : index
    %23 = vector.load %arg6[%c0_29, %c0_30] : memref<256x128xf32, #tpu.memory_space<vmem>>, vector<256x128xf32>
    %c0_31 = arith.constant 0 : index
    %c2_32 = arith.constant 2 : index
    %c0_33 = arith.constant 0 : index
    %c0_34 = arith.constant 0 : index
    %24 = vector.load %arg3[%c0_31, %c2_32, %c0_33, %c0_34] : memref<3x3x4x128xf32, #tpu.memory_space<vmem>>, vector<1x1x4x128xf32>
    %25 = vector.shape_cast %24 : vector<1x1x4x128xf32> to vector<4x128xf32>
    %cst_35 = arith.constant dense<0.000000e+00> : vector<256x128xf32>
    %26 = tpu.matmul %22, %25, %cst_35 {dimension_numbers = #tpu.dot_dimension_numbers<[1], [0], [0], [1], [0, 0, 1, 1], [], []>} : vector<256x4xf32>, vector<4x128xf32>, vector<256x128xf32> -> vector<256x128xf32>
    %27 = arith.addf %23, %26 : vector<256x128xf32>
    %c0_36 = arith.constant 0 : index
    %c0_37 = arith.constant 0 : index
    %28 = vector.load %arg6[%c0_36, %c0_37] : memref<256x128xf32, #tpu.memory_space<vmem>>, vector<256x128xf32>
    tpu.vector_store %arg6[%c0_36, %c0_37], %27 {strides = array<i32>} : memref<256x128xf32, #tpu.memory_space<vmem>>, vector<256x128xf32>,
    %c0_38 = arith.constant 0 : index
    %c1_39 = arith.constant 1 : index
    %c0_40 = arith.constant 0 : index
    %c0_41 = arith.constant 0 : index
    %29 = vector.load %arg2[%c0_38, %c1_39, %c0_40, %c0_41] : memref<1x18x18x4xf32, #tpu.memory_space<vmem>>, vector<1x16x16x4xf32>
    %30 = vector.shape_cast %29 : vector<1x16x16x4xf32> to vector<16x16x4xf32>
    %31 = vector.shape_cast %30 : vector<16x16x4xf32> to vector<256x4xf32>
    %c0_42 = arith.constant 0 : index
    %c0_43 = arith.constant 0 : index
    %32 = vector.load %arg6[%c0_42, %c0_43] : memref<256x128xf32, #tpu.memory_space<vmem>>, vector<256x128xf32>
    %c1_44 = arith.constant 1 : index
    %c0_45 = arith.constant 0 : index
    %c0_46 = arith.constant 0 : index
    %c0_47 = arith.constant 0 : index
    %33 = vector.load %arg3[%c1_44, %c0_45, %c0_46, %c0_47] : memref<3x3x4x128xf32, #tpu.memory_space<vmem>>, vector<1x1x4x128xf32>
    %34 = vector.shape_cast %33 : vector<1x1x4x128xf32> to vector<4x128xf32>
    %cst_48 = arith.constant dense<0.000000e+00> : vector<256x128xf32>
    %35 = tpu.matmul %31, %34, %cst_48 {dimension_numbers = #tpu.dot_dimension_numbers<[1], [0], [0], [1], [0, 0, 1, 1], [], []>} : vector<256x4xf32>, vector<4x128xf32>, vector<256x128xf32> -> vector<256x128xf32>
    %36 = arith.addf %32, %35 : vector<256x128xf32>
    %c0_49 = arith.constant 0 : index
    %c0_50 = arith.constant 0 : index
    %37 = vector.load %arg6[%c0_49, %c0_50] : memref<256x128xf32, #tpu.memory_space<vmem>>, vector<256x128xf32>
    tpu.vector_store %arg6[%c0_49, %c0_50], %36 {strides = array<i32>} : memref<256x128xf32, #tpu.memory_space<vmem>>, vector<256x128xf32>,
    %c0_51 = arith.constant 0 : index
    %c1_52 = arith.constant 1 : index
    %c1_53 = arith.constant 1 : index
    %c0_54 = arith.constant 0 : index
    %38 = vector.load %arg2[%c0_51, %c1_52, %c1_53, %c0_54] : memref<1x18x18x4xf32, #tpu.memory_space<vmem>>, vector<1x16x16x4xf32>
    %39 = vector.shape_cast %38 : vector<1x16x16x4xf32> to vector<16x16x4xf32>
    %40 = vector.shape_cast %39 : vector<16x16x4xf32> to vector<256x4xf32>
    %c0_55 = arith.constant 0 : index
    %c0_56 = arith.constant 0 : index
    %41 = vector.load %arg6[%c0_55, %c0_56] : memref<256x128xf32, #tpu.memory_space<vmem>>, vector<256x128xf32>
    %c1_57 = arith.constant 1 : index
    %c1_58 = arith.constant 1 : index
    %c0_59 = arith.constant 0 : index
    %c0_60 = arith.constant 0 : index
    %42 = vector.load %arg3[%c1_57, %c1_58, %c0_59, %c0_60] : memref<3x3x4x128xf32, #tpu.memory_space<vmem>>, vector<1x1x4x128xf32>
    %43 = vector.shape_cast %42 : vector<1x1x4x128xf32> to vector<4x128xf32>
    %cst_61 = arith.constant dense<0.000000e+00> : vector<256x128xf32>
    %44 = tpu.matmul %40, %43, %cst_61 {dimension_numbers = #tpu.dot_dimension_numbers<[1], [0], [0], [1], [0, 0, 1, 1], [], []>} : vector<256x4xf32>, vector<4x128xf32>, vector<256x128xf32> -> vector<256x128xf32>
    %45 = arith.addf %41, %44 : vector<256x128xf32>
    %c0_62 = arith.constant 0 : index
    %c0_63 = arith.constant 0 : index
    %46 = vector.load %arg6[%c0_62, %c0_63] : memref<256x128xf32, #tpu.memory_space<vmem>>, vector<256x128xf32>
    tpu.vector_store %arg6[%c0_62, %c0_63], %45 {strides = array<i32>} : memref<256x128xf32, #tpu.memory_space<vmem>>, vector<256x128xf32>,
    %c0_64 = arith.constant 0 : index
    %c1_65 = arith.constant 1 : index
    %c2_66 = arith.constant 2 : index
    %c0_67 = arith.constant 0 : index
    %47 = vector.load %arg2[%c0_64, %c1_65, %c2_66, %c0_67] : memref<1x18x18x4xf32, #tpu.memory_space<vmem>>, vector<1x16x16x4xf32>
    %48 = vector.shape_cast %47 : vector<1x16x16x4xf32> to vector<16x16x4xf32>
    %49 = vector.shape_cast %48 : vector<16x16x4xf32> to vector<256x4xf32>
    %c0_68 = arith.constant 0 : index
    %c0_69 = arith.constant 0 : index
    %50 = vector.load %arg6[%c0_68, %c0_69] : memref<256x128xf32, #tpu.memory_space<vmem>>, vector<256x128xf32>
    %c1_70 = arith.constant 1 : index
    %c2_71 = arith.constant 2 : index
    %c0_72 = arith.constant 0 : index
    %c0_73 = arith.constant 0 : index
    %51 = vector.load %arg3[%c1_70, %c2_71, %c0_72, %c0_73] : memref<3x3x4x128xf32, #tpu.memory_space<vmem>>, vector<1x1x4x128xf32>
    %52 = vector.shape_cast %51 : vector<1x1x4x128xf32> to vector<4x128xf32>
    %cst_74 = arith.constant dense<0.000000e+00> : vector<256x128xf32>
    %53 = tpu.matmul %49, %52, %cst_74 {dimension_numbers = #tpu.dot_dimension_numbers<[1], [0], [0], [1], [0, 0, 1, 1], [], []>} : vector<256x4xf32>, vector<4x128xf32>, vector<256x128xf32> -> vector<256x128xf32>
    %54 = arith.addf %50, %53 : vector<256x128xf32>
    %c0_75 = arith.constant 0 : index
    %c0_76 = arith.constant 0 : index
    %55 = vector.load %arg6[%c0_75, %c0_76] : memref<256x128xf32, #tpu.memory_space<vmem>>, vector<256x128xf32>
    tpu.vector_store %arg6[%c0_75, %c0_76], %54 {strides = array<i32>} : memref<256x128xf32, #tpu.memory_space<vmem>>, vector<256x128xf32>,
    %c0_77 = arith.constant 0 : index
    %c2_78 = arith.constant 2 : index
    %c0_79 = arith.constant 0 : index
    %c0_80 = arith.constant 0 : index
    %56 = vector.load %arg2[%c0_77, %c2_78, %c0_79, %c0_80] : memref<1x18x18x4xf32, #tpu.memory_space<vmem>>, vector<1x16x16x4xf32>
    %57 = vector.shape_cast %56 : vector<1x16x16x4xf32> to vector<16x16x4xf32>
    %58 = vector.shape_cast %57 : vector<16x16x4xf32> to vector<256x4xf32>
    %c0_81 = arith.constant 0 : index
    %c0_82 = arith.constant 0 : index
    %59 = vector.load %arg6[%c0_81, %c0_82] : memref<256x128xf32, #tpu.memory_space<vmem>>, vector<256x128xf32>
    %c2_83 = arith.constant 2 : index
    %c0_84 = arith.constant 0 : index
    %c0_85 = arith.constant 0 : index
    %c0_86 = arith.constant 0 : index
    %60 = vector.load %arg3[%c2_83, %c0_84, %c0_85, %c0_86] : memref<3x3x4x128xf32, #tpu.memory_space<vmem>>, vector<1x1x4x128xf32>
    %61 = vector.shape_cast %60 : vector<1x1x4x128xf32> to vector<4x128xf32>
    %cst_87 = arith.constant dense<0.000000e+00> : vector<256x128xf32>
    %62 = tpu.matmul %58, %61, %cst_87 {dimension_numbers = #tpu.dot_dimension_numbers<[1], [0], [0], [1], [0, 0, 1, 1], [], []>} : vector<256x4xf32>, vector<4x128xf32>, vector<256x128xf32> -> vector<256x128xf32>
    %63 = arith.addf %59, %62 : vector<256x128xf32>
    %c0_88 = arith.constant 0 : index
    %c0_89 = arith.constant 0 : index
    %64 = vector.load %arg6[%c0_88, %c0_89] : memref<256x128xf32, #tpu.memory_space<vmem>>, vector<256x128xf32>
    tpu.vector_store %arg6[%c0_88, %c0_89], %63 {strides = array<i32>} : memref<256x128xf32, #tpu.memory_space<vmem>>, vector<256x128xf32>,
    %c0_90 = arith.constant 0 : index
    %c2_91 = arith.constant 2 : index
    %c1_92 = arith.constant 1 : index
    %c0_93 = arith.constant 0 : index
    %65 = vector.load %arg2[%c0_90, %c2_91, %c1_92, %c0_93] : memref<1x18x18x4xf32, #tpu.memory_space<vmem>>, vector<1x16x16x4xf32>
    %66 = vector.shape_cast %65 : vector<1x16x16x4xf32> to vector<16x16x4xf32>
    %67 = vector.shape_cast %66 : vector<16x16x4xf32> to vector<256x4xf32>
    %c0_94 = arith.constant 0 : index
    %c0_95 = arith.constant 0 : index
    %68 = vector.load %arg6[%c0_94, %c0_95] : memref<256x128xf32, #tpu.memory_space<vmem>>, vector<256x128xf32>
    %c2_96 = arith.constant 2 : index
    %c1_97 = arith.constant 1 : index
    %c0_98 = arith.constant 0 : index
    %c0_99 = arith.constant 0 : index
    %69 = vector.load %arg3[%c2_96, %c1_97, %c0_98, %c0_99] : memref<3x3x4x128xf32, #tpu.memory_space<vmem>>, vector<1x1x4x128xf32>
    %70 = vector.shape_cast %69 : vector<1x1x4x128xf32> to vector<4x128xf32>
    %cst_100 = arith.constant dense<0.000000e+00> : vector<256x128xf32>
    %71 = tpu.matmul %67, %70, %cst_100 {dimension_numbers = #tpu.dot_dimension_numbers<[1], [0], [0], [1], [0, 0, 1, 1], [], []>} : vector<256x4xf32>, vector<4x128xf32>, vector<256x128xf32> -> vector<256x128xf32>
    %72 = arith.addf %68, %71 : vector<256x128xf32>
    %c0_101 = arith.constant 0 : index
    %c0_102 = arith.constant 0 : index
    %73 = vector.load %arg6[%c0_101, %c0_102] : memref<256x128xf32, #tpu.memory_space<vmem>>, vector<256x128xf32>
    tpu.vector_store %arg6[%c0_101, %c0_102], %72 {strides = array<i32>} : memref<256x128xf32, #tpu.memory_space<vmem>>, vector<256x128xf32>,
    %c0_103 = arith.constant 0 : index
    %c2_104 = arith.constant 2 : index
    %c2_105 = arith.constant 2 : index
    %c0_106 = arith.constant 0 : index
    %74 = vector.load %arg2[%c0_103, %c2_104, %c2_105, %c0_106] : memref<1x18x18x4xf32, #tpu.memory_space<vmem>>, vector<1x16x16x4xf32>
    %75 = vector.shape_cast %74 : vector<1x16x16x4xf32> to vector<16x16x4xf32>
    %76 = vector.shape_cast %75 : vector<16x16x4xf32> to vector<256x4xf32>
    %c0_107 = arith.constant 0 : index
    %c0_108 = arith.constant 0 : index
    %77 = vector.load %arg6[%c0_107, %c0_108] : memref<256x128xf32, #tpu.memory_space<vmem>>, vector<256x128xf32>
    %c2_109 = arith.constant 2 : index
    %c2_110 = arith.constant 2 : index
    %c0_111 = arith.constant 0 : index
    %c0_112 = arith.constant 0 : index
    %78 = vector.load %arg3[%c2_109, %c2_110, %c0_111, %c0_112] : memref<3x3x4x128xf32, #tpu.memory_space<vmem>>, vector<1x1x4x128xf32>
    %79 = vector.shape_cast %78 : vector<1x1x4x128xf32> to vector<4x128xf32>
    %cst_113 = arith.constant dense<0.000000e+00> : vector<256x128xf32>
    %80 = tpu.matmul %76, %79, %cst_113 {dimension_numbers = #tpu.dot_dimension_numbers<[1], [0], [0], [1], [0, 0, 1, 1], [], []>} : vector<256x4xf32>, vector<4x128xf32>, vector<256x128xf32> -> vector<256x128xf32>
    %81 = arith.addf %77, %80 : vector<256x128xf32>
    %c0_114 = arith.constant 0 : index
    %c0_115 = arith.constant 0 : index
    %82 = vector.load %arg6[%c0_114, %c0_115] : memref<256x128xf32, #tpu.memory_space<vmem>>, vector<256x128xf32>
    tpu.vector_store %arg6[%c0_114, %c0_115], %81 {strides = array<i32>} : memref<256x128xf32, #tpu.memory_space<vmem>>, vector<256x128xf32>,
    %c0_116 = arith.constant 0 : index
    %c0_117 = arith.constant 0 : index
    %83 = vector.load %arg4[%c0_116, %c0_117] : memref<1x128xf32, #tpu.memory_space<vmem>>, vector<1x128xf32>
    %c0_118 = arith.constant 0 : index
    %c0_119 = arith.constant 0 : index
    %84 = vector.load %arg6[%c0_118, %c0_119] : memref<256x128xf32, #tpu.memory_space<vmem>>, vector<256x128xf32>
    %85 = vector.broadcast %83 : vector<1x128xf32> to vector<256x128xf32>
    %86 = arith.addf %84, %85 : vector<256x128xf32>
    %cst_120 = arith.constant 0.000000e+00 : f32
    %87 = vector.broadcast %cst_120 : f32 to vector<256x128xf32>
    %88 = arith.maximumf %86, %87 : vector<256x128xf32>
    %89 = vector.shape_cast %88 : vector<256x128xf32> to vector<16x16x128xf32>
    %cst_121 = arith.constant 0.000000e+00 : f32
    %90 = vector.broadcast %cst_121 : f32 to vector<1x18x18x128xf32>
    %c0_122 = arith.constant 0 : index
    %c0_123 = arith.constant 0 : index
    %c0_124 = arith.constant 0 : index
    %c0_125 = arith.constant 0 : index
    %91 = vector.load %arg5[%c0_122, %c0_123, %c0_124, %c0_125] : memref<1x18x18x128xf32, #tpu.memory_space<vmem>>, vector<1x18x18x128xf32>
    tpu.vector_store %arg5[%c0_122, %c0_123, %c0_124, %c0_125], %90 {strides = array<i32>} : memref<1x18x18x128xf32, #tpu.memory_space<vmem>>, vector<1x18x18x128xf32>,
    %c0_126 = arith.constant 0 : index
    %c1_127 = arith.constant 1 : index
    %c1_128 = arith.constant 1 : index
    %c0_129 = arith.constant 0 : index
    %92 = vector.load %arg5[%c0_126, %c1_127, %c1_128, %c0_129] : memref<1x18x18x128xf32, #tpu.memory_space<vmem>>, vector<1x16x16x128xf32>
    %93 = vector.shape_cast %92 : vector<1x16x16x128xf32> to vector<16x16x128xf32>
    %94 = vector.shape_cast %89 : vector<16x16x128xf32> to vector<1x16x16x128xf32>
    tpu.vector_store %arg5[%c0_126, %c1_127, %c1_128, %c0_129], %94 {strides = array<i32>} : memref<1x18x18x128xf32, #tpu.memory_space<vmem>>, vector<1x16x16x128xf32>,
    return
  }
  func.func @transform_0(%arg0: i32, %arg1: i32) -> (i32, i32, i32, i32) {
    %c0_i32 = arith.constant 0 : i32
    %c0_i32_0 = arith.constant 0 : i32
    %c0_i32_1 = arith.constant 0 : i32
    %c0_i32_2 = arith.constant 0 : i32
    return %arg0, %c0_i32, %c0_i32_0, %c0_i32_1 : i32, i32, i32, i32
  }
  func.func @transform_1(%arg0: i32, %arg1: i32) -> (i32, i32, i32, i32) {
    %c0_i32 = arith.constant 0 : i32
    %c0_i32_0 = arith.constant 0 : i32
    %c0_i32_1 = arith.constant 0 : i32
    %c0_i32_2 = arith.constant 0 : i32
    return %c0_i32, %c0_i32_0, %c0_i32_1, %arg1 : i32, i32, i32, i32
  }
  func.func @transform_2(%arg0: i32, %arg1: i32) -> (i32, i32) {
    %c0_i32 = arith.constant 0 : i32
    %c0_i32_0 = arith.constant 0 : i32
    return %c0_i32, %arg1 : i32, i32
  }
  func.func @transform_3(%arg0: i32, %arg1: i32) -> (i32, i32, i32, i32) {
    %c0_i32 = arith.constant 0 : i32
    %c0_i32_0 = arith.constant 0 : i32
    %c0_i32_1 = arith.constant 0 : i32
    return %arg0, %c0_i32, %c0_i32_0, %arg1 : i32, i32, i32, i32
  }
}

module attributes {stable_mosaic.version = 11 : i64} {
  func.func @_maxpool2x2_kernel(%arg0: i32, %arg1: memref<1x8x2x8x256xf32, #tpu.memory_space<vmem>>, %arg2: memref<1x8x8x128xf32, #tpu.memory_space<vmem>>) attributes {dimension_semantics = [#tpu.dimension_semantics<parallel>], iteration_bounds = array<i64: 2>, scalar_prefetch = 0 : i64, scratch_operands = 0 : i64, tpu.core_type = #tpu.core_type<tc>, window_params = [{transform_indices = @transform_0, window_bounds = array<i64: 1, 8, 2, 8, 256>}, {transform_indices = @transform_1, window_bounds = array<i64: 1, 8, 8, 128>}]} {
    %c0 = arith.constant 0 : index
    %c0_0 = arith.constant 0 : index
    %c0_1 = arith.constant 0 : index
    %c0_2 = arith.constant 0 : index
    %c0_3 = arith.constant 0 : index
    %0 = vector.load %arg1[%c0, %c0_0, %c0_1, %c0_2, %c0_3] : memref<1x8x2x8x256xf32, #tpu.memory_space<vmem>>, vector<1x8x1x8x256xf32>
    %1 = vector.shape_cast %0 : vector<1x8x1x8x256xf32> to vector<8x8x256xf32>
    %c0_4 = arith.constant 0 : index
    %c0_5 = arith.constant 0 : index
    %c1 = arith.constant 1 : index
    %c0_6 = arith.constant 0 : index
    %c0_7 = arith.constant 0 : index
    %2 = vector.load %arg1[%c0_4, %c0_5, %c1, %c0_6, %c0_7] : memref<1x8x2x8x256xf32, #tpu.memory_space<vmem>>, vector<1x8x1x8x256xf32>
    %3 = vector.shape_cast %2 : vector<1x8x1x8x256xf32> to vector<8x8x256xf32>
    %4 = arith.maximumf %1, %3 : vector<8x8x256xf32>
    %5 = vector.extract_strided_slice %4 {offsets = [0, 0, 0], sizes = [8, 8, 128], strides = [1, 1, 1]} : vector<8x8x256xf32> to vector<8x8x128xf32>
    %6 = vector.extract_strided_slice %4 {offsets = [0, 0, 128], sizes = [8, 8, 128], strides = [1, 1, 1]} : vector<8x8x256xf32> to vector<8x8x128xf32>
    %7 = arith.maximumf %5, %6 : vector<8x8x128xf32>
    %c0_8 = arith.constant 0 : index
    %c0_9 = arith.constant 0 : index
    %c0_10 = arith.constant 0 : index
    %c0_11 = arith.constant 0 : index
    %8 = vector.load %arg2[%c0_8, %c0_9, %c0_10, %c0_11] : memref<1x8x8x128xf32, #tpu.memory_space<vmem>>, vector<1x8x8x128xf32>
    %9 = vector.shape_cast %8 : vector<1x8x8x128xf32> to vector<8x8x128xf32>
    %10 = vector.shape_cast %7 : vector<8x8x128xf32> to vector<1x8x8x128xf32>
    tpu.vector_store %arg2[%c0_8, %c0_9, %c0_10, %c0_11], %10 {strides = array<i32>} : memref<1x8x8x128xf32, #tpu.memory_space<vmem>>, vector<1x8x8x128xf32>,
    return
  }
  func.func @transform_0(%arg0: i32) -> (i32, i32, i32, i32, i32) {
    %c0_i32 = arith.constant 0 : i32
    %c0_i32_0 = arith.constant 0 : i32
    %c0_i32_1 = arith.constant 0 : i32
    %c0_i32_2 = arith.constant 0 : i32
    %c0_i32_3 = arith.constant 0 : i32
    return %arg0, %c0_i32, %c0_i32_0, %c0_i32_1, %c0_i32_2 : i32, i32, i32, i32, i32
  }
  func.func @transform_1(%arg0: i32) -> (i32, i32, i32, i32) {
    %c0_i32 = arith.constant 0 : i32
    %c0_i32_0 = arith.constant 0 : i32
    %c0_i32_1 = arith.constant 0 : i32
    %c0_i32_2 = arith.constant 0 : i32
    return %arg0, %c0_i32, %c0_i32_0, %c0_i32_1 : i32, i32, i32, i32
  }
}

</mosaic_0001>

<llo_original>
// kernel: vgg_block_forward.5
$region0: #{vgg_block_forward.5}
  #allocation0 [shape = 'u32[]', space=smem, size = 0x4, offset = 0x4, fixed_abs, tag = 'smem constant byte address 0x4 - core index']
  #allocation1 [shape = 'u32[144,128]{1,0:T(1,128)}', space=vmem, size = 0x12000, scoped, tag = 'internal scratch']
  %s0 = inlined_call_operand.vmem [shape: f32[2,8,2,8,256], index: 0, kind: input, shape index: {}]
  %s1 = inlined_call_operand.vmem [shape: f32[2,8,8,128], index: 1, kind: output, shape index: {}]
  %s2 = sld [smem:[#allocation0]]
  $region37: #{vgg_block_forward.5} parent=0
    _
  %s4 = ssub.s32 1, %s2
  %s5 = scalar_select 0, %s4, %s2
  loop: start=0, step=1, limit=4
  $region2: #{vgg_block_forward.5} parent=0 // loop_pre_header
    _
  $region3: #{vgg_block_forward.5} parent=0 // loop_header
    %s7 = sphi 0, %s11
    %p8 = scmp.ge.s32.totalorder %s7, 4
    %s17 = sphi 0, %s19
    %s20 = sphi 0, %s17
    %s21 = sphi 0, %s20
    %s37 = sphi 0, %s21
    %s43 = sphi 0, %s45
    %s46 = sphi 0, %s43
    %s47 = sphi 0, %s46
    %s63 = sphi 0, %s47
  $region4: #{vgg_block_forward.5} parent=0 // loop_header_branch
    %10 = sbr.rel (%p8) target = $region8
  $region5: #{vgg_block_forward.5} parent=0 // loop_body
    %s12 = ssub.s32 %s7, 1
    %s13 = ssub.s32 %s7, 2
    %s14 = sadd.s32 %s7, 1
    %s15 = ssub.s32 %s7, %s14
    %p16 = scmp.eq.s32.totalorder %s15, 0
    %s18 = sadd.s32 %s17, 1
    %s19 = scalar_select %p16, %s17, %s18
    %p22 = pneg %p16
    %p23 = scmp.eq.s32.totalorder %s7, 1
    %p24 = por %p22, %p23
    %p25 = scmp.ne.s32.totalorder %s17, %s20
    %p26 = scmp.eq.s32.totalorder %s7, 0
    %p27 = por %p25, %p26
    %p28 = scmp.ne.s32.totalorder %s17, %s20
    %p29 = scmp.eq.s32.totalorder %s12, 1
    %p30 = por %p28, %p29
    %p31 = scmp.ne.s32.totalorder %s20, %s21
    %p32 = scmp.eq.s32.totalorder %s12, 0
    %p33 = por %p31, %p32
    %p34 = scmp.ne.s32.totalorder %s20, %s21
    %p35 = scmp.eq.s32.totalorder %s13, 1
    %p36 = por %p34, %p35
    %p38 = scmp.ne.s32.totalorder %s21, %s37
    %p39 = scmp.eq.s32.totalorder %s13, 0
    %p40 = por %p38, %p39
    %s41 = ssub.s32 %s7, %s14
    %p42 = scmp.eq.s32.totalorder %s41, 0
    %s44 = sadd.s32 %s43, 1
    %s45 = scalar_select %p42, %s43, %s44
    %p48 = pneg %p42
    %p49 = scmp.eq.s32.totalorder %s7, 1
    %p50 = por %p48, %p49
    %p51 = scmp.ne.s32.totalorder %s43, %s46
    %p52 = scmp.eq.s32.totalorder %s7, 0
    %p53 = por %p51, %p52
    %p54 = scmp.ne.s32.totalorder %s43, %s46
    %p55 = scmp.eq.s32.totalorder %s12, 1
    %p56 = por %p54, %p55
    %p57 = scmp.ne.s32.totalorder %s46, %s47
    %p58 = scmp.eq.s32.totalorder %s12, 0
    %p59 = por %p57, %p58
    %p60 = scmp.ne.s32.totalorder %s46, %s47
    %p61 = scmp.eq.s32.totalorder %s13, 1
    %p62 = por %p60, %p61
    %p64 = scmp.ne.s32.totalorder %s47, %s63
    %p65 = scmp.eq.s32.totalorder %s13, 0
    %p66 = por %p64, %p65
    %p67 = scmp.le.s32.totalorder 1, %s7
    %p68 = scmp.lt.s32.totalorder %s7, 3
    %p69 = pnand %p67, %p68
    %p70 = pneg %p69
    // Predicated region
    $region9: #{vgg_block_forward.5} parent=5 // pred_check
      _
    $region10: #{vgg_block_forward.5} parent=5 // pred_check_branch
      %72 = sbr.rel (%p69) target = $region12
    $region11: #{vgg_block_forward.5} parent=5 // pred_region
      %s73 = ssub.s32 %s7, 1
    $region12: #{vgg_block_forward.5} parent=5 // pred_fallthru
      _
    %p74 = scmp.lt.s32.totalorder %s7, 2
    // Predicated region
    $region13: #{vgg_block_forward.5} parent=5 // pred_check
      %p75 = pneg %p74
    $region14: #{vgg_block_forward.5} parent=5 // pred_check_branch
      %77 = sbr.rel (%p75) target = $region16
    $region15: #{vgg_block_forward.5} parent=5 // pred_region
      // Predicated region
      $region17: #{vgg_block_forward.5} parent=15 // pred_check
        %p78 = pneg %p27
      $region18: #{vgg_block_forward.5} parent=15 // pred_check_branch
        %80 = sbr.rel (%p78) target = $region20
      $region19: #{vgg_block_forward.5} parent=15 // pred_region
        %p81 = scmp.lt.s32.totalorder %s7, 1
        %s82 = scalar_select %p81, %s7, 1
        %s83 = smul.addr %s82, 32
        %s84 = smul.addr %s83, 8
        %s85 = scalar_lea.vmem %s0, %s84
      $region20: #{vgg_block_forward.5} parent=15 // pred_fallthru
        _
    $region16: #{vgg_block_forward.5} parent=5 // pred_fallthru
      _
    %p86 = scmp.le.s32.totalorder 1, %s7
    %p87 = scmp.lt.s32.totalorder %s7, 3
    %p88 = pnand %p86, %p87
    %p89 = pneg %p88
    // Predicated region
    $region21: #{vgg_block_forward.5} parent=5 // pred_check
      _
    $region22: #{vgg_block_forward.5} parent=5 // pred_check_branch
      %91 = sbr.rel (%p88) target = $region24
    $region23: #{vgg_block_forward.5} parent=5 // pred_region
      %s92 = ssub.s32 %s7, 1
      %p93 = scmp.lt.s32.totalorder %s12, 1
      %s94 = scalar_select %p93, %s12, 1
      %s95 = smul.addr %s94, 32
      %s96 = smul.addr %s95, 8
      %s97 = scalar_lea.vmem %s0, %s96
      %p98 = pneg %p33
      %p99 = pneg %p30
      %p100 = pneg %p59
      %p101 = pneg %p56
      %p102 = scmp.lt.s32.totalorder %s12, 1
      %s103 = scalar_select %p102, %s12, 1
      %s104 = smul.addr %s103, 8
      %s105 = smul.addr %s104, 8
      %s106 = scalar_lea.vmem %s1, %s105
      %p107 = scmp.lt.s32.totalorder %s12, 1
      %s108 = scalar_select %p107, %s12, 1
      %s109 = smul.addr %s108, 32
      %s110 = smul.addr %s109, 8
      %s111 = scalar_lea.vmem %s0, %s110
      %p112 = scmp.lt.s32.totalorder %s12, 1
      %s113 = scalar_select %p112, %s12, 1
      %s114 = smul.addr %s113, 8
      %s115 = smul.addr %s114, 8
      %s116 = scalar_lea.vmem %s1, %s115
      %v117 = vld [vmem:[%s111] sm:$0xff]
      %v118 = vld [vmem:[%s111 + $0x8] sm:$0xff]
      %v119 = vld [vmem:[%s111 + $0x20] sm:$0xff]
      %v120 = vld [vmem:[%s111 + $0x28] sm:$0xff]
      %v121 = vld [vmem:[%s111 + $0x40] sm:$0xff]
      %v122 = vld [vmem:[%s111 + $0x48] sm:$0xff]
      %v123 = vld [vmem:[%s111 + $0x60] sm:$0xff]
      %v124 = vld [vmem:[%s111 + $0x68] sm:$0xff]
      %v125 = vld [vmem:[%s111 + $0x80] sm:$0xff]
      %v126 = vld [vmem:[%s111 + $0x88] sm:$0xff]
      %v127 = vld [vmem:[%s111 + $0xa0] sm:$0xff]
      %v128 = vld [vmem:[%s111 + $0xa8] sm:$0xff]
      %v129 = vld [vmem:[%s111 + $0xc0] sm:$0xff]
      %v130 = vld [vmem:[%s111 + $0xc8] sm:$0xff]
      %v131 = vld [vmem:[%s111 + $0xe0] sm:$0xff]
      %v132 = vld [vmem:[%s111 + $0xe8] sm:$0xff]
      %s133 = scalar_lea.vmem %s111, 16
      %v134 = vld [vmem:[%s133] sm:$0xff]
      %v135 = vld [vmem:[%s133 + $0x8] sm:$0xff]
      %v136 = vld [vmem:[%s133 + $0x20] sm:$0xff]
      %v137 = vld [vmem:[%s133 + $0x28] sm:$0xff]
      %v138 = vld [vmem:[%s133 + $0x40] sm:$0xff]
      %v139 = vld [vmem:[%s133 + $0x48] sm:$0xff]
      %v140 = vld [vmem:[%s133 + $0x60] sm:$0xff]
      %v141 = vld [vmem:[%s133 + $0x68] sm:$0xff]
      %v142 = vld [vmem:[%s133 + $0x80] sm:$0xff]
      %v143 = vld [vmem:[%s133 + $0x88] sm:$0xff]
      %v144 = vld [vmem:[%s133 + $0xa0] sm:$0xff]
      %v145 = vld [vmem:[%s133 + $0xa8] sm:$0xff]
      %v146 = vld [vmem:[%s133 + $0xc0] sm:$0xff]
      %v147 = vld [vmem:[%s133 + $0xc8] sm:$0xff]
      %v148 = vld [vmem:[%s133 + $0xe0] sm:$0xff]
      %v149 = vld [vmem:[%s133 + $0xe8] sm:$0xff]
      %v150 = vmax.f32 %v117, %v134
      %v151 = vmax.f32 %v118, %v135
      %v152 = vmax.f32 %v119, %v136
      %v153 = vmax.f32 %v120, %v137
      %v154 = vmax.f32 %v121, %v138
      %v155 = vmax.f32 %v122, %v139
      %v156 = vmax.f32 %v123, %v140
      %v157 = vmax.f32 %v124, %v141
      %v158 = vmax.f32 %v125, %v142
      %v159 = vmax.f32 %v126, %v143
      %v160 = vmax.f32 %v127, %v144
      %v161 = vmax.f32 %v128, %v145
      %v162 = vmax.f32 %v129, %v146
      %v163 = vmax.f32 %v130, %v147
      %v164 = vmax.f32 %v131, %v148
      %v165 = vmax.f32 %v132, %v149
      %v166 = vmax.f32 %v150, %v151
      %v167 = vmax.f32 %v152, %v153
      %v168 = vmax.f32 %v154, %v155
      %v169 = vmax.f32 %v156, %v157
      %v170 = vmax.f32 %v158, %v159
      %v171 = vmax.f32 %v160, %v161
      %v172 = vmax.f32 %v162, %v163
      %v173 = vmax.f32 %v164, %v165
      %174 = vst [vmem:[%s116] sm:$0xff] %v166
      %175 = vst [vmem:[%s116 + $0x8] sm:$0xff] %v167
      %176 = vst [vmem:[%s116 + $0x10] sm:$0xff] %v168
      %177 = vst [vmem:[%s116 + $0x18] sm:$0xff] %v169
      %178 = vst [vmem:[%s116 + $0x20] sm:$0xff] %v170
      %179 = vst [vmem:[%s116 + $0x28] sm:$0xff] %v171
      %180 = vst [vmem:[%s116 + $0x30] sm:$0xff] %v172
      %181 = vst [vmem:[%s116 + $0x38] sm:$0xff] %v173
      %p182 = scmp.lt.s32.totalorder %s12, 1
      %s183 = scalar_select %p182, %s12, 1
      %s184 = smul.addr %s183, 8
      %s185 = smul.addr %s184, 8
      %s186 = scalar_lea.vmem %s1, %s185
      // Predicated region
      $region25: #{vgg_block_forward.5} parent=23 // pred_check
        %p187 = pneg %p56
      $region26: #{vgg_block_forward.5} parent=23 // pred_check_branch
        %189 = sbr.rel (%p187) target = $region28
      $region27: #{vgg_block_forward.5} parent=23 // pred_region
        _
      $region28: #{vgg_block_forward.5} parent=23 // pred_fallthru
        _
    $region24: #{vgg_block_forward.5} parent=5 // pred_fallthru
      _
    %p190 = scmp.le.s32.totalorder 2, %s7
    // Predicated region
    $region29: #{vgg_block_forward.5} parent=5 // pred_check
      %p191 = pneg %p190
    $region30: #{vgg_block_forward.5} parent=5 // pred_check_branch
      %193 = sbr.rel (%p191) target = $region32
    $region31: #{vgg_block_forward.5} parent=5 // pred_region
      %s194 = ssub.s32 %s7, 2
      // Predicated region
      $region33: #{vgg_block_forward.5} parent=31 // pred_check
        %p195 = pneg %p62
      $region34: #{vgg_block_forward.5} parent=31 // pred_check_branch
        %197 = sbr.rel (%p195) target = $region36
      $region35: #{vgg_block_forward.5} parent=31 // pred_region
        %p198 = scmp.lt.s32.totalorder %s13, 1
        %s199 = scalar_select %p198, %s13, 1
        %s200 = smul.addr %s199, 8
        %s201 = smul.addr %s200, 8
        %s202 = scalar_lea.vmem %s1, %s201
      $region36: #{vgg_block_forward.5} parent=31 // pred_fallthru
        _
    $region32: #{vgg_block_forward.5} parent=5 // pred_fallthru
      _
  $region6: #{vgg_block_forward.5} parent=0 // loop_footer
    %s11 = sadd.s32 1, %s7
  $region7: #{vgg_block_forward.5} parent=0 // loop_footer_branch
    %6 = sbr.rel target = $region3
  $region8: #{vgg_block_forward.5} parent=0 // loop_exit
    _

// kernel: vgg_block_forward.4
$region0: #{vgg_block_forward.4}
  #allocation0 [shape = 'u32[]', space=smem, size = 0x4, offset = 0x4, fixed_abs, tag = 'smem constant byte address 0x4 - core index']
  #allocation1 [shape = 'u32[144,128]{1,0:T(1,128)}', space=vmem, size = 0x12000, scoped, tag = 'internal scratch']
  #allocation2 [shape = 'f32[256,128]{1,0:T(8,128)}', space=vmem, size = 0x20000, scoped, tag = 'scratch operand']
  %s0 = inlined_call_operand.vmem [shape: f32[2,18,18,128], index: 0, kind: input, shape index: {}]
  %s1 = inlined_call_operand.vmem [shape: f32[3,3,128,128], index: 1, kind: input, shape index: {}]
  %s2 = inlined_call_operand.vmem [shape: f32[1,128], index: 2, kind: input, shape index: {}]
  %s3 = inlined_call_operand.vmem [shape: f32[2,16,16,128], index: 3, kind: output, shape index: {}]
  %s4 = sld [smem:[#allocation0]]
  $region45: #{vgg_block_forward.4} parent=0
    _
  %s6 = ssub.s32 1, %s4
  %s7 = scalar_select 0, %s6, %s4
  loop: start=0, step=1, limit=4
  $region2: #{vgg_block_forward.4} parent=0 // loop_pre_header
    _
  $region3: #{vgg_block_forward.4} parent=0 // loop_header
    %s9 = sphi 0, %s13
    %p10 = scmp.ge.s32.totalorder %s9, 4
    %s16 = sphi 0, %s28
    %s17 = sphi 0, %s24
    %s18 = sphi 0, %s16
    %s19 = sphi 0, %s17
    %s20 = sphi 0, %s18
    %s21 = sphi 0, %s19
    %s31 = sphi 0, %s33
    %s34 = sphi 0, %s31
    %s35 = sphi 0, %s34
    %s51 = sphi 0, %s35
    %s57 = sphi 0, %s59
    %s60 = sphi 0, %s57
    %s61 = sphi 0, %s60
    %s77 = sphi 0, %s61
    %s83 = sphi 0, %s85
    %s86 = sphi 0, %s83
    %s87 = sphi 0, %s86
    %s103 = sphi 0, %s87
    %s111 = sphi 0, %s113
    %s114 = sphi 0, %s111
    %s115 = sphi 0, %s114
    %s131 = sphi 0, %s115
  $region4: #{vgg_block_forward.4} parent=0 // loop_header_branch
    %12 = sbr.rel (%p10) target = $region8
  $region5: #{vgg_block_forward.4} parent=0 // loop_body
    %s14 = ssub.s32 %s9, 1
    %s15 = ssub.s32 %s9, 2
    %s22 = sadd.s32 1, %s17
    %p23 = scmp.ge.s32.totalorder %s22, 1
    %s24 = scalar_select %p23, 0, %s22
    %s25 = sadd.s32 1, %s16
    %s26 = scalar_select %p23, %s25, %s16
    %p27 = scmp.ge.s32.totalorder %s26, 2
    %s28 = scalar_select %p27, 0, %s26
    %s29 = ssub.s32 %s16, %s28
    %p30 = scmp.eq.s32.totalorder %s29, 0
    %s32 = sadd.s32 %s31, 1
    %s33 = scalar_select %p30, %s31, %s32
    %p36 = pneg %p30
    %p37 = scmp.eq.s32.totalorder %s9, 1
    %p38 = por %p36, %p37
    %p39 = scmp.ne.s32.totalorder %s31, %s34
    %p40 = scmp.eq.s32.totalorder %s9, 0
    %p41 = por %p39, %p40
    %p42 = scmp.ne.s32.totalorder %s31, %s34
    %p43 = scmp.eq.s32.totalorder %s14, 1
    %p44 = por %p42, %p43
    %p45 = scmp.ne.s32.totalorder %s34, %s35
    %p46 = scmp.eq.s32.totalorder %s14, 0
    %p47 = por %p45, %p46
    %p48 = scmp.ne.s32.totalorder %s34, %s35
    %p49 = scmp.eq.s32.totalorder %s15, 1
    %p50 = por %p48, %p49
    %p52 = scmp.ne.s32.totalorder %s35, %s51
    %p53 = scmp.eq.s32.totalorder %s15, 0
    %p54 = por %p52, %p53
    %s55 = ssub.s32 %s17, %s24
    %p56 = scmp.eq.s32.totalorder %s55, 0
    %s58 = sadd.s32 %s57, 1
    %s59 = scalar_select %p56, %s57, %s58
    %p62 = pneg %p56
    %p63 = scmp.eq.s32.totalorder %s9, 1
    %p64 = por %p62, %p63
    %p65 = scmp.ne.s32.totalorder %s57, %s60
    %p66 = scmp.eq.s32.totalorder %s9, 0
    %p67 = por %p65, %p66
    %p68 = scmp.ne.s32.totalorder %s57, %s60
    %p69 = scmp.eq.s32.totalorder %s14, 1
    %p70 = por %p68, %p69
    %p71 = scmp.ne.s32.totalorder %s60, %s61
    %p72 = scmp.eq.s32.totalorder %s14, 0
    %p73 = por %p71, %p72
    %p74 = scmp.ne.s32.totalorder %s60, %s61
    %p75 = scmp.eq.s32.totalorder %s15, 1
    %p76 = por %p74, %p75
    %p78 = scmp.ne.s32.totalorder %s61, %s77
    %p79 = scmp.eq.s32.totalorder %s15, 0
    %p80 = por %p78, %p79
    %s81 = ssub.s32 %s17, %s24
    %p82 = scmp.eq.s32.totalorder %s81, 0
    %s84 = sadd.s32 %s83, 1
    %s85 = scalar_select %p82, %s83, %s84
    %p88 = pneg %p82
    %p89 = scmp.eq.s32.totalorder %s9, 1
    %p90 = por %p88, %p89
    %p91 = scmp.ne.s32.totalorder %s83, %s86
    %p92 = scmp.eq.s32.totalorder %s9, 0
    %p93 = por %p91, %p92
    %p94 = scmp.ne.s32.totalorder %s83, %s86
    %p95 = scmp.eq.s32.totalorder %s14, 1
    %p96 = por %p94, %p95
    %p97 = scmp.ne.s32.totalorder %s86, %s87
    %p98 = scmp.eq.s32.totalorder %s14, 0
    %p99 = por %p97, %p98
    %p100 = scmp.ne.s32.totalorder %s86, %s87
    %p101 = scmp.eq.s32.totalorder %s15, 1
    %p102 = por %p100, %p101
    %p104 = scmp.ne.s32.totalorder %s87, %s103
    %p105 = scmp.eq.s32.totalorder %s15, 0
    %p106 = por %p104, %p105
    %s107 = ssub.s32 %s16, %s28
    %s108 = ssub.s32 %s17, %s24
    %s109 = sor.u32 %s107, %s108
    %p110 = scmp.eq.s32.totalorder %s109, 0
    %s112 = sadd.s32 %s111, 1
    %s113 = scalar_select %p110, %s111, %s112
    %p116 = pneg %p110
    %p117 = scmp.eq.s32.totalorder %s9, 1
    %p118 = por %p116, %p117
    %p119 = scmp.ne.s32.totalorder %s111, %s114
    %p120 = scmp.eq.s32.totalorder %s9, 0
    %p121 = por %p119, %p120
    %p122 = scmp.ne.s32.totalorder %s111, %s114
    %p123 = scmp.eq.s32.totalorder %s14, 1
    %p124 = por %p122, %p123
    %p125 = scmp.ne.s32.totalorder %s114, %s115
    %p126 = scmp.eq.s32.totalorder %s14, 0
    %p127 = por %p125, %p126
    %p128 = scmp.ne.s32.totalorder %s114, %s115
    %p129 = scmp.eq.s32.totalorder %s15, 1
    %p130 = por %p128, %p129
    %p132 = scmp.ne.s32.totalorder %s115, %s131
    %p133 = scmp.eq.s32.totalorder %s15, 0
    %p134 = por %p132, %p133
    %p135 = scmp.le.s32.totalorder 1, %s9
    %p136 = scmp.lt.s32.totalorder %s9, 3
    %p137 = pnand %p135, %p136
    %p138 = pneg %p137
    // Predicated region
    $region9: #{vgg_block_forward.4} parent=5 // pred_check
      _
    $region10: #{vgg_block_forward.4} parent=5 // pred_check_branch
      %140 = sbr.rel (%p137) target = $region12
    $region11: #{vgg_block_forward.4} parent=5 // pred_region
      %s141 = ssub.s32 %s9, 1
      // Predicated region
      $region13: #{vgg_block_forward.4} parent=11 // pred_check
        %p142 = pneg %p73
      $region14: #{vgg_block_forward.4} parent=11 // pred_check_branch
        %144 = sbr.rel (%p142) target = $region16
      $region15: #{vgg_block_forward.4} parent=11 // pred_region
        %p145 = scmp.lt.s32.totalorder %s19, 0
        %s146 = scalar_select %p145, %s19, 0
        %s147 = smul.addr %s146, 8
        %s148 = scalar_lea.vmem %s1, %s147
      $region16: #{vgg_block_forward.4} parent=11 // pred_fallthru
        _
      // Predicated region
      $region17: #{vgg_block_forward.4} parent=11 // pred_check
        %p149 = pneg %p99
      $region18: #{vgg_block_forward.4} parent=11 // pred_check_branch
        %151 = sbr.rel (%p149) target = $region20
      $region19: #{vgg_block_forward.4} parent=11 // pred_region
        %p152 = scmp.lt.s32.totalorder %s19, 0
        %s153 = scalar_select %p152, %s19, 0
        %s154 = scalar_lea.vmem %s2, %s153
      $region20: #{vgg_block_forward.4} parent=11 // pred_fallthru
        _
    $region12: #{vgg_block_forward.4} parent=5 // pred_fallthru
      _
    %p155 = scmp.lt.s32.totalorder %s9, 2
    // Predicated region
    $region21: #{vgg_block_forward.4} parent=5 // pred_check
      %p156 = pneg %p155
    $region22: #{vgg_block_forward.4} parent=5 // pred_check_branch
      %158 = sbr.rel (%p156) target = $region24
    $region23: #{vgg_block_forward.4} parent=5 // pred_region
      // Predicated region
      $region25: #{vgg_block_forward.4} parent=23 // pred_check
        %p159 = pneg %p41
      $region26: #{vgg_block_forward.4} parent=23 // pred_check_branch
        %161 = sbr.rel (%p159) target = $region28
      $region27: #{vgg_block_forward.4} parent=23 // pred_region
        %p162 = scmp.lt.s32.totalorder %s16, 1
        %s163 = scalar_select %p162, %s16, 1
        %s164 = smul.addr %s163, 54
        %s165 = smul.addr %s164, 8
        %s166 = scalar_lea.vmem %s0, %s165
      $region28: #{vgg_block_forward.4} parent=23 // pred_fallthru
        _
    $region24: #{vgg_block_forward.4} parent=5 // pred_fallthru
      _
    %p167 = scmp.le.s32.totalorder 1, %s9
    %p168 = scmp.lt.s32.totalorder %s9, 3
    %p169 = pnand %p167, %p168
    %p170 = pneg %p169
    // Predicated region
    $region29: #{vgg_block_forward.4} parent=5 // pred_check
      _
    $region30: #{vgg_block_forward.4} parent=5 // pred_check_branch
      %172 = sbr.rel (%p169) target = $region32
    $region31: #{vgg_block_forward.4} parent=5 // pred_region
      %s173 = ssub.s32 %s9, 1
      %p174 = scmp.lt.s32.totalorder %s18, 1
      %s175 = scalar_select %p174, %s18, 1
      %s176 = smul.addr %s175, 54
      %s177 = smul.addr %s176, 8
      %s178 = scalar_lea.vmem %s0, %s177
      %p179 = pneg %p47
      %p180 = pneg %p44
      %p181 = scmp.lt.s32.totalorder %s19, 0
      %s182 = scalar_select %p181, %s19, 0
      %s183 = smul.addr %s182, 8
      %s184 = scalar_lea.vmem %s1, %s183
      %p185 = pneg %p73
      %p186 = pneg %p70
      %p187 = scmp.lt.s32.totalorder %s19, 0
      %s188 = scalar_select %p187, %s19, 0
      %s189 = scalar_lea.vmem %s2, %s188
      %p190 = pneg %p99
      %p191 = pneg %p96
      %p192 = pneg %p127
      %p193 = pneg %p124
      %p194 = scmp.lt.s32.totalorder %s18, 1
      %s195 = scalar_select %p194, %s18, 1
      %p196 = scmp.lt.s32.totalorder %s19, 0
      %s197 = scalar_select %p196, %s19, 0
      %s198 = smul.addr %s195, 32
      %s199 = sadd.s32 %s197, %s198
      %s200 = smul.addr %s199, 8
      %s201 = scalar_lea.vmem %s3, %s200
      %p202 = scmp.lt.s32.totalorder %s18, 1
      %s203 = scalar_select %p202, %s18, 1
      %s204 = smul.addr %s203, 54
      %s205 = smul.addr %s204, 8
      %s206 = scalar_lea.vmem %s0, %s205
      %p207 = scmp.lt.s32.totalorder %s19, 0
      %s208 = scalar_select %p207, %s19, 0
      %s209 = smul.addr %s208, 8
      %s210 = scalar_lea.vmem %s1, %s209
      %p211 = scmp.lt.s32.totalorder %s19, 0
      %s212 = scalar_select %p211, %s19, 0
      %s213 = scalar_lea.vmem %s2, %s212
      %p214 = scmp.lt.s32.totalorder %s18, 1
      %s215 = scalar_select %p214, %s18, 1
      %p216 = scmp.lt.s32.totalorder %s19, 0
      %s217 = scalar_select %p216, %s19, 0
      %s218 = smul.addr %s215, 32
      %s219 = sadd.s32 %s217, %s218
      %s220 = smul.addr %s219, 8
      %s221 = scalar_lea.vmem %s3, %s220
      %222 = vst [vmem:[#allocation2] sm:$0xff] 0.0
      %223 = vst [vmem:[#allocation2 + $0x8] sm:$0xff] 0.0
      %224 = vst [vmem:[#allocation2 + $0x10] sm:$0xff] 0.0
      %225 = vst [vmem:[#allocation2 + $0x18] sm:$0xff] 0.0
      %226 = vst [vmem:[#allocation2 + $0x20] sm:$0xff] 0.0
      %227 = vst [vmem:[#allocation2 + $0x28] sm:$0xff] 0.0
      %228 = vst [vmem:[#allocation2 + $0x30] sm:$0xff] 0.0
      %229 = vst [vmem:[#allocation2 + $0x38] sm:$0xff] 0.0
      %230 = vst [vmem:[#allocation2 + $0x40] sm:$0xff] 0.0
      %231 = vst [vmem:[#allocation2 + $0x48] sm:$0xff] 0.0
      %232 = vst [vmem:[#allocation2 + $0x50] sm:$0xff] 0.0
      %233 = vst [vmem:[#allocation2 + $0x58] sm:$0xff] 0.0
      %234 = vst [vmem:[#allocation2 + $0x60] sm:$0xff] 0.0
      %235 = vst [vmem:[#allocation2 + $0x68] sm:$0xff] 0.0
      %236 = vst [vmem:[#allocation2 + $0x70] sm:$0xff] 0.0
      %237 = vst [vmem:[#allocation2 + $0x78] sm:$0xff] 0.0
      %238 = vst [vmem:[#allocation2 + $0x80] sm:$0xff] 0.0
      %239 = vst [vmem:[#allocation2 + $0x88] sm:$0xff] 0.0
      %240 = vst [vmem:[#allocation2 + $0x90] sm:$0xff] 0.0
      %241 = vst [vmem:[#allocation2 + $0x98] sm:$0xff] 0.0
      %242 = vst [vmem:[#allocation2 + $0xa0] sm:$0xff] 0.0
      %243 = vst [vmem:[#allocation2 + $0xa8] sm:$0xff] 0.0
      %244 = vst [vmem:[#allocation2 + $0xb0] sm:$0xff] 0.0
      %245 = vst [vmem:[#allocation2 + $0xb8] sm:$0xff] 0.0
      %246 = vst [vmem:[#allocation2 + $0xc0] sm:$0xff] 0.0
      %247 = vst [vmem:[#allocation2 + $0xc8] sm:$0xff] 0.0
      %248 = vst [vmem:[#allocation2 + $0xd0] sm:$0xff] 0.0
      %249 = vst [vmem:[#allocation2 + $0xd8] sm:$0xff] 0.0
      %250 = vst [vmem:[#allocation2 + $0xe0] sm:$0xff] 0.0
      %251 = vst [vmem:[#allocation2 + $0xe8] sm:$0xff] 0.0
      %252 = vst [vmem:[#allocation2 + $0xf0] sm:$0xff] 0.0
      %253 = vst [vmem:[#allocation2 + $0xf8] sm:$0xff] 0.0
      %v254 = vld [vmem:[%s206] sm:$0xff]
      %v255 = vld [vmem:[%s206 + $0x8] sm:$0xff]
      %v256 = vld [vmem:[%s206 + $0x18] sm:$0xff]
      %v257 = vld [vmem:[%s206 + $0x20] sm:$0xff]
      %v258 = vld [vmem:[%s206 + $0x30] sm:$0xff]
      %v259 = vld [vmem:[%s206 + $0x38] sm:$0xff]
      %v260 = vld [vmem:[%s206 + $0x48] sm:$0xff]
      %v261 = vld [vmem:[%s206 + $0x50] sm:$0xff]
      %v262 = vld [vmem:[%s206 + $0x60] sm:$0xff]
      %v263 = vld [vmem:[%s206 + $0x68] sm:$0xff]
      %v264 = vld [vmem:[%s206 + $0x78] sm:$0xff]
      %v265 = vld [vmem:[%s206 + $0x80] sm:$0xff]
      %v266 = vld [vmem:[%s206 + $0x90] sm:$0xff]
      %v267 = vld [vmem:[%s206 + $0x98] sm:$0xff]
      %v268 = vld [vmem:[%s206 + $0xa8] sm:$0xff]
      %v269 = vld [vmem:[%s206 + $0xb0] sm:$0xff]
      %v270 = vld [vmem:[%s206 + $0xc0] sm:$0xff]
      %v271 = vld [vmem:[%s206 + $0xc8] sm:$0xff]
      %v272 = vld [vmem:[%s206 + $0xd8] sm:$0xff]
      %v273 = vld [vmem:[%s206 + $0xe0] sm:$0xff]
      %v274 = vld [vmem:[%s206 + $0xf0] sm:$0xff]
      %v275 = vld [vmem:[%s206 + $0xf8] sm:$0xff]
      %v276 = vld [vmem:[%s206 + $0x108] sm:$0xff]
      %v277 = vld [vmem:[%s206 + $0x110] sm:$0xff]
      %v278 = vld [vmem:[%s206 + $0x120] sm:$0xff]
      %v279 = vld [vmem:[%s206 + $0x128] sm:$0xff]
      %v280 = vld [vmem:[%s206 + $0x138] sm:$0xff]
      %v281 = vld [vmem:[%s206 + $0x140] sm:$0xff]
      %v282 = vld [vmem:[%s206 + $0x150] sm:$0xff]
      %v283 = vld [vmem:[%s206 + $0x158] sm:$0xff]
      %v284 = vld [vmem:[%s206 + $0x168] sm:$0xff]
      %v285 = vld [vmem:[%s206 + $0x170] sm:$0xff]
      %v286 = vld [vmem:[#allocation2] sm:$0xff]
      %v287 = vld [vmem:[#allocation2 + $0x8] sm:$0xff]
      %v288 = vld [vmem:[#allocation2 + $0x10] sm:$0xff]
      %v289 = vld [vmem:[#allocation2 + $0x18] sm:$0xff]
      %v290 = vld [vmem:[#allocation2 + $0x20] sm:$0xff]
      %v291 = vld [vmem:[#allocation2 + $0x28] sm:$0xff]
      %v292 = vld [vmem:[#allocation2 + $0x30] sm:$0xff]
      %v293 = vld [vmem:[#allocation2 + $0x38] sm:$0xff]
      %v294 = vld [vmem:[#allocation2 + $0x40] sm:$0xff]
      %v295 = vld [vmem:[#allocation2 + $0x48] sm:$0xff]
      %v296 = vld [vmem:[#allocation2 + $0x50] sm:$0xff]
      %v297 = vld [vmem:[#allocation2 + $0x58] sm:$0xff]
      %v298 = vld [vmem:[#allocation2 + $0x60] sm:$0xff]
      %v299 = vld [vmem:[#allocation2 + $0x68] sm:$0xff]
      %v300 = vld [vmem:[#allocation2 + $0x70] sm:$0xff]
      %v301 = vld [vmem:[#allocation2 + $0x78] sm:$0xff]
      %v302 = vld [vmem:[#allocation2 + $0x80] sm:$0xff]
      %v303 = vld [vmem:[#allocation2 + $0x88] sm:$0xff]
      %v304 = vld [vmem:[#allocation2 + $0x90] sm:$0xff]
      %v305 = vld [vmem:[#allocation2 + $0x98] sm:$0xff]
      %v306 = vld [vmem:[#allocation2 + $0xa0] sm:$0xff]
      %v307 = vld [vmem:[#allocation2 + $0xa8] sm:$0xff]
      %v308 = vld [vmem:[#allocation2 + $0xb0] sm:$0xff]
      %v309 = vld [vmem:[#allocation2 + $0xb8] sm:$0xff]
      %v310 = vld [vmem:[#allocation2 + $0xc0] sm:$0xff]
      %v311 = vld [vmem:[#allocation2 + $0xc8] sm:$0xff]
      %v312 = vld [vmem:[#allocation2 + $0xd0] sm:$0xff]
      %v313 = vld [vmem:[#allocation2 + $0xd8] sm:$0xff]
      %v314 = vld [vmem:[#allocation2 + $0xe0] sm:$0xff]
      %v315 = vld [vmem:[#allocation2 + $0xe8] sm:$0xff]
      %v316 = vld [vmem:[#allocation2 + $0xf0] sm:$0xff]
      %v317 = vld [vmem:[#allocation2 + $0xf8] sm:$0xff]
      %v318 = vld [vmem:[%s210] sm:$0xff]
      %v319 = vld [vmem:[%s210 + $0x8] sm:$0xff]
      %v320 = vld [vmem:[%s210 + $0x10] sm:$0xff]
      %v321 = vld [vmem:[%s210 + $0x18] sm:$0xff]
      %v322 = vld [vmem:[%s210 + $0x20] sm:$0xff]
      %v323 = vld [vmem:[%s210 + $0x28] sm:$0xff]
      %v324 = vld [vmem:[%s210 + $0x30] sm:$0xff]
      %v325 = vld [vmem:[%s210 + $0x38] sm:$0xff]
      %v326 = vld [vmem:[%s210 + $0x40] sm:$0xff]
      %v327 = vld [vmem:[%s210 + $0x48] sm:$0xff]
      %v328 = vld [vmem:[%s210 + $0x50] sm:$0xff]
      %v329 = vld [vmem:[%s210 + $0x58] sm:$0xff]
      %v330 = vld [vmem:[%s210 + $0x60] sm:$0xff]
      %v331 = vld [vmem:[%s210 + $0x68] sm:$0xff]
      %v332 = vld [vmem:[%s210 + $0x70] sm:$0xff]
      %v333 = vld [vmem:[%s210 + $0x78] sm:$0xff]
      %334 = vmatprep.subr.mxu0 0.0
      %335 = vmatpush1.msra.mxu0 %v318
      %336 = vmatprep.subr.mxu0 0.0
      %337 = vmatpush1.msra.mxu0 %v319
      %338 = vmatprep.subr.mxu0 0.0
      %339 = vmatpush1.msra.mxu0 %v320
      %340 = vmatprep.subr.mxu0 0.0
      %341 = vmatpush1.msra.mxu0 %v321
      %342 = vmatprep.subr.mxu0 0.0
      %343 = vmatpush1.msra.mxu0 %v322
      %344 = vmatprep.subr.mxu0 0.0
      %345 = vmatpush1.msra.mxu0 %v323
      %346 = vmatprep.subr.mxu0 0.0
      %347 = vmatpush1.msra.mxu0 %v324
      %348 = vmatprep.subr.mxu0 0.0
      %349 = vmatpush1.msra.mxu0 %v325
      %350 = vmatprep.subr.mxu0 0.0
      %351 = vmatpush1.msra.mxu0 %v326
      %352 = vmatprep.subr.mxu0 0.0
      %353 = vmatpush1.msra.mxu0 %v327
      %354 = vmatprep.subr.mxu0 0.0
      %355 = vmatpush1.msra.mxu0 %v328
      %356 = vmatprep.subr.mxu0 0.0
      %357 = vmatpush1.msra.mxu0 %v329
      %358 = vmatprep.subr.mxu0 0.0
      %359 = vmatpush1.msra.mxu0 %v330
      %360 = vmatprep.subr.mxu0 0.0
      %361 = vmatpush1.msra.mxu0 %v331
      %362 = vmatprep.subr.mxu0 0.0
      %363 = vmatpush1.msra.mxu0 %v332
      %364 = vmatprep.subr.mxu0 0.0
      %365 = vmatpush1.msra.mxu0 %v333
      %366 = vmatprep.subr.mxu0 0.0
      %367 = vmatpush1.msra.mxu0 0.0
      %368 = vmatprep.subr.mxu0 0.0
      %369 = vmatpush1.msra.mxu0 0.0
      %370 = vmatprep.subr.mxu0 0.0
      %371 = vmatpush1.msra.mxu0 0.0
      %372 = vmatprep.subr.mxu0 0.0
      %373 = vmatpush1.msra.mxu0 0.0
      %374 = vmatprep.subr.mxu0 0.0
      %375 = vmatpush1.msra.mxu0 0.0
      %376 = vmatprep.subr.mxu0 0.0
      %377 = vmatpush1.msra.mxu0 0.0
      %378 = vmatprep.subr.mxu0 0.0
      %379 = vmatpush1.msra.mxu0 0.0
      %380 = vmatprep.subr.mxu0 0.0
      %381 = vmatpush1.msra.mxu0 0.0
      %382 = vmatprep.subr.mxu0 0.0
      %383 = vmatpush1.msra.mxu0 0.0
      %384 = vmatprep.subr.mxu0 0.0
      %385 = vmatpush1.msra.mxu0 0.0
      %386 = vmatprep.subr.mxu0 0.0
      %387 = vmatpush1.msra.mxu0 0.0
      %388 = vmatprep.subr.mxu0 0.0
      %389 = vmatpush1.msra.mxu0 0.0
      %390 = vmatprep.subr.mxu0 0.0
      %391 = vmatpush1.msra.mxu0 0.0
      %392 = vmatprep.subr.mxu0 0.0
      %393 = vmatpush1.msra.mxu0 0.0
      %394 = vmatprep.subr.mxu0 0.0
      %395 = vmatpush1.msra.mxu0 0.0
      %396 = vmatprep.subr.mxu0 0.0
      %397 = vmatpush1.msra.mxu0 0.0
      %398 = vmatprep.mubr.f32.mxu0 0.0
      %399 = vmatmul.mubr.f32.gmra.mrb[0].mxu0 %v254
      %v400 = vpop.f32.mrb[0].mxu0
      %v401 = vadd.f32 0.0, %v400
      %v402 = vpop.f32.mrb[0].mxu0
      %403 = vmatprep.mubr.f32.mxu0 0.0
      %404 = vmatmul.mubr.f32.gmra.mrb[0].mxu0 %v255
      %v405 = vpop.f32.mrb[0].mxu0
      %v406 = vadd.f32 0.0, %v405
      %v407 = vpop.f32.mrb[0].mxu0
      %408 = vmatprep.mubr.f32.mxu0 0.0
      %409 = vmatmul.mubr.f32.gmra.mrb[0].mxu0 %v256
      %v410 = vpop.f32.mrb[0].mxu0
      %v411 = vadd.f32 0.0, %v410
      %v412 = vpop.f32.mrb[0].mxu0
      %413 = vmatprep.mubr.f32.mxu0 0.0
      %414 = vmatmul.mubr.f32.gmra.mrb[0].mxu0 %v257
      %v415 = vpop.f32.mrb[0].mxu0
      %v416 = vadd.f32 0.0, %v415
      %v417 = vpop.f32.mrb[0].mxu0
      %418 = vmatprep.mubr.f32.mxu0 0.0
      %419 = vmatmul.mubr.f32.gmra.mrb[0].mxu0 %v258
      %v420 = vpop.f32.mrb[0].mxu0
      %v421 = vadd.f32 0.0, %v420
      %v422 = vpop.f32.mrb[0].mxu0
      %423 = vmatprep.mubr.f32.mxu0 0.0
      %424 = vmatmul.mubr.f32.gmra.mrb[0].mxu0 %v259
      %v425 = vpop.f32.mrb[0].mxu0
      %v426 = vadd.f32 0.0, %v425
      %v427 = vpop.f32.mrb[0].mxu0
      %428 = vmatprep.mubr.f32.mxu0 0.0
      %429 = vmatmul.mubr.f32.gmra.mrb[0].mxu0 %v260
      %v430 = vpop.f32.mrb[0].mxu0
      %v431 = vadd.f32 0.0, %v430
      %v432 = vpop.f32.mrb[0].mxu0
      %433 = vmatprep.mubr.f32.mxu0 0.0
      %434 = vmatmul.mubr.f32.gmra.mrb[0].mxu0 %v261
      %v435 = vpop.f32.mrb[0].mxu0
      %v436 = vadd.f32 0.0, %v435
      %v437 = vpop.f32.mrb[0].mxu0
      %438 = vmatprep.mubr.f32.mxu0 0.0
      %439 = vmatmul.mubr.f32.gmra.mrb[0].mxu0 %v262
      %v440 = vpop.f32.mrb[0].mxu0
      %v441 = vadd.f32 0.0, %v440
      %v442 = vpop.f32.mrb[0].mxu0
      %443 = vmatprep.mubr.f32.mxu0 0.0
      %444 = vmatmul.mubr.f32.gmra.mrb[0].mxu0 %v263
      %v445 = vpop.f32.mrb[0].mxu0
      %v446 = vadd.f32 0.0, %v445
      %v447 = vpop.f32.mrb[0].mxu0
      %448 = vmatprep.mubr.f32.mxu0 0.0
      %449 = vmatmul.mubr.f32.gmra.mrb[0].mxu0 %v264
      %v450 = vpop.f32.mrb[0].mxu0
      %v451 = vadd.f32 0.0, %v450
      %v452 = vpop.f32.mrb[0].mxu0
      %453 = vmatprep.mubr.f32.mxu0 0.0
      %454 = vmatmul.mubr.f32.gmra.mrb[0].mxu0 %v265
      %v455 = vpop.f32.mrb[0].mxu0
      %v456 = vadd.f32 0.0, %v455
      %v457 = vpop.f32.mrb[0].mxu0
      %458 = vmatprep.mubr.f32.mxu0 0.0
      %459 = vmatmul.mubr.f32.gmra.mrb[0].mxu0 %v266
      %v460 = vpop.f32.mrb[0].mxu0
      %v461 = vadd.f32 0.0, %v460
      %v462 = vpop.f32.mrb[0].mxu0
      %463 = vmatprep.mubr.f32.mxu0 0.0
      %464 = vmatmul.mubr.f32.gmra.mrb[0].mxu0 %v267
      %v465 = vpop.f32.mrb[0].mxu0
      %v466 = vadd.f32 0.0, %v465
      %v467 = vpop.f32.mrb[0].mxu0
      %468 = vmatprep.mubr.f32.mxu0 0.0
      %469 = vmatmul.mubr.f32.gmra.mrb[0].mxu0 %v268
      %v470 = vpop.f32.mrb[0].mxu0
      %v471 = vadd.f32 0.0, %v470
      %v472 = vpop.f32.mrb[0].mxu0
      %473 = vmatprep.mubr.f32.mxu0 0.0
      %474 = vmatmul.mubr.f32.gmra.mrb[0].mxu0 %v269
      %v475 = vpop.f32.mrb[0].mxu0
      %v476 = vadd.f32 0.0, %v475
      %v477 = vpop.f32.mrb[0].mxu0
      %478 = vmatprep.mubr.f32.mxu0 0.0
      %479 = vmatmul.mubr.f32.gmra.mrb[0].mxu0 %v270
      %v480 = vpop.f32.mrb[0].mxu0
      %v481 = vadd.f32 0.0, %v480
      %v482 = vpop.f32.mrb[0].mxu0
      %483 = vmatprep.mubr.f32.mxu0 0.0
      %484 = vmatmul.mubr.f32.gmra.mrb[0].mxu0 %v271
      %v485 = vpop.f32.mrb[0].mxu0
      %v486 = vadd.f32 0.0, %v485
      %v487 = vpop.f32.mrb[0].mxu0
      %488 = vmatprep.mubr.f32.mxu0 0.0
      %489 = vmatmul.mubr.f32.gmra.mrb[0].mxu0 %v272
      %v490 = vpop.f32.mrb[0].mxu0
      %v491 = vadd.f32 0.0, %v490
      %v492 = vpop.f32.mrb[0].mxu0
      %493 = vmatprep.mubr.f32.mxu0 0.0
      %494 = vmatmul.mubr.f32.gmra.mrb[0].mxu0 %v273
      %v495 = vpop.f32.mrb[0].mxu0
      %v496 = vadd.f32 0.0, %v495
      %v497 = vpop.f32.mrb[0].mxu0
      %498 = vmatprep.mubr.f32.mxu0 0.0
      %499 = vmatmul.mubr.f32.gmra.mrb[0].mxu0 %v274
      %v500 = vpop.f32.mrb[0].mxu0
      %v501 = vadd.f32 0.0, %v500
      %v502 = vpop.f32.mrb[0].mxu0
      %503 = vmatprep.mubr.f32.mxu0 0.0
      %504 = vmatmul.mubr.f32.gmra.mrb[0].mxu0 %v275
      %v505 = vpop.f32.mrb[0].mxu0
      %v506 = vadd.f32 0.0, %v505
      %v507 = vpop.f32.mrb[0].mxu0
      %508 = vmatprep.mubr.f32.mxu0 0.0
      %509 = vmatmul.mubr.f32.gmra.mrb[0].mxu0 %v276
      %v510 = vpop.f32.mrb[0].mxu0
      %v511 = vadd.f32 0.0, %v510
      %v512 = vpop.f32.mrb[0].mxu0
      %513 = vmatprep.mubr.f32.mxu0 0.0
      %514 = vmatmul.mubr.f32.gmra.mrb[0].mxu0 %v277
      %v515 = vpop.f32.mrb[0].mxu0
      %v516 = vadd.f32 0.0, %v515
      %v517 = vpop.f32.mrb[0].mxu0
      %518 = vmatprep.mubr.f32.mxu0 0.0
      %519 = vmatmul.mubr.f32.gmra.mrb[0].mxu0 %v278
      %v520 = vpop.f32.mrb[0].mxu0
      %v521 = vadd.f32 0.0, %v520
      %v522 = vpop.f32.mrb[0].mxu0
      %523 = vmatprep.mubr.f32.mxu0 0.0
      %524 = vmatmul.mubr.f32.gmra.mrb[0].mxu0 %v279
      %v525 = vpop.f32.mrb[0].mxu0
      %v526 = vadd.f32 0.0, %v525
      %v527 = vpop.f32.mrb[0].mxu0
      %528 = vmatprep.mubr.f32.mxu0 0.0
      %529 = vmatmul.mubr.f32.gmra.mrb[0].mxu0 %v280
      %v530 = vpop.f32.mrb[0].mxu0
      %v531 = vadd.f32 0.0, %v530
      %v532 = vpop.f32.mrb[0].mxu0
      %533 = vmatprep.mubr.f32.mxu0 0.0
      %534 = vmatmul.mubr.f32.gmra.mrb[0].mxu0 %v281
      %v535 = vpop.f32.mrb[0].mxu0
      %v536 = vadd.f32 0.0, %v535
      %v537 = vpop.f32.mrb[0].mxu0
      %538 = vmatprep.mubr.f32.mxu0 0.0
      %539 = vmatmul.mubr.f32.gmra.mrb[0].mxu0 %v282
      %v540 = vpop.f32.mrb[0].mxu0
      %v541 = vadd.f32 0.0, %v540
      %v542 = vpop.f32.mrb[0].mxu0
      %543 = vmatprep.mubr.f32.mxu0 0.0
      %544 = vmatmul.mubr.f32.gmra.mrb[0].mxu0 %v283
      %v545 = vpop.f32.mrb[0].mxu0
      %v546 = vadd.f32 0.0, %v545
      %v547 = vpop.f32.mrb[0].mxu0
      %548 = vmatprep.mubr.f32.mxu0 0.0
      %549 = vmatmul.mubr.f32.gmra.mrb[0].mxu0 %v284
      %v550 = vpop.f32.mrb[0].mxu0
      %v551 = vadd.f32 0.0, %v550
      %v552 = vpop.f32.mrb[0].mxu0
      %553 = vmatprep.mubr.f32.mxu0 0.0
      %554 = vmatmul.mubr.f32.gmra.mrb[0].mxu0 %v285
      %v555 = vpop.f32.mrb[0].mxu0
      %v556 = vadd.f32 0.0, %v555
      %v557 = vpop.f32.mrb[0].mxu0
      %558 = vdwg.mxu0
      %v559 = vadd.f32 %v286, %v401
      %v560 = vadd.f32 %v287, %v406
      %v561 = vadd.f32 %v288, %v411
      %v562 = vadd.f32 %v289, %v416
      %v563 = vadd.f32 %v290, %v421
      %v564 = vadd.f32 %v291, %v426
      %v565 = vadd.f32 %v292, %v431
      %v566 = vadd.f32 %v293, %v436
      %v567 = vadd.f32 %v294, %v441
      %v568 = vadd.f32 %v295, %v446
      %v569 = vadd.f32 %v296, %v451
      %v570 = vadd.f32 %v297, %v456
      %v571 = vadd.f32 %v298, %v461
      %v572 = vadd.f32 %v299, %v466
      %v573 = vadd.f32 %v300, %v471
      %v574 = vadd.f32 %v301, %v476
      %v575 = vadd.f32 %v302, %v481
      %v576 = vadd.f32 %v303, %v486
      %v577 = vadd.f32 %v304, %v491
      %v578 = vadd.f32 %v305, %v496
      %v579 = vadd.f32 %v306, %v501
      %v580 = vadd.f32 %v307, %v506
      %v581 = vadd.f32 %v308, %v511
      %v582 = vadd.f32 %v309, %v516
      %v583 = vadd.f32 %v310, %v521
      %v584 = vadd.f32 %v311, %v526
      %v585 = vadd.f32 %v312, %v531
      %v586 = vadd.f32 %v313, %v536
      %v587 = vadd.f32 %v314, %v541
      %v588 = vadd.f32 %v315, %v546
      %v589 = vadd.f32 %v316, %v551
      %v590 = vadd.f32 %v317, %v556
      %591 = vst [vmem:[#allocation2] sm:$0xff] %v559
      %592 = vst [vmem:[#allocation2 + $0x8] sm:$0xff] %v560
      %593 = vst [vmem:[#allocation2 + $0x10] sm:$0xff] %v561
      %594 = vst [vmem:[#allocation2 + $0x18] sm:$0xff] %v562
      %595 = vst [vmem:[#allocation2 + $0x20] sm:$0xff] %v563
      %596 = vst [vmem:[#allocation2 + $0x28] sm:$0xff] %v564
      %597 = vst [vmem:[#allocation2 + $0x30] sm:$0xff] %v565
      %598 = vst [vmem:[#allocation2 + $0x38] sm:$0xff] %v566
      %599 = vst [vmem:[#allocation2 + $0x40] sm:$0xff] %v567
      %600 = vst [vmem:[#allocation2 + $0x48] sm:$0xff] %v568
      %601 = vst [vmem:[#allocation2 + $0x50] sm:$0xff] %v569
      %602 = vst [vmem:[#allocation2 + $0x58] sm:$0xff] %v570
      %603 = vst [vmem:[#allocation2 + $0x60] sm:$0xff] %v571
      %604 = vst [vmem:[#allocation2 + $0x68] sm:$0xff] %v572
      %605 = vst [vmem:[#allocation2 + $0x70] sm:$0xff] %v573
      %606 = vst [vmem:[#allocation2 + $0x78] sm:$0xff] %v574
      %607 = vst [vmem:[#allocation2 + $0x80] sm:$0xff] %v575
      %608 = vst [vmem:[#allocation2 + $0x88] sm:$0xff] %v576
      %609 = vst [vmem:[#allocation2 + $0x90] sm:$0xff] %v577
      %610 = vst [vmem:[#allocation2 + $0x98] sm:$0xff] %v578
      %611 = vst [vmem:[#allocation2 + $0xa0] sm:$0xff] %v579
      %612 = vst [vmem:[#allocation2 + $0xa8] sm:$0xff] %v580
      %613 = vst [vmem:[#allocation2 + $0xb0] sm:$0xff] %v581
      %614 = vst [vmem:[#allocation2 + $0xb8] sm:$0xff] %v582
      %615 = vst [vmem:[#allocation2 + $0xc0] sm:$0xff] %v583
      %616 = vst [vmem:[#allocation2 + $0xc8] sm:$0xff] %v584
      %617 = vst [vmem:[#allocation2 + $0xd0] sm:$0xff] %v585
      %618 = vst [vmem:[#allocation2 + $0xd8] sm:$0xff] %v586
      %619 = vst [vmem:[#allocation2 + $0xe0] sm:$0xff] %v587
      %620 = vst [vmem:[#allocation2 + $0xe8] sm:$0xff] %v588
      %621 = vst [vmem:[#allocation2 + $0xf0] sm:$0xff] %v589
      %622 = vst [vmem:[#allocation2 + $0xf8] sm:$0xff] %v590
      %v623 = vld [vmem:[%s206 + $0x1] sm:$0xff]
      %v624 = vld [vmem:[%s206 + $0x9] sm:$0xff]
      %v625 = vld [vmem:[%s206 + $0x19] sm:$0xff]
      %v626 = vld [vmem:[%s206 + $0x21] sm:$0xff]
      %v627 = vld [vmem:[%s206 + $0x31] sm:$0xff]
      %v628 = vld [vmem:[%s206 + $0x39] sm:$0xff]
      %v629 = vld [vmem:[%s206 + $0x49] sm:$0xff]
      %v630 = vld [vmem:[%s206 + $0x51] sm:$0xff]
      %v631 = vld [vmem:[%s206 + $0x61] sm:$0xff]
      %v632 = vld [vmem:[%s206 + $0x69] sm:$0xff]
      %v633 = vld [vmem:[%s206 + $0x79] sm:$0xff]
      %v634 = vld [vmem:[%s206 + $0x81] sm:$0xff]
      %v635 = vld [vmem:[%s206 + $0x91] sm:$0xff]
      %v636 = vld [vmem:[%s206 + $0x99] sm:$0xff]
      %v637 = vld [vmem:[%s206 + $0xa9] sm:$0xff]
      %v638 = vld [vmem:[%s206 + $0xb1] sm:$0xff]
      %v639 = vld [vmem:[%s206 + $0xc1] sm:$0xff]
      %v640 = vld [vmem:[%s206 + $0xc9] sm:$0xff]
      %v641 = vld [vmem:[%s206 + $0xd9] sm:$0xff]
      %v642 = vld [vmem:[%s206 + $0xe1] sm:$0xff]
      %v643 = vld [vmem:[%s206 + $0xf1] sm:$0xff]
      %v644 = vld [vmem:[%s206 + $0xf9] sm:$0xff]
      %v645 = vld [vmem:[%s206 + $0x109] sm:$0xff]
      %v646 = vld [vmem:[%s206 + $0x111] sm:$0xff]
      %v647 = vld [vmem:[%s206 + $0x121] sm:$0xff]
      %v648 = vld [vmem:[%s206 + $0x129] sm:$0xff]
      %v649 = vld [vmem:[%s206 + $0x139] sm:$0xff]
      %v650 = vld [vmem:[%s206 + $0x141] sm:$0xff]
      %v651 = vld [vmem:[%s206 + $0x151] sm:$0xff]
      %v652 = vld [vmem:[%s206 + $0x159] sm:$0xff]
      %v653 = vld [vmem:[%s206 + $0x169] sm:$0xff]
      %v654 = vld [vmem:[%s206 + $0x171] sm:$0xff]
      %v655 = vld [vmem:[#allocation2] sm:$0xff]
      %v656 = vld [vmem:[#allocation2 + $0x8] sm:$0xff]
      %v657 = vld [vmem:[#allocation2 + $0x10] sm:$0xff]
      %v658 = vld [vmem:[#allocation2 + $0x18] sm:$0xff]
      %v659 = vld [vmem:[#allocation2 + $0x20] sm:$0xff]
      %v660 = vld [vmem:[#allocation2 + $0x28] sm:$0xff]
      %v661 = vld [vmem:[#allocation2 + $0x30] sm:$0xff]
      %v662 = vld [vmem:[#allocation2 + $0x38] sm:$0xff]
      %v663 = vld [vmem:[#allocation2 + $0x40] sm:$0xff]
      %v664 = vld [vmem:[#allocation2 + $0x48] sm:$0xff]
      %v665 = vld [vmem:[#allocation2 + $0x50] sm:$0xff]
      %v666 = vld [vmem:[#allocation2 + $0x58] sm:$0xff]
      %v667 = vld [vmem:[#allocation2 + $0x60] sm:$0xff]
      %v668 = vld [vmem:[#allocation2 + $0x68] sm:$0xff]
      %v669 = vld [vmem:[#allocation2 + $0x70] sm:$0xff]
      %v670 = vld [vmem:[#allocation2 + $0x78] sm:$0xff]
      %v671 = vld [vmem:[#allocation2 + $0x80] sm:$0xff]
      %v672 = vld [vmem:[#allocation2 + $0x88] sm:$0xff]
      %v673 = vld [vmem:[#allocation2 + $0x90] sm:$0xff]
      %v674 = vld [vmem:[#allocation2 + $0x98] sm:$0xff]
      %v675 = vld [vmem:[#allocation2 + $0xa0] sm:$0xff]
      %v676 = vld [vmem:[#allocation2 + $0xa8] sm:$0xff]
      %v677 = vld [vmem:[#allocation2 + $0xb0] sm:$0xff]
      %v678 = vld [vmem:[#allocation2 + $0xb8] sm:$0xff]
      %v679 = vld [vmem:[#allocation2 + $0xc0] sm:$0xff]
      %v680 = vld [vmem:[#allocation2 + $0xc8] sm:$0xff]
      %v681 = vld [vmem:[#allocation2 + $0xd0] sm:$0xff]
      %v682 = vld [vmem:[#allocation2 + $0xd8] sm:$0xff]
      %v683 = vld [vmem:[#allocation2 + $0xe0] sm:$0xff]
      %v684 = vld [vmem:[#allocation2 + $0xe8] sm:$0xff]
      %v685 = vld [vmem:[#allocation2 + $0xf0] sm:$0xff]
      %v686 = vld [vmem:[#allocation2 + $0xf8] sm:$0xff]
      %s687 = scalar_lea.vmem %s210, 128
      %v688 = vld [vmem:[%s687] sm:$0xff]
      %v689 = vld [vmem:[%s687 + $0x8] sm:$0xff]
      %v690 = vld [vmem:[%s687 + $0x10] sm:$0xff]
      %v691 = vld [vmem:[%s687 + $0x18] sm:$0xff]
      %v692 = vld [vmem:[%s687 + $0x20] sm:$0xff]
      %v693 = vld [vmem:[%s687 + $0x28] sm:$0xff]
      %v694 = vld [vmem:[%s687 + $0x30] sm:$0xff]
      %v695 = vld [vmem:[%s687 + $0x38] sm:$0xff]
      %v696 = vld [vmem:[%s687 + $0x40] sm:$0xff]
      %v697 = vld [vmem:[%s687 + $0x48] sm:$0xff]
      %v698 = vld [vmem:[%s687 + $0x50] sm:$0xff]
      %v699 = vld [vmem:[%s687 + $0x58] sm:$0xff]
      %v700 = vld [vmem:[%s687 + $0x60] sm:$0xff]
      %v701 = vld [vmem:[%s687 + $0x68] sm:$0xff]
      %v702 = vld [vmem:[%s687 + $0x70] sm:$0xff]
      %v703 = vld [vmem:[%s687 + $0x78] sm:$0xff]
      %704 = vmatprep.subr.mxu0 0.0
      %705 = vmatpush1.msra.mxu0 %v688
      %706 = vmatprep.subr.mxu0 0.0
      %707 = vmatpush1.msra.mxu0 %v689
      %708 = vmatprep.subr.mxu0 0.0
      %709 = vmatpush1.msra.mxu0 %v690
      %710 = vmatprep.subr.mxu0 0.0
      %711 = vmatpush1.msra.mxu0 %v691
      %712 = vmatprep.subr.mxu0 0.0
      %713 = vmatpush1.msra.mxu0 %v692
      %714 = vmatprep.subr.mxu0 0.0
      %715 = vmatpush1.msra.mxu0 %v693
      %716 = vmatprep.subr.mxu0 0.0
      %717 = vmatpush1.msra.mxu0 %v694
      %718 = vmatprep.subr.mxu0 0.0
      %719 = vmatpush1.msra.mxu0 %v695
      %720 = vmatprep.subr.mxu0 0.0
      %721 = vmatpush1.msra.mxu0 %v696
      %722 = vmatprep.subr.mxu0 0.0
      %723 = vmatpush1.msra.mxu0 %v697
      %724 = vmatprep.subr.mxu0 0.0
      %725 = vmatpush1.msra.mxu0 %v698
      %726 = vmatprep.subr.mxu0 0.0
      %727 = vmatpush1.msra.mxu0 %v699
      %728 = vmatprep.subr.mxu0 0.0
      %729 = vmatpush1.msra.mxu0 %v700
      %730 = vmatprep.subr.mxu0 0.0
      %731 = vmatpush1.msra.mxu0 %v701
      %732 = vmatprep.subr.mxu0 0.0
      %733 = vmatpush1.msra.mxu0 %v702
      %734 = vmatprep.subr.mxu0 0.0
      %735 = vmatpush1.msra.mxu0 %v703
      %736 = vmatprep.subr.mxu0 0.0
      %737 = vmatpush1.msra.mxu0 0.0
      %738 = vmatprep.subr.mxu0 0.0
      %739 = vmatpush1.msra.mxu0 0.0
      %740 = vmatprep.subr.mxu0 0.0
      %741 = vmatpush1.msra.mxu0 0.0
      %742 = vmatprep.subr.mxu0 0.0
      %743 = vmatpush1.msra.mxu0 0.0
      %744 = vmatprep.subr.mxu0 0.0
      %745 = vmatpush1.msra.mxu0 0.0
      %746 = vmatprep.subr.mxu0 0.0
      %747 = vmatpush1.msra.mxu0 0.0
      %748 = vmatprep.subr.mxu0 0.0
      %749 = vmatpush1.msra.mxu0 0.0
      %750 = vmatprep.subr.mxu0 0.0
      %751 = vmatpush1.msra.mxu0 0.0
      %752 = vmatprep.subr.mxu0 0.0
      %753 = vmatpush1.msra.mxu0 0.0
      %754 = vmatprep.subr.mxu0 0.0
      %755 = vmatpush1.msra.mxu0 0.0
      %756 = vmatprep.subr.mxu0 0.0
      %757 = vmatpush1.msra.mxu0 0.0
      %758 = vmatprep.subr.mxu0 0.0
      %759 = vmatpush1.msra.mxu0 0.0
      %760 = vmatprep.subr.mxu0 0.0
      %761 = vmatpush1.msra.mxu0 0.0
      %762 = vmatprep.subr.mxu0 0.0
      %763 = vmatpush1.msra.mxu0 0.0
      %764 = vmatprep.subr.mxu0 0.0
      %765 = vmatpush1.msra.mxu0 0.0
      %766 = vmatprep.subr.mxu0 0.0
      %767 = vmatpush1.msra.mxu0 0.0
      %768 = vmatprep.mubr.f32.mxu0 0.0
      %769 = vmatmul.mubr.f32.gmra.mrb[0].mxu0 %v623
      %v770 = vpop.f32.mrb[0].mxu0
      %v771 = vadd.f32 0.0, %v770
      %v772 = vpop.f32.mrb[0].mxu0
      %773 = vmatprep.mubr.f32.mxu0 0.0
      %774 = vmatmul.mubr.f32.gmra.mrb[0].mxu0 %v624
      %v775 = vpop.f32.mrb[0].mxu0
      %v776 = vadd.f32 0.0, %v775
      %v777 = vpop.f32.mrb[0].mxu0
      %778 = vmatprep.mubr.f32.mxu0 0.0
      %779 = vmatmul.mubr.f32.gmra.mrb[0].mxu0 %v625
      %v780 = vpop.f32.mrb[0].mxu0
      %v781 = vadd.f32 0.0, %v780
      %v782 = vpop.f32.mrb[0].mxu0
      %783 = vmatprep.mubr.f32.mxu0 0.0
      %784 = vmatmul.mubr.f32.gmra.mrb[0].mxu0 %v626
      %v785 = vpop.f32.mrb[0].mxu0
      %v786 = vadd.f32 0.0, %v785
      %v787 = vpop.f32.mrb[0].mxu0
      %788 = vmatprep.mubr.f32.mxu0 0.0
      %789 = vmatmul.mubr.f32.gmra.mrb[0].mxu0 %v627
      %v790 = vpop.f32.mrb[0].mxu0
      %v791 = vadd.f32 0.0, %v790
      %v792 = vpop.f32.mrb[0].mxu0
      %793 = vmatprep.mubr.f32.mxu0 0.0
      %794 = vmatmul.mubr.f32.gmra.mrb[0].mxu0 %v628
      %v795 = vpop.f32.mrb[0].mxu0
      %v796 = vadd.f32 0.0, %v795
      %v797 = vpop.f32.mrb[0].mxu0
      %798 = vmatprep.mubr.f32.mxu0 0.0
      %799 = vmatmul.mubr.f32.gmra.mrb[0].mxu0 %v629
      %v800 = vpop.f32.mrb[0].mxu0
      %v801 = vadd.f32 0.0, %v800
      %v802 = vpop.f32.mrb[0].mxu0
      %803 = vmatprep.mubr.f32.mxu0 0.0
      %804 = vmatmul.mubr.f32.gmra.mrb[0].mxu0 %v630
      %v805 = vpop.f32.mrb[0].mxu0
      %v806 = vadd.f32 0.0, %v805
      %v807 = vpop.f32.mrb[0].mxu0
      %808 = vmatprep.mubr.f32.mxu0 0.0
      %809 = vmatmul.mubr.f32.gmra.mrb[0].mxu0 %v631
      %v810 = vpop.f32.mrb[0].mxu0
      %v811 = vadd.f32 0.0, %v810
      %v812 = vpop.f32.mrb[0].mxu0
      %813 = vmatprep.mubr.f32.mxu0 0.0
      %814 = vmatmul.mubr.f32.gmra.mrb[0].mxu0 %v632
      %v815 = vpop.f32.mrb[0].mxu0
      %v816 = vadd.f32 0.0, %v815
      %v817 = vpop.f32.mrb[0].mxu0
      %818 = vmatprep.mubr.f32.mxu0 0.0
      %819 = vmatmul.mubr.f32.gmra.mrb[0].mxu0 %v633
      %v820 = vpop.f32.mrb[0].mxu0
      %v821 = vadd.f32 0.0, %v820
      %v822 = vpop.f32.mrb[0].mxu0
      %823 = vmatprep.mubr.f32.mxu0 0.0
      %824 = vmatmul.mubr.f32.gmra.mrb[0].mxu0 %v634
      %v825 = vpop.f32.mrb[0].mxu0
      %v826 = vadd.f32 0.0, %v825
      %v827 = vpop.f32.mrb[0].mxu0
      %828 = vmatprep.mubr.f32.mxu0 0.0
      %829 = vmatmul.mubr.f32.gmra.mrb[0].mxu0 %v635
      %v830 = vpop.f32.mrb[0].mxu0
      %v831 = vadd.f32 0.0, %v830
      %v832 = vpop.f32.mrb[0].mxu0
      %833 = vmatprep.mubr.f32.mxu0 0.0
      %834 = vmatmul.mubr.f32.gmra.mrb[0].mxu0 %v636
      %v835 = vpop.f32.mrb[0].mxu0
      %v836 = vadd.f32 0.0, %v835
      %v837 = vpop.f32.mrb[0].mxu0
      %838 = vmatprep.mubr.f32.mxu0 0.0
      %839 = vmatmul.mubr.f32.gmra.mrb[0].mxu0 %v637
      %v840 = vpop.f32.mrb[0].mxu0
      %v841 = vadd.f32 0.0, %v840
      %v842 = vpop.f32.mrb[0].mxu0
      %843 = vmatprep.mubr.f32.mxu0 0.0
      %844 = vmatmul.mubr.f32.gmra.mrb[0].mxu0 %v638
      %v845 = vpop.f32.mrb[0].mxu0
      %v846 = vadd.f32 0.0, %v845
      %v847 = vpop.f32.mrb[0].mxu0
      %848 = vmatprep.mubr.f32.mxu0 0.0
      %849 = vmatmul.mubr.f32.gmra.mrb[0].mxu0 %v639
      %v850 = vpop.f32.mrb[0].mxu0
      %v851 = vadd.f32 0.0, %v850
      %v852 = vpop.f32.mrb[0].mxu0
      %853 = vmatprep.mubr.f32.mxu0 0.0
      %854 = vmatmul.mubr.f32.gmra.mrb[0].mxu0 %v640
      %v855 = vpop.f32.mrb[0].mxu0
      %v856 = vadd.f32 0.0, %v855
      %v857 = vpop.f32.mrb[0].mxu0
      %858 = vmatprep.mubr.f32.mxu0 0.0
      %859 = vmatmul.mubr.f32.gmra.mrb[0].mxu0 %v641
      %v860 = vpop.f32.mrb[0].mxu0
      %v861 = vadd.f32 0.0, %v860
      %v862 = vpop.f32.mrb[0].mxu0
      %863 = vmatprep.mubr.f32.mxu0 0.0
      %864 = vmatmul.mubr.f32.gmra.mrb[0].mxu0 %v642
      %v865 = vpop.f32.mrb[0].mxu0
      %v866 = vadd.f32 0.0, %v865
      %v867 = vpop.f32.mrb[0].mxu0
      %868 = vmatprep.mubr.f32.mxu0 0.0
      %869 = vmatmul.mubr.f32.gmra.mrb[0].mxu0 %v643
      %v870 = vpop.f32.mrb[0].mxu0
      %v871 = vadd.f32 0.0, %v870
      %v872 = vpop.f32.mrb[0].mxu0
      %873 = vmatprep.mubr.f32.mxu0 0.0
      %874 = vmatmul.mubr.f32.gmra.mrb[0].mxu0 %v644
      %v875 = vpop.f32.mrb[0].mxu0
      %v876 = vadd.f32 0.0, %v875
      %v877 = vpop.f32.mrb[0].mxu0
      %878 = vmatprep.mubr.f32.mxu0 0.0
      %879 = vmatmul.mubr.f32.gmra.mrb[0].mxu0 %v645
      %v880 = vpop.f32.mrb[0].mxu0
      %v881 = vadd.f32 0.0, %v880
      %v882 = vpop.f32.mrb[0].mxu0
      %883 = vmatprep.mubr.f32.mxu0 0.0
      %884 = vmatmul.mubr.f32.gmra.mrb[0].mxu0 %v646
      %v885 = vpop.f32.mrb[0].mxu0
      %v886 = vadd.f32 0.0, %v885
      %v887 = vpop.f32.mrb[0].mxu0
      %888 = vmatprep.mubr.f32.mxu0 0.0
      %889 = vmatmul.mubr.f32.gmra.mrb[0].mxu0 %v647
      %v890 = vpop.f32.mrb[0].mxu0
      %v891 = vadd.f32 0.0, %v890
      %v892 = vpop.f32.mrb[0].mxu0
      %893 = vmatprep.mubr.f32.mxu0 0.0
      %894 = vmatmul.mubr.f32.gmra.mrb[0].mxu0 %v648
      %v895 = vpop.f32.mrb[0].mxu0
      %v896 = vadd.f32 0.0, %v895
      %v897 = vpop.f32.mrb[0].mxu0
      %898 = vmatprep.mubr.f32.mxu0 0.0
      %899 = vmatmul.mubr.f32.gmra.mrb[0].mxu0 %v649
      %v900 = vpop.f32.mrb[0].mxu0
      %v901 = vadd.f32 0.0, %v900
      %v902 = vpop.f32.mrb[0].mxu0
      %903 = vmatprep.mubr.f32.mxu0 0.0
      %904 = vmatmul.mubr.f32.gmra.mrb[0].mxu0 %v650
      %v905 = vpop.f32.mrb[0].mxu0
      %v906 = vadd.f32 0.0, %v905
      %v907 = vpop.f32.mrb[0].mxu0
      %908 = vmatprep.mubr.f32.mxu0 0.0
      %909 = vmatmul.mubr.f32.gmra.mrb[0].mxu0 %v651
      %v910 = vpop.f32.mrb[0].mxu0
      %v911 = vadd.f32 0.0, %v910
      %v912 = vpop.f32.mrb[0].mxu0
      %913 = vmatprep.mubr.f32.mxu0 0.0
      %914 = vmatmul.mubr.f32.gmra.mrb[0].mxu0 %v652
      %v915 = vpop.f32.mrb[0].mxu0
      %v916 = vadd.f32 0.0, %v915
      %v917 = vpop.f32.mrb[0].mxu0
      %918 = vmatprep.mubr.f32.mxu0 0.0
      %919 = vmatmul.mubr.f32.gmra.mrb[0].mxu0 %v653
      %v920 = vpop.f32.mrb[0].mxu0
      %v921 = vadd.f32 0.0, %v920
      %v922 = vpop.f32.mrb[0].mxu0
      %923 = vmatprep.mubr.f32.mxu0 0.0
      %924 = vmatmul.mubr.f32.gmra.mrb[0].mxu0 %v654
      %v925 = vpop.f32.mrb[0].mxu0
      %v926 = vadd.f32 0.0, %v925
      %v927 = vpop.f32.mrb[0].mxu0
      %928 = vdwg.mxu0
      %v929 = vadd.f32 %v655, %v771
      %v930 = vadd.f32 %v656, %v776
      %v931 = vadd.f32 %v657, %v781
      %v932 = vadd.f32 %v658, %v786
      %v933 = vadd.f32 %v659, %v791
      %v934 = vadd.f32 %v660, %v796
      %v935 = vadd.f32 %v661, %v801
      %v936 = vadd.f32 %v662, %v806
      %v937 = vadd.f32 %v663, %v811
      %v938 = vadd.f32 %v664, %v816
      %v939 = vadd.f32 %v665, %v821
      %v940 = vadd.f32 %v666, %v826
      %v941 = vadd.f32 %v667, %v831
      %v942 = vadd.f32 %v668, %v836
      %v943 = vadd.f32 %v669, %v841
      %v944 = vadd.f32 %v670, %v846
      %v945 = vadd.f32 %v671, %v851
      %v946 = vadd.f32 %v672, %v856
      %v947 = vadd.f32 %v673, %v861
      %v948 = vadd.f32 %v674, %v866
      %v949 = vadd.f32 %v675, %v871
      %v950 = vadd.f32 %v676, %v876
      %v951 = vadd.f32 %v677, %v881
      %v952 = vadd.f32 %v678, %v886
      %v953 = vadd.f32 %v679, %v891
      %v954 = vadd.f32 %v680, %v896
      %v955 = vadd.f32 %v681, %v901
      %v956 = vadd.f32 %v682, %v906
      %v957 = vadd.f32 %v683, %v911
      %v958 = vadd.f32 %v684, %v916
      %v959 = vadd.f32 %v685, %v921
      %v960 = vadd.f32 %v686, %v926
      %961 = vst [vmem:[#allocation2] sm:$0xff] %v929
      %962 = vst [vmem:[#allocation2 + $0x8] sm:$0xff] %v930
      %963 = vst [vmem:[#allocation2 + $0x10] sm:$0xff] %v931
      %964 = vst [vmem:[#allocation2 + $0x18] sm:$0xff] %v932
      %965 = vst [vmem:[#allocation2 + $0x20] sm:$0xff] %v933
      %966 = vst [vmem:[#allocation2 + $0x28] sm:$0xff] %v934
      %967 = vst [vmem:[#allocation2 + $0x30] sm:$0xff] %v935
      %968 = vst [vmem:[#allocation2 + $0x38] sm:$0xff] %v936
      %969 = vst [vmem:[#allocation2 + $0x40] sm:$0xff] %v937
      %970 = vst [vmem:[#allocation2 + $0x48] sm:$0xff] %v938
      %971 = vst [vmem:[#allocation2 + $0x50] sm:$0xff] %v939
      %972 = vst [vmem:[#allocation2 + $0x58] sm:$0xff] %v940
      %973 = vst [vmem:[#allocation2 + $0x60] sm:$0xff] %v941
      %974 = vst [vmem:[#allocation2 + $0x68] sm:$0xff] %v942
      %975 = vst [vmem:[#allocation2 + $0x70] sm:$0xff] %v943
      %976 = vst [vmem:[#allocation2 + $0x78] sm:$0xff] %v944
      %977 = vst [vmem:[#allocation2 + $0x80] sm:$0xff] %v945
      %978 = vst [vmem:[#allocation2 + $0x88] sm:$0xff] %v946
      %979 = vst [vmem:[#allocation2 + $0x90] sm:$0xff] %v947
      %980 = vst [vmem:[#allocation2 + $0x98] sm:$0xff] %v948
      %981 = vst [vmem:[#allocation2 + $0xa0] sm:$0xff] %v949
      %982 = vst [vmem:[#allocation2 + $0xa8] sm:$0xff] %v950
      %983 = vst [vmem:[#allocation2 + $0xb0] sm:$0xff] %v951
      %984 = vst [vmem:[#allocation2 + $0xb8] sm:$0xff] %v952
      %985 = vst [vmem:[#allocation2 + $0xc0] sm:$0xff] %v953
      %986 = vst [vmem:[#allocation2 + $0xc8] sm:$0xff] %v954
      %987 = vst [vmem:[#allocation2 + $0xd0] sm:$0xff] %v955
      %988 = vst [vmem:[#allocation2 + $0xd8] sm:$0xff] %v956
      %989 = vst [vmem:[#allocation2 + $0xe0] sm:$0xff] %v957
      %990 = vst [vmem:[#allocation2 + $0xe8] sm:$0xff] %v958
      %991 = vst [vmem:[#allocation2 + $0xf0] sm:$0xff] %v959
      %992 = vst [vmem:[#allocation2 + $0xf8] sm:$0xff] %v960
      %v993 = vld [vmem:[%s206 + $0x2] sm:$0xff]
      %v994 = vld [vmem:[%s206 + $0xa] sm:$0xff]
      %v995 = vld [vmem:[%s206 + $0x1a] sm:$0xff]
      %v996 = vld [vmem:[%s206 + $0x22] sm:$0xff]
      %v997 = vld [vmem:[%s206 + $0x32] sm:$0xff]
      %v998 = vld [vmem:[%s206 + $0x3a] sm:$0xff]
      %v999 = vld [vmem:[%s206 + $0x4a] sm:$0xff]
      %v1000 = vld [vmem:[%s206 + $0x52] sm:$0xff]
      %v1001 = vld [vmem:[%s206 + $0x62] sm:$0xff]
      %v1002 = vld [vmem:[%s206 + $0x6a] sm:$0xff]
      %v1003 = vld [vmem:[%s206 + $0x7a] sm:$0xff]
      %v1004 = vld [vmem:[%s206 + $0x82] sm:$0xff]
      %v1005 = vld [vmem:[%s206 + $0x92] sm:$0xff]
      %v1006 = vld [vmem:[%s206 + $0x9a] sm:$0xff]
      %v1007 = vld [vmem:[%s206 + $0xaa] sm:$0xff]
      %v1008 = vld [vmem:[%s206 + $0xb2] sm:$0xff]
      %v1009 = vld [vmem:[%s206 + $0xc2] sm:$0xff]
      %v1010 = vld [vmem:[%s206 + $0xca] sm:$0xff]
      %v1011 = vld [vmem:[%s206 + $0xda] sm:$0xff]
      %v1012 = vld [vmem:[%s206 + $0xe2] sm:$0xff]
      %v1013 = vld [vmem:[%s206 + $0xf2] sm:$0xff]
      %v1014 = vld [vmem:[%s206 + $0xfa] sm:$0xff]
      %v1015 = vld [vmem:[%s206 + $0x10a] sm:$0xff]
      %v1016 = vld [vmem:[%s206 + $0x112] sm:$0xff]
      %v1017 = vld [vmem:[%s206 + $0x122] sm:$0xff]
      %v1018 = vld [vmem:[%s206 + $0x12a] sm:$0xff]
      %v1019 = vld [vmem:[%s206 + $0x13a] sm:$0xff]
      %v1020 = vld [vmem:[%s206 + $0x142] sm:$0xff]
      %v1021 = vld [vmem:[%s206 + $0x152] sm:$0xff]
      %v1022 = vld [vmem:[%s206 + $0x15a] sm:$0xff]
      %v1023 = vld [vmem:[%s206 + $0x16a] sm:$0xff]
      %v1024 = vld [vmem:[%s206 + $0x172] sm:$0xff]
      %v1025 = vld [vmem:[#allocation2] sm:$0xff]
      %v1026 = vld [vmem:[#allocation2 + $0x8] sm:$0xff]
      %v1027 = vld [vmem:[#allocation2 + $0x10] sm:$0xff]
      %v1028 = vld [vmem:[#allocation2 + $0x18] sm:$0xff]
      %v1029 = vld [vmem:[#allocation2 + $0x20] sm:$0xff]
      %v1030 = vld [vmem:[#allocation2 + $0x28] sm:$0xff]
      %v1031 = vld [vmem:[#allocation2 + $0x30] sm:$0xff]
      %v1032 = vld [vmem:[#allocation2 + $0x38] sm:$0xff]
      %v1033 = vld [vmem:[#allocation2 + $0x40] sm:$0xff]
      %v1034 = vld [vmem:[#allocation2 + $0x48] sm:$0xff]
      %v1035 = vld [vmem:[#allocation2 + $0x50] sm:$0xff]
      %v1036 = vld [vmem:[#allocation2 + $0x58] sm:$0xff]
      %v1037 = vld [vmem:[#allocation2 + $0x60] sm:$0xff]
      %v1038 = vld [vmem:[#allocation2 + $0x68] sm:$0xff]
      %v1039 = vld [vmem:[#allocation2 + $0x70] sm:$0xff]
      %v1040 = vld [vmem:[#allocation2 + $0x78] sm:$0xff]
      %v1041 = vld [vmem:[#allocation2 + $0x80] sm:$0xff]
      %v1042 = vld [vmem:[#allocation2 + $0x88] sm:$0xff]
      %v1043 = vld [vmem:[#allocation2 + $0x90] sm:$0xff]
      %v1044 = vld [vmem:[#allocation2 + $0x98] sm:$0xff]
      %v1045 = vld [vmem:[#allocation2 + $0xa0] sm:$0xff]
      %v1046 = vld [vmem:[#allocation2 + $0xa8] sm:$0xff]
      %v1047 = vld [vmem:[#allocation2 + $0xb0] sm:$0xff]
      %v1048 = vld [vmem:[#allocation2 + $0xb8] sm:$0xff]
      %v1049 = vld [vmem:[#allocation2 + $0xc0] sm:$0xff]
      %v1050 = vld [vmem:[#allocation2 + $0xc8] sm:$0xff]
      %v1051 = vld [vmem:[#allocation2 + $0xd0] sm:$0xff]
      %v1052 = vld [vmem:[#allocation2 + $0xd8] sm:$0xff]
      %v1053 = vld [vmem:[#allocation2 + $0xe0] sm:$0xff]
      %v1054 = vld [vmem:[#allocation2 + $0xe8] sm:$0xff]
      %v1055 = vld [vmem:[#allocation2 + $0xf0] sm:$0xff]
      %v1056 = vld [vmem:[#allocation2 + $0xf8] sm:$0xff]
      %s1057 = scalar_lea.vmem %s210, 256
      %v1058 = vld [vmem:[%s1057] sm:$0xff]
      %v1059 = vld [vmem:[%s1057 + $0x8] sm:$0xff]
      %v1060 = vld [vmem:[%s1057 + $0x10] sm:$0xff]
      %v1061 = vld [vmem:[%s1057 + $0x18] sm:$0xff]
      %v1062 = vld [vmem:[%s1057 + $0x20] sm:$0xff]
      %v1063 = vld [vmem:[%s1057 + $0x28] sm:$0xff]
      %v1064 = vld [vmem:[%s1057 + $0x30] sm:$0xff]
      %v1065 = vld [vmem:[%s1057 + $0x38] sm:$0xff]
      %v1066 = vld [vmem:[%s1057 + $0x40] sm:$0xff]
      %v1067 = vld [vmem:[%s1057 + $0x48] sm:$0xff]
      %v1068 = vld [vmem:[%s1057 + $0x50] sm:$0xff]
      %v1069 = vld [vmem:[%s1057 + $0x58] sm:$0xff]
      %v1070 = vld [vmem:[%s1057 + $0x60] sm:$0xff]
      %v1071 = vld [vmem:[%s1057 + $0x68] sm:$0xff]
      %v1072 = vld [vmem:[%s1057 + $0x70] sm:$0xff]
      %v1073 = vld [vmem:[%s1057 + $0x78] sm:$0xff]
      %1074 = vmatprep.subr.mxu0 0.0
      %1075 = vmatpush1.msra.mxu0 %v1058
      %1076 = vmatprep.subr.mxu0 0.0
      %1077 = vmatpush1.msra.mxu0 %v1059
      %1078 = vmatprep.subr.mxu0 0.0
      %1079 = vmatpush1.msra.mxu0 %v1060
      %1080 = vmatprep.subr.mxu0 0.0
      %1081 = vmatpush1.msra.mxu0 %v1061
      %1082 = vmatprep.subr.mxu0 0.0
      %1083 = vmatpush1.msra.mxu0 %v1062
      %1084 = vmatprep.subr.mxu0 0.0
      %1085 = vmatpush1.msra.mxu0 %v1063
      %1086 = vmatprep.subr.mxu0 0.0
      %1087 = vmatpush1.msra.mxu0 %v1064
      %1088 = vmatprep.subr.mxu0 0.0
      %1089 = vmatpush1.msra.mxu0 %v1065
      %1090 = vmatprep.subr.mxu0 0.0
      %1091 = vmatpush1.msra.mxu0 %v1066
      %1092 = vmatprep.subr.mxu0 0.0
      %1093 = vmatpush1.msra.mxu0 %v1067
      %1094 = vmatprep.subr.mxu0 0.0
      %1095 = vmatpush1.msra.mxu0 %v1068
      %1096 = vmatprep.subr.mxu0 0.0
      %1097 = vmatpush1.msra.mxu0 %v1069
      %1098 = vmatprep.subr.mxu0 0.0
      %1099 = vmatpush1.msra.mxu0 %v1070
      %1100 = vmatprep.subr.mxu0 0.0
      %1101 = vmatpush1.msra.mxu0 %v1071
      %1102 = vmatprep.subr.mxu0 0.0
      %1103 = vmatpush1.msra.mxu0 %v1072
      %1104 = vmatprep.subr.mxu0 0.0
      %1105 = vmatpush1.msra.mxu0 %v1073
      %1106 = vmatprep.subr.mxu0 0.0
      %1107 = vmatpush1.msra.mxu0 0.0
      %1108 = vmatprep.subr.mxu0 0.0
      %1109 = vmatpush1.msra.mxu0 0.0
      %1110 = vmatprep.subr.mxu0 0.0
      %1111 = vmatpush1.msra.mxu0 0.0
      %1112 = vmatprep.subr.mxu0 0.0
      %1113 = vmatpush1.msra.mxu0 0.0
      %1114 = vmatprep.subr.mxu0 0.0
      %1115 = vmatpush1.msra.mxu0 0.0
      %1116 = vmatprep.subr.mxu0 0.0
      %1117 = vmatpush1.msra.mxu0 0.0
      %1118 = vmatprep.subr.mxu0 0.0
      %1119 = vmatpush1.msra.mxu0 0.0
      %1120 = vmatprep.subr.mxu0 0.0
      %1121 = vmatpush1.msra.mxu0 0.0
      %1122 = vmatprep.subr.mxu0 0.0
      %1123 = vmatpush1.msra.mxu0 0.0
      %1124 = vmatprep.subr.mxu0 0.0
      %1125 = vmatpush1.msra.mxu0 0.0
      %1126 = vmatprep.subr.mxu0 0.0
      %1127 = vmatpush1.msra.mxu0 0.0
      %1128 = vmatprep.subr.mxu0 0.0
      %1129 = vmatpush1.msra.mxu0 0.0
      %1130 = vmatprep.subr.mxu0 0.0
      %1131 = vmatpush1.msra.mxu0 0.0
      %1132 = vmatprep.subr.mxu0 0.0
      %1133 = vmatpush1.msra.mxu0 0.0
      %1134 = vmatprep.subr.mxu0 0.0
      %1135 = vmatpush1.msra.mxu0 0.0
      %1136 = vmatprep.subr.mxu0 0.0
      %1137 = vmatpush1.msra.mxu0 0.0
      %1138 = vmatprep.mubr.f32.mxu0 0.0
      %1139 = vmatmul.mubr.f32.gmra.mrb[0].mxu0 %v993
      %v1140 = vpop.f32.mrb[0].mxu0
      %v1141 = vadd.f32 0.0, %v1140
      %v1142 = vpop.f32.mrb[0].mxu0
      %1143 = vmatprep.mubr.f32.mxu0 0.0
      %1144 = vmatmul.mubr.f32.gmra.mrb[0].mxu0 %v994
      %v1145 = vpop.f32.mrb[0].mxu0
      %v1146 = vadd.f32 0.0, %v1145
      %v1147 = vpop.f32.mrb[0].mxu0
      %1148 = vmatprep.mubr.f32.mxu0 0.0
      %1149 = vmatmul.mubr.f32.gmra.mrb[0].mxu0 %v995
      %v1150 = vpop.f32.mrb[0].mxu0
      %v1151 = vadd.f32 0.0, %v1150
      %v1152 = vpop.f32.mrb[0].mxu0
      %1153 = vmatprep.mubr.f32.mxu0 0.0
      %1154 = vmatmul.mubr.f32.gmra.mrb[0].mxu0 %v996
      %v1155 = vpop.f32.mrb[0].mxu0
      %v1156 = vadd.f32 0.0, %v1155
      %v1157 = vpop.f32.mrb[0].mxu0
      %1158 = vmatprep.mubr.f32.mxu0 0.0
      %1159 = vmatmul.mubr.f32.gmra.mrb[0].mxu0 %v997
      %v1160 = vpop.f32.mrb[0].mxu0
      %v1161 = vadd.f32 0.0, %v1160
      %v1162 = vpop.f32.mrb[0].mxu0
      %1163 = vmatprep.mubr.f32.mxu0 0.0
      %1164 = vmatmul.mubr.f32.gmra.mrb[0].mxu0 %v998
      %v1165 = vpop.f32.mrb[0].mxu0
      %v1166 = vadd.f32 0.0, %v1165
      %v1167 = vpop.f32.mrb[0].mxu0
      %1168 = vmatprep.mubr.f32.mxu0 0.0
      %1169 = vmatmul.mubr.f32.gmra.mrb[0].mxu0 %v999
      %v1170 = vpop.f32.mrb[0].mxu0
      %v1171 = vadd.f32 0.0, %v1170
      %v1172 = vpop.f32.mrb[0].mxu0
      %1173 = vmatprep.mubr.f32.mxu0 0.0
      %1174 = vmatmul.mubr.f32.gmra.mrb[0].mxu0 %v1000
      %v1175 = vpop.f32.mrb[0].mxu0
      %v1176 = vadd.f32 0.0, %v1175
      %v1177 = vpop.f32.mrb[0].mxu0
      %1178 = vmatprep.mubr.f32.mxu0 0.0
      %1179 = vmatmul.mubr.f32.gmra.mrb[0].mxu0 %v1001
      %v1180 = vpop.f32.mrb[0].mxu0
      %v1181 = vadd.f32 0.0, %v1180
      %v1182 = vpop.f32.mrb[0].mxu0
      %1183 = vmatprep.mubr.f32.mxu0 0.0
      %1184 = vmatmul.mubr.f32.gmra.mrb[0].mxu0 %v1002
      %v1185 = vpop.f32.mrb[0].mxu0
      %v1186 = vadd.f32 0.0, %v1185
      %v1187 = vpop.f32.mrb[0].mxu0
      %1188 = vmatprep.mubr.f32.mxu0 0.0
      %1189 = vmatmul.mubr.f32.gmra.mrb[0].mxu0 %v1003
      %v1190 = vpop.f32.mrb[0].mxu0
      %v1191 = vadd.f32 0.0, %v1190
      %v1192 = vpop.f32.mrb[0].mxu0
      %1193 = vmatprep.mubr.f32.mxu0 0.0
      %1194 = vmatmul.mubr.f32.gmra.mrb[0].mxu0 %v1004
      %v1195 = vpop.f32.mrb[0].mxu0
      %v1196 = vadd.f32 0.0, %v1195
      %v1197 = vpop.f32.mrb[0].mxu0
      %1198 = vmatprep.mubr.f32.mxu0 0.0
      %1199 = vmatmul.mubr.f32.gmra.mrb[0].mxu0 %v1005
      %v1200 = vpop.f32.mrb[0].mxu0
      %v1201 = vadd.f32 0.0, %v1200
      %v1202 = vpop.f32.mrb[0].mxu0
      %1203 = vmatprep.mubr.f32.mxu0 0.0
      %1204 = vmatmul.mubr.f32.gmra.mrb[0].mxu0 %v1006
      %v1205 = vpop.f32.mrb[0].mxu0
      %v1206 = vadd.f32 0.0, %v1205
      %v1207 = vpop.f32.mrb[0].mxu0
      %1208 = vmatprep.mubr.f32.mxu0 0.0
      %1209 = vmatmul.mubr.f32.gmra.mrb[0].mxu0 %v1007
      %v1210 = vpop.f32.mrb[0].mxu0
      %v1211 = vadd.f32 0.0, %v1210
      %v1212 = vpop.f32.mrb[0].mxu0
      %1213 = vmatprep.mubr.f32.mxu0 0.0
      %1214 = vmatmul.mubr.f32.gmra.mrb[0].mxu0 %v1008
      %v1215 = vpop.f32.mrb[0].mxu0
      %v1216 = vadd.f32 0.0, %v1215
      %v1217 = vpop.f32.mrb[0].mxu0
      %1218 = vmatprep.mubr.f32.mxu0 0.0
      %1219 = vmatmul.mubr.f32.gmra.mrb[0].mxu0 %v1009
      %v1220 = vpop.f32.mrb[0].mxu0
      %v1221 = vadd.f32 0.0, %v1220
      %v1222 = vpop.f32.mrb[0].mxu0
      %1223 = vmatprep.mubr.f32.mxu0 0.0
      %1224 = vmatmul.mubr.f32.gmra.mrb[0].mxu0 %v1010
      %v1225 = vpop.f32.mrb[0].mxu0
      %v1226 = vadd.f32 0.0, %v1225
      %v1227 = vpop.f32.mrb[0].mxu0
      %1228 = vmatprep.mubr.f32.mxu0 0.0
      %1229 = vmatmul.mubr.f32.gmra.mrb[0].mxu0 %v1011
      %v1230 = vpop.f32.mrb[0].mxu0
      %v1231 = vadd.f32 0.0, %v1230
      %v1232 = vpop.f32.mrb[0].mxu0
      %1233 = vmatprep.mubr.f32.mxu0 0.0
      %1234 = vmatmul.mubr.f32.gmra.mrb[0].mxu0 %v1012
      %v1235 = vpop.f32.mrb[0].mxu0
      %v1236 = vadd.f32 0.0, %v1235
      %v1237 = vpop.f32.mrb[0].mxu0
      %1238 = vmatprep.mubr.f32.mxu0 0.0
      %1239 = vmatmul.mubr.f32.gmra.mrb[0].mxu0 %v1013
      %v1240 = vpop.f32.mrb[0].mxu0
      %v1241 = vadd.f32 0.0, %v1240
      %v1242 = vpop.f32.mrb[0].mxu0
      %1243 = vmatprep.mubr.f32.mxu0 0.0
      %1244 = vmatmul.mubr.f32.gmra.mrb[0].mxu0 %v1014
      %v1245 = vpop.f32.mrb[0].mxu0
      %v1246 = vadd.f32 0.0, %v1245
      %v1247 = vpop.f32.mrb[0].mxu0
      %1248 = vmatprep.mubr.f32.mxu0 0.0
      %1249 = vmatmul.mubr.f32.gmra.mrb[0].mxu0 %v1015
      %v1250 = vpop.f32.mrb[0].mxu0
      %v1251 = vadd.f32 0.0, %v1250
      %v1252 = vpop.f32.mrb[0].mxu0
      %1253 = vmatprep.mubr.f32.mxu0 0.0
      %1254 = vmatmul.mubr.f32.gmra.mrb[0].mxu0 %v1016
      %v1255 = vpop.f32.mrb[0].mxu0
      %v1256 = vadd.f32 0.0, %v1255
      %v1257 = vpop.f32.mrb[0].mxu0
      %1258 = vmatprep.mubr.f32.mxu0 0.0
      %1259 = vmatmul.mubr.f32.gmra.mrb[0].mxu0 %v1017
      %v1260 = vpop.f32.mrb[0].mxu0
      %v1261 = vadd.f32 0.0, %v1260
      %v1262 = vpop.f32.mrb[0].mxu0
      %1263 = vmatprep.mubr.f32.mxu0 0.0
      %1264 = vmatmul.mubr.f32.gmra.mrb[0].mxu0 %v1018
      %v1265 = vpop.f32.mrb[0].mxu0
      %v1266 = vadd.f32 0.0, %v1265
      %v1267 = vpop.f32.mrb[0].mxu0
      %1268 = vmatprep.mubr.f32.mxu0 0.0
      %1269 = vmatmul.mubr.f32.gmra.mrb[0].mxu0 %v1019
      %v1270 = vpop.f32.mrb[0].mxu0
      %v1271 = vadd.f32 0.0, %v1270
      %v1272 = vpop.f32.mrb[0].mxu0
      %1273 = vmatprep.mubr.f32.mxu0 0.0
      %1274 = vmatmul.mubr.f32.gmra.mrb[0].mxu0 %v1020
      %v1275 = vpop.f32.mrb[0].mxu0
      %v1276 = vadd.f32 0.0, %v1275
      %v1277 = vpop.f32.mrb[0].mxu0
      %1278 = vmatprep.mubr.f32.mxu0 0.0
      %1279 = vmatmul.mubr.f32.gmra.mrb[0].mxu0 %v1021
      %v1280 = vpop.f32.mrb[0].mxu0
      %v1281 = vadd.f32 0.0, %v1280
      %v1282 = vpop.f32.mrb[0].mxu0
      %1283 = vmatprep.mubr.f32.mxu0 0.0
      %1284 = vmatmul.mubr.f32.gmra.mrb[0].mxu0 %v1022
      %v1285 = vpop.f32.mrb[0].mxu0
      %v1286 = vadd.f32 0.0, %v1285
      %v1287 = vpop.f32.mrb[0].mxu0
      %1288 = vmatprep.mubr.f32.mxu0 0.0
      %1289 = vmatmul.mubr.f32.gmra.mrb[0].mxu0 %v1023
      %v1290 = vpop.f32.mrb[0].mxu0
      %v1291 = vadd.f32 0.0, %v1290
      %v1292 = vpop.f32.mrb[0].mxu0
      %1293 = vmatprep.mubr.f32.mxu0 0.0
      %1294 = vmatmul.mubr.f32.gmra.mrb[0].mxu0 %v1024
      %v1295 = vpop.f32.mrb[0].mxu0
      %v1296 = vadd.f32 0.0, %v1295
      %v1297 = vpop.f32.mrb[0].mxu0
      %1298 = vdwg.mxu0
      %v1299 = vadd.f32 %v1025, %v1141
      %v1300 = vadd.f32 %v1026, %v1146
      %v1301 = vadd.f32 %v1027, %v1151
      %v1302 = vadd.f32 %v1028, %v1156
      %v1303 = vadd.f32 %v1029, %v1161
      %v1304 = vadd.f32 %v1030, %v1166
      %v1305 = vadd.f32 %v1031, %v1171
      %v1306 = vadd.f32 %v1032, %v1176
      %v1307 = vadd.f32 %v1033, %v1181
      %v1308 = vadd.f32 %v1034, %v1186
      %v1309 = vadd.f32 %v1035, %v1191
      %v1310 = vadd.f32 %v1036, %v1196
      %v1311 = vadd.f32 %v1037, %v1201
      %v1312 = vadd.f32 %v1038, %v1206
      %v1313 = vadd.f32 %v1039, %v1211
      %v1314 = vadd.f32 %v1040, %v1216
      %v1315 = vadd.f32 %v1041, %v1221
      %v1316 = vadd.f32 %v1042, %v1226
      %v1317 = vadd.f32 %v1043, %v1231
      %v1318 = vadd.f32 %v1044, %v1236
      %v1319 = vadd.f32 %v1045, %v1241
      %v1320 = vadd.f32 %v1046, %v1246
      %v1321 = vadd.f32 %v1047, %v1251
      %v1322 = vadd.f32 %v1048, %v1256
      %v1323 = vadd.f32 %v1049, %v1261
      %v1324 = vadd.f32 %v1050, %v1266
      %v1325 = vadd.f32 %v1051, %v1271
      %v1326 = vadd.f32 %v1052, %v1276
      %v1327 = vadd.f32 %v1053, %v1281
      %v1328 = vadd.f32 %v1054, %v1286
      %v1329 = vadd.f32 %v1055, %v1291
      %v1330 = vadd.f32 %v1056, %v1296
      %1331 = vst [vmem:[#allocation2] sm:$0xff] %v1299
      %1332 = vst [vmem:[#allocation2 + $0x8] sm:$0xff] %v1300
      %1333 = vst [vmem:[#allocation2 + $0x10] sm:$0xff] %v1301
      %1334 = vst [vmem:[#allocation2 + $0x18] sm:$0xff] %v1302
      %1335 = vst [vmem:[#allocation2 + $0x20] sm:$0xff] %v1303
      %1336 = vst [vmem:[#allocation2 + $0x28] sm:$0xff] %v1304
      %1337 = vst [vmem:[#allocation2 + $0x30] sm:$0xff] %v1305
      %1338 = vst [vmem:[#allocation2 + $0x38] sm:$0xff] %v1306
      %1339 = vst [vmem:[#allocation2 + $0x40] sm:$0xff] %v1307
      %1340 = vst [vmem:[#allocation2 + $0x48] sm:$0xff] %v1308
      %1341 = vst [vmem:[#allocation2 + $0x50] sm:$0xff] %v1309
      %1342 = vst [vmem:[#allocation2 + $0x58] sm:$0xff] %v1310
      %1343 = vst [vmem:[#allocation2 + $0x60] sm:$0xff] %v1311
      %1344 = vst [vmem:[#allocation2 + $0x68] sm:$0xff] %v1312
      %1345 = vst [vmem:[#allocation2 + $0x70] sm:$0xff] %v1313
      %1346 = vst [vmem:[#allocation2 + $0x78] sm:$0xff] %v1314
      %1347 = vst [vmem:[#allocation2 + $0x80] sm:$0xff] %v1315
      %1348 = vst [vmem:[#allocation2 + $0x88] sm:$0xff] %v1316
      %1349 = vst [vmem:[#allocation2 + $0x90] sm:$0xff] %v1317
      %1350 = vst [vmem:[#allocation2 + $0x98] sm:$0xff] %v1318
      %1351 = vst [vmem:[#allocation2 + $0xa0] sm:$0xff] %v1319
      %1352 = vst [vmem:[#allocation2 + $0xa8] sm:$0xff] %v1320
      %1353 = vst [vmem:[#allocation2 + $0xb0] sm:$0xff] %v1321
      %1354 = vst [vmem:[#allocation2 + $0xb8] sm:$0xff] %v1322
      %1355 = vst [vmem:[#allocation2 + $0xc0] sm:$0xff] %v1323
      %1356 = vst [vmem:[#allocation2 + $0xc8] sm:$0xff] %v1324
      %1357 = vst [vmem:[#allocation2 + $0xd0] sm:$0xff] %v1325
      %1358 = vst [vmem:[#allocation2 + $0xd8] sm:$0xff] %v1326
      %1359 = vst [vmem:[#allocation2 + $0xe0] sm:$0xff] %v1327
      %1360 = vst [vmem:[#allocation2 + $0xe8] sm:$0xff] %v1328
      %1361 = vst [vmem:[#allocation2 + $0xf0] sm:$0xff] %v1329
      %1362 = vst [vmem:[#allocation2 + $0xf8] sm:$0xff] %v1330
      %s1363 = scalar_lea.vmem %s206, 24
      %v1364 = vld [vmem:[%s1363] sm:$0xff]
      %v1365 = vld [vmem:[%s1363 + $0x8] sm:$0xff]
      %v1366 = vld [vmem:[%s1363 + $0x18] sm:$0xff]
      %v1367 = vld [vmem:[%s1363 + $0x20] sm:$0xff]
      %v1368 = vld [vmem:[%s1363 + $0x30] sm:$0xff]
      %v1369 = vld [vmem:[%s1363 + $0x38] sm:$0xff]
      %v1370 = vld [vmem:[%s1363 + $0x48] sm:$0xff]
      %v1371 = vld [vmem:[%s1363 + $0x50] sm:$0xff]
      %v1372 = vld [vmem:[%s1363 + $0x60] sm:$0xff]
      %v1373 = vld [vmem:[%s1363 + $0x68] sm:$0xff]
      %v1374 = vld [vmem:[%s1363 + $0x78] sm:$0xff]
      %v1375 = vld [vmem:[%s1363 + $0x80] sm:$0xff]
      %v1376 = vld [vmem:[%s1363 + $0x90] sm:$0xff]
      %v1377 = vld [vmem:[%s1363 + $0x98] sm:$0xff]
      %v1378 = vld [vmem:[%s1363 + $0xa8] sm:$0xff]
      %v1379 = vld [vmem:[%s1363 + $0xb0] sm:$0xff]
      %v1380 = vld [vmem:[%s1363 + $0xc0] sm:$0xff]
      %v1381 = vld [vmem:[%s1363 + $0xc8] sm:$0xff]
      %v1382 = vld [vmem:[%s1363 + $0xd8] sm:$0xff]
      %v1383 = vld [vmem:[%s1363 + $0xe0] sm:$0xff]
      %v1384 = vld [vmem:[%s1363 + $0xf0] sm:$0xff]
      %v1385 = vld [vmem:[%s1363 + $0xf8] sm:$0xff]
      %v1386 = vld [vmem:[%s1363 + $0x108] sm:$0xff]
      %v1387 = vld [vmem:[%s1363 + $0x110] sm:$0xff]
      %v1388 = vld [vmem:[%s1363 + $0x120] sm:$0xff]
      %v1389 = vld [vmem:[%s1363 + $0x128] sm:$0xff]
      %v1390 = vld [vmem:[%s1363 + $0x138] sm:$0xff]
      %v1391 = vld [vmem:[%s1363 + $0x140] sm:$0xff]
      %v1392 = vld [vmem:[%s1363 + $0x150] sm:$0xff]
      %v1393 = vld [vmem:[%s1363 + $0x158] sm:$0xff]
      %v1394 = vld [vmem:[%s1363 + $0x168] sm:$0xff]
      %v1395 = vld [vmem:[%s1363 + $0x170] sm:$0xff]
      %v1396 = vld [vmem:[#allocation2] sm:$0xff]
      %v1397 = vld [vmem:[#allocation2 + $0x8] sm:$0xff]
      %v1398 = vld [vmem:[#allocation2 + $0x10] sm:$0xff]
      %v1399 = vld [vmem:[#allocation2 + $0x18] sm:$0xff]
      %v1400 = vld [vmem:[#allocation2 + $0x20] sm:$0xff]
      %v1401 = vld [vmem:[#allocation2 + $0x28] sm:$0xff]
      %v1402 = vld [vmem:[#allocation2 + $0x30] sm:$0xff]
      %v1403 = vld [vmem:[#allocation2 + $0x38] sm:$0xff]
      %v1404 = vld [vmem:[#allocation2 + $0x40] sm:$0xff]
      %v1405 = vld [vmem:[#allocation2 + $0x48] sm:$0xff]
      %v1406 = vld [vmem:[#allocation2 + $0x50] sm:$0xff]
      %v1407 = vld [vmem:[#allocation2 + $0x58] sm:$0xff]
      %v1408 = vld [vmem:[#allocation2 + $0x60] sm:$0xff]
      %v1409 = vld [vmem:[#allocation2 + $0x68] sm:$0xff]
      %v1410 = vld [vmem:[#allocation2 + $0x70] sm:$0xff]
      %v1411 = vld [vmem:[#allocation2 + $0x78] sm:$0xff]
      %v1412 = vld [vmem:[#allocation2 + $0x80] sm:$0xff]
      %v1413 = vld [vmem:[#allocation2 + $0x88] sm:$0xff]
      %v1414 = vld [vmem:[#allocation2 + $0x90] sm:$0xff]
      %v1415 = vld [vmem:[#allocation2 + $0x98] sm:$0xff]
      %v1416 = vld [vmem:[#allocation2 + $0xa0] sm:$0xff]
      %v1417 = vld [vmem:[#allocation2 + $0xa8] sm:$0xff]
      %v1418 = vld [vmem:[#allocation2 + $0xb0] sm:$0xff]
      %v1419 = vld [vmem:[#allocation2 + $0xb8] sm:$0xff]
      %v1420 = vld [vmem:[#allocation2 + $0xc0] sm:$0xff]
      %v1421 = vld [vmem:[#allocation2 + $0xc8] sm:$0xff]
      %v1422 = vld [vmem:[#allocation2 + $0xd0] sm:$0xff]
      %v1423 = vld [vmem:[#allocation2 + $0xd8] sm:$0xff]
      %v1424 = vld [vmem:[#allocation2 + $0xe0] sm:$0xff]
      %v1425 = vld [vmem:[#allocation2 + $0xe8] sm:$0xff]
      %v1426 = vld [vmem:[#allocation2 + $0xf0] sm:$0xff]
      %v1427 = vld [vmem:[#allocation2 + $0xf8] sm:$0xff]
      %s1428 = scalar_lea.vmem %s210, 384
      %v1429 = vld [vmem:[%s1428] sm:$0xff]
      %v1430 = vld [vmem:[%s1428 + $0x8] sm:$0xff]
      %v1431 = vld [vmem:[%s1428 + $0x10] sm:$0xff]
      %v1432 = vld [vmem:[%s1428 + $0x18] sm:$0xff]
      %v1433 = vld [vmem:[%s1428 + $0x20] sm:$0xff]
      %v1434 = vld [vmem:[%s1428 + $0x28] sm:$0xff]
      %v1435 = vld [vmem:[%s1428 + $0x30] sm:$0xff]
      %v1436 = vld [vmem:[%s1428 + $0x38] sm:$0xff]
      %v1437 = vld [vmem:[%s1428 + $0x40] sm:$0xff]
      %v1438 = vld [vmem:[%s1428 + $0x48] sm:$0xff]
      %v1439 = vld [vmem:[%s1428 + $0x50] sm:$0xff]
      %v1440 = vld [vmem:[%s1428 + $0x58] sm:$0xff]
      %v1441 = vld [vmem:[%s1428 + $0x60] sm:$0xff]
      %v1442 = vld [vmem:[%s1428 + $0x68] sm:$0xff]
      %v1443 = vld [vmem:[%s1428 + $0x70] sm:$0xff]
      %v1444 = vld [vmem:[%s1428 + $0x78] sm:$0xff]
      %1445 = vmatprep.subr.mxu0 0.0
      %1446 = vmatpush1.msra.mxu0 %v1429
      %1447 = vmatprep.subr.mxu0 0.0
      %1448 = vmatpush1.msra.mxu0 %v1430
      %1449 = vmatprep.subr.mxu0 0.0
      %1450 = vmatpush1.msra.mxu0 %v1431
      %1451 = vmatprep.subr.mxu0 0.0
      %1452 = vmatpush1.msra.mxu0 %v1432
      %1453 = vmatprep.subr.mxu0 0.0
      %1454 = vmatpush1.msra.mxu0 %v1433
      %1455 = vmatprep.subr.mxu0 0.0
      %1456 = vmatpush1.msra.mxu0 %v1434
      %1457 = vmatprep.subr.mxu0 0.0
      %1458 = vmatpush1.msra.mxu0 %v1435
      %1459 = vmatprep.subr.mxu0 0.0
      %1460 = vmatpush1.msra.mxu0 %v1436
      %1461 = vmatprep.subr.mxu0 0.0
      %1462 = vmatpush1.msra.mxu0 %v1437
      %1463 = vmatprep.subr.mxu0 0.0
      %1464 = vmatpush1.msra.mxu0 %v1438
      %1465 = vmatprep.subr.mxu0 0.0
      %1466 = vmatpush1.msra.mxu0 %v1439
      %1467 = vmatprep.subr.mxu0 0.0
      %1468 = vmatpush1.msra.mxu0 %v1440
      %1469 = vmatprep.subr.mxu0 0.0
      %1470 = vmatpush1.msra.mxu0 %v1441
      %1471 = vmatprep.subr.mxu0 0.0
      %1472 = vmatpush1.msra.mxu0 %v1442
      %1473 = vmatprep.subr.mxu0 0.0
      %1474 = vmatpush1.msra.mxu0 %v1443
      %1475 = vmatprep.subr.mxu0 0.0
      %1476 = vmatpush1.msra.mxu0 %v1444
      %1477 = vmatprep.subr.mxu0 0.0
      %1478 = vmatpush1.msra.mxu0 0.0
      %1479 = vmatprep.subr.mxu0 0.0
      %1480 = vmatpush1.msra.mxu0 0.0
      %1481 = vmatprep.subr.mxu0 0.0
      %1482 = vmatpush1.msra.mxu0 0.0
      %1483 = vmatprep.subr.mxu0 0.0
      %1484 = vmatpush1.msra.mxu0 0.0
      %1485 = vmatprep.subr.mxu0 0.0
      %1486 = vmatpush1.msra.mxu0 0.0
      %1487 = vmatprep.subr.mxu0 0.0
      %1488 = vmatpush1.msra.mxu0 0.0
      %1489 = vmatprep.subr.mxu0 0.0
      %1490 = vmatpush1.msra.mxu0 0.0
      %1491 = vmatprep.subr.mxu0 0.0
      %1492 = vmatpush1.msra.mxu0 0.0
      %1493 = vmatprep.subr.mxu0 0.0
      %1494 = vmatpush1.msra.mxu0 0.0
      %1495 = vmatprep.subr.mxu0 0.0
      %1496 = vmatpush1.msra.mxu0 0.0
      %1497 = vmatprep.subr.mxu0 0.0
      %1498 = vmatpush1.msra.mxu0 0.0
      %1499 = vmatprep.subr.mxu0 0.0
      %1500 = vmatpush1.msra.mxu0 0.0
      %1501 = vmatprep.subr.mxu0 0.0
      %1502 = vmatpush1.msra.mxu0 0.0
      %1503 = vmatprep.subr.mxu0 0.0
      %1504 = vmatpush1.msra.mxu0 0.0
      %1505 = vmatprep.subr.mxu0 0.0
      %1506 = vmatpush1.msra.mxu0 0.0
      %1507 = vmatprep.subr.mxu0 0.0
      %1508 = vmatpush1.msra.mxu0 0.0
      %1509 = vmatprep.mubr.f32.mxu0 0.0
      %1510 = vmatmul.mubr.f32.gmra.mrb[0].mxu0 %v1364
      %v1511 = vpop.f32.mrb[0].mxu0
      %v1512 = vadd.f32 0.0, %v1511
      %v1513 = vpop.f32.mrb[0].mxu0
      %1514 = vmatprep.mubr.f32.mxu0 0.0
      %1515 = vmatmul.mubr.f32.gmra.mrb[0].mxu0 %v1365
      %v1516 = vpop.f32.mrb[0].mxu0
      %v1517 = vadd.f32 0.0, %v1516
      %v1518 = vpop.f32.mrb[0].mxu0
      %1519 = vmatprep.mubr.f32.mxu0 0.0
      %1520 = vmatmul.mubr.f32.gmra.mrb[0].mxu0 %v1366
      %v1521 = vpop.f32.mrb[0].mxu0
      %v1522 = vadd.f32 0.0, %v1521
      %v1523 = vpop.f32.mrb[0].mxu0
      %1524 = vmatprep.mubr.f32.mxu0 0.0
      %1525 = vmatmul.mubr.f32.gmra.mrb[0].mxu0 %v1367
      %v1526 = vpop.f32.mrb[0].mxu0
      %v1527 = vadd.f32 0.0, %v1526
      %v1528 = vpop.f32.mrb[0].mxu0
      %1529 = vmatprep.mubr.f32.mxu0 0.0
      %1530 = vmatmul.mubr.f32.gmra.mrb[0].mxu0 %v1368
      %v1531 = vpop.f32.mrb[0].mxu0
      %v1532 = vadd.f32 0.0, %v1531
      %v1533 = vpop.f32.mrb[0].mxu0
      %1534 = vmatprep.mubr.f32.mxu0 0.0
      %1535 = vmatmul.mubr.f32.gmra.mrb[0].mxu0 %v1369
      %v1536 = vpop.f32.mrb[0].mxu0
      %v1537 = vadd.f32 0.0, %v1536
      %v1538 = vpop.f32.mrb[0].mxu0
      %1539 = vmatprep.mubr.f32.mxu0 0.0
      %1540 = vmatmul.mubr.f32.gmra.mrb[0].mxu0 %v1370
      %v1541 = vpop.f32.mrb[0].mxu0
      %v1542 = vadd.f32 0.0, %v1541
      %v1543 = vpop.f32.mrb[0].mxu0
      %1544 = vmatprep.mubr.f32.mxu0 0.0
      %1545 = vmatmul.mubr.f32.gmra.mrb[0].mxu0 %v1371
      %v1546 = vpop.f32.mrb[0].mxu0
      %v1547 = vadd.f32 0.0, %v1546
      %v1548 = vpop.f32.mrb[0].mxu0
      %1549 = vmatprep.mubr.f32.mxu0 0.0
      %1550 = vmatmul.mubr.f32.gmra.mrb[0].mxu0 %v1372
      %v1551 = vpop.f32.mrb[0].mxu0
      %v1552 = vadd.f32 0.0, %v1551
      %v1553 = vpop.f32.mrb[0].mxu0
      %1554 = vmatprep.mubr.f32.mxu0 0.0
      %1555 = vmatmul.mubr.f32.gmra.mrb[0].mxu0 %v1373
      %v1556 = vpop.f32.mrb[0].mxu0
      %v1557 = vadd.f32 0.0, %v1556
      %v1558 = vpop.f32.mrb[0].mxu0
      %1559 = vmatprep.mubr.f32.mxu0 0.0
      %1560 = vmatmul.mubr.f32.gmra.mrb[0].mxu0 %v1374
      %v1561 = vpop.f32.mrb[0].mxu0
      %v1562 = vadd.f32 0.0, %v1561
      %v1563 = vpop.f32.mrb[0].mxu0
      %1564 = vmatprep.mubr.f32.mxu0 0.0
      %1565 = vmatmul.mubr.f32.gmra.mrb[0].mxu0 %v1375
      %v1566 = vpop.f32.mrb[0].mxu0
      %v1567 = vadd.f32 0.0, %v1566
      %v1568 = vpop.f32.mrb[0].mxu0
      %1569 = vmatprep.mubr.f32.mxu0 0.0
      %1570 = vmatmul.mubr.f32.gmra.mrb[0].mxu0 %v1376
      %v1571 = vpop.f32.mrb[0].mxu0
      %v1572 = vadd.f32 0.0, %v1571
      %v1573 = vpop.f32.mrb[0].mxu0
      %1574 = vmatprep.mubr.f32.mxu0 0.0
      %1575 = vmatmul.mubr.f32.gmra.mrb[0].mxu0 %v1377
      %v1576 = vpop.f32.mrb[0].mxu0
      %v1577 = vadd.f32 0.0, %v1576
      %v1578 = vpop.f32.mrb[0].mxu0
      %1579 = vmatprep.mubr.f32.mxu0 0.0
      %1580 = vmatmul.mubr.f32.gmra.mrb[0].mxu0 %v1378
      %v1581 = vpop.f32.mrb[0].mxu0
      %v1582 = vadd.f32 0.0, %v1581
      %v1583 = vpop.f32.mrb[0].mxu0
      %1584 = vmatprep.mubr.f32.mxu0 0.0
      %1585 = vmatmul.mubr.f32.gmra.mrb[0].mxu0 %v1379
      %v1586 = vpop.f32.mrb[0].mxu0
      %v1587 = vadd.f32 0.0, %v1586
      %v1588 = vpop.f32.mrb[0].mxu0
      %1589 = vmatprep.mubr.f32.mxu0 0.0
      %1590 = vmatmul.mubr.f32.gmra.mrb[0].mxu0 %v1380
      %v1591 = vpop.f32.mrb[0].mxu0
      %v1592 = vadd.f32 0.0, %v1591
      %v1593 = vpop.f32.mrb[0].mxu0
      %1594 = vmatprep.mubr.f32.mxu0 0.0
      %1595 = vmatmul.mubr.f32.gmra.mrb[0].mxu0 %v1381
      %v1596 = vpop.f32.mrb[0].mxu0
      %v1597 = vadd.f32 0.0, %v1596
      %v1598 = vpop.f32.mrb[0].mxu0
      %1599 = vmatprep.mubr.f32.mxu0 0.0
      %1600 = vmatmul.mubr.f32.gmra.mrb[0].mxu0 %v1382
      %v1601 = vpop.f32.mrb[0].mxu0
      %v1602 = vadd.f32 0.0, %v1601
      %v1603 = vpop.f32.mrb[0].mxu0
      %1604 = vmatprep.mubr.f32.mxu0 0.0
      %1605 = vmatmul.mubr.f32.gmra.mrb[0].mxu0 %v1383
      %v1606 = vpop.f32.mrb[0].mxu0
      %v1607 = vadd.f32 0.0, %v1606
      %v1608 = vpop.f32.mrb[0].mxu0
      %1609 = vmatprep.mubr.f32.mxu0 0.0
      %1610 = vmatmul.mubr.f32.gmra.mrb[0].mxu0 %v1384
      %v1611 = vpop.f32.mrb[0].mxu0
      %v1612 = vadd.f32 0.0, %v1611
      %v1613 = vpop.f32.mrb[0].mxu0
      %1614 = vmatprep.mubr.f32.mxu0 0.0
      %1615 = vmatmul.mubr.f32.gmra.mrb[0].mxu0 %v1385
      %v1616 = vpop.f32.mrb[0].mxu0
      %v1617 = vadd.f32 0.0, %v1616
      %v1618 = vpop.f32.mrb[0].mxu0
      %1619 = vmatprep.mubr.f32.mxu0 0.0
      %1620 = vmatmul.mubr.f32.gmra.mrb[0].mxu0 %v1386
      %v1621 = vpop.f32.mrb[0].mxu0
      %v1622 = vadd.f32 0.0, %v1621
      %v1623 = vpop.f32.mrb[0].mxu0
      %1624 = vmatprep.mubr.f32.mxu0 0.0
      %1625 = vmatmul.mubr.f32.gmra.mrb[0].mxu0 %v1387
      %v1626 = vpop.f32.mrb[0].mxu0
      %v1627 = vadd.f32 0.0, %v1626
      %v1628 = vpop.f32.mrb[0].mxu0
      %1629 = vmatprep.mubr.f32.mxu0 0.0
      %1630 = vmatmul.mubr.f32.gmra.mrb[0].mxu0 %v1388
      %v1631 = vpop.f32.mrb[0].mxu0
      %v1632 = vadd.f32 0.0, %v1631
      %v1633 = vpop.f32.mrb[0].mxu0
      %1634 = vmatprep.mubr.f32.mxu0 0.0
      %1635 = vmatmul.mubr.f32.gmra.mrb[0].mxu0 %v1389
      %v1636 = vpop.f32.mrb[0].mxu0
      %v1637 = vadd.f32 0.0, %v1636
      %v1638 = vpop.f32.mrb[0].mxu0
      %1639 = vmatprep.mubr.f32.mxu0 0.0
      %1640 = vmatmul.mubr.f32.gmra.mrb[0].mxu0 %v1390
      %v1641 = vpop.f32.mrb[0].mxu0
      %v1642 = vadd.f32 0.0, %v1641
      %v1643 = vpop.f32.mrb[0].mxu0
      %1644 = vmatprep.mubr.f32.mxu0 0.0
      %1645 = vmatmul.mubr.f32.gmra.mrb[0].mxu0 %v1391
      %v1646 = vpop.f32.mrb[0].mxu0
      %v1647 = vadd.f32 0.0, %v1646
      %v1648 = vpop.f32.mrb[0].mxu0
      %1649 = vmatprep.mubr.f32.mxu0 0.0
      %1650 = vmatmul.mubr.f32.gmra.mrb[0].mxu0 %v1392
      %v1651 = vpop.f32.mrb[0].mxu0
      %v1652 = vadd.f32 0.0, %v1651
      %v1653 = vpop.f32.mrb[0].mxu0
      %1654 = vmatprep.mubr.f32.mxu0 0.0
      %1655 = vmatmul.mubr.f32.gmra.mrb[0].mxu0 %v1393
      %v1656 = vpop.f32.mrb[0].mxu0
      %v1657 = vadd.f32 0.0, %v1656
      %v1658 = vpop.f32.mrb[0].mxu0
      %1659 = vmatprep.mubr.f32.mxu0 0.0
      %1660 = vmatmul.mubr.f32.gmra.mrb[0].mxu0 %v1394
      %v1661 = vpop.f32.mrb[0].mxu0
      %v1662 = vadd.f32 0.0, %v1661
      %v1663 = vpop.f32.mrb[0].mxu0
      %1664 = vmatprep.mubr.f32.mxu0 0.0
      %1665 = vmatmul.mubr.f32.gmra.mrb[0].mxu0 %v1395
      %v1666 = vpop.f32.mrb[0].mxu0
      %v1667 = vadd.f32 0.0, %v1666
      %v1668 = vpop.f32.mrb[0].mxu0
      %1669 = vdwg.mxu0
      %v1670 = vadd.f32 %v1396, %v1512
      %v1671 = vadd.f32 %v1397, %v1517
      %v1672 = vadd.f32 %v1398, %v1522
      %v1673 = vadd.f32 %v1399, %v1527
      %v1674 = vadd.f32 %v1400, %v1532
      %v1675 = vadd.f32 %v1401, %v1537
      %v1676 = vadd.f32 %v1402, %v1542
      %v1677 = vadd.f32 %v1403, %v1547
      %v1678 = vadd.f32 %v1404, %v1552
      %v1679 = vadd.f32 %v1405, %v1557
      %v1680 = vadd.f32 %v1406, %v1562
      %v1681 = vadd.f32 %v1407, %v1567
      %v1682 = vadd.f32 %v1408, %v1572
      %v1683 = vadd.f32 %v1409, %v1577
      %v1684 = vadd.f32 %v1410, %v1582
      %v1685 = vadd.f32 %v1411, %v1587
      %v1686 = vadd.f32 %v1412, %v1592
      %v1687 = vadd.f32 %v1413, %v1597
      %v1688 = vadd.f32 %v1414, %v1602
      %v1689 = vadd.f32 %v1415, %v1607
      %v1690 = vadd.f32 %v1416, %v1612
      %v1691 = vadd.f32 %v1417, %v1617
      %v1692 = vadd.f32 %v1418, %v1622
      %v1693 = vadd.f32 %v1419, %v1627
      %v1694 = vadd.f32 %v1420, %v1632
      %v1695 = vadd.f32 %v1421, %v1637
      %v1696 = vadd.f32 %v1422, %v1642
      %v1697 = vadd.f32 %v1423, %v1647
      %v1698 = vadd.f32 %v1424, %v1652
      %v1699 = vadd.f32 %v1425, %v1657
      %v1700 = vadd.f32 %v1426, %v1662
      %v1701 = vadd.f32 %v1427, %v1667
      %1702 = vst [vmem:[#allocation2] sm:$0xff] %v1670
      %1703 = vst [vmem:[#allocation2 + $0x8] sm:$0xff] %v1671
      %1704 = vst [vmem:[#allocation2 + $0x10] sm:$0xff] %v1672
      %1705 = vst [vmem:[#allocation2 + $0x18] sm:$0xff] %v1673
      %1706 = vst [vmem:[#allocation2 + $0x20] sm:$0xff] %v1674
      %1707 = vst [vmem:[#allocation2 + $0x28] sm:$0xff] %v1675
      %1708 = vst [vmem:[#allocation2 + $0x30] sm:$0xff] %v1676
      %1709 = vst [vmem:[#allocation2 + $0x38] sm:$0xff] %v1677
      %1710 = vst [vmem:[#allocation2 + $0x40] sm:$0xff] %v1678
      %1711 = vst [vmem:[#allocation2 + $0x48] sm:$0xff] %v1679
      %1712 = vst [vmem:[#allocation2 + $0x50] sm:$0xff] %v1680
      %1713 = vst [vmem:[#allocation2 + $0x58] sm:$0xff] %v1681
      %1714 = vst [vmem:[#allocation2 + $0x60] sm:$0xff] %v1682
      %1715 = vst [vmem:[#allocation2 + $0x68] sm:$0xff] %v1683
      %1716 = vst [vmem:[#allocation2 + $0x70] sm:$0xff] %v1684
      %1717 = vst [vmem:[#allocation2 + $0x78] sm:$0xff] %v1685
      %1718 = vst [vmem:[#allocation2 + $0x80] sm:$0xff] %v1686
      %1719 = vst [vmem:[#allocation2 + $0x88] sm:$0xff] %v1687
      %1720 = vst [vmem:[#allocation2 + $0x90] sm:$0xff] %v1688
      %1721 = vst [vmem:[#allocation2 + $0x98] sm:$0xff] %v1689
      %1722 = vst [vmem:[#allocation2 + $0xa0] sm:$0xff] %v1690
      %1723 = vst [vmem:[#allocation2 + $0xa8] sm:$0xff] %v1691
      %1724 = vst [vmem:[#allocation2 + $0xb0] sm:$0xff] %v1692
      %1725 = vst [vmem:[#allocation2 + $0xb8] sm:$0xff] %v1693
      %1726 = vst [vmem:[#allocation2 + $0xc0] sm:$0xff] %v1694
      %1727 = vst [vmem:[#allocation2 + $0xc8] sm:$0xff] %v1695
      %1728 = vst [vmem:[#allocation2 + $0xd0] sm:$0xff] %v1696
      %1729 = vst [vmem:[#allocation2 + $0xd8] sm:$0xff] %v1697
      %1730 = vst [vmem:[#allocation2 + $0xe0] sm:$0xff] %v1698
      %1731 = vst [vmem:[#allocation2 + $0xe8] sm:$0xff] %v1699
      %1732 = vst [vmem:[#allocation2 + $0xf0] sm:$0xff] %v1700
      %1733 = vst [vmem:[#allocation2 + $0xf8] sm:$0xff] %v1701
      %v1734 = vld [vmem:[%s1363 + $0x1] sm:$0xff]
      %v1735 = vld [vmem:[%s1363 + $0x9] sm:$0xff]
      %v1736 = vld [vmem:[%s1363 + $0x19] sm:$0xff]
      %v1737 = vld [vmem:[%s1363 + $0x21] sm:$0xff]
      %v1738 = vld [vmem:[%s1363 + $0x31] sm:$0xff]
      %v1739 = vld [vmem:[%s1363 + $0x39] sm:$0xff]
      %v1740 = vld [vmem:[%s1363 + $0x49] sm:$0xff]
      %v1741 = vld [vmem:[%s1363 + $0x51] sm:$0xff]
      %v1742 = vld [vmem:[%s1363 + $0x61] sm:$0xff]
      %v1743 = vld [vmem:[%s1363 + $0x69] sm:$0xff]
      %v1744 = vld [vmem:[%s1363 + $0x79] sm:$0xff]
      %v1745 = vld [vmem:[%s1363 + $0x81] sm:$0xff]
      %v1746 = vld [vmem:[%s1363 + $0x91] sm:$0xff]
      %v1747 = vld [vmem:[%s1363 + $0x99] sm:$0xff]
      %v1748 = vld [vmem:[%s1363 + $0xa9] sm:$0xff]
      %v1749 = vld [vmem:[%s1363 + $0xb1] sm:$0xff]
      %v1750 = vld [vmem:[%s1363 + $0xc1] sm:$0xff]
      %v1751 = vld [vmem:[%s1363 + $0xc9] sm:$0xff]
      %v1752 = vld [vmem:[%s1363 + $0xd9] sm:$0xff]
      %v1753 = vld [vmem:[%s1363 + $0xe1] sm:$0xff]
      %v1754 = vld [vmem:[%s1363 + $0xf1] sm:$0xff]
      %v1755 = vld [vmem:[%s1363 + $0xf9] sm:$0xff]
      %v1756 = vld [vmem:[%s1363 + $0x109] sm:$0xff]
      %v1757 = vld [vmem:[%s1363 + $0x111] sm:$0xff]
      %v1758 = vld [vmem:[%s1363 + $0x121] sm:$0xff]
      %v1759 = vld [vmem:[%s1363 + $0x129] sm:$0xff]
      %v1760 = vld [vmem:[%s1363 + $0x139] sm:$0xff]
      %v1761 = vld [vmem:[%s1363 + $0x141] sm:$0xff]
      %v1762 = vld [vmem:[%s1363 + $0x151] sm:$0xff]
      %v1763 = vld [vmem:[%s1363 + $0x159] sm:$0xff]
      %v1764 = vld [vmem:[%s1363 + $0x169] sm:$0xff]
      %v1765 = vld [vmem:[%s1363 + $0x171] sm:$0xff]
      %v1766 = vld [vmem:[#allocation2] sm:$0xff]
      %v1767 = vld [vmem:[#allocation2 + $0x8] sm:$0xff]
      %v1768 = vld [vmem:[#allocation2 + $0x10] sm:$0xff]
      %v1769 = vld [vmem:[#allocation2 + $0x18] sm:$0xff]
      %v1770 = vld [vmem:[#allocation2 + $0x20] sm:$0xff]
      %v1771 = vld [vmem:[#allocation2 + $0x28] sm:$0xff]
      %v1772 = vld [vmem:[#allocation2 + $0x30] sm:$0xff]
      %v1773 = vld [vmem:[#allocation2 + $0x38] sm:$0xff]
      %v1774 = vld [vmem:[#allocation2 + $0x40] sm:$0xff]
      %v1775 = vld [vmem:[#allocation2 + $0x48] sm:$0xff]
      %v1776 = vld [vmem:[#allocation2 + $0x50] sm:$0xff]
      %v1777 = vld [vmem:[#allocation2 + $0x58] sm:$0xff]
      %v1778 = vld [vmem:[#allocation2 + $0x60] sm:$0xff]
      %v1779 = vld [vmem:[#allocation2 + $0x68] sm:$0xff]
      %v1780 = vld [vmem:[#allocation2 + $0x70] sm:$0xff]
      %v1781 = vld [vmem:[#allocation2 + $0x78] sm:$0xff]
      %v1782 = vld [vmem:[#allocation2 + $0x80] sm:$0xff]
      %v1783 = vld [vmem:[#allocation2 + $0x88] sm:$0xff]
      %v1784 = vld [vmem:[#allocation2 + $0x90] sm:$0xff]
      %v1785 = vld [vmem:[#allocation2 + $0x98] sm:$0xff]
      %v1786 = vld [vmem:[#allocation2 + $0xa0] sm:$0xff]
      %v1787 = vld [vmem:[#allocation2 + $0xa8] sm:$0xff]
      %v1788 = vld [vmem:[#allocation2 + $0xb0] sm:$0xff]
      %v1789 = vld [vmem:[#allocation2 + $0xb8] sm:$0xff]
      %v1790 = vld [vmem:[#allocation2 + $0xc0] sm:$0xff]
      %v1791 = vld [vmem:[#allocation2 + $0xc8] sm:$0xff]
      %v1792 = vld [vmem:[#allocation2 + $0xd0] sm:$0xff]
      %v1793 = vld [vmem:[#allocation2 + $0xd8] sm:$0xff]
      %v1794 = vld [vmem:[#allocation2 + $0xe0] sm:$0xff]
      %v1795 = vld [vmem:[#allocation2 + $0xe8] sm:$0xff]
      %v1796 = vld [vmem:[#allocation2 + $0xf0] sm:$0xff]
      %v1797 = vld [vmem:[#allocation2 + $0xf8] sm:$0xff]
      %s1798 = scalar_lea.vmem %s210, 512
      %v1799 = vld [vmem:[%s1798] sm:$0xff]
      %v1800 = vld [vmem:[%s1798 + $0x8] sm:$0xff]
      %v1801 = vld [vmem:[%s1798 + $0x10] sm:$0xff]
      %v1802 = vld [vmem:[%s1798 + $0x18] sm:$0xff]
      %v1803 = vld [vmem:[%s1798 + $0x20] sm:$0xff]
      %v1804 = vld [vmem:[%s1798 + $0x28] sm:$0xff]
      %v1805 = vld [vmem:[%s1798 + $0x30] sm:$0xff]
      %v1806 = vld [vmem:[%s1798 + $0x38] sm:$0xff]
      %v1807 = vld [vmem:[%s1798 + $0x40] sm:$0xff]
      %v1808 = vld [vmem:[%s1798 + $0x48] sm:$0xff]
      %v1809 = vld [vmem:[%s1798 + $0x50] sm:$0xff]
      %v1810 = vld [vmem:[%s1798 + $0x58] sm:$0xff]
      %v1811 = vld [vmem:[%s1798 + $0x60] sm:$0xff]
      %v1812 = vld [vmem:[%s1798 + $0x68] sm:$0xff]
      %v1813 = vld [vmem:[%s1798 + $0x70] sm:$0xff]
      %v1814 = vld [vmem:[%s1798 + $0x78] sm:$0xff]
      %1815 = vmatprep.subr.mxu0 0.0
      %1816 = vmatpush1.msra.mxu0 %v1799
      %1817 = vmatprep.subr.mxu0 0.0
      %1818 = vmatpush1.msra.mxu0 %v1800
      %1819 = vmatprep.subr.mxu0 0.0
      %1820 = vmatpush1.msra.mxu0 %v1801
      %1821 = vmatprep.subr.mxu0 0.0
      %1822 = vmatpush1.msra.mxu0 %v1802
      %1823 = vmatprep.subr.mxu0 0.0
      %1824 = vmatpush1.msra.mxu0 %v1803
      %1825 = vmatprep.subr.mxu0 0.0
      %1826 = vmatpush1.msra.mxu0 %v1804
      %1827 = vmatprep.subr.mxu0 0.0
      %1828 = vmatpush1.msra.mxu0 %v1805
      %1829 = vmatprep.subr.mxu0 0.0
      %1830 = vmatpush1.msra.mxu0 %v1806
      %1831 = vmatprep.subr.mxu0 0.0
      %1832 = vmatpush1.msra.mxu0 %v1807
      %1833 = vmatprep.subr.mxu0 0.0
      %1834 = vmatpush1.msra.mxu0 %v1808
      %1835 = vmatprep.subr.mxu0 0.0
      %1836 = vmatpush1.msra.mxu0 %v1809
      %1837 = vmatprep.subr.mxu0 0.0
      %1838 = vmatpush1.msra.mxu0 %v1810
      %1839 = vmatprep.subr.mxu0 0.0
      %1840 = vmatpush1.msra.mxu0 %v1811
      %1841 = vmatprep.subr.mxu0 0.0
      %1842 = vmatpush1.msra.mxu0 %v1812
      %1843 = vmatprep.subr.mxu0 0.0
      %1844 = vmatpush1.msra.mxu0 %v1813
      %1845 = vmatprep.subr.mxu0 0.0
      %1846 = vmatpush1.msra.mxu0 %v1814
      %1847 = vmatprep.subr.mxu0 0.0
      %1848 = vmatpush1.msra.mxu0 0.0
      %1849 = vmatprep.subr.mxu0 0.0
      %1850 = vmatpush1.msra.mxu0 0.0
      %1851 = vmatprep.subr.mxu0 0.0
      %1852 = vmatpush1.msra.mxu0 0.0
      %1853 = vmatprep.subr.mxu0 0.0
      %1854 = vmatpush1.msra.mxu0 0.0
      %1855 = vmatprep.subr.mxu0 0.0
      %1856 = vmatpush1.msra.mxu0 0.0
      %1857 = vmatprep.subr.mxu0 0.0
      %1858 = vmatpush1.msra.mxu0 0.0
      %1859 = vmatprep.subr.mxu0 0.0
      %1860 = vmatpush1.msra.mxu0 0.0
      %1861 = vmatprep.subr.mxu0 0.0
      %1862 = vmatpush1.msra.mxu0 0.0
      %1863 = vmatprep.subr.mxu0 0.0
      %1864 = vmatpush1.msra.mxu0 0.0
      %1865 = vmatprep.subr.mxu0 0.0
      %1866 = vmatpush1.msra.mxu0 0.0
      %1867 = vmatprep.subr.mxu0 0.0
      %1868 = vmatpush1.msra.mxu0 0.0
      %1869 = vmatprep.subr.mxu0 0.0
      %1870 = vmatpush1.msra.mxu0 0.0
      %1871 = vmatprep.subr.mxu0 0.0
      %1872 = vmatpush1.msra.mxu0 0.0
      %1873 = vmatprep.subr.mxu0 0.0
      %1874 = vmatpush1.msra.mxu0 0.0
      %1875 = vmatprep.subr.mxu0 0.0
      %1876 = vmatpush1.msra.mxu0 0.0
      %1877 = vmatprep.subr.mxu0 0.0
      %1878 = vmatpush1.msra.mxu0 0.0
      %1879 = vmatprep.mubr.f32.mxu0 0.0
      %1880 = vmatmul.mubr.f32.gmra.mrb[0].mxu0 %v1734
      %v1881 = vpop.f32.mrb[0].mxu0
      %v1882 = vadd.f32 0.0, %v1881
      %v1883 = vpop.f32.mrb[0].mxu0
      %1884 = vmatprep.mubr.f32.mxu0 0.0
      %1885 = vmatmul.mubr.f32.gmra.mrb[0].mxu0 %v1735
      %v1886 = vpop.f32.mrb[0].mxu0
      %v1887 = vadd.f32 0.0, %v1886
      %v1888 = vpop.f32.mrb[0].mxu0
      %1889 = vmatprep.mubr.f32.mxu0 0.0
      %1890 = vmatmul.mubr.f32.gmra.mrb[0].mxu0 %v1736
      %v1891 = vpop.f32.mrb[0].mxu0
      %v1892 = vadd.f32 0.0, %v1891
      %v1893 = vpop.f32.mrb[0].mxu0
      %1894 = vmatprep.mubr.f32.mxu0 0.0
      %1895 = vmatmul.mubr.f32.gmra.mrb[0].mxu0 %v1737
      %v1896 = vpop.f32.mrb[0].mxu0
      %v1897 = vadd.f32 0.0, %v1896
      %v1898 = vpop.f32.mrb[0].mxu0
      %1899 = vmatprep.mubr.f32.mxu0 0.0
      %1900 = vmatmul.mubr.f32.gmra.mrb[0].mxu0 %v1738
      %v1901 = vpop.f32.mrb[0].mxu0
      %v1902 = vadd.f32 0.0, %v1901
      %v1903 = vpop.f32.mrb[0].mxu0
      %1904 = vmatprep.mubr.f32.mxu0 0.0
      %1905 = vmatmul.mubr.f32.gmra.mrb[0].mxu0 %v1739
      %v1906 = vpop.f32.mrb[0].mxu0
      %v1907 = vadd.f32 0.0, %v1906
      %v1908 = vpop.f32.mrb[0].mxu0
      %1909 = vmatprep.mubr.f32.mxu0 0.0
      %1910 = vmatmul.mubr.f32.gmra.mrb[0].mxu0 %v1740
      %v1911 = vpop.f32.mrb[0].mxu0
      %v1912 = vadd.f32 0.0, %v1911
      %v1913 = vpop.f32.mrb[0].mxu0
      %1914 = vmatprep.mubr.f32.mxu0 0.0
      %1915 = vmatmul.mubr.f32.gmra.mrb[0].mxu0 %v1741
      %v1916 = vpop.f32.mrb[0].mxu0
      %v1917 = vadd.f32 0.0, %v1916
      %v1918 = vpop.f32.mrb[0].mxu0
      %1919 = vmatprep.mubr.f32.mxu0 0.0
      %1920 = vmatmul.mubr.f32.gmra.mrb[0].mxu0 %v1742
      %v1921 = vpop.f32.mrb[0].mxu0
      %v1922 = vadd.f32 0.0, %v1921
      %v1923 = vpop.f32.mrb[0].mxu0
      %1924 = vmatprep.mubr.f32.mxu0 0.0
      %1925 = vmatmul.mubr.f32.gmra.mrb[0].mxu0 %v1743
      %v1926 = vpop.f32.mrb[0].mxu0
      %v1927 = vadd.f32 0.0, %v1926
      %v1928 = vpop.f32.mrb[0].mxu0
      %1929 = vmatprep.mubr.f32.mxu0 0.0
      %1930 = vmatmul.mubr.f32.gmra.mrb[0].mxu0 %v1744
      %v1931 = vpop.f32.mrb[0].mxu0
      %v1932 = vadd.f32 0.0, %v1931
      %v1933 = vpop.f32.mrb[0].mxu0
      %1934 = vmatprep.mubr.f32.mxu0 0.0
      %1935 = vmatmul.mubr.f32.gmra.mrb[0].mxu0 %v1745
      %v1936 = vpop.f32.mrb[0].mxu0
      %v1937 = vadd.f32 0.0, %v1936
      %v1938 = vpop.f32.mrb[0].mxu0
      %1939 = vmatprep.mubr.f32.mxu0 0.0
      %1940 = vmatmul.mubr.f32.gmra.mrb[0].mxu0 %v1746
      %v1941 = vpop.f32.mrb[0].mxu0
      %v1942 = vadd.f32 0.0, %v1941
      %v1943 = vpop.f32.mrb[0].mxu0
      %1944 = vmatprep.mubr.f32.mxu0 0.0
      %1945 = vmatmul.mubr.f32.gmra.mrb[0].mxu0 %v1747
      %v1946 = vpop.f32.mrb[0].mxu0
      %v1947 = vadd.f32 0.0, %v1946
      %v1948 = vpop.f32.mrb[0].mxu0
      %1949 = vmatprep.mubr.f32.mxu0 0.0
      %1950 = vmatmul.mubr.f32.gmra.mrb[0].mxu0 %v1748
      %v1951 = vpop.f32.mrb[0].mxu0
      %v1952 = vadd.f32 0.0, %v1951
      %v1953 = vpop.f32.mrb[0].mxu0
      %1954 = vmatprep.mubr.f32.mxu0 0.0
      %1955 = vmatmul.mubr.f32.gmra.mrb[0].mxu0 %v1749
      %v1956 = vpop.f32.mrb[0].mxu0
      %v1957 = vadd.f32 0.0, %v1956
      %v1958 = vpop.f32.mrb[0].mxu0
      %1959 = vmatprep.mubr.f32.mxu0 0.0
      %1960 = vmatmul.mubr.f32.gmra.mrb[0].mxu0 %v1750
      %v1961 = vpop.f32.mrb[0].mxu0
      %v1962 = vadd.f32 0.0, %v1961
      %v1963 = vpop.f32.mrb[0].mxu0
      %1964 = vmatprep.mubr.f32.mxu0 0.0
      %1965 = vmatmul.mubr.f32.gmra.mrb[0].mxu0 %v1751
      %v1966 = vpop.f32.mrb[0].mxu0
      %v1967 = vadd.f32 0.0, %v1966
      %v1968 = vpop.f32.mrb[0].mxu0
      %1969 = vmatprep.mubr.f32.mxu0 0.0
      %1970 = vmatmul.mubr.f32.gmra.mrb[0].mxu0 %v1752
      %v1971 = vpop.f32.mrb[0].mxu0
      %v1972 = vadd.f32 0.0, %v1971
      %v1973 = vpop.f32.mrb[0].mxu0
      %1974 = vmatprep.mubr.f32.mxu0 0.0
      %1975 = vmatmul.mubr.f32.gmra.mrb[0].mxu0 %v1753
      %v1976 = vpop.f32.mrb[0].mxu0
      %v1977 = vadd.f32 0.0, %v1976
      %v1978 = vpop.f32.mrb[0].mxu0
      %1979 = vmatprep.mubr.f32.mxu0 0.0
      %1980 = vmatmul.mubr.f32.gmra.mrb[0].mxu0 %v1754
      %v1981 = vpop.f32.mrb[0].mxu0
      %v1982 = vadd.f32 0.0, %v1981
      %v1983 = vpop.f32.mrb[0].mxu0
      %1984 = vmatprep.mubr.f32.mxu0 0.0
      %1985 = vmatmul.mubr.f32.gmra.mrb[0].mxu0 %v1755
      %v1986 = vpop.f32.mrb[0].mxu0
      %v1987 = vadd.f32 0.0, %v1986
      %v1988 = vpop.f32.mrb[0].mxu0
      %1989 = vmatprep.mubr.f32.mxu0 0.0
      %1990 = vmatmul.mubr.f32.gmra.mrb[0].mxu0 %v1756
      %v1991 = vpop.f32.mrb[0].mxu0
      %v1992 = vadd.f32 0.0, %v1991
      %v1993 = vpop.f32.mrb[0].mxu0
      %1994 = vmatprep.mubr.f32.mxu0 0.0
      %1995 = vmatmul.mubr.f32.gmra.mrb[0].mxu0 %v1757
      %v1996 = vpop.f32.mrb[0].mxu0
      %v1997 = vadd.f32 0.0, %v1996
      %v1998 = vpop.f32.mrb[0].mxu0
      %1999 = vmatprep.mubr.f32.mxu0 0.0
      %2000 = vmatmul.mubr.f32.gmra.mrb[0].mxu0 %v1758
      %v2001 = vpop.f32.mrb[0].mxu0
      %v2002 = vadd.f32 0.0, %v2001
      %v2003 = vpop.f32.mrb[0].mxu0
      %2004 = vmatprep.mubr.f32.mxu0 0.0
      %2005 = vmatmul.mubr.f32.gmra.mrb[0].mxu0 %v1759
      %v2006 = vpop.f32.mrb[0].mxu0
      %v2007 = vadd.f32 0.0, %v2006
      %v2008 = vpop.f32.mrb[0].mxu0
      %2009 = vmatprep.mubr.f32.mxu0 0.0
      %2010 = vmatmul.mubr.f32.gmra.mrb[0].mxu0 %v1760
      %v2011 = vpop.f32.mrb[0].mxu0
      %v2012 = vadd.f32 0.0, %v2011
      %v2013 = vpop.f32.mrb[0].mxu0
      %2014 = vmatprep.mubr.f32.mxu0 0.0
      %2015 = vmatmul.mubr.f32.gmra.mrb[0].mxu0 %v1761
      %v2016 = vpop.f32.mrb[0].mxu0
      %v2017 = vadd.f32 0.0, %v2016
      %v2018 = vpop.f32.mrb[0].mxu0
      %2019 = vmatprep.mubr.f32.mxu0 0.0
      %2020 = vmatmul.mubr.f32.gmra.mrb[0].mxu0 %v1762
      %v2021 = vpop.f32.mrb[0].mxu0
      %v2022 = vadd.f32 0.0, %v2021
      %v2023 = vpop.f32.mrb[0].mxu0
      %2024 = vmatprep.mubr.f32.mxu0 0.0
      %2025 = vmatmul.mubr.f32.gmra.mrb[0].mxu0 %v1763
      %v2026 = vpop.f32.mrb[0].mxu0
      %v2027 = vadd.f32 0.0, %v2026
      %v2028 = vpop.f32.mrb[0].mxu0
      %2029 = vmatprep.mubr.f32.mxu0 0.0
      %2030 = vmatmul.mubr.f32.gmra.mrb[0].mxu0 %v1764
      %v2031 = vpop.f32.mrb[0].mxu0
      %v2032 = vadd.f32 0.0, %v2031
      %v2033 = vpop.f32.mrb[0].mxu0
      %2034 = vmatprep.mubr.f32.mxu0 0.0
      %2035 = vmatmul.mubr.f32.gmra.mrb[0].mxu0 %v1765
      %v2036 = vpop.f32.mrb[0].mxu0
      %v2037 = vadd.f32 0.0, %v2036
      %v2038 = vpop.f32.mrb[0].mxu0
      %2039 = vdwg.mxu0
      %v2040 = vadd.f32 %v1766, %v1882
      %v2041 = vadd.f32 %v1767, %v1887
      %v2042 = vadd.f32 %v1768, %v1892
      %v2043 = vadd.f32 %v1769, %v1897
      %v2044 = vadd.f32 %v1770, %v1902
      %v2045 = vadd.f32 %v1771, %v1907
      %v2046 = vadd.f32 %v1772, %v1912
      %v2047 = vadd.f32 %v1773, %v1917
      %v2048 = vadd.f32 %v1774, %v1922
      %v2049 = vadd.f32 %v1775, %v1927
      %v2050 = vadd.f32 %v1776, %v1932
      %v2051 = vadd.f32 %v1777, %v1937
      %v2052 = vadd.f32 %v1778, %v1942
      %v2053 = vadd.f32 %v1779, %v1947
      %v2054 = vadd.f32 %v1780, %v1952
      %v2055 = vadd.f32 %v1781, %v1957
      %v2056 = vadd.f32 %v1782, %v1962
      %v2057 = vadd.f32 %v1783, %v1967
      %v2058 = vadd.f32 %v1784, %v1972
      %v2059 = vadd.f32 %v1785, %v1977
      %v2060 = vadd.f32 %v1786, %v1982
      %v2061 = vadd.f32 %v1787, %v1987
      %v2062 = vadd.f32 %v1788, %v1992
      %v2063 = vadd.f32 %v1789, %v1997
      %v2064 = vadd.f32 %v1790, %v2002
      %v2065 = vadd.f32 %v1791, %v2007
      %v2066 = vadd.f32 %v1792, %v2012
      %v2067 = vadd.f32 %v1793, %v2017
      %v2068 = vadd.f32 %v1794, %v2022
      %v2069 = vadd.f32 %v1795, %v2027
      %v2070 = vadd.f32 %v1796, %v2032
      %v2071 = vadd.f32 %v1797, %v2037
      %2072 = vst [vmem:[#allocation2] sm:$0xff] %v2040
      %2073 = vst [vmem:[#allocation2 + $0x8] sm:$0xff] %v2041
      %2074 = vst [vmem:[#allocation2 + $0x10] sm:$0xff] %v2042
      %2075 = vst [vmem:[#allocation2 + $0x18] sm:$0xff] %v2043
      %2076 = vst [vmem:[#allocation2 + $0x20] sm:$0xff] %v2044
      %2077 = vst [vmem:[#allocation2 + $0x28] sm:$0xff] %v2045
      %2078 = vst [vmem:[#allocation2 + $0x30] sm:$0xff] %v2046
      %2079 = vst [vmem:[#allocation2 + $0x38] sm:$0xff] %v2047
      %2080 = vst [vmem:[#allocation2 + $0x40] sm:$0xff] %v2048
      %2081 = vst [vmem:[#allocation2 + $0x48] sm:$0xff] %v2049
      %2082 = vst [vmem:[#allocation2 + $0x50] sm:$0xff] %v2050
      %2083 = vst [vmem:[#allocation2 + $0x58] sm:$0xff] %v2051
      %2084 = vst [vmem:[#allocation2 + $0x60] sm:$0xff] %v2052
      %2085 = vst [vmem:[#allocation2 + $0x68] sm:$0xff] %v2053
      %2086 = vst [vmem:[#allocation2 + $0x70] sm:$0xff] %v2054
      %2087 = vst [vmem:[#allocation2 + $0x78] sm:$0xff] %v2055
      %2088 = vst [vmem:[#allocation2 + $0x80] sm:$0xff] %v2056
      %2089 = vst [vmem:[#allocation2 + $0x88] sm:$0xff] %v2057
      %2090 = vst [vmem:[#allocation2 + $0x90] sm:$0xff] %v2058
      %2091 = vst [vmem:[#allocation2 + $0x98] sm:$0xff] %v2059
      %2092 = vst [vmem:[#allocation2 + $0xa0] sm:$0xff] %v2060
      %2093 = vst [vmem:[#allocation2 + $0xa8] sm:$0xff] %v2061
      %2094 = vst [vmem:[#allocation2 + $0xb0] sm:$0xff] %v2062
      %2095 = vst [vmem:[#allocation2 + $0xb8] sm:$0xff] %v2063
      %2096 = vst [vmem:[#allocation2 + $0xc0] sm:$0xff] %v2064
      %2097 = vst [vmem:[#allocation2 + $0xc8] sm:$0xff] %v2065
      %2098 = vst [vmem:[#allocation2 + $0xd0] sm:$0xff] %v2066
      %2099 = vst [vmem:[#allocation2 + $0xd8] sm:$0xff] %v2067
      %2100 = vst [vmem:[#allocation2 + $0xe0] sm:$0xff] %v2068
      %2101 = vst [vmem:[#allocation2 + $0xe8] sm:$0xff] %v2069
      %2102 = vst [vmem:[#allocation2 + $0xf0] sm:$0xff] %v2070
      %2103 = vst [vmem:[#allocation2 + $0xf8] sm:$0xff] %v2071
      %v2104 = vld [vmem:[%s1363 + $0x2] sm:$0xff]
      %v2105 = vld [vmem:[%s1363 + $0xa] sm:$0xff]
      %v2106 = vld [vmem:[%s1363 + $0x1a] sm:$0xff]
      %v2107 = vld [vmem:[%s1363 + $0x22] sm:$0xff]
      %v2108 = vld [vmem:[%s1363 + $0x32] sm:$0xff]
      %v2109 = vld [vmem:[%s1363 + $0x3a] sm:$0xff]
      %v2110 = vld [vmem:[%s1363 + $0x4a] sm:$0xff]
      %v2111 = vld [vmem:[%s1363 + $0x52] sm:$0xff]
      %v2112 = vld [vmem:[%s1363 + $0x62] sm:$0xff]
      %v2113 = vld [vmem:[%s1363 + $0x6a] sm:$0xff]
      %v2114 = vld [vmem:[%s1363 + $0x7a] sm:$0xff]
      %v2115 = vld [vmem:[%s1363 + $0x82] sm:$0xff]
      %v2116 = vld [vmem:[%s1363 + $0x92] sm:$0xff]
      %v2117 = vld [vmem:[%s1363 + $0x9a] sm:$0xff]
      %v2118 = vld [vmem:[%s1363 + $0xaa] sm:$0xff]
      %v2119 = vld [vmem:[%s1363 + $0xb2] sm:$0xff]
      %v2120 = vld [vmem:[%s1363 + $0xc2] sm:$0xff]
      %v2121 = vld [vmem:[%s1363 + $0xca] sm:$0xff]
      %v2122 = vld [vmem:[%s1363 + $0xda] sm:$0xff]
      %v2123 = vld [vmem:[%s1363 + $0xe2] sm:$0xff]
      %v2124 = vld [vmem:[%s1363 + $0xf2] sm:$0xff]
      %v2125 = vld [vmem:[%s1363 + $0xfa] sm:$0xff]
      %v2126 = vld [vmem:[%s1363 + $0x10a] sm:$0xff]
      %v2127 = vld [vmem:[%s1363 + $0x112] sm:$0xff]
      %v2128 = vld [vmem:[%s1363 + $0x122] sm:$0xff]
      %v2129 = vld [vmem:[%s1363 + $0x12a] sm:$0xff]
      %v2130 = vld [vmem:[%s1363 + $0x13a] sm:$0xff]
      %v2131 = vld [vmem:[%s1363 + $0x142] sm:$0xff]
      %v2132 = vld [vmem:[%s1363 + $0x152] sm:$0xff]
      %v2133 = vld [vmem:[%s1363 + $0x15a] sm:$0xff]
      %v2134 = vld [vmem:[%s1363 + $0x16a] sm:$0xff]
      %v2135 = vld [vmem:[%s1363 + $0x172] sm:$0xff]
      %v2136 = vld [vmem:[#allocation2] sm:$0xff]
      %v2137 = vld [vmem:[#allocation2 + $0x8] sm:$0xff]
      %v2138 = vld [vmem:[#allocation2 + $0x10] sm:$0xff]
      %v2139 = vld [vmem:[#allocation2 + $0x18] sm:$0xff]
      %v2140 = vld [vmem:[#allocation2 + $0x20] sm:$0xff]
      %v2141 = vld [vmem:[#allocation2 + $0x28] sm:$0xff]
      %v2142 = vld [vmem:[#allocation2 + $0x30] sm:$0xff]
      %v2143 = vld [vmem:[#allocation2 + $0x38] sm:$0xff]
      %v2144 = vld [vmem:[#allocation2 + $0x40] sm:$0xff]
      %v2145 = vld [vmem:[#allocation2 + $0x48] sm:$0xff]
      %v2146 = vld [vmem:[#allocation2 + $0x50] sm:$0xff]
      %v2147 = vld [vmem:[#allocation2 + $0x58] sm:$0xff]
      %v2148 = vld [vmem:[#allocation2 + $0x60] sm:$0xff]
      %v2149 = vld [vmem:[#allocation2 + $0x68] sm:$0xff]
      %v2150 = vld [vmem:[#allocation2 + $0x70] sm:$0xff]
      %v2151 = vld [vmem:[#allocation2 + $0x78] sm:$0xff]
      %v2152 = vld [vmem:[#allocation2 + $0x80] sm:$0xff]
      %v2153 = vld [vmem:[#allocation2 + $0x88] sm:$0xff]
      %v2154 = vld [vmem:[#allocation2 + $0x90] sm:$0xff]
      %v2155 = vld [vmem:[#allocation2 + $0x98] sm:$0xff]
      %v2156 = vld [vmem:[#allocation2 + $0xa0] sm:$0xff]
      %v2157 = vld [vmem:[#allocation2 + $0xa8] sm:$0xff]
      %v2158 = vld [vmem:[#allocation2 + $0xb0] sm:$0xff]
      %v2159 = vld [vmem:[#allocation2 + $0xb8] sm:$0xff]
      %v2160 = vld [vmem:[#allocation2 + $0xc0] sm:$0xff]
      %v2161 = vld [vmem:[#allocation2 + $0xc8] sm:$0xff]
      %v2162 = vld [vmem:[#allocation2 + $0xd0] sm:$0xff]
      %v2163 = vld [vmem:[#allocation2 + $0xd8] sm:$0xff]
      %v2164 = vld [vmem:[#allocation2 + $0xe0] sm:$0xff]
      %v2165 = vld [vmem:[#allocation2 + $0xe8] sm:$0xff]
      %v2166 = vld [vmem:[#allocation2 + $0xf0] sm:$0xff]
      %v2167 = vld [vmem:[#allocation2 + $0xf8] sm:$0xff]
      %s2168 = scalar_lea.vmem %s210, 640
      %v2169 = vld [vmem:[%s2168] sm:$0xff]
      %v2170 = vld [vmem:[%s2168 + $0x8] sm:$0xff]
      %v2171 = vld [vmem:[%s2168 + $0x10] sm:$0xff]
      %v2172 = vld [vmem:[%s2168 + $0x18] sm:$0xff]
      %v2173 = vld [vmem:[%s2168 + $0x20] sm:$0xff]
      %v2174 = vld [vmem:[%s2168 + $0x28] sm:$0xff]
      %v2175 = vld [vmem:[%s2168 + $0x30] sm:$0xff]
      %v2176 = vld [vmem:[%s2168 + $0x38] sm:$0xff]
      %v2177 = vld [vmem:[%s2168 + $0x40] sm:$0xff]
      %v2178 = vld [vmem:[%s2168 + $0x48] sm:$0xff]
      %v2179 = vld [vmem:[%s2168 + $0x50] sm:$0xff]
      %v2180 = vld [vmem:[%s2168 + $0x58] sm:$0xff]
      %v2181 = vld [vmem:[%s2168 + $0x60] sm:$0xff]
      %v2182 = vld [vmem:[%s2168 + $0x68] sm:$0xff]
      %v2183 = vld [vmem:[%s2168 + $0x70] sm:$0xff]
      %v2184 = vld [vmem:[%s2168 + $0x78] sm:$0xff]
      %2185 = vmatprep.subr.mxu0 0.0
      %2186 = vmatpush1.msra.mxu0 %v2169
      %2187 = vmatprep.subr.mxu0 0.0
      %2188 = vmatpush1.msra.mxu0 %v2170
      %2189 = vmatprep.subr.mxu0 0.0
      %2190 = vmatpush1.msra.mxu0 %v2171
      %2191 = vmatprep.subr.mxu0 0.0
      %2192 = vmatpush1.msra.mxu0 %v2172
      %2193 = vmatprep.subr.mxu0 0.0
      %2194 = vmatpush1.msra.mxu0 %v2173
      %2195 = vmatprep.subr.mxu0 0.0
      %2196 = vmatpush1.msra.mxu0 %v2174
      %2197 = vmatprep.subr.mxu0 0.0
      %2198 = vmatpush1.msra.mxu0 %v2175
      %2199 = vmatprep.subr.mxu0 0.0
      %2200 = vmatpush1.msra.mxu0 %v2176
      %2201 = vmatprep.subr.mxu0 0.0
      %2202 = vmatpush1.msra.mxu0 %v2177
      %2203 = vmatprep.subr.mxu0 0.0
      %2204 = vmatpush1.msra.mxu0 %v2178
      %2205 = vmatprep.subr.mxu0 0.0
      %2206 = vmatpush1.msra.mxu0 %v2179
      %2207 = vmatprep.subr.mxu0 0.0
      %2208 = vmatpush1.msra.mxu0 %v2180
      %2209 = vmatprep.subr.mxu0 0.0
      %2210 = vmatpush1.msra.mxu0 %v2181
      %2211 = vmatprep.subr.mxu0 0.0
      %2212 = vmatpush1.msra.mxu0 %v2182
      %2213 = vmatprep.subr.mxu0 0.0
      %2214 = vmatpush1.msra.mxu0 %v2183
      %2215 = vmatprep.subr.mxu0 0.0
      %2216 = vmatpush1.msra.mxu0 %v2184
      %2217 = vmatprep.subr.mxu0 0.0
      %2218 = vmatpush1.msra.mxu0 0.0
      %2219 = vmatprep.subr.mxu0 0.0
      %2220 = vmatpush1.msra.mxu0 0.0
      %2221 = vmatprep.subr.mxu0 0.0
      %2222 = vmatpush1.msra.mxu0 0.0
      %2223 = vmatprep.subr.mxu0 0.0
      %2224 = vmatpush1.msra.mxu0 0.0
      %2225 = vmatprep.subr.mxu0 0.0
      %2226 = vmatpush1.msra.mxu0 0.0
      %2227 = vmatprep.subr.mxu0 0.0
      %2228 = vmatpush1.msra.mxu0 0.0
      %2229 = vmatprep.subr.mxu0 0.0
      %2230 = vmatpush1.msra.mxu0 0.0
      %2231 = vmatprep.subr.mxu0 0.0
      %2232 = vmatpush1.msra.mxu0 0.0
      %2233 = vmatprep.subr.mxu0 0.0
      %2234 = vmatpush1.msra.mxu0 0.0
      %2235 = vmatprep.subr.mxu0 0.0
      %2236 = vmatpush1.msra.mxu0 0.0
      %2237 = vmatprep.subr.mxu0 0.0
      %2238 = vmatpush1.msra.mxu0 0.0
      %2239 = vmatprep.subr.mxu0 0.0
      %2240 = vmatpush1.msra.mxu0 0.0
      %2241 = vmatprep.subr.mxu0 0.0
      %2242 = vmatpush1.msra.mxu0 0.0
      %2243 = vmatprep.subr.mxu0 0.0
      %2244 = vmatpush1.msra.mxu0 0.0
      %2245 = vmatprep.subr.mxu0 0.0
      %2246 = vmatpush1.msra.mxu0 0.0
      %2247 = vmatprep.subr.mxu0 0.0
      %2248 = vmatpush1.msra.mxu0 0.0
      %2249 = vmatprep.mubr.f32.mxu0 0.0
      %2250 = vmatmul.mubr.f32.gmra.mrb[0].mxu0 %v2104
      %v2251 = vpop.f32.mrb[0].mxu0
      %v2252 = vadd.f32 0.0, %v2251
      %v2253 = vpop.f32.mrb[0].mxu0
      %2254 = vmatprep.mubr.f32.mxu0 0.0
      %2255 = vmatmul.mubr.f32.gmra.mrb[0].mxu0 %v2105
      %v2256 = vpop.f32.mrb[0].mxu0
      %v2257 = vadd.f32 0.0, %v2256
      %v2258 = vpop.f32.mrb[0].mxu0
      %2259 = vmatprep.mubr.f32.mxu0 0.0
      %2260 = vmatmul.mubr.f32.gmra.mrb[0].mxu0 %v2106
      %v2261 = vpop.f32.mrb[0].mxu0
      %v2262 = vadd.f32 0.0, %v2261
      %v2263 = vpop.f32.mrb[0].mxu0
      %2264 = vmatprep.mubr.f32.mxu0 0.0
      %2265 = vmatmul.mubr.f32.gmra.mrb[0].mxu0 %v2107
      %v2266 = vpop.f32.mrb[0].mxu0
      %v2267 = vadd.f32 0.0, %v2266
      %v2268 = vpop.f32.mrb[0].mxu0
      %2269 = vmatprep.mubr.f32.mxu0 0.0
      %2270 = vmatmul.mubr.f32.gmra.mrb[0].mxu0 %v2108
      %v2271 = vpop.f32.mrb[0].mxu0
      %v2272 = vadd.f32 0.0, %v2271
      %v2273 = vpop.f32.mrb[0].mxu0
      %2274 = vmatprep.mubr.f32.mxu0 0.0
      %2275 = vmatmul.mubr.f32.gmra.mrb[0].mxu0 %v2109
      %v2276 = vpop.f32.mrb[0].mxu0
      %v2277 = vadd.f32 0.0, %v2276
      %v2278 = vpop.f32.mrb[0].mxu0
      %2279 = vmatprep.mubr.f32.mxu0 0.0
      %2280 = vmatmul.mubr.f32.gmra.mrb[0].mxu0 %v2110
      %v2281 = vpop.f32.mrb[0].mxu0
      %v2282 = vadd.f32 0.0, %v2281
      %v2283 = vpop.f32.mrb[0].mxu0
      %2284 = vmatprep.mubr.f32.mxu0 0.0
      %2285 = vmatmul.mubr.f32.gmra.mrb[0].mxu0 %v2111
      %v2286 = vpop.f32.mrb[0].mxu0
      %v2287 = vadd.f32 0.0, %v2286
      %v2288 = vpop.f32.mrb[0].mxu0
      %2289 = vmatprep.mubr.f32.mxu0 0.0
      %2290 = vmatmul.mubr.f32.gmra.mrb[0].mxu0 %v2112
      %v2291 = vpop.f32.mrb[0].mxu0
      %v2292 = vadd.f32 0.0, %v2291
      %v2293 = vpop.f32.mrb[0].mxu0
      %2294 = vmatprep.mubr.f32.mxu0 0.0
      %2295 = vmatmul.mubr.f32.gmra.mrb[0].mxu0 %v2113
      %v2296 = vpop.f32.mrb[0].mxu0
      %v2297 = vadd.f32 0.0, %v2296
      %v2298 = vpop.f32.mrb[0].mxu0
      %2299 = vmatprep.mubr.f32.mxu0 0.0
      %2300 = vmatmul.mubr.f32.gmra.mrb[0].mxu0 %v2114
      %v2301 = vpop.f32.mrb[0].mxu0
      %v2302 = vadd.f32 0.0, %v2301
      %v2303 = vpop.f32.mrb[0].mxu0
      %2304 = vmatprep.mubr.f32.mxu0 0.0
      %2305 = vmatmul.mubr.f32.gmra.mrb[0].mxu0 %v2115
      %v2306 = vpop.f32.mrb[0].mxu0
      %v2307 = vadd.f32 0.0, %v2306
      %v2308 = vpop.f32.mrb[0].mxu0
      %2309 = vmatprep.mubr.f32.mxu0 0.0
      %2310 = vmatmul.mubr.f32.gmra.mrb[0].mxu0 %v2116
      %v2311 = vpop.f32.mrb[0].mxu0
      %v2312 = vadd.f32 0.0, %v2311
      %v2313 = vpop.f32.mrb[0].mxu0
      %2314 = vmatprep.mubr.f32.mxu0 0.0
      %2315 = vmatmul.mubr.f32.gmra.mrb[0].mxu0 %v2117
      %v2316 = vpop.f32.mrb[0].mxu0
      %v2317 = vadd.f32 0.0, %v2316
      %v2318 = vpop.f32.mrb[0].mxu0
      %2319 = vmatprep.mubr.f32.mxu0 0.0
      %2320 = vmatmul.mubr.f32.gmra.mrb[0].mxu0 %v2118
      %v2321 = vpop.f32.mrb[0].mxu0
      %v2322 = vadd.f32 0.0, %v2321
      %v2323 = vpop.f32.mrb[0].mxu0
      %2324 = vmatprep.mubr.f32.mxu0 0.0
      %2325 = vmatmul.mubr.f32.gmra.mrb[0].mxu0 %v2119
      %v2326 = vpop.f32.mrb[0].mxu0
      %v2327 = vadd.f32 0.0, %v2326
      %v2328 = vpop.f32.mrb[0].mxu0
      %2329 = vmatprep.mubr.f32.mxu0 0.0
      %2330 = vmatmul.mubr.f32.gmra.mrb[0].mxu0 %v2120
      %v2331 = vpop.f32.mrb[0].mxu0
      %v2332 = vadd.f32 0.0, %v2331
      %v2333 = vpop.f32.mrb[0].mxu0
      %2334 = vmatprep.mubr.f32.mxu0 0.0
      %2335 = vmatmul.mubr.f32.gmra.mrb[0].mxu0 %v2121
      %v2336 = vpop.f32.mrb[0].mxu0
      %v2337 = vadd.f32 0.0, %v2336
      %v2338 = vpop.f32.mrb[0].mxu0
      %2339 = vmatprep.mubr.f32.mxu0 0.0
      %2340 = vmatmul.mubr.f32.gmra.mrb[0].mxu0 %v2122
      %v2341 = vpop.f32.mrb[0].mxu0
      %v2342 = vadd.f32 0.0, %v2341
      %v2343 = vpop.f32.mrb[0].mxu0
      %2344 = vmatprep.mubr.f32.mxu0 0.0
      %2345 = vmatmul.mubr.f32.gmra.mrb[0].mxu0 %v2123
      %v2346 = vpop.f32.mrb[0].mxu0
      %v2347 = vadd.f32 0.0, %v2346
      %v2348 = vpop.f32.mrb[0].mxu0
      %2349 = vmatprep.mubr.f32.mxu0 0.0
      %2350 = vmatmul.mubr.f32.gmra.mrb[0].mxu0 %v2124
      %v2351 = vpop.f32.mrb[0].mxu0
      %v2352 = vadd.f32 0.0, %v2351
      %v2353 = vpop.f32.mrb[0].mxu0
      %2354 = vmatprep.mubr.f32.mxu0 0.0
      %2355 = vmatmul.mubr.f32.gmra.mrb[0].mxu0 %v2125
      %v2356 = vpop.f32.mrb[0].mxu0
      %v2357 = vadd.f32 0.0, %v2356
      %v2358 = vpop.f32.mrb[0].mxu0
      %2359 = vmatprep.mubr.f32.mxu0 0.0
      %2360 = vmatmul.mubr.f32.gmra.mrb[0].mxu0 %v2126
      %v2361 = vpop.f32.mrb[0].mxu0
      %v2362 = vadd.f32 0.0, %v2361
      %v2363 = vpop.f32.mrb[0].mxu0
      %2364 = vmatprep.mubr.f32.mxu0 0.0
      %2365 = vmatmul.mubr.f32.gmra.mrb[0].mxu0 %v2127
      %v2366 = vpop.f32.mrb[0].mxu0
      %v2367 = vadd.f32 0.0, %v2366
      %v2368 = vpop.f32.mrb[0].mxu0
      %2369 = vmatprep.mubr.f32.mxu0 0.0
      %2370 = vmatmul.mubr.f32.gmra.mrb[0].mxu0 %v2128
      %v2371 = vpop.f32.mrb[0].mxu0
      %v2372 = vadd.f32 0.0, %v2371
      %v2373 = vpop.f32.mrb[0].mxu0
      %2374 = vmatprep.mubr.f32.mxu0 0.0
      %2375 = vmatmul.mubr.f32.gmra.mrb[0].mxu0 %v2129
      %v2376 = vpop.f32.mrb[0].mxu0
      %v2377 = vadd.f32 0.0, %v2376
      %v2378 = vpop.f32.mrb[0].mxu0
      %2379 = vmatprep.mubr.f32.mxu0 0.0
      %2380 = vmatmul.mubr.f32.gmra.mrb[0].mxu0 %v2130
      %v2381 = vpop.f32.mrb[0].mxu0
      %v2382 = vadd.f32 0.0, %v2381
      %v2383 = vpop.f32.mrb[0].mxu0
      %2384 = vmatprep.mubr.f32.mxu0 0.0
      %2385 = vmatmul.mubr.f32.gmra.mrb[0].mxu0 %v2131
      %v2386 = vpop.f32.mrb[0].mxu0
      %v2387 = vadd.f32 0.0, %v2386
      %v2388 = vpop.f32.mrb[0].mxu0
      %2389 = vmatprep.mubr.f32.mxu0 0.0
      %2390 = vmatmul.mubr.f32.gmra.mrb[0].mxu0 %v2132
      %v2391 = vpop.f32.mrb[0].mxu0
      %v2392 = vadd.f32 0.0, %v2391
      %v2393 = vpop.f32.mrb[0].mxu0
      %2394 = vmatprep.mubr.f32.mxu0 0.0
      %2395 = vmatmul.mubr.f32.gmra.mrb[0].mxu0 %v2133
      %v2396 = vpop.f32.mrb[0].mxu0
      %v2397 = vadd.f32 0.0, %v2396
      %v2398 = vpop.f32.mrb[0].mxu0
      %2399 = vmatprep.mubr.f32.mxu0 0.0
      %2400 = vmatmul.mubr.f32.gmra.mrb[0].mxu0 %v2134
      %v2401 = vpop.f32.mrb[0].mxu0
      %v2402 = vadd.f32 0.0, %v2401
      %v2403 = vpop.f32.mrb[0].mxu0
      %2404 = vmatprep.mubr.f32.mxu0 0.0
      %2405 = vmatmul.mubr.f32.gmra.mrb[0].mxu0 %v2135
      %v2406 = vpop.f32.mrb[0].mxu0
      %v2407 = vadd.f32 0.0, %v2406
      %v2408 = vpop.f32.mrb[0].mxu0
      %2409 = vdwg.mxu0
      %v2410 = vadd.f32 %v2136, %v2252
      %v2411 = vadd.f32 %v2137, %v2257
      %v2412 = vadd.f32 %v2138, %v2262
      %v2413 = vadd.f32 %v2139, %v2267
      %v2414 = vadd.f32 %v2140, %v2272
      %v2415 = vadd.f32 %v2141, %v2277
      %v2416 = vadd.f32 %v2142, %v2282
      %v2417 = vadd.f32 %v2143, %v2287
      %v2418 = vadd.f32 %v2144, %v2292
      %v2419 = vadd.f32 %v2145, %v2297
      %v2420 = vadd.f32 %v2146, %v2302
      %v2421 = vadd.f32 %v2147, %v2307
      %v2422 = vadd.f32 %v2148, %v2312
      %v2423 = vadd.f32 %v2149, %v2317
      %v2424 = vadd.f32 %v2150, %v2322
      %v2425 = vadd.f32 %v2151, %v2327
      %v2426 = vadd.f32 %v2152, %v2332
      %v2427 = vadd.f32 %v2153, %v2337
      %v2428 = vadd.f32 %v2154, %v2342
      %v2429 = vadd.f32 %v2155, %v2347
      %v2430 = vadd.f32 %v2156, %v2352
      %v2431 = vadd.f32 %v2157, %v2357
      %v2432 = vadd.f32 %v2158, %v2362
      %v2433 = vadd.f32 %v2159, %v2367
      %v2434 = vadd.f32 %v2160, %v2372
      %v2435 = vadd.f32 %v2161, %v2377
      %v2436 = vadd.f32 %v2162, %v2382
      %v2437 = vadd.f32 %v2163, %v2387
      %v2438 = vadd.f32 %v2164, %v2392
      %v2439 = vadd.f32 %v2165, %v2397
      %v2440 = vadd.f32 %v2166, %v2402
      %v2441 = vadd.f32 %v2167, %v2407
      %2442 = vst [vmem:[#allocation2] sm:$0xff] %v2410
      %2443 = vst [vmem:[#allocation2 + $0x8] sm:$0xff] %v2411
      %2444 = vst [vmem:[#allocation2 + $0x10] sm:$0xff] %v2412
      %2445 = vst [vmem:[#allocation2 + $0x18] sm:$0xff] %v2413
      %2446 = vst [vmem:[#allocation2 + $0x20] sm:$0xff] %v2414
      %2447 = vst [vmem:[#allocation2 + $0x28] sm:$0xff] %v2415
      %2448 = vst [vmem:[#allocation2 + $0x30] sm:$0xff] %v2416
      %2449 = vst [vmem:[#allocation2 + $0x38] sm:$0xff] %v2417
      %2450 = vst [vmem:[#allocation2 + $0x40] sm:$0xff] %v2418
      %2451 = vst [vmem:[#allocation2 + $0x48] sm:$0xff] %v2419
      %2452 = vst [vmem:[#allocation2 + $0x50] sm:$0xff] %v2420
      %2453 = vst [vmem:[#allocation2 + $0x58] sm:$0xff] %v2421
      %2454 = vst [vmem:[#allocation2 + $0x60] sm:$0xff] %v2422
      %2455 = vst [vmem:[#allocation2 + $0x68] sm:$0xff] %v2423
      %2456 = vst [vmem:[#allocation2 + $0x70] sm:$0xff] %v2424
      %2457 = vst [vmem:[#allocation2 + $0x78] sm:$0xff] %v2425
      %2458 = vst [vmem:[#allocation2 + $0x80] sm:$0xff] %v2426
      %2459 = vst [vmem:[#allocation2 + $0x88] sm:$0xff] %v2427
      %2460 = vst [vmem:[#allocation2 + $0x90] sm:$0xff] %v2428
      %2461 = vst [vmem:[#allocation2 + $0x98] sm:$0xff] %v2429
      %2462 = vst [vmem:[#allocation2 + $0xa0] sm:$0xff] %v2430
      %2463 = vst [vmem:[#allocation2 + $0xa8] sm:$0xff] %v2431
      %2464 = vst [vmem:[#allocation2 + $0xb0] sm:$0xff] %v2432
      %2465 = vst [vmem:[#allocation2 + $0xb8] sm:$0xff] %v2433
      %2466 = vst [vmem:[#allocation2 + $0xc0] sm:$0xff] %v2434
      %2467 = vst [vmem:[#allocation2 + $0xc8] sm:$0xff] %v2435
      %2468 = vst [vmem:[#allocation2 + $0xd0] sm:$0xff] %v2436
      %2469 = vst [vmem:[#allocation2 + $0xd8] sm:$0xff] %v2437
      %2470 = vst [vmem:[#allocation2 + $0xe0] sm:$0xff] %v2438
      %2471 = vst [vmem:[#allocation2 + $0xe8] sm:$0xff] %v2439
      %2472 = vst [vmem:[#allocation2 + $0xf0] sm:$0xff] %v2440
      %2473 = vst [vmem:[#allocation2 + $0xf8] sm:$0xff] %v2441
      %s2474 = scalar_lea.vmem %s206, 48
      %v2475 = vld [vmem:[%s2474] sm:$0xff]
      %v2476 = vld [vmem:[%s2474 + $0x8] sm:$0xff]
      %v2477 = vld [vmem:[%s2474 + $0x18] sm:$0xff]
      %v2478 = vld [vmem:[%s2474 + $0x20] sm:$0xff]
      %v2479 = vld [vmem:[%s2474 + $0x30] sm:$0xff]
      %v2480 = vld [vmem:[%s2474 + $0x38] sm:$0xff]
      %v2481 = vld [vmem:[%s2474 + $0x48] sm:$0xff]
      %v2482 = vld [vmem:[%s2474 + $0x50] sm:$0xff]
      %v2483 = vld [vmem:[%s2474 + $0x60] sm:$0xff]
      %v2484 = vld [vmem:[%s2474 + $0x68] sm:$0xff]
      %v2485 = vld [vmem:[%s2474 + $0x78] sm:$0xff]
      %v2486 = vld [vmem:[%s2474 + $0x80] sm:$0xff]
      %v2487 = vld [vmem:[%s2474 + $0x90] sm:$0xff]
      %v2488 = vld [vmem:[%s2474 + $0x98] sm:$0xff]
      %v2489 = vld [vmem:[%s2474 + $0xa8] sm:$0xff]
      %v2490 = vld [vmem:[%s2474 + $0xb0] sm:$0xff]
      %v2491 = vld [vmem:[%s2474 + $0xc0] sm:$0xff]
      %v2492 = vld [vmem:[%s2474 + $0xc8] sm:$0xff]
      %v2493 = vld [vmem:[%s2474 + $0xd8] sm:$0xff]
      %v2494 = vld [vmem:[%s2474 + $0xe0] sm:$0xff]
      %v2495 = vld [vmem:[%s2474 + $0xf0] sm:$0xff]
      %v2496 = vld [vmem:[%s2474 + $0xf8] sm:$0xff]
      %v2497 = vld [vmem:[%s2474 + $0x108] sm:$0xff]
      %v2498 = vld [vmem:[%s2474 + $0x110] sm:$0xff]
      %v2499 = vld [vmem:[%s2474 + $0x120] sm:$0xff]
      %v2500 = vld [vmem:[%s2474 + $0x128] sm:$0xff]
      %v2501 = vld [vmem:[%s2474 + $0x138] sm:$0xff]
      %v2502 = vld [vmem:[%s2474 + $0x140] sm:$0xff]
      %v2503 = vld [vmem:[%s2474 + $0x150] sm:$0xff]
      %v2504 = vld [vmem:[%s2474 + $0x158] sm:$0xff]
      %v2505 = vld [vmem:[%s2474 + $0x168] sm:$0xff]
      %v2506 = vld [vmem:[%s2474 + $0x170] sm:$0xff]
      %v2507 = vld [vmem:[#allocation2] sm:$0xff]
      %v2508 = vld [vmem:[#allocation2 + $0x8] sm:$0xff]
      %v2509 = vld [vmem:[#allocation2 + $0x10] sm:$0xff]
      %v2510 = vld [vmem:[#allocation2 + $0x18] sm:$0xff]
      %v2511 = vld [vmem:[#allocation2 + $0x20] sm:$0xff]
      %v2512 = vld [vmem:[#allocation2 + $0x28] sm:$0xff]
      %v2513 = vld [vmem:[#allocation2 + $0x30] sm:$0xff]
      %v2514 = vld [vmem:[#allocation2 + $0x38] sm:$0xff]
      %v2515 = vld [vmem:[#allocation2 + $0x40] sm:$0xff]
      %v2516 = vld [vmem:[#allocation2 + $0x48] sm:$0xff]
      %v2517 = vld [vmem:[#allocation2 + $0x50] sm:$0xff]
      %v2518 = vld [vmem:[#allocation2 + $0x58] sm:$0xff]
      %v2519 = vld [vmem:[#allocation2 + $0x60] sm:$0xff]
      %v2520 = vld [vmem:[#allocation2 + $0x68] sm:$0xff]
      %v2521 = vld [vmem:[#allocation2 + $0x70] sm:$0xff]
      %v2522 = vld [vmem:[#allocation2 + $0x78] sm:$0xff]
      %v2523 = vld [vmem:[#allocation2 + $0x80] sm:$0xff]
      %v2524 = vld [vmem:[#allocation2 + $0x88] sm:$0xff]
      %v2525 = vld [vmem:[#allocation2 + $0x90] sm:$0xff]
      %v2526 = vld [vmem:[#allocation2 + $0x98] sm:$0xff]
      %v2527 = vld [vmem:[#allocation2 + $0xa0] sm:$0xff]
      %v2528 = vld [vmem:[#allocation2 + $0xa8] sm:$0xff]
      %v2529 = vld [vmem:[#allocation2 + $0xb0] sm:$0xff]
      %v2530 = vld [vmem:[#allocation2 + $0xb8] sm:$0xff]
      %v2531 = vld [vmem:[#allocation2 + $0xc0] sm:$0xff]
      %v2532 = vld [vmem:[#allocation2 + $0xc8] sm:$0xff]
      %v2533 = vld [vmem:[#allocation2 + $0xd0] sm:$0xff]
      %v2534 = vld [vmem:[#allocation2 + $0xd8] sm:$0xff]
      %v2535 = vld [vmem:[#allocation2 + $0xe0] sm:$0xff]
      %v2536 = vld [vmem:[#allocation2 + $0xe8] sm:$0xff]
      %v2537 = vld [vmem:[#allocation2 + $0xf0] sm:$0xff]
      %v2538 = vld [vmem:[#allocation2 + $0xf8] sm:$0xff]
      %s2539 = scalar_lea.vmem %s210, 768
      %v2540 = vld [vmem:[%s2539] sm:$0xff]
      %v2541 = vld [vmem:[%s2539 + $0x8] sm:$0xff]
      %v2542 = vld [vmem:[%s2539 + $0x10] sm:$0xff]
      %v2543 = vld [vmem:[%s2539 + $0x18] sm:$0xff]
      %v2544 = vld [vmem:[%s2539 + $0x20] sm:$0xff]
      %v2545 = vld [vmem:[%s2539 + $0x28] sm:$0xff]
      %v2546 = vld [vmem:[%s2539 + $0x30] sm:$0xff]
      %v2547 = vld [vmem:[%s2539 + $0x38] sm:$0xff]
      %v2548 = vld [vmem:[%s2539 + $0x40] sm:$0xff]
      %v2549 = vld [vmem:[%s2539 + $0x48] sm:$0xff]
      %v2550 = vld [vmem:[%s2539 + $0x50] sm:$0xff]
      %v2551 = vld [vmem:[%s2539 + $0x58] sm:$0xff]
      %v2552 = vld [vmem:[%s2539 + $0x60] sm:$0xff]
      %v2553 = vld [vmem:[%s2539 + $0x68] sm:$0xff]
      %v2554 = vld [vmem:[%s2539 + $0x70] sm:$0xff]
      %v2555 = vld [vmem:[%s2539 + $0x78] sm:$0xff]
      %2556 = vmatprep.subr.mxu0 0.0
      %2557 = vmatpush1.msra.mxu0 %v2540
      %2558 = vmatprep.subr.mxu0 0.0
      %2559 = vmatpush1.msra.mxu0 %v2541
      %2560 = vmatprep.subr.mxu0 0.0
      %2561 = vmatpush1.msra.mxu0 %v2542
      %2562 = vmatprep.subr.mxu0 0.0
      %2563 = vmatpush1.msra.mxu0 %v2543
      %2564 = vmatprep.subr.mxu0 0.0
      %2565 = vmatpush1.msra.mxu0 %v2544
      %2566 = vmatprep.subr.mxu0 0.0
      %2567 = vmatpush1.msra.mxu0 %v2545
      %2568 = vmatprep.subr.mxu0 0.0
      %2569 = vmatpush1.msra.mxu0 %v2546
      %2570 = vmatprep.subr.mxu0 0.0
      %2571 = vmatpush1.msra.mxu0 %v2547
      %2572 = vmatprep.subr.mxu0 0.0
      %2573 = vmatpush1.msra.mxu0 %v2548
      %2574 = vmatprep.subr.mxu0 0.0
      %2575 = vmatpush1.msra.mxu0 %v2549
      %2576 = vmatprep.subr.mxu0 0.0
      %2577 = vmatpush1.msra.mxu0 %v2550
      %2578 = vmatprep.subr.mxu0 0.0
      %2579 = vmatpush1.msra.mxu0 %v2551
      %2580 = vmatprep.subr.mxu0 0.0
      %2581 = vmatpush1.msra.mxu0 %v2552
      %2582 = vmatprep.subr.mxu0 0.0
      %2583 = vmatpush1.msra.mxu0 %v2553
      %2584 = vmatprep.subr.mxu0 0.0
      %2585 = vmatpush1.msra.mxu0 %v2554
      %2586 = vmatprep.subr.mxu0 0.0
      %2587 = vmatpush1.msra.mxu0 %v2555
      %2588 = vmatprep.subr.mxu0 0.0
      %2589 = vmatpush1.msra.mxu0 0.0
      %2590 = vmatprep.subr.mxu0 0.0
      %2591 = vmatpush1.msra.mxu0 0.0
      %2592 = vmatprep.subr.mxu0 0.0
      %2593 = vmatpush1.msra.mxu0 0.0
      %2594 = vmatprep.subr.mxu0 0.0
      %2595 = vmatpush1.msra.mxu0 0.0
      %2596 = vmatprep.subr.mxu0 0.0
      %2597 = vmatpush1.msra.mxu0 0.0
      %2598 = vmatprep.subr.mxu0 0.0
      %2599 = vmatpush1.msra.mxu0 0.0
      %2600 = vmatprep.subr.mxu0 0.0
      %2601 = vmatpush1.msra.mxu0 0.0
      %2602 = vmatprep.subr.mxu0 0.0
      %2603 = vmatpush1.msra.mxu0 0.0
      %2604 = vmatprep.subr.mxu0 0.0
      %2605 = vmatpush1.msra.mxu0 0.0
      %2606 = vmatprep.subr.mxu0 0.0
      %2607 = vmatpush1.msra.mxu0 0.0
      %2608 = vmatprep.subr.mxu0 0.0
      %2609 = vmatpush1.msra.mxu0 0.0
      %2610 = vmatprep.subr.mxu0 0.0
      %2611 = vmatpush1.msra.mxu0 0.0
      %2612 = vmatprep.subr.mxu0 0.0
      %2613 = vmatpush1.msra.mxu0 0.0
      %2614 = vmatprep.subr.mxu0 0.0
      %2615 = vmatpush1.msra.mxu0 0.0
      %2616 = vmatprep.subr.mxu0 0.0
      %2617 = vmatpush1.msra.mxu0 0.0
      %2618 = vmatprep.subr.mxu0 0.0
      %2619 = vmatpush1.msra.mxu0 0.0
      %2620 = vmatprep.mubr.f32.mxu0 0.0
      %2621 = vmatmul.mubr.f32.gmra.mrb[0].mxu0 %v2475
      %v2622 = vpop.f32.mrb[0].mxu0
      %v2623 = vadd.f32 0.0, %v2622
      %v2624 = vpop.f32.mrb[0].mxu0
      %2625 = vmatprep.mubr.f32.mxu0 0.0
      %2626 = vmatmul.mubr.f32.gmra.mrb[0].mxu0 %v2476
      %v2627 = vpop.f32.mrb[0].mxu0
      %v2628 = vadd.f32 0.0, %v2627
      %v2629 = vpop.f32.mrb[0].mxu0
      %2630 = vmatprep.mubr.f32.mxu0 0.0
      %2631 = vmatmul.mubr.f32.gmra.mrb[0].mxu0 %v2477
      %v2632 = vpop.f32.mrb[0].mxu0
      %v2633 = vadd.f32 0.0, %v2632
      %v2634 = vpop.f32.mrb[0].mxu0
      %2635 = vmatprep.mubr.f32.mxu0 0.0
      %2636 = vmatmul.mubr.f32.gmra.mrb[0].mxu0 %v2478
      %v2637 = vpop.f32.mrb[0].mxu0
      %v2638 = vadd.f32 0.0, %v2637
      %v2639 = vpop.f32.mrb[0].mxu0
      %2640 = vmatprep.mubr.f32.mxu0 0.0
      %2641 = vmatmul.mubr.f32.gmra.mrb[0].mxu0 %v2479
      %v2642 = vpop.f32.mrb[0].mxu0
      %v2643 = vadd.f32 0.0, %v2642
      %v2644 = vpop.f32.mrb[0].mxu0
      %2645 = vmatprep.mubr.f32.mxu0 0.0
      %2646 = vmatmul.mubr.f32.gmra.mrb[0].mxu0 %v2480
      %v2647 = vpop.f32.mrb[0].mxu0
      %v2648 = vadd.f32 0.0, %v2647
      %v2649 = vpop.f32.mrb[0].mxu0
      %2650 = vmatprep.mubr.f32.mxu0 0.0
      %2651 = vmatmul.mubr.f32.gmra.mrb[0].mxu0 %v2481
      %v2652 = vpop.f32.mrb[0].mxu0
      %v2653 = vadd.f32 0.0, %v2652
      %v2654 = vpop.f32.mrb[0].mxu0
      %2655 = vmatprep.mubr.f32.mxu0 0.0
      %2656 = vmatmul.mubr.f32.gmra.mrb[0].mxu0 %v2482
      %v2657 = vpop.f32.mrb[0].mxu0
      %v2658 = vadd.f32 0.0, %v2657
      %v2659 = vpop.f32.mrb[0].mxu0
      %2660 = vmatprep.mubr.f32.mxu0 0.0
      %2661 = vmatmul.mubr.f32.gmra.mrb[0].mxu0 %v2483
      %v2662 = vpop.f32.mrb[0].mxu0
      %v2663 = vadd.f32 0.0, %v2662
      %v2664 = vpop.f32.mrb[0].mxu0
      %2665 = vmatprep.mubr.f32.mxu0 0.0
      %2666 = vmatmul.mubr.f32.gmra.mrb[0].mxu0 %v2484
      %v2667 = vpop.f32.mrb[0].mxu0
      %v2668 = vadd.f32 0.0, %v2667
      %v2669 = vpop.f32.mrb[0].mxu0
      %2670 = vmatprep.mubr.f32.mxu0 0.0
      %2671 = vmatmul.mubr.f32.gmra.mrb[0].mxu0 %v2485
      %v2672 = vpop.f32.mrb[0].mxu0
      %v2673 = vadd.f32 0.0, %v2672
      %v2674 = vpop.f32.mrb[0].mxu0
      %2675 = vmatprep.mubr.f32.mxu0 0.0
      %2676 = vmatmul.mubr.f32.gmra.mrb[0].mxu0 %v2486
      %v2677 = vpop.f32.mrb[0].mxu0
      %v2678 = vadd.f32 0.0, %v2677
      %v2679 = vpop.f32.mrb[0].mxu0
      %2680 = vmatprep.mubr.f32.mxu0 0.0
      %2681 = vmatmul.mubr.f32.gmra.mrb[0].mxu0 %v2487
      %v2682 = vpop.f32.mrb[0].mxu0
      %v2683 = vadd.f32 0.0, %v2682
      %v2684 = vpop.f32.mrb[0].mxu0
      %2685 = vmatprep.mubr.f32.mxu0 0.0
      %2686 = vmatmul.mubr.f32.gmra.mrb[0].mxu0 %v2488
      %v2687 = vpop.f32.mrb[0].mxu0
      %v2688 = vadd.f32 0.0, %v2687
      %v2689 = vpop.f32.mrb[0].mxu0
      %2690 = vmatprep.mubr.f32.mxu0 0.0
      %2691 = vmatmul.mubr.f32.gmra.mrb[0].mxu0 %v2489
      %v2692 = vpop.f32.mrb[0].mxu0
      %v2693 = vadd.f32 0.0, %v2692
      %v2694 = vpop.f32.mrb[0].mxu0
      %2695 = vmatprep.mubr.f32.mxu0 0.0
      %2696 = vmatmul.mubr.f32.gmra.mrb[0].mxu0 %v2490
      %v2697 = vpop.f32.mrb[0].mxu0
      %v2698 = vadd.f32 0.0, %v2697
      %v2699 = vpop.f32.mrb[0].mxu0
      %2700 = vmatprep.mubr.f32.mxu0 0.0
      %2701 = vmatmul.mubr.f32.gmra.mrb[0].mxu0 %v2491
      %v2702 = vpop.f32.mrb[0].mxu0
      %v2703 = vadd.f32 0.0, %v2702
      %v2704 = vpop.f32.mrb[0].mxu0
      %2705 = vmatprep.mubr.f32.mxu0 0.0
      %2706 = vmatmul.mubr.f32.gmra.mrb[0].mxu0 %v2492
      %v2707 = vpop.f32.mrb[0].mxu0
      %v2708 = vadd.f32 0.0, %v2707
      %v2709 = vpop.f32.mrb[0].mxu0
      %2710 = vmatprep.mubr.f32.mxu0 0.0
      %2711 = vmatmul.mubr.f32.gmra.mrb[0].mxu0 %v2493
      %v2712 = vpop.f32.mrb[0].mxu0
      %v2713 = vadd.f32 0.0, %v2712
      %v2714 = vpop.f32.mrb[0].mxu0
      %2715 = vmatprep.mubr.f32.mxu0 0.0
      %2716 = vmatmul.mubr.f32.gmra.mrb[0].mxu0 %v2494
      %v2717 = vpop.f32.mrb[0].mxu0
      %v2718 = vadd.f32 0.0, %v2717
      %v2719 = vpop.f32.mrb[0].mxu0
      %2720 = vmatprep.mubr.f32.mxu0 0.0
      %2721 = vmatmul.mubr.f32.gmra.mrb[0].mxu0 %v2495
      %v2722 = vpop.f32.mrb[0].mxu0
      %v2723 = vadd.f32 0.0, %v2722
      %v2724 = vpop.f32.mrb[0].mxu0
      %2725 = vmatprep.mubr.f32.mxu0 0.0
      %2726 = vmatmul.mubr.f32.gmra.mrb[0].mxu0 %v2496
      %v2727 = vpop.f32.mrb[0].mxu0
      %v2728 = vadd.f32 0.0, %v2727
      %v2729 = vpop.f32.mrb[0].mxu0
      %2730 = vmatprep.mubr.f32.mxu0 0.0
      %2731 = vmatmul.mubr.f32.gmra.mrb[0].mxu0 %v2497
      %v2732 = vpop.f32.mrb[0].mxu0
      %v2733 = vadd.f32 0.0, %v2732
      %v2734 = vpop.f32.mrb[0].mxu0
      %2735 = vmatprep.mubr.f32.mxu0 0.0
      %2736 = vmatmul.mubr.f32.gmra.mrb[0].mxu0 %v2498
      %v2737 = vpop.f32.mrb[0].mxu0
      %v2738 = vadd.f32 0.0, %v2737
      %v2739 = vpop.f32.mrb[0].mxu0
      %2740 = vmatprep.mubr.f32.mxu0 0.0
      %2741 = vmatmul.mubr.f32.gmra.mrb[0].mxu0 %v2499
      %v2742 = vpop.f32.mrb[0].mxu0
      %v2743 = vadd.f32 0.0, %v2742
      %v2744 = vpop.f32.mrb[0].mxu0
      %2745 = vmatprep.mubr.f32.mxu0 0.0
      %2746 = vmatmul.mubr.f32.gmra.mrb[0].mxu0 %v2500
      %v2747 = vpop.f32.mrb[0].mxu0
      %v2748 = vadd.f32 0.0, %v2747
      %v2749 = vpop.f32.mrb[0].mxu0
      %2750 = vmatprep.mubr.f32.mxu0 0.0
      %2751 = vmatmul.mubr.f32.gmra.mrb[0].mxu0 %v2501
      %v2752 = vpop.f32.mrb[0].mxu0
      %v2753 = vadd.f32 0.0, %v2752
      %v2754 = vpop.f32.mrb[0].mxu0
      %2755 = vmatprep.mubr.f32.mxu0 0.0
      %2756 = vmatmul.mubr.f32.gmra.mrb[0].mxu0 %v2502
      %v2757 = vpop.f32.mrb[0].mxu0
      %v2758 = vadd.f32 0.0, %v2757
      %v2759 = vpop.f32.mrb[0].mxu0
      %2760 = vmatprep.mubr.f32.mxu0 0.0
      %2761 = vmatmul.mubr.f32.gmra.mrb[0].mxu0 %v2503
      %v2762 = vpop.f32.mrb[0].mxu0
      %v2763 = vadd.f32 0.0, %v2762
      %v2764 = vpop.f32.mrb[0].mxu0
      %2765 = vmatprep.mubr.f32.mxu0 0.0
      %2766 = vmatmul.mubr.f32.gmra.mrb[0].mxu0 %v2504
      %v2767 = vpop.f32.mrb[0].mxu0
      %v2768 = vadd.f32 0.0, %v2767
      %v2769 = vpop.f32.mrb[0].mxu0
      %2770 = vmatprep.mubr.f32.mxu0 0.0
      %2771 = vmatmul.mubr.f32.gmra.mrb[0].mxu0 %v2505
      %v2772 = vpop.f32.mrb[0].mxu0
      %v2773 = vadd.f32 0.0, %v2772
      %v2774 = vpop.f32.mrb[0].mxu0
      %2775 = vmatprep.mubr.f32.mxu0 0.0
      %2776 = vmatmul.mubr.f32.gmra.mrb[0].mxu0 %v2506
      %v2777 = vpop.f32.mrb[0].mxu0
      %v2778 = vadd.f32 0.0, %v2777
      %v2779 = vpop.f32.mrb[0].mxu0
      %2780 = vdwg.mxu0
      %v2781 = vadd.f32 %v2507, %v2623
      %v2782 = vadd.f32 %v2508, %v2628
      %v2783 = vadd.f32 %v2509, %v2633
      %v2784 = vadd.f32 %v2510, %v2638
      %v2785 = vadd.f32 %v2511, %v2643
      %v2786 = vadd.f32 %v2512, %v2648
      %v2787 = vadd.f32 %v2513, %v2653
      %v2788 = vadd.f32 %v2514, %v2658
      %v2789 = vadd.f32 %v2515, %v2663
      %v2790 = vadd.f32 %v2516, %v2668
      %v2791 = vadd.f32 %v2517, %v2673
      %v2792 = vadd.f32 %v2518, %v2678
      %v2793 = vadd.f32 %v2519, %v2683
      %v2794 = vadd.f32 %v2520, %v2688
      %v2795 = vadd.f32 %v2521, %v2693
      %v2796 = vadd.f32 %v2522, %v2698
      %v2797 = vadd.f32 %v2523, %v2703
      %v2798 = vadd.f32 %v2524, %v2708
      %v2799 = vadd.f32 %v2525, %v2713
      %v2800 = vadd.f32 %v2526, %v2718
      %v2801 = vadd.f32 %v2527, %v2723
      %v2802 = vadd.f32 %v2528, %v2728
      %v2803 = vadd.f32 %v2529, %v2733
      %v2804 = vadd.f32 %v2530, %v2738
      %v2805 = vadd.f32 %v2531, %v2743
      %v2806 = vadd.f32 %v2532, %v2748
      %v2807 = vadd.f32 %v2533, %v2753
      %v2808 = vadd.f32 %v2534, %v2758
      %v2809 = vadd.f32 %v2535, %v2763
      %v2810 = vadd.f32 %v2536, %v2768
      %v2811 = vadd.f32 %v2537, %v2773
      %v2812 = vadd.f32 %v2538, %v2778
      %2813 = vst [vmem:[#allocation2] sm:$0xff] %v2781
      %2814 = vst [vmem:[#allocation2 + $0x8] sm:$0xff] %v2782
      %2815 = vst [vmem:[#allocation2 + $0x10] sm:$0xff] %v2783
      %2816 = vst [vmem:[#allocation2 + $0x18] sm:$0xff] %v2784
      %2817 = vst [vmem:[#allocation2 + $0x20] sm:$0xff] %v2785
      %2818 = vst [vmem:[#allocation2 + $0x28] sm:$0xff] %v2786
      %2819 = vst [vmem:[#allocation2 + $0x30] sm:$0xff] %v2787
      %2820 = vst [vmem:[#allocation2 + $0x38] sm:$0xff] %v2788
      %2821 = vst [vmem:[#allocation2 + $0x40] sm:$0xff] %v2789
      %2822 = vst [vmem:[#allocation2 + $0x48] sm:$0xff] %v2790
      %2823 = vst [vmem:[#allocation2 + $0x50] sm:$0xff] %v2791
      %2824 = vst [vmem:[#allocation2 + $0x58] sm:$0xff] %v2792
      %2825 = vst [vmem:[#allocation2 + $0x60] sm:$0xff] %v2793
      %2826 = vst [vmem:[#allocation2 + $0x68] sm:$0xff] %v2794
      %2827 = vst [vmem:[#allocation2 + $0x70] sm:$0xff] %v2795
      %2828 = vst [vmem:[#allocation2 + $0x78] sm:$0xff] %v2796
      %2829 = vst [vmem:[#allocation2 + $0x80] sm:$0xff] %v2797
      %2830 = vst [vmem:[#allocation2 + $0x88] sm:$0xff] %v2798
      %2831 = vst [vmem:[#allocation2 + $0x90] sm:$0xff] %v2799
      %2832 = vst [vmem:[#allocation2 + $0x98] sm:$0xff] %v2800
      %2833 = vst [vmem:[#allocation2 + $0xa0] sm:$0xff] %v2801
      %2834 = vst [vmem:[#allocation2 + $0xa8] sm:$0xff] %v2802
      %2835 = vst [vmem:[#allocation2 + $0xb0] sm:$0xff] %v2803
      %2836 = vst [vmem:[#allocation2 + $0xb8] sm:$0xff] %v2804
      %2837 = vst [vmem:[#allocation2 + $0xc0] sm:$0xff] %v2805
      %2838 = vst [vmem:[#allocation2 + $0xc8] sm:$0xff] %v2806
      %2839 = vst [vmem:[#allocation2 + $0xd0] sm:$0xff] %v2807
      %2840 = vst [vmem:[#allocation2 + $0xd8] sm:$0xff] %v2808
      %2841 = vst [vmem:[#allocation2 + $0xe0] sm:$0xff] %v2809
      %2842 = vst [vmem:[#allocation2 + $0xe8] sm:$0xff] %v2810
      %2843 = vst [vmem:[#allocation2 + $0xf0] sm:$0xff] %v2811
      %2844 = vst [vmem:[#allocation2 + $0xf8] sm:$0xff] %v2812
      %v2845 = vld [vmem:[%s2474 + $0x1] sm:$0xff]
      %v2846 = vld [vmem:[%s2474 + $0x9] sm:$0xff]
      %v2847 = vld [vmem:[%s2474 + $0x19] sm:$0xff]
      %v2848 = vld [vmem:[%s2474 + $0x21] sm:$0xff]
      %v2849 = vld [vmem:[%s2474 + $0x31] sm:$0xff]
      %v2850 = vld [vmem:[%s2474 + $0x39] sm:$0xff]
      %v2851 = vld [vmem:[%s2474 + $0x49] sm:$0xff]
      %v2852 = vld [vmem:[%s2474 + $0x51] sm:$0xff]
      %v2853 = vld [vmem:[%s2474 + $0x61] sm:$0xff]
      %v2854 = vld [vmem:[%s2474 + $0x69] sm:$0xff]
      %v2855 = vld [vmem:[%s2474 + $0x79] sm:$0xff]
      %v2856 = vld [vmem:[%s2474 + $0x81] sm:$0xff]
      %v2857 = vld [vmem:[%s2474 + $0x91] sm:$0xff]
      %v2858 = vld [vmem:[%s2474 + $0x99] sm:$0xff]
      %v2859 = vld [vmem:[%s2474 + $0xa9] sm:$0xff]
      %v2860 = vld [vmem:[%s2474 + $0xb1] sm:$0xff]
      %v2861 = vld [vmem:[%s2474 + $0xc1] sm:$0xff]
      %v2862 = vld [vmem:[%s2474 + $0xc9] sm:$0xff]
      %v2863 = vld [vmem:[%s2474 + $0xd9] sm:$0xff]
      %v2864 = vld [vmem:[%s2474 + $0xe1] sm:$0xff]
      %v2865 = vld [vmem:[%s2474 + $0xf1] sm:$0xff]
      %v2866 = vld [vmem:[%s2474 + $0xf9] sm:$0xff]
      %v2867 = vld [vmem:[%s2474 + $0x109] sm:$0xff]
      %v2868 = vld [vmem:[%s2474 + $0x111] sm:$0xff]
      %v2869 = vld [vmem:[%s2474 + $0x121] sm:$0xff]
      %v2870 = vld [vmem:[%s2474 + $0x129] sm:$0xff]
      %v2871 = vld [vmem:[%s2474 + $0x139] sm:$0xff]
      %v2872 = vld [vmem:[%s2474 + $0x141] sm:$0xff]
      %v2873 = vld [vmem:[%s2474 + $0x151] sm:$0xff]
      %v2874 = vld [vmem:[%s2474 + $0x159] sm:$0xff]
      %v2875 = vld [vmem:[%s2474 + $0x169] sm:$0xff]
      %v2876 = vld [vmem:[%s2474 + $0x171] sm:$0xff]
      %v2877 = vld [vmem:[#allocation2] sm:$0xff]
      %v2878 = vld [vmem:[#allocation2 + $0x8] sm:$0xff]
      %v2879 = vld [vmem:[#allocation2 + $0x10] sm:$0xff]
      %v2880 = vld [vmem:[#allocation2 + $0x18] sm:$0xff]
      %v2881 = vld [vmem:[#allocation2 + $0x20] sm:$0xff]
      %v2882 = vld [vmem:[#allocation2 + $0x28] sm:$0xff]
      %v2883 = vld [vmem:[#allocation2 + $0x30] sm:$0xff]
      %v2884 = vld [vmem:[#allocation2 + $0x38] sm:$0xff]
      %v2885 = vld [vmem:[#allocation2 + $0x40] sm:$0xff]
      %v2886 = vld [vmem:[#allocation2 + $0x48] sm:$0xff]
      %v2887 = vld [vmem:[#allocation2 + $0x50] sm:$0xff]
      %v2888 = vld [vmem:[#allocation2 + $0x58] sm:$0xff]
      %v2889 = vld [vmem:[#allocation2 + $0x60] sm:$0xff]
      %v2890 = vld [vmem:[#allocation2 + $0x68] sm:$0xff]
      %v2891 = vld [vmem:[#allocation2 + $0x70] sm:$0xff]
      %v2892 = vld [vmem:[#allocation2 + $0x78] sm:$0xff]
      %v2893 = vld [vmem:[#allocation2 + $0x80] sm:$0xff]
      %v2894 = vld [vmem:[#allocation2 + $0x88] sm:$0xff]
      %v2895 = vld [vmem:[#allocation2 + $0x90] sm:$0xff]
      %v2896 = vld [vmem:[#allocation2 + $0x98] sm:$0xff]
      %v2897 = vld [vmem:[#allocation2 + $0xa0] sm:$0xff]
      %v2898 = vld [vmem:[#allocation2 + $0xa8] sm:$0xff]
      %v2899 = vld [vmem:[#allocation2 + $0xb0] sm:$0xff]
      %v2900 = vld [vmem:[#allocation2 + $0xb8] sm:$0xff]
      %v2901 = vld [vmem:[#allocation2 + $0xc0] sm:$0xff]
      %v2902 = vld [vmem:[#allocation2 + $0xc8] sm:$0xff]
      %v2903 = vld [vmem:[#allocation2 + $0xd0] sm:$0xff]
      %v2904 = vld [vmem:[#allocation2 + $0xd8] sm:$0xff]
      %v2905 = vld [vmem:[#allocation2 + $0xe0] sm:$0xff]
      %v2906 = vld [vmem:[#allocation2 + $0xe8] sm:$0xff]
      %v2907 = vld [vmem:[#allocation2 + $0xf0] sm:$0xff]
      %v2908 = vld [vmem:[#allocation2 + $0xf8] sm:$0xff]
      %s2909 = scalar_lea.vmem %s210, 896
      %v2910 = vld [vmem:[%s2909] sm:$0xff]
      %v2911 = vld [vmem:[%s2909 + $0x8] sm:$0xff]
      %v2912 = vld [vmem:[%s2909 + $0x10] sm:$0xff]
      %v2913 = vld [vmem:[%s2909 + $0x18] sm:$0xff]
      %v2914 = vld [vmem:[%s2909 + $0x20] sm:$0xff]
      %v2915 = vld [vmem:[%s2909 + $0x28] sm:$0xff]
      %v2916 = vld [vmem:[%s2909 + $0x30] sm:$0xff]
      %v2917 = vld [vmem:[%s2909 + $0x38] sm:$0xff]
      %v2918 = vld [vmem:[%s2909 + $0x40] sm:$0xff]
      %v2919 = vld [vmem:[%s2909 + $0x48] sm:$0xff]
      %v2920 = vld [vmem:[%s2909 + $0x50] sm:$0xff]
      %v2921 = vld [vmem:[%s2909 + $0x58] sm:$0xff]
      %v2922 = vld [vmem:[%s2909 + $0x60] sm:$0xff]
      %v2923 = vld [vmem:[%s2909 + $0x68] sm:$0xff]
      %v2924 = vld [vmem:[%s2909 + $0x70] sm:$0xff]
      %v2925 = vld [vmem:[%s2909 + $0x78] sm:$0xff]
      %2926 = vmatprep.subr.mxu0 0.0
      %2927 = vmatpush1.msra.mxu0 %v2910
      %2928 = vmatprep.subr.mxu0 0.0
      %2929 = vmatpush1.msra.mxu0 %v2911
      %2930 = vmatprep.subr.mxu0 0.0
      %2931 = vmatpush1.msra.mxu0 %v2912
      %2932 = vmatprep.subr.mxu0 0.0
      %2933 = vmatpush1.msra.mxu0 %v2913
      %2934 = vmatprep.subr.mxu0 0.0
      %2935 = vmatpush1.msra.mxu0 %v2914
      %2936 = vmatprep.subr.mxu0 0.0
      %2937 = vmatpush1.msra.mxu0 %v2915
      %2938 = vmatprep.subr.mxu0 0.0
      %2939 = vmatpush1.msra.mxu0 %v2916
      %2940 = vmatprep.subr.mxu0 0.0
      %2941 = vmatpush1.msra.mxu0 %v2917
      %2942 = vmatprep.subr.mxu0 0.0
      %2943 = vmatpush1.msra.mxu0 %v2918
      %2944 = vmatprep.subr.mxu0 0.0
      %2945 = vmatpush1.msra.mxu0 %v2919
      %2946 = vmatprep.subr.mxu0 0.0
      %2947 = vmatpush1.msra.mxu0 %v2920
      %2948 = vmatprep.subr.mxu0 0.0
      %2949 = vmatpush1.msra.mxu0 %v2921
      %2950 = vmatprep.subr.mxu0 0.0
      %2951 = vmatpush1.msra.mxu0 %v2922
      %2952 = vmatprep.subr.mxu0 0.0
      %2953 = vmatpush1.msra.mxu0 %v2923
      %2954 = vmatprep.subr.mxu0 0.0
      %2955 = vmatpush1.msra.mxu0 %v2924
      %2956 = vmatprep.subr.mxu0 0.0
      %2957 = vmatpush1.msra.mxu0 %v2925
      %2958 = vmatprep.subr.mxu0 0.0
      %2959 = vmatpush1.msra.mxu0 0.0
      %2960 = vmatprep.subr.mxu0 0.0
      %2961 = vmatpush1.msra.mxu0 0.0
      %2962 = vmatprep.subr.mxu0 0.0
      %2963 = vmatpush1.msra.mxu0 0.0
      %2964 = vmatprep.subr.mxu0 0.0
      %2965 = vmatpush1.msra.mxu0 0.0
      %2966 = vmatprep.subr.mxu0 0.0
      %2967 = vmatpush1.msra.mxu0 0.0
      %2968 = vmatprep.subr.mxu0 0.0
      %2969 = vmatpush1.msra.mxu0 0.0
      %2970 = vmatprep.subr.mxu0 0.0
      %2971 = vmatpush1.msra.mxu0 0.0
      %2972 = vmatprep.subr.mxu0 0.0
      %2973 = vmatpush1.msra.mxu0 0.0
      %2974 = vmatprep.subr.mxu0 0.0
      %2975 = vmatpush1.msra.mxu0 0.0
      %2976 = vmatprep.subr.mxu0 0.0
      %2977 = vmatpush1.msra.mxu0 0.0
      %2978 = vmatprep.subr.mxu0 0.0
      %2979 = vmatpush1.msra.mxu0 0.0
      %2980 = vmatprep.subr.mxu0 0.0
      %2981 = vmatpush1.msra.mxu0 0.0
      %2982 = vmatprep.subr.mxu0 0.0
      %2983 = vmatpush1.msra.mxu0 0.0
      %2984 = vmatprep.subr.mxu0 0.0
      %2985 = vmatpush1.msra.mxu0 0.0
      %2986 = vmatprep.subr.mxu0 0.0
      %2987 = vmatpush1.msra.mxu0 0.0
      %2988 = vmatprep.subr.mxu0 0.0
      %2989 = vmatpush1.msra.mxu0 0.0
      %2990 = vmatprep.mubr.f32.mxu0 0.0
      %2991 = vmatmul.mubr.f32.gmra.mrb[0].mxu0 %v2845
      %v2992 = vpop.f32.mrb[0].mxu0
      %v2993 = vadd.f32 0.0, %v2992
      %v2994 = vpop.f32.mrb[0].mxu0
      %2995 = vmatprep.mubr.f32.mxu0 0.0
      %2996 = vmatmul.mubr.f32.gmra.mrb[0].mxu0 %v2846
      %v2997 = vpop.f32.mrb[0].mxu0
      %v2998 = vadd.f32 0.0, %v2997
      %v2999 = vpop.f32.mrb[0].mxu0
      %3000 = vmatprep.mubr.f32.mxu0 0.0
      %3001 = vmatmul.mubr.f32.gmra.mrb[0].mxu0 %v2847
      %v3002 = vpop.f32.mrb[0].mxu0
      %v3003 = vadd.f32 0.0, %v3002
      %v3004 = vpop.f32.mrb[0].mxu0
      %3005 = vmatprep.mubr.f32.mxu0 0.0
      %3006 = vmatmul.mubr.f32.gmra.mrb[0].mxu0 %v2848
      %v3007 = vpop.f32.mrb[0].mxu0
      %v3008 = vadd.f32 0.0, %v3007
      %v3009 = vpop.f32.mrb[0].mxu0
      %3010 = vmatprep.mubr.f32.mxu0 0.0
      %3011 = vmatmul.mubr.f32.gmra.mrb[0].mxu0 %v2849
      %v3012 = vpop.f32.mrb[0].mxu0
      %v3013 = vadd.f32 0.0, %v3012
      %v3014 = vpop.f32.mrb[0].mxu0
      %3015 = vmatprep.mubr.f32.mxu0 0.0
      %3016 = vmatmul.mubr.f32.gmra.mrb[0].mxu0 %v2850
      %v3017 = vpop.f32.mrb[0].mxu0
      %v3018 = vadd.f32 0.0, %v3017
      %v3019 = vpop.f32.mrb[0].mxu0
      %3020 = vmatprep.mubr.f32.mxu0 0.0
      %3021 = vmatmul.mubr.f32.gmra.mrb[0].mxu0 %v2851
      %v3022 = vpop.f32.mrb[0].mxu0
      %v3023 = vadd.f32 0.0, %v3022
      %v3024 = vpop.f32.mrb[0].mxu0
      %3025 = vmatprep.mubr.f32.mxu0 0.0
      %3026 = vmatmul.mubr.f32.gmra.mrb[0].mxu0 %v2852
      %v3027 = vpop.f32.mrb[0].mxu0
      %v3028 = vadd.f32 0.0, %v3027
      %v3029 = vpop.f32.mrb[0].mxu0
      %3030 = vmatprep.mubr.f32.mxu0 0.0
      %3031 = vmatmul.mubr.f32.gmra.mrb[0].mxu0 %v2853
      %v3032 = vpop.f32.mrb[0].mxu0
      %v3033 = vadd.f32 0.0, %v3032
      %v3034 = vpop.f32.mrb[0].mxu0
      %3035 = vmatprep.mubr.f32.mxu0 0.0
      %3036 = vmatmul.mubr.f32.gmra.mrb[0].mxu0 %v2854
      %v3037 = vpop.f32.mrb[0].mxu0
      %v3038 = vadd.f32 0.0, %v3037
      %v3039 = vpop.f32.mrb[0].mxu0
      %3040 = vmatprep.mubr.f32.mxu0 0.0
      %3041 = vmatmul.mubr.f32.gmra.mrb[0].mxu0 %v2855
      %v3042 = vpop.f32.mrb[0].mxu0
      %v3043 = vadd.f32 0.0, %v3042
      %v3044 = vpop.f32.mrb[0].mxu0
      %3045 = vmatprep.mubr.f32.mxu0 0.0
      %3046 = vmatmul.mubr.f32.gmra.mrb[0].mxu0 %v2856
      %v3047 = vpop.f32.mrb[0].mxu0
      %v3048 = vadd.f32 0.0, %v3047
      %v3049 = vpop.f32.mrb[0].mxu0
      %3050 = vmatprep.mubr.f32.mxu0 0.0
      %3051 = vmatmul.mubr.f32.gmra.mrb[0].mxu0 %v2857
      %v3052 = vpop.f32.mrb[0].mxu0
      %v3053 = vadd.f32 0.0, %v3052
      %v3054 = vpop.f32.mrb[0].mxu0
      %3055 = vmatprep.mubr.f32.mxu0 0.0
      %3056 = vmatmul.mubr.f32.gmra.mrb[0].mxu0 %v2858
      %v3057 = vpop.f32.mrb[0].mxu0
      %v3058 = vadd.f32 0.0, %v3057
      %v3059 = vpop.f32.mrb[0].mxu0
      %3060 = vmatprep.mubr.f32.mxu0 0.0
      %3061 = vmatmul.mubr.f32.gmra.mrb[0].mxu0 %v2859
      %v3062 = vpop.f32.mrb[0].mxu0
      %v3063 = vadd.f32 0.0, %v3062
      %v3064 = vpop.f32.mrb[0].mxu0
      %3065 = vmatprep.mubr.f32.mxu0 0.0
      %3066 = vmatmul.mubr.f32.gmra.mrb[0].mxu0 %v2860
      %v3067 = vpop.f32.mrb[0].mxu0
      %v3068 = vadd.f32 0.0, %v3067
      %v3069 = vpop.f32.mrb[0].mxu0
      %3070 = vmatprep.mubr.f32.mxu0 0.0
      %3071 = vmatmul.mubr.f32.gmra.mrb[0].mxu0 %v2861
      %v3072 = vpop.f32.mrb[0].mxu0
      %v3073 = vadd.f32 0.0, %v3072
      %v3074 = vpop.f32.mrb[0].mxu0
      %3075 = vmatprep.mubr.f32.mxu0 0.0
      %3076 = vmatmul.mubr.f32.gmra.mrb[0].mxu0 %v2862
      %v3077 = vpop.f32.mrb[0].mxu0
      %v3078 = vadd.f32 0.0, %v3077
      %v3079 = vpop.f32.mrb[0].mxu0
      %3080 = vmatprep.mubr.f32.mxu0 0.0
      %3081 = vmatmul.mubr.f32.gmra.mrb[0].mxu0 %v2863
      %v3082 = vpop.f32.mrb[0].mxu0
      %v3083 = vadd.f32 0.0, %v3082
      %v3084 = vpop.f32.mrb[0].mxu0
      %3085 = vmatprep.mubr.f32.mxu0 0.0
      %3086 = vmatmul.mubr.f32.gmra.mrb[0].mxu0 %v2864
      %v3087 = vpop.f32.mrb[0].mxu0
      %v3088 = vadd.f32 0.0, %v3087
      %v3089 = vpop.f32.mrb[0].mxu0
      %3090 = vmatprep.mubr.f32.mxu0 0.0
      %3091 = vmatmul.mubr.f32.gmra.mrb[0].mxu0 %v2865
      %v3092 = vpop.f32.mrb[0].mxu0
      %v3093 = vadd.f32 0.0, %v3092
      %v3094 = vpop.f32.mrb[0].mxu0
      %3095 = vmatprep.mubr.f32.mxu0 0.0
      %3096 = vmatmul.mubr.f32.gmra.mrb[0].mxu0 %v2866
      %v3097 = vpop.f32.mrb[0].mxu0
      %v3098 = vadd.f32 0.0, %v3097
      %v3099 = vpop.f32.mrb[0].mxu0
      %3100 = vmatprep.mubr.f32.mxu0 0.0
      %3101 = vmatmul.mubr.f32.gmra.mrb[0].mxu0 %v2867
      %v3102 = vpop.f32.mrb[0].mxu0
      %v3103 = vadd.f32 0.0, %v3102
      %v3104 = vpop.f32.mrb[0].mxu0
      %3105 = vmatprep.mubr.f32.mxu0 0.0
      %3106 = vmatmul.mubr.f32.gmra.mrb[0].mxu0 %v2868
      %v3107 = vpop.f32.mrb[0].mxu0
      %v3108 = vadd.f32 0.0, %v3107
      %v3109 = vpop.f32.mrb[0].mxu0
      %3110 = vmatprep.mubr.f32.mxu0 0.0
      %3111 = vmatmul.mubr.f32.gmra.mrb[0].mxu0 %v2869
      %v3112 = vpop.f32.mrb[0].mxu0
      %v3113 = vadd.f32 0.0, %v3112
      %v3114 = vpop.f32.mrb[0].mxu0
      %3115 = vmatprep.mubr.f32.mxu0 0.0
      %3116 = vmatmul.mubr.f32.gmra.mrb[0].mxu0 %v2870
      %v3117 = vpop.f32.mrb[0].mxu0
      %v3118 = vadd.f32 0.0, %v3117
      %v3119 = vpop.f32.mrb[0].mxu0
      %3120 = vmatprep.mubr.f32.mxu0 0.0
      %3121 = vmatmul.mubr.f32.gmra.mrb[0].mxu0 %v2871
      %v3122 = vpop.f32.mrb[0].mxu0
      %v3123 = vadd.f32 0.0, %v3122
      %v3124 = vpop.f32.mrb[0].mxu0
      %3125 = vmatprep.mubr.f32.mxu0 0.0
      %3126 = vmatmul.mubr.f32.gmra.mrb[0].mxu0 %v2872
      %v3127 = vpop.f32.mrb[0].mxu0
      %v3128 = vadd.f32 0.0, %v3127
      %v3129 = vpop.f32.mrb[0].mxu0
      %3130 = vmatprep.mubr.f32.mxu0 0.0
      %3131 = vmatmul.mubr.f32.gmra.mrb[0].mxu0 %v2873
      %v3132 = vpop.f32.mrb[0].mxu0
      %v3133 = vadd.f32 0.0, %v3132
      %v3134 = vpop.f32.mrb[0].mxu0
      %3135 = vmatprep.mubr.f32.mxu0 0.0
      %3136 = vmatmul.mubr.f32.gmra.mrb[0].mxu0 %v2874
      %v3137 = vpop.f32.mrb[0].mxu0
      %v3138 = vadd.f32 0.0, %v3137
      %v3139 = vpop.f32.mrb[0].mxu0
      %3140 = vmatprep.mubr.f32.mxu0 0.0
      %3141 = vmatmul.mubr.f32.gmra.mrb[0].mxu0 %v2875
      %v3142 = vpop.f32.mrb[0].mxu0
      %v3143 = vadd.f32 0.0, %v3142
      %v3144 = vpop.f32.mrb[0].mxu0
      %3145 = vmatprep.mubr.f32.mxu0 0.0
      %3146 = vmatmul.mubr.f32.gmra.mrb[0].mxu0 %v2876
      %v3147 = vpop.f32.mrb[0].mxu0
      %v3148 = vadd.f32 0.0, %v3147
      %v3149 = vpop.f32.mrb[0].mxu0
      %3150 = vdwg.mxu0
      %v3151 = vadd.f32 %v2877, %v2993
      %v3152 = vadd.f32 %v2878, %v2998
      %v3153 = vadd.f32 %v2879, %v3003
      %v3154 = vadd.f32 %v2880, %v3008
      %v3155 = vadd.f32 %v2881, %v3013
      %v3156 = vadd.f32 %v2882, %v3018
      %v3157 = vadd.f32 %v2883, %v3023
      %v3158 = vadd.f32 %v2884, %v3028
      %v3159 = vadd.f32 %v2885, %v3033
      %v3160 = vadd.f32 %v2886, %v3038
      %v3161 = vadd.f32 %v2887, %v3043
      %v3162 = vadd.f32 %v2888, %v3048
      %v3163 = vadd.f32 %v2889, %v3053
      %v3164 = vadd.f32 %v2890, %v3058
      %v3165 = vadd.f32 %v2891, %v3063
      %v3166 = vadd.f32 %v2892, %v3068
      %v3167 = vadd.f32 %v2893, %v3073
      %v3168 = vadd.f32 %v2894, %v3078
      %v3169 = vadd.f32 %v2895, %v3083
      %v3170 = vadd.f32 %v2896, %v3088
      %v3171 = vadd.f32 %v2897, %v3093
      %v3172 = vadd.f32 %v2898, %v3098
      %v3173 = vadd.f32 %v2899, %v3103
      %v3174 = vadd.f32 %v2900, %v3108
      %v3175 = vadd.f32 %v2901, %v3113
      %v3176 = vadd.f32 %v2902, %v3118
      %v3177 = vadd.f32 %v2903, %v3123
      %v3178 = vadd.f32 %v2904, %v3128
      %v3179 = vadd.f32 %v2905, %v3133
      %v3180 = vadd.f32 %v2906, %v3138
      %v3181 = vadd.f32 %v2907, %v3143
      %v3182 = vadd.f32 %v2908, %v3148
      %3183 = vst [vmem:[#allocation2] sm:$0xff] %v3151
      %3184 = vst [vmem:[#allocation2 + $0x8] sm:$0xff] %v3152
      %3185 = vst [vmem:[#allocation2 + $0x10] sm:$0xff] %v3153
      %3186 = vst [vmem:[#allocation2 + $0x18] sm:$0xff] %v3154
      %3187 = vst [vmem:[#allocation2 + $0x20] sm:$0xff] %v3155
      %3188 = vst [vmem:[#allocation2 + $0x28] sm:$0xff] %v3156
      %3189 = vst [vmem:[#allocation2 + $0x30] sm:$0xff] %v3157
      %3190 = vst [vmem:[#allocation2 + $0x38] sm:$0xff] %v3158
      %3191 = vst [vmem:[#allocation2 + $0x40] sm:$0xff] %v3159
      %3192 = vst [vmem:[#allocation2 + $0x48] sm:$0xff] %v3160
      %3193 = vst [vmem:[#allocation2 + $0x50] sm:$0xff] %v3161
      %3194 = vst [vmem:[#allocation2 + $0x58] sm:$0xff] %v3162
      %3195 = vst [vmem:[#allocation2 + $0x60] sm:$0xff] %v3163
      %3196 = vst [vmem:[#allocation2 + $0x68] sm:$0xff] %v3164
      %3197 = vst [vmem:[#allocation2 + $0x70] sm:$0xff] %v3165
      %3198 = vst [vmem:[#allocation2 + $0x78] sm:$0xff] %v3166
      %3199 = vst [vmem:[#allocation2 + $0x80] sm:$0xff] %v3167
      %3200 = vst [vmem:[#allocation2 + $0x88] sm:$0xff] %v3168
      %3201 = vst [vmem:[#allocation2 + $0x90] sm:$0xff] %v3169
      %3202 = vst [vmem:[#allocation2 + $0x98] sm:$0xff] %v3170
      %3203 = vst [vmem:[#allocation2 + $0xa0] sm:$0xff] %v3171
      %3204 = vst [vmem:[#allocation2 + $0xa8] sm:$0xff] %v3172
      %3205 = vst [vmem:[#allocation2 + $0xb0] sm:$0xff] %v3173
      %3206 = vst [vmem:[#allocation2 + $0xb8] sm:$0xff] %v3174
      %3207 = vst [vmem:[#allocation2 + $0xc0] sm:$0xff] %v3175
      %3208 = vst [vmem:[#allocation2 + $0xc8] sm:$0xff] %v3176
      %3209 = vst [vmem:[#allocation2 + $0xd0] sm:$0xff] %v3177
      %3210 = vst [vmem:[#allocation2 + $0xd8] sm:$0xff] %v3178
      %3211 = vst [vmem:[#allocation2 + $0xe0] sm:$0xff] %v3179
      %3212 = vst [vmem:[#allocation2 + $0xe8] sm:$0xff] %v3180
      %3213 = vst [vmem:[#allocation2 + $0xf0] sm:$0xff] %v3181
      %3214 = vst [vmem:[#allocation2 + $0xf8] sm:$0xff] %v3182
      %v3215 = vld [vmem:[%s2474 + $0x2] sm:$0xff]
      %v3216 = vld [vmem:[%s2474 + $0xa] sm:$0xff]
      %v3217 = vld [vmem:[%s2474 + $0x1a] sm:$0xff]
      %v3218 = vld [vmem:[%s2474 + $0x22] sm:$0xff]
      %v3219 = vld [vmem:[%s2474 + $0x32] sm:$0xff]
      %v3220 = vld [vmem:[%s2474 + $0x3a] sm:$0xff]
      %v3221 = vld [vmem:[%s2474 + $0x4a] sm:$0xff]
      %v3222 = vld [vmem:[%s2474 + $0x52] sm:$0xff]
      %v3223 = vld [vmem:[%s2474 + $0x62] sm:$0xff]
      %v3224 = vld [vmem:[%s2474 + $0x6a] sm:$0xff]
      %v3225 = vld [vmem:[%s2474 + $0x7a] sm:$0xff]
      %v3226 = vld [vmem:[%s2474 + $0x82] sm:$0xff]
      %v3227 = vld [vmem:[%s2474 + $0x92] sm:$0xff]
      %v3228 = vld [vmem:[%s2474 + $0x9a] sm:$0xff]
      %v3229 = vld [vmem:[%s2474 + $0xaa] sm:$0xff]
      %v3230 = vld [vmem:[%s2474 + $0xb2] sm:$0xff]
      %v3231 = vld [vmem:[%s2474 + $0xc2] sm:$0xff]
      %v3232 = vld [vmem:[%s2474 + $0xca] sm:$0xff]
      %v3233 = vld [vmem:[%s2474 + $0xda] sm:$0xff]
      %v3234 = vld [vmem:[%s2474 + $0xe2] sm:$0xff]
      %v3235 = vld [vmem:[%s2474 + $0xf2] sm:$0xff]
      %v3236 = vld [vmem:[%s2474 + $0xfa] sm:$0xff]
      %v3237 = vld [vmem:[%s2474 + $0x10a] sm:$0xff]
      %v3238 = vld [vmem:[%s2474 + $0x112] sm:$0xff]
      %v3239 = vld [vmem:[%s2474 + $0x122] sm:$0xff]
      %v3240 = vld [vmem:[%s2474 + $0x12a] sm:$0xff]
      %v3241 = vld [vmem:[%s2474 + $0x13a] sm:$0xff]
      %v3242 = vld [vmem:[%s2474 + $0x142] sm:$0xff]
      %v3243 = vld [vmem:[%s2474 + $0x152] sm:$0xff]
      %v3244 = vld [vmem:[%s2474 + $0x15a] sm:$0xff]
      %v3245 = vld [vmem:[%s2474 + $0x16a] sm:$0xff]
      %v3246 = vld [vmem:[%s2474 + $0x172] sm:$0xff]
      %v3247 = vld [vmem:[#allocation2] sm:$0xff]
      %v3248 = vld [vmem:[#allocation2 + $0x8] sm:$0xff]
      %v3249 = vld [vmem:[#allocation2 + $0x10] sm:$0xff]
      %v3250 = vld [vmem:[#allocation2 + $0x18] sm:$0xff]
      %v3251 = vld [vmem:[#allocation2 + $0x20] sm:$0xff]
      %v3252 = vld [vmem:[#allocation2 + $0x28] sm:$0xff]
      %v3253 = vld [vmem:[#allocation2 + $0x30] sm:$0xff]
      %v3254 = vld [vmem:[#allocation2 + $0x38] sm:$0xff]
      %v3255 = vld [vmem:[#allocation2 + $0x40] sm:$0xff]
      %v3256 = vld [vmem:[#allocation2 + $0x48] sm:$0xff]
      %v3257 = vld [vmem:[#allocation2 + $0x50] sm:$0xff]
      %v3258 = vld [vmem:[#allocation2 + $0x58] sm:$0xff]
      %v3259 = vld [vmem:[#allocation2 + $0x60] sm:$0xff]
      %v3260 = vld [vmem:[#allocation2 + $0x68] sm:$0xff]
      %v3261 = vld [vmem:[#allocation2 + $0x70] sm:$0xff]
      %v3262 = vld [vmem:[#allocation2 + $0x78] sm:$0xff]
      %v3263 = vld [vmem:[#allocation2 + $0x80] sm:$0xff]
      %v3264 = vld [vmem:[#allocation2 + $0x88] sm:$0xff]
      %v3265 = vld [vmem:[#allocation2 + $0x90] sm:$0xff]
      %v3266 = vld [vmem:[#allocation2 + $0x98] sm:$0xff]
      %v3267 = vld [vmem:[#allocation2 + $0xa0] sm:$0xff]
      %v3268 = vld [vmem:[#allocation2 + $0xa8] sm:$0xff]
      %v3269 = vld [vmem:[#allocation2 + $0xb0] sm:$0xff]
      %v3270 = vld [vmem:[#allocation2 + $0xb8] sm:$0xff]
      %v3271 = vld [vmem:[#allocation2 + $0xc0] sm:$0xff]
      %v3272 = vld [vmem:[#allocation2 + $0xc8] sm:$0xff]
      %v3273 = vld [vmem:[#allocation2 + $0xd0] sm:$0xff]
      %v3274 = vld [vmem:[#allocation2 + $0xd8] sm:$0xff]
      %v3275 = vld [vmem:[#allocation2 + $0xe0] sm:$0xff]
      %v3276 = vld [vmem:[#allocation2 + $0xe8] sm:$0xff]
      %v3277 = vld [vmem:[#allocation2 + $0xf0] sm:$0xff]
      %v3278 = vld [vmem:[#allocation2 + $0xf8] sm:$0xff]
      %s3279 = scalar_lea.vmem %s210, 1024
      %v3280 = vld [vmem:[%s3279] sm:$0xff]
      %v3281 = vld [vmem:[%s3279 + $0x8] sm:$0xff]
      %v3282 = vld [vmem:[%s3279 + $0x10] sm:$0xff]
      %v3283 = vld [vmem:[%s3279 + $0x18] sm:$0xff]
      %v3284 = vld [vmem:[%s3279 + $0x20] sm:$0xff]
      %v3285 = vld [vmem:[%s3279 + $0x28] sm:$0xff]
      %v3286 = vld [vmem:[%s3279 + $0x30] sm:$0xff]
      %v3287 = vld [vmem:[%s3279 + $0x38] sm:$0xff]
      %v3288 = vld [vmem:[%s3279 + $0x40] sm:$0xff]
      %v3289 = vld [vmem:[%s3279 + $0x48] sm:$0xff]
      %v3290 = vld [vmem:[%s3279 + $0x50] sm:$0xff]
      %v3291 = vld [vmem:[%s3279 + $0x58] sm:$0xff]
      %v3292 = vld [vmem:[%s3279 + $0x60] sm:$0xff]
      %v3293 = vld [vmem:[%s3279 + $0x68] sm:$0xff]
      %v3294 = vld [vmem:[%s3279 + $0x70] sm:$0xff]
      %v3295 = vld [vmem:[%s3279 + $0x78] sm:$0xff]
      %3296 = vmatprep.subr.mxu0 0.0
      %3297 = vmatpush1.msra.mxu0 %v3280
      %3298 = vmatprep.subr.mxu0 0.0
      %3299 = vmatpush1.msra.mxu0 %v3281
      %3300 = vmatprep.subr.mxu0 0.0
      %3301 = vmatpush1.msra.mxu0 %v3282
      %3302 = vmatprep.subr.mxu0 0.0
      %3303 = vmatpush1.msra.mxu0 %v3283
      %3304 = vmatprep.subr.mxu0 0.0
      %3305 = vmatpush1.msra.mxu0 %v3284
      %3306 = vmatprep.subr.mxu0 0.0
      %3307 = vmatpush1.msra.mxu0 %v3285
      %3308 = vmatprep.subr.mxu0 0.0
      %3309 = vmatpush1.msra.mxu0 %v3286
      %3310 = vmatprep.subr.mxu0 0.0
      %3311 = vmatpush1.msra.mxu0 %v3287
      %3312 = vmatprep.subr.mxu0 0.0
      %3313 = vmatpush1.msra.mxu0 %v3288
      %3314 = vmatprep.subr.mxu0 0.0
      %3315 = vmatpush1.msra.mxu0 %v3289
      %3316 = vmatprep.subr.mxu0 0.0
      %3317 = vmatpush1.msra.mxu0 %v3290
      %3318 = vmatprep.subr.mxu0 0.0
      %3319 = vmatpush1.msra.mxu0 %v3291
      %3320 = vmatprep.subr.mxu0 0.0
      %3321 = vmatpush1.msra.mxu0 %v3292
      %3322 = vmatprep.subr.mxu0 0.0
      %3323 = vmatpush1.msra.mxu0 %v3293
      %3324 = vmatprep.subr.mxu0 0.0
      %3325 = vmatpush1.msra.mxu0 %v3294
      %3326 = vmatprep.subr.mxu0 0.0
      %3327 = vmatpush1.msra.mxu0 %v3295
      %3328 = vmatprep.subr.mxu0 0.0
      %3329 = vmatpush1.msra.mxu0 0.0
      %3330 = vmatprep.subr.mxu0 0.0
      %3331 = vmatpush1.msra.mxu0 0.0
      %3332 = vmatprep.subr.mxu0 0.0
      %3333 = vmatpush1.msra.mxu0 0.0
      %3334 = vmatprep.subr.mxu0 0.0
      %3335 = vmatpush1.msra.mxu0 0.0
      %3336 = vmatprep.subr.mxu0 0.0
      %3337 = vmatpush1.msra.mxu0 0.0
      %3338 = vmatprep.subr.mxu0 0.0
      %3339 = vmatpush1.msra.mxu0 0.0
      %3340 = vmatprep.subr.mxu0 0.0
      %3341 = vmatpush1.msra.mxu0 0.0
      %3342 = vmatprep.subr.mxu0 0.0
      %3343 = vmatpush1.msra.mxu0 0.0
      %3344 = vmatprep.subr.mxu0 0.0
      %3345 = vmatpush1.msra.mxu0 0.0
      %3346 = vmatprep.subr.mxu0 0.0
      %3347 = vmatpush1.msra.mxu0 0.0
      %3348 = vmatprep.subr.mxu0 0.0
      %3349 = vmatpush1.msra.mxu0 0.0
      %3350 = vmatprep.subr.mxu0 0.0
      %3351 = vmatpush1.msra.mxu0 0.0
      %3352 = vmatprep.subr.mxu0 0.0
      %3353 = vmatpush1.msra.mxu0 0.0
      %3354 = vmatprep.subr.mxu0 0.0
      %3355 = vmatpush1.msra.mxu0 0.0
      %3356 = vmatprep.subr.mxu0 0.0
      %3357 = vmatpush1.msra.mxu0 0.0
      %3358 = vmatprep.subr.mxu0 0.0
      %3359 = vmatpush1.msra.mxu0 0.0
      %3360 = vmatprep.mubr.f32.mxu0 0.0
      %3361 = vmatmul.mubr.f32.gmra.mrb[0].mxu0 %v3215
      %v3362 = vpop.f32.mrb[0].mxu0
      %v3363 = vadd.f32 0.0, %v3362
      %v3364 = vpop.f32.mrb[0].mxu0
      %3365 = vmatprep.mubr.f32.mxu0 0.0
      %3366 = vmatmul.mubr.f32.gmra.mrb[0].mxu0 %v3216
      %v3367 = vpop.f32.mrb[0].mxu0
      %v3368 = vadd.f32 0.0, %v3367
      %v3369 = vpop.f32.mrb[0].mxu0
      %3370 = vmatprep.mubr.f32.mxu0 0.0
      %3371 = vmatmul.mubr.f32.gmra.mrb[0].mxu0 %v3217
      %v3372 = vpop.f32.mrb[0].mxu0
      %v3373 = vadd.f32 0.0, %v3372
      %v3374 = vpop.f32.mrb[0].mxu0
      %3375 = vmatprep.mubr.f32.mxu0 0.0
      %3376 = vmatmul.mubr.f32.gmra.mrb[0].mxu0 %v3218
      %v3377 = vpop.f32.mrb[0].mxu0
      %v3378 = vadd.f32 0.0, %v3377
      %v3379 = vpop.f32.mrb[0].mxu0
      %3380 = vmatprep.mubr.f32.mxu0 0.0
      %3381 = vmatmul.mubr.f32.gmra.mrb[0].mxu0 %v3219
      %v3382 = vpop.f32.mrb[0].mxu0
      %v3383 = vadd.f32 0.0, %v3382
      %v3384 = vpop.f32.mrb[0].mxu0
      %3385 = vmatprep.mubr.f32.mxu0 0.0
      %3386 = vmatmul.mubr.f32.gmra.mrb[0].mxu0 %v3220
      %v3387 = vpop.f32.mrb[0].mxu0
      %v3388 = vadd.f32 0.0, %v3387
      %v3389 = vpop.f32.mrb[0].mxu0
      %3390 = vmatprep.mubr.f32.mxu0 0.0
      %3391 = vmatmul.mubr.f32.gmra.mrb[0].mxu0 %v3221
      %v3392 = vpop.f32.mrb[0].mxu0
      %v3393 = vadd.f32 0.0, %v3392
      %v3394 = vpop.f32.mrb[0].mxu0
      %3395 = vmatprep.mubr.f32.mxu0 0.0
      %3396 = vmatmul.mubr.f32.gmra.mrb[0].mxu0 %v3222
      %v3397 = vpop.f32.mrb[0].mxu0
      %v3398 = vadd.f32 0.0, %v3397
      %v3399 = vpop.f32.mrb[0].mxu0
      %3400 = vmatprep.mubr.f32.mxu0 0.0
      %3401 = vmatmul.mubr.f32.gmra.mrb[0].mxu0 %v3223
      %v3402 = vpop.f32.mrb[0].mxu0
      %v3403 = vadd.f32 0.0, %v3402
      %v3404 = vpop.f32.mrb[0].mxu0
      %3405 = vmatprep.mubr.f32.mxu0 0.0
      %3406 = vmatmul.mubr.f32.gmra.mrb[0].mxu0 %v3224
      %v3407 = vpop.f32.mrb[0].mxu0
      %v3408 = vadd.f32 0.0, %v3407
      %v3409 = vpop.f32.mrb[0].mxu0
      %3410 = vmatprep.mubr.f32.mxu0 0.0
      %3411 = vmatmul.mubr.f32.gmra.mrb[0].mxu0 %v3225
      %v3412 = vpop.f32.mrb[0].mxu0
      %v3413 = vadd.f32 0.0, %v3412
      %v3414 = vpop.f32.mrb[0].mxu0
      %3415 = vmatprep.mubr.f32.mxu0 0.0
      %3416 = vmatmul.mubr.f32.gmra.mrb[0].mxu0 %v3226
      %v3417 = vpop.f32.mrb[0].mxu0
      %v3418 = vadd.f32 0.0, %v3417
      %v3419 = vpop.f32.mrb[0].mxu0
      %3420 = vmatprep.mubr.f32.mxu0 0.0
      %3421 = vmatmul.mubr.f32.gmra.mrb[0].mxu0 %v3227
      %v3422 = vpop.f32.mrb[0].mxu0
      %v3423 = vadd.f32 0.0, %v3422
      %v3424 = vpop.f32.mrb[0].mxu0
      %3425 = vmatprep.mubr.f32.mxu0 0.0
      %3426 = vmatmul.mubr.f32.gmra.mrb[0].mxu0 %v3228
      %v3427 = vpop.f32.mrb[0].mxu0
      %v3428 = vadd.f32 0.0, %v3427
      %v3429 = vpop.f32.mrb[0].mxu0
      %3430 = vmatprep.mubr.f32.mxu0 0.0
      %3431 = vmatmul.mubr.f32.gmra.mrb[0].mxu0 %v3229
      %v3432 = vpop.f32.mrb[0].mxu0
      %v3433 = vadd.f32 0.0, %v3432
      %v3434 = vpop.f32.mrb[0].mxu0
      %3435 = vmatprep.mubr.f32.mxu0 0.0
      %3436 = vmatmul.mubr.f32.gmra.mrb[0].mxu0 %v3230
      %v3437 = vpop.f32.mrb[0].mxu0
      %v3438 = vadd.f32 0.0, %v3437
      %v3439 = vpop.f32.mrb[0].mxu0
      %3440 = vmatprep.mubr.f32.mxu0 0.0
      %3441 = vmatmul.mubr.f32.gmra.mrb[0].mxu0 %v3231
      %v3442 = vpop.f32.mrb[0].mxu0
      %v3443 = vadd.f32 0.0, %v3442
      %v3444 = vpop.f32.mrb[0].mxu0
      %3445 = vmatprep.mubr.f32.mxu0 0.0
      %3446 = vmatmul.mubr.f32.gmra.mrb[0].mxu0 %v3232
      %v3447 = vpop.f32.mrb[0].mxu0
      %v3448 = vadd.f32 0.0, %v3447
      %v3449 = vpop.f32.mrb[0].mxu0
      %3450 = vmatprep.mubr.f32.mxu0 0.0
      %3451 = vmatmul.mubr.f32.gmra.mrb[0].mxu0 %v3233
      %v3452 = vpop.f32.mrb[0].mxu0
      %v3453 = vadd.f32 0.0, %v3452
      %v3454 = vpop.f32.mrb[0].mxu0
      %3455 = vmatprep.mubr.f32.mxu0 0.0
      %3456 = vmatmul.mubr.f32.gmra.mrb[0].mxu0 %v3234
      %v3457 = vpop.f32.mrb[0].mxu0
      %v3458 = vadd.f32 0.0, %v3457
      %v3459 = vpop.f32.mrb[0].mxu0
      %3460 = vmatprep.mubr.f32.mxu0 0.0
      %3461 = vmatmul.mubr.f32.gmra.mrb[0].mxu0 %v3235
      %v3462 = vpop.f32.mrb[0].mxu0
      %v3463 = vadd.f32 0.0, %v3462
      %v3464 = vpop.f32.mrb[0].mxu0
      %3465 = vmatprep.mubr.f32.mxu0 0.0
      %3466 = vmatmul.mubr.f32.gmra.mrb[0].mxu0 %v3236
      %v3467 = vpop.f32.mrb[0].mxu0
      %v3468 = vadd.f32 0.0, %v3467
      %v3469 = vpop.f32.mrb[0].mxu0
      %3470 = vmatprep.mubr.f32.mxu0 0.0
      %3471 = vmatmul.mubr.f32.gmra.mrb[0].mxu0 %v3237
      %v3472 = vpop.f32.mrb[0].mxu0
      %v3473 = vadd.f32 0.0, %v3472
      %v3474 = vpop.f32.mrb[0].mxu0
      %3475 = vmatprep.mubr.f32.mxu0 0.0
      %3476 = vmatmul.mubr.f32.gmra.mrb[0].mxu0 %v3238
      %v3477 = vpop.f32.mrb[0].mxu0
      %v3478 = vadd.f32 0.0, %v3477
      %v3479 = vpop.f32.mrb[0].mxu0
      %3480 = vmatprep.mubr.f32.mxu0 0.0
      %3481 = vmatmul.mubr.f32.gmra.mrb[0].mxu0 %v3239
      %v3482 = vpop.f32.mrb[0].mxu0
      %v3483 = vadd.f32 0.0, %v3482
      %v3484 = vpop.f32.mrb[0].mxu0
      %3485 = vmatprep.mubr.f32.mxu0 0.0
      %3486 = vmatmul.mubr.f32.gmra.mrb[0].mxu0 %v3240
      %v3487 = vpop.f32.mrb[0].mxu0
      %v3488 = vadd.f32 0.0, %v3487
      %v3489 = vpop.f32.mrb[0].mxu0
      %3490 = vmatprep.mubr.f32.mxu0 0.0
      %3491 = vmatmul.mubr.f32.gmra.mrb[0].mxu0 %v3241
      %v3492 = vpop.f32.mrb[0].mxu0
      %v3493 = vadd.f32 0.0, %v3492
      %v3494 = vpop.f32.mrb[0].mxu0
      %3495 = vmatprep.mubr.f32.mxu0 0.0
      %3496 = vmatmul.mubr.f32.gmra.mrb[0].mxu0 %v3242
      %v3497 = vpop.f32.mrb[0].mxu0
      %v3498 = vadd.f32 0.0, %v3497
      %v3499 = vpop.f32.mrb[0].mxu0
      %3500 = vmatprep.mubr.f32.mxu0 0.0
      %3501 = vmatmul.mubr.f32.gmra.mrb[0].mxu0 %v3243
      %v3502 = vpop.f32.mrb[0].mxu0
      %v3503 = vadd.f32 0.0, %v3502
      %v3504 = vpop.f32.mrb[0].mxu0
      %3505 = vmatprep.mubr.f32.mxu0 0.0
      %3506 = vmatmul.mubr.f32.gmra.mrb[0].mxu0 %v3244
      %v3507 = vpop.f32.mrb[0].mxu0
      %v3508 = vadd.f32 0.0, %v3507
      %v3509 = vpop.f32.mrb[0].mxu0
      %3510 = vmatprep.mubr.f32.mxu0 0.0
      %3511 = vmatmul.mubr.f32.gmra.mrb[0].mxu0 %v3245
      %v3512 = vpop.f32.mrb[0].mxu0
      %v3513 = vadd.f32 0.0, %v3512
      %v3514 = vpop.f32.mrb[0].mxu0
      %3515 = vmatprep.mubr.f32.mxu0 0.0
      %3516 = vmatmul.mubr.f32.gmra.mrb[0].mxu0 %v3246
      %v3517 = vpop.f32.mrb[0].mxu0
      %v3518 = vadd.f32 0.0, %v3517
      %v3519 = vpop.f32.mrb[0].mxu0
      %3520 = vdwg.mxu0
      %v3521 = vadd.f32 %v3247, %v3363
      %v3522 = vadd.f32 %v3248, %v3368
      %v3523 = vadd.f32 %v3249, %v3373
      %v3524 = vadd.f32 %v3250, %v3378
      %v3525 = vadd.f32 %v3251, %v3383
      %v3526 = vadd.f32 %v3252, %v3388
      %v3527 = vadd.f32 %v3253, %v3393
      %v3528 = vadd.f32 %v3254, %v3398
      %v3529 = vadd.f32 %v3255, %v3403
      %v3530 = vadd.f32 %v3256, %v3408
      %v3531 = vadd.f32 %v3257, %v3413
      %v3532 = vadd.f32 %v3258, %v3418
      %v3533 = vadd.f32 %v3259, %v3423
      %v3534 = vadd.f32 %v3260, %v3428
      %v3535 = vadd.f32 %v3261, %v3433
      %v3536 = vadd.f32 %v3262, %v3438
      %v3537 = vadd.f32 %v3263, %v3443
      %v3538 = vadd.f32 %v3264, %v3448
      %v3539 = vadd.f32 %v3265, %v3453
      %v3540 = vadd.f32 %v3266, %v3458
      %v3541 = vadd.f32 %v3267, %v3463
      %v3542 = vadd.f32 %v3268, %v3468
      %v3543 = vadd.f32 %v3269, %v3473
      %v3544 = vadd.f32 %v3270, %v3478
      %v3545 = vadd.f32 %v3271, %v3483
      %v3546 = vadd.f32 %v3272, %v3488
      %v3547 = vadd.f32 %v3273, %v3493
      %v3548 = vadd.f32 %v3274, %v3498
      %v3549 = vadd.f32 %v3275, %v3503
      %v3550 = vadd.f32 %v3276, %v3508
      %v3551 = vadd.f32 %v3277, %v3513
      %v3552 = vadd.f32 %v3278, %v3518
      %3553 = vst [vmem:[#allocation2] sm:$0xff] %v3521
      %3554 = vst [vmem:[#allocation2 + $0x8] sm:$0xff] %v3522
      %3555 = vst [vmem:[#allocation2 + $0x10] sm:$0xff] %v3523
      %3556 = vst [vmem:[#allocation2 + $0x18] sm:$0xff] %v3524
      %3557 = vst [vmem:[#allocation2 + $0x20] sm:$0xff] %v3525
      %3558 = vst [vmem:[#allocation2 + $0x28] sm:$0xff] %v3526
      %3559 = vst [vmem:[#allocation2 + $0x30] sm:$0xff] %v3527
      %3560 = vst [vmem:[#allocation2 + $0x38] sm:$0xff] %v3528
      %3561 = vst [vmem:[#allocation2 + $0x40] sm:$0xff] %v3529
      %3562 = vst [vmem:[#allocation2 + $0x48] sm:$0xff] %v3530
      %3563 = vst [vmem:[#allocation2 + $0x50] sm:$0xff] %v3531
      %3564 = vst [vmem:[#allocation2 + $0x58] sm:$0xff] %v3532
      %3565 = vst [vmem:[#allocation2 + $0x60] sm:$0xff] %v3533
      %3566 = vst [vmem:[#allocation2 + $0x68] sm:$0xff] %v3534
      %3567 = vst [vmem:[#allocation2 + $0x70] sm:$0xff] %v3535
      %3568 = vst [vmem:[#allocation2 + $0x78] sm:$0xff] %v3536
      %3569 = vst [vmem:[#allocation2 + $0x80] sm:$0xff] %v3537
      %3570 = vst [vmem:[#allocation2 + $0x88] sm:$0xff] %v3538
      %3571 = vst [vmem:[#allocation2 + $0x90] sm:$0xff] %v3539
      %3572 = vst [vmem:[#allocation2 + $0x98] sm:$0xff] %v3540
      %3573 = vst [vmem:[#allocation2 + $0xa0] sm:$0xff] %v3541
      %3574 = vst [vmem:[#allocation2 + $0xa8] sm:$0xff] %v3542
      %3575 = vst [vmem:[#allocation2 + $0xb0] sm:$0xff] %v3543
      %3576 = vst [vmem:[#allocation2 + $0xb8] sm:$0xff] %v3544
      %3577 = vst [vmem:[#allocation2 + $0xc0] sm:$0xff] %v3545
      %3578 = vst [vmem:[#allocation2 + $0xc8] sm:$0xff] %v3546
      %3579 = vst [vmem:[#allocation2 + $0xd0] sm:$0xff] %v3547
      %3580 = vst [vmem:[#allocation2 + $0xd8] sm:$0xff] %v3548
      %3581 = vst [vmem:[#allocation2 + $0xe0] sm:$0xff] %v3549
      %3582 = vst [vmem:[#allocation2 + $0xe8] sm:$0xff] %v3550
      %3583 = vst [vmem:[#allocation2 + $0xf0] sm:$0xff] %v3551
      %3584 = vst [vmem:[#allocation2 + $0xf8] sm:$0xff] %v3552
      %v3585 = vld [vmem:[%s213] sm:$0x1]
      %v3586 = vld [vmem:[#allocation2] sm:$0xff]
      %v3587 = vld [vmem:[#allocation2 + $0x8] sm:$0xff]
      %v3588 = vld [vmem:[#allocation2 + $0x10] sm:$0xff]
      %v3589 = vld [vmem:[#allocation2 + $0x18] sm:$0xff]
      %v3590 = vld [vmem:[#allocation2 + $0x20] sm:$0xff]
      %v3591 = vld [vmem:[#allocation2 + $0x28] sm:$0xff]
      %v3592 = vld [vmem:[#allocation2 + $0x30] sm:$0xff]
      %v3593 = vld [vmem:[#allocation2 + $0x38] sm:$0xff]
      %v3594 = vld [vmem:[#allocation2 + $0x40] sm:$0xff]
      %v3595 = vld [vmem:[#allocation2 + $0x48] sm:$0xff]
      %v3596 = vld [vmem:[#allocation2 + $0x50] sm:$0xff]
      %v3597 = vld [vmem:[#allocation2 + $0x58] sm:$0xff]
      %v3598 = vld [vmem:[#allocation2 + $0x60] sm:$0xff]
      %v3599 = vld [vmem:[#allocation2 + $0x68] sm:$0xff]
      %v3600 = vld [vmem:[#allocation2 + $0x70] sm:$0xff]
      %v3601 = vld [vmem:[#allocation2 + $0x78] sm:$0xff]
      %v3602 = vld [vmem:[#allocation2 + $0x80] sm:$0xff]
      %v3603 = vld [vmem:[#allocation2 + $0x88] sm:$0xff]
      %v3604 = vld [vmem:[#allocation2 + $0x90] sm:$0xff]
      %v3605 = vld [vmem:[#allocation2 + $0x98] sm:$0xff]
      %v3606 = vld [vmem:[#allocation2 + $0xa0] sm:$0xff]
      %v3607 = vld [vmem:[#allocation2 + $0xa8] sm:$0xff]
      %v3608 = vld [vmem:[#allocation2 + $0xb0] sm:$0xff]
      %v3609 = vld [vmem:[#allocation2 + $0xb8] sm:$0xff]
      %v3610 = vld [vmem:[#allocation2 + $0xc0] sm:$0xff]
      %v3611 = vld [vmem:[#allocation2 + $0xc8] sm:$0xff]
      %v3612 = vld [vmem:[#allocation2 + $0xd0] sm:$0xff]
      %v3613 = vld [vmem:[#allocation2 + $0xd8] sm:$0xff]
      %v3614 = vld [vmem:[#allocation2 + $0xe0] sm:$0xff]
      %v3615 = vld [vmem:[#allocation2 + $0xe8] sm:$0xff]
      %v3616 = vld [vmem:[#allocation2 + $0xf0] sm:$0xff]
      %v3617 = vld [vmem:[#allocation2 + $0xf8] sm:$0xff]
      %v3619 = vlaneseq
      %v3620 = vshrl.u32 %v3619, 7
      %v3621 = vsub.s32 0, %v3620
      %v3622 = vrot.slane %v3585, %v3621
      %v3624 = vadd.f32 %v3586, %v3622
      %v3625 = vadd.f32 %v3587, %v3622
      %v3626 = vadd.f32 %v3588, %v3622
      %v3627 = vadd.f32 %v3589, %v3622
      %v3628 = vadd.f32 %v3590, %v3622
      %v3629 = vadd.f32 %v3591, %v3622
      %v3630 = vadd.f32 %v3592, %v3622
      %v3631 = vadd.f32 %v3593, %v3622
      %v3632 = vadd.f32 %v3594, %v3622
      %v3633 = vadd.f32 %v3595, %v3622
      %v3634 = vadd.f32 %v3596, %v3622
      %v3635 = vadd.f32 %v3597, %v3622
      %v3636 = vadd.f32 %v3598, %v3622
      %v3637 = vadd.f32 %v3599, %v3622
      %v3638 = vadd.f32 %v3600, %v3622
      %v3639 = vadd.f32 %v3601, %v3622
      %v3640 = vadd.f32 %v3602, %v3622
      %v3641 = vadd.f32 %v3603, %v3622
      %v3642 = vadd.f32 %v3604, %v3622
      %v3643 = vadd.f32 %v3605, %v3622
      %v3644 = vadd.f32 %v3606, %v3622
      %v3645 = vadd.f32 %v3607, %v3622
      %v3646 = vadd.f32 %v3608, %v3622
      %v3647 = vadd.f32 %v3609, %v3622
      %v3648 = vadd.f32 %v3610, %v3622
      %v3649 = vadd.f32 %v3611, %v3622
      %v3650 = vadd.f32 %v3612, %v3622
      %v3651 = vadd.f32 %v3613, %v3622
      %v3652 = vadd.f32 %v3614, %v3622
      %v3653 = vadd.f32 %v3615, %v3622
      %v3654 = vadd.f32 %v3616, %v3622
      %v3655 = vadd.f32 %v3617, %v3622
      %v3656 = vmax.f32 %v3624, 0.0
      %v3657 = vmax.f32 %v3625, 0.0
      %v3658 = vmax.f32 %v3626, 0.0
      %v3659 = vmax.f32 %v3627, 0.0
      %v3660 = vmax.f32 %v3628, 0.0
      %v3661 = vmax.f32 %v3629, 0.0
      %v3662 = vmax.f32 %v3630, 0.0
      %v3663 = vmax.f32 %v3631, 0.0
      %v3664 = vmax.f32 %v3632, 0.0
      %v3665 = vmax.f32 %v3633, 0.0
      %v3666 = vmax.f32 %v3634, 0.0
      %v3667 = vmax.f32 %v3635, 0.0
      %v3668 = vmax.f32 %v3636, 0.0
      %v3669 = vmax.f32 %v3637, 0.0
      %v3670 = vmax.f32 %v3638, 0.0
      %v3671 = vmax.f32 %v3639, 0.0
      %v3672 = vmax.f32 %v3640, 0.0
      %v3673 = vmax.f32 %v3641, 0.0
      %v3674 = vmax.f32 %v3642, 0.0
      %v3675 = vmax.f32 %v3643, 0.0
      %v3676 = vmax.f32 %v3644, 0.0
      %v3677 = vmax.f32 %v3645, 0.0
      %v3678 = vmax.f32 %v3646, 0.0
      %v3679 = vmax.f32 %v3647, 0.0
      %v3680 = vmax.f32 %v3648, 0.0
      %v3681 = vmax.f32 %v3649, 0.0
      %v3682 = vmax.f32 %v3650, 0.0
      %v3683 = vmax.f32 %v3651, 0.0
      %v3684 = vmax.f32 %v3652, 0.0
      %v3685 = vmax.f32 %v3653, 0.0
      %v3686 = vmax.f32 %v3654, 0.0
      %v3687 = vmax.f32 %v3655, 0.0
      %3688 = vst [vmem:[%s221] sm:$0xff] %v3656
      %3689 = vst [vmem:[%s221 + $0x8] sm:$0xff] %v3657
      %3690 = vst [vmem:[%s221 + $0x10] sm:$0xff] %v3658
      %3691 = vst [vmem:[%s221 + $0x18] sm:$0xff] %v3659
      %3692 = vst [vmem:[%s221 + $0x20] sm:$0xff] %v3660
      %3693 = vst [vmem:[%s221 + $0x28] sm:$0xff] %v3661
      %3694 = vst [vmem:[%s221 + $0x30] sm:$0xff] %v3662
      %3695 = vst [vmem:[%s221 + $0x38] sm:$0xff] %v3663
      %3696 = vst [vmem:[%s221 + $0x40] sm:$0xff] %v3664
      %3697 = vst [vmem:[%s221 + $0x48] sm:$0xff] %v3665
      %3698 = vst [vmem:[%s221 + $0x50] sm:$0xff] %v3666
      %3699 = vst [vmem:[%s221 + $0x58] sm:$0xff] %v3667
      %3700 = vst [vmem:[%s221 + $0x60] sm:$0xff] %v3668
      %3701 = vst [vmem:[%s221 + $0x68] sm:$0xff] %v3669
      %3702 = vst [vmem:[%s221 + $0x70] sm:$0xff] %v3670
      %3703 = vst [vmem:[%s221 + $0x78] sm:$0xff] %v3671
      %3704 = vst [vmem:[%s221 + $0x80] sm:$0xff] %v3672
      %3705 = vst [vmem:[%s221 + $0x88] sm:$0xff] %v3673
      %3706 = vst [vmem:[%s221 + $0x90] sm:$0xff] %v3674
      %3707 = vst [vmem:[%s221 + $0x98] sm:$0xff] %v3675
      %3708 = vst [vmem:[%s221 + $0xa0] sm:$0xff] %v3676
      %3709 = vst [vmem:[%s221 + $0xa8] sm:$0xff] %v3677
      %3710 = vst [vmem:[%s221 + $0xb0] sm:$0xff] %v3678
      %3711 = vst [vmem:[%s221 + $0xb8] sm:$0xff] %v3679
      %3712 = vst [vmem:[%s221 + $0xc0] sm:$0xff] %v3680
      %3713 = vst [vmem:[%s221 + $0xc8] sm:$0xff] %v3681
      %3714 = vst [vmem:[%s221 + $0xd0] sm:$0xff] %v3682
      %3715 = vst [vmem:[%s221 + $0xd8] sm:$0xff] %v3683
      %3716 = vst [vmem:[%s221 + $0xe0] sm:$0xff] %v3684
      %3717 = vst [vmem:[%s221 + $0xe8] sm:$0xff] %v3685
      %3718 = vst [vmem:[%s221 + $0xf0] sm:$0xff] %v3686
      %3719 = vst [vmem:[%s221 + $0xf8] sm:$0xff] %v3687
      %p3720 = scmp.lt.s32.totalorder %s18, 1
      %s3721 = scalar_select %p3720, %s18, 1
      %p3722 = scmp.lt.s32.totalorder %s19, 0
      %s3723 = scalar_select %p3722, %s19, 0
      %s3724 = smul.addr %s3721, 32
      %s3725 = sadd.s32 %s3723, %s3724
      %s3726 = smul.addr %s3725, 8
      %s3727 = scalar_lea.vmem %s3, %s3726
      // Predicated region
      $region33: #{vgg_block_forward.4} parent=31 // pred_check
        %p3728 = pneg %p124
      $region34: #{vgg_block_forward.4} parent=31 // pred_check_branch
        %3730 = sbr.rel (%p3728) target = $region36
      $region35: #{vgg_block_forward.4} parent=31 // pred_region
        _
      $region36: #{vgg_block_forward.4} parent=31 // pred_fallthru
        _
    $region32: #{vgg_block_forward.4} parent=5 // pred_fallthru
      _
    %p3731 = scmp.le.s32.totalorder 2, %s9
    // Predicated region
    $region37: #{vgg_block_forward.4} parent=5 // pred_check
      %p3732 = pneg %p3731
    $region38: #{vgg_block_forward.4} parent=5 // pred_check_branch
      %3734 = sbr.rel (%p3732) target = $region40
    $region39: #{vgg_block_forward.4} parent=5 // pred_region
      %s3735 = ssub.s32 %s9, 2
      // Predicated region
      $region41: #{vgg_block_forward.4} parent=39 // pred_check
        %p3736 = pneg %p130
      $region42: #{vgg_block_forward.4} parent=39 // pred_check_branch
        %3738 = sbr.rel (%p3736) target = $region44
      $region43: #{vgg_block_forward.4} parent=39 // pred_region
        %p3739 = scmp.lt.s32.totalorder %s20, 1
        %s3740 = scalar_select %p3739, %s20, 1
        %p3741 = scmp.lt.s32.totalorder %s21, 0
        %s3742 = scalar_select %p3741, %s21, 0
        %s3743 = smul.addr %s3740, 32
        %s3744 = sadd.s32 %s3742, %s3743
        %s3745 = smul.addr %s3744, 8
        %s3746 = scalar_lea.vmem %s3, %s3745
      $region44: #{vgg_block_forward.4} parent=39 // pred_fallthru
        _
    $region40: #{vgg_block_forward.4} parent=5 // pred_fallthru
      _
  $region6: #{vgg_block_forward.4} parent=0 // loop_footer
    %s13 = sadd.s32 1, %s9
  $region7: #{vgg_block_forward.4} parent=0 // loop_footer_branch
    %8 = sbr.rel target = $region3
  $region8: #{vgg_block_forward.4} parent=0 // loop_exit
    _

// kernel: vgg_block_forward.3
$region0: #{vgg_block_forward.3}
  #allocation0 [shape = 'u32[]', space=smem, size = 0x4, offset = 0x4, fixed_abs, tag = 'smem constant byte address 0x4 - core index']
  #allocation1 [shape = 'u32[144,128]{1,0:T(1,128)}', space=vmem, size = 0x12000, scoped, tag = 'internal scratch']
  #allocation2 [shape = 'f32[256,128]{1,0:T(8,128)}', space=vmem, size = 0x20000, scoped, tag = 'scratch operand']
  %s0 = inlined_call_operand.vmem [shape: f32[2,18,18,4], index: 0, kind: input, shape index: {}]
  %s1 = inlined_call_operand.vmem [shape: f32[3,3,4,128], index: 1, kind: input, shape index: {}]
  %s2 = inlined_call_operand.vmem [shape: f32[1,128], index: 2, kind: input, shape index: {}]
  %s3 = inlined_call_operand.vmem [shape: f32[2,18,18,128], index: 3, kind: output, shape index: {}]
  %s4 = sld [smem:[#allocation0]]
  $region45: #{vgg_block_forward.3} parent=0
    _
  %s6 = ssub.s32 1, %s4
  %s7 = scalar_select 0, %s6, %s4
  loop: start=0, step=1, limit=4
  $region2: #{vgg_block_forward.3} parent=0 // loop_pre_header
    _
  $region3: #{vgg_block_forward.3} parent=0 // loop_header
    %s9 = sphi 0, %s13
    %p10 = scmp.ge.s32.totalorder %s9, 4
    %s16 = sphi 0, %s28
    %s17 = sphi 0, %s24
    %s18 = sphi 0, %s16
    %s19 = sphi 0, %s17
    %s20 = sphi 0, %s18
    %s21 = sphi 0, %s19
    %s31 = sphi 0, %s33
    %s34 = sphi 0, %s31
    %s35 = sphi 0, %s34
    %s51 = sphi 0, %s35
    %s57 = sphi 0, %s59
    %s60 = sphi 0, %s57
    %s61 = sphi 0, %s60
    %s77 = sphi 0, %s61
    %s83 = sphi 0, %s85
    %s86 = sphi 0, %s83
    %s87 = sphi 0, %s86
    %s103 = sphi 0, %s87
    %s111 = sphi 0, %s113
    %s114 = sphi 0, %s111
    %s115 = sphi 0, %s114
    %s131 = sphi 0, %s115
  $region4: #{vgg_block_forward.3} parent=0 // loop_header_branch
    %12 = sbr.rel (%p10) target = $region8
  $region5: #{vgg_block_forward.3} parent=0 // loop_body
    %s14 = ssub.s32 %s9, 1
    %s15 = ssub.s32 %s9, 2
    %s22 = sadd.s32 1, %s17
    %p23 = scmp.ge.s32.totalorder %s22, 1
    %s24 = scalar_select %p23, 0, %s22
    %s25 = sadd.s32 1, %s16
    %s26 = scalar_select %p23, %s25, %s16
    %p27 = scmp.ge.s32.totalorder %s26, 2
    %s28 = scalar_select %p27, 0, %s26
    %s29 = ssub.s32 %s16, %s28
    %p30 = scmp.eq.s32.totalorder %s29, 0
    %s32 = sadd.s32 %s31, 1
    %s33 = scalar_select %p30, %s31, %s32
    %p36 = pneg %p30
    %p37 = scmp.eq.s32.totalorder %s9, 1
    %p38 = por %p36, %p37
    %p39 = scmp.ne.s32.totalorder %s31, %s34
    %p40 = scmp.eq.s32.totalorder %s9, 0
    %p41 = por %p39, %p40
    %p42 = scmp.ne.s32.totalorder %s31, %s34
    %p43 = scmp.eq.s32.totalorder %s14, 1
    %p44 = por %p42, %p43
    %p45 = scmp.ne.s32.totalorder %s34, %s35
    %p46 = scmp.eq.s32.totalorder %s14, 0
    %p47 = por %p45, %p46
    %p48 = scmp.ne.s32.totalorder %s34, %s35
    %p49 = scmp.eq.s32.totalorder %s15, 1
    %p50 = por %p48, %p49
    %p52 = scmp.ne.s32.totalorder %s35, %s51
    %p53 = scmp.eq.s32.totalorder %s15, 0
    %p54 = por %p52, %p53
    %s55 = ssub.s32 %s17, %s24
    %p56 = scmp.eq.s32.totalorder %s55, 0
    %s58 = sadd.s32 %s57, 1
    %s59 = scalar_select %p56, %s57, %s58
    %p62 = pneg %p56
    %p63 = scmp.eq.s32.totalorder %s9, 1
    %p64 = por %p62, %p63
    %p65 = scmp.ne.s32.totalorder %s57, %s60
    %p66 = scmp.eq.s32.totalorder %s9, 0
    %p67 = por %p65, %p66
    %p68 = scmp.ne.s32.totalorder %s57, %s60
    %p69 = scmp.eq.s32.totalorder %s14, 1
    %p70 = por %p68, %p69
    %p71 = scmp.ne.s32.totalorder %s60, %s61
    %p72 = scmp.eq.s32.totalorder %s14, 0
    %p73 = por %p71, %p72
    %p74 = scmp.ne.s32.totalorder %s60, %s61
    %p75 = scmp.eq.s32.totalorder %s15, 1
    %p76 = por %p74, %p75
    %p78 = scmp.ne.s32.totalorder %s61, %s77
    %p79 = scmp.eq.s32.totalorder %s15, 0
    %p80 = por %p78, %p79
    %s81 = ssub.s32 %s17, %s24
    %p82 = scmp.eq.s32.totalorder %s81, 0
    %s84 = sadd.s32 %s83, 1
    %s85 = scalar_select %p82, %s83, %s84
    %p88 = pneg %p82
    %p89 = scmp.eq.s32.totalorder %s9, 1
    %p90 = por %p88, %p89
    %p91 = scmp.ne.s32.totalorder %s83, %s86
    %p92 = scmp.eq.s32.totalorder %s9, 0
    %p93 = por %p91, %p92
    %p94 = scmp.ne.s32.totalorder %s83, %s86
    %p95 = scmp.eq.s32.totalorder %s14, 1
    %p96 = por %p94, %p95
    %p97 = scmp.ne.s32.totalorder %s86, %s87
    %p98 = scmp.eq.s32.totalorder %s14, 0
    %p99 = por %p97, %p98
    %p100 = scmp.ne.s32.totalorder %s86, %s87
    %p101 = scmp.eq.s32.totalorder %s15, 1
    %p102 = por %p100, %p101
    %p104 = scmp.ne.s32.totalorder %s87, %s103
    %p105 = scmp.eq.s32.totalorder %s15, 0
    %p106 = por %p104, %p105
    %s107 = ssub.s32 %s16, %s28
    %s108 = ssub.s32 %s17, %s24
    %s109 = sor.u32 %s107, %s108
    %p110 = scmp.eq.s32.totalorder %s109, 0
    %s112 = sadd.s32 %s111, 1
    %s113 = scalar_select %p110, %s111, %s112
    %p116 = pneg %p110
    %p117 = scmp.eq.s32.totalorder %s9, 1
    %p118 = por %p116, %p117
    %p119 = scmp.ne.s32.totalorder %s111, %s114
    %p120 = scmp.eq.s32.totalorder %s9, 0
    %p121 = por %p119, %p120
    %p122 = scmp.ne.s32.totalorder %s111, %s114
    %p123 = scmp.eq.s32.totalorder %s14, 1
    %p124 = por %p122, %p123
    %p125 = scmp.ne.s32.totalorder %s114, %s115
    %p126 = scmp.eq.s32.totalorder %s14, 0
    %p127 = por %p125, %p126
    %p128 = scmp.ne.s32.totalorder %s114, %s115
    %p129 = scmp.eq.s32.totalorder %s15, 1
    %p130 = por %p128, %p129
    %p132 = scmp.ne.s32.totalorder %s115, %s131
    %p133 = scmp.eq.s32.totalorder %s15, 0
    %p134 = por %p132, %p133
    %p135 = scmp.le.s32.totalorder 1, %s9
    %p136 = scmp.lt.s32.totalorder %s9, 3
    %p137 = pnand %p135, %p136
    %p138 = pneg %p137
    // Predicated region
    $region9: #{vgg_block_forward.3} parent=5 // pred_check
      _
    $region10: #{vgg_block_forward.3} parent=5 // pred_check_branch
      %140 = sbr.rel (%p137) target = $region12
    $region11: #{vgg_block_forward.3} parent=5 // pred_region
      %s141 = ssub.s32 %s9, 1
      // Predicated region
      $region13: #{vgg_block_forward.3} parent=11 // pred_check
        %p142 = pneg %p73
      $region14: #{vgg_block_forward.3} parent=11 // pred_check_branch
        %144 = sbr.rel (%p142) target = $region16
      $region15: #{vgg_block_forward.3} parent=11 // pred_region
        %p145 = scmp.lt.s32.totalorder %s19, 0
        %s146 = scalar_select %p145, %s19, 0
        %s147 = smul.addr %s146, 4
        %s148 = scalar_lea.vmem %s1, %s147
      $region16: #{vgg_block_forward.3} parent=11 // pred_fallthru
        _
      // Predicated region
      $region17: #{vgg_block_forward.3} parent=11 // pred_check
        %p149 = pneg %p99
      $region18: #{vgg_block_forward.3} parent=11 // pred_check_branch
        %151 = sbr.rel (%p149) target = $region20
      $region19: #{vgg_block_forward.3} parent=11 // pred_region
        %p152 = scmp.lt.s32.totalorder %s19, 0
        %s153 = scalar_select %p152, %s19, 0
        %s154 = scalar_lea.vmem %s2, %s153
      $region20: #{vgg_block_forward.3} parent=11 // pred_fallthru
        _
    $region12: #{vgg_block_forward.3} parent=5 // pred_fallthru
      _
    %p155 = scmp.lt.s32.totalorder %s9, 2
    // Predicated region
    $region21: #{vgg_block_forward.3} parent=5 // pred_check
      %p156 = pneg %p155
    $region22: #{vgg_block_forward.3} parent=5 // pred_check_branch
      %158 = sbr.rel (%p156) target = $region24
    $region23: #{vgg_block_forward.3} parent=5 // pred_region
      // Predicated region
      $region25: #{vgg_block_forward.3} parent=23 // pred_check
        %p159 = pneg %p41
      $region26: #{vgg_block_forward.3} parent=23 // pred_check_branch
        %161 = sbr.rel (%p159) target = $region28
      $region27: #{vgg_block_forward.3} parent=23 // pred_region
        %p162 = scmp.lt.s32.totalorder %s16, 1
        %s163 = scalar_select %p162, %s16, 1
        %s164 = smul.addr %s163, 54
        %s165 = smul.addr %s164, 8
        %s166 = scalar_lea.vmem %s0, %s165
      $region28: #{vgg_block_forward.3} parent=23 // pred_fallthru
        _
    $region24: #{vgg_block_forward.3} parent=5 // pred_fallthru
      _
    %p167 = scmp.le.s32.totalorder 1, %s9
    %p168 = scmp.lt.s32.totalorder %s9, 3
    %p169 = pnand %p167, %p168
    %p170 = pneg %p169
    // Predicated region
    $region29: #{vgg_block_forward.3} parent=5 // pred_check
      _
    $region30: #{vgg_block_forward.3} parent=5 // pred_check_branch
      %172 = sbr.rel (%p169) target = $region32
    $region31: #{vgg_block_forward.3} parent=5 // pred_region
      %s173 = ssub.s32 %s9, 1
      %p174 = scmp.lt.s32.totalorder %s18, 1
      %s175 = scalar_select %p174, %s18, 1
      %s176 = smul.addr %s175, 54
      %s177 = smul.addr %s176, 8
      %s178 = scalar_lea.vmem %s0, %s177
      %p179 = pneg %p47
      %p180 = pneg %p44
      %p181 = scmp.lt.s32.totalorder %s19, 0
      %s182 = scalar_select %p181, %s19, 0
      %s183 = smul.addr %s182, 4
      %s184 = scalar_lea.vmem %s1, %s183
      %p185 = pneg %p73
      %p186 = pneg %p70
      %p187 = scmp.lt.s32.totalorder %s19, 0
      %s188 = scalar_select %p187, %s19, 0
      %s189 = scalar_lea.vmem %s2, %s188
      %p190 = pneg %p99
      %p191 = pneg %p96
      %p192 = pneg %p127
      %p193 = pneg %p124
      %p194 = scmp.lt.s32.totalorder %s18, 1
      %s195 = scalar_select %p194, %s18, 1
      %p196 = scmp.lt.s32.totalorder %s19, 0
      %s197 = scalar_select %p196, %s19, 0
      %s198 = smul.addr %s195, 54
      %s199 = sadd.s32 %s197, %s198
      %s200 = smul.addr %s199, 8
      %s201 = scalar_lea.vmem %s3, %s200
      %p202 = scmp.lt.s32.totalorder %s18, 1
      %s203 = scalar_select %p202, %s18, 1
      %s204 = smul.addr %s203, 54
      %s205 = smul.addr %s204, 8
      %s206 = scalar_lea.vmem %s0, %s205
      %p207 = scmp.lt.s32.totalorder %s19, 0
      %s208 = scalar_select %p207, %s19, 0
      %s209 = smul.addr %s208, 4
      %s210 = scalar_lea.vmem %s1, %s209
      %p211 = scmp.lt.s32.totalorder %s19, 0
      %s212 = scalar_select %p211, %s19, 0
      %s213 = scalar_lea.vmem %s2, %s212
      %p214 = scmp.lt.s32.totalorder %s18, 1
      %s215 = scalar_select %p214, %s18, 1
      %p216 = scmp.lt.s32.totalorder %s19, 0
      %s217 = scalar_select %p216, %s19, 0
      %s218 = smul.addr %s215, 54
      %s219 = sadd.s32 %s217, %s218
      %s220 = smul.addr %s219, 8
      %s221 = scalar_lea.vmem %s3, %s220
      %222 = vst [vmem:[#allocation2] sm:$0xff] 0.0
      %223 = vst [vmem:[#allocation2 + $0x8] sm:$0xff] 0.0
      %224 = vst [vmem:[#allocation2 + $0x10] sm:$0xff] 0.0
      %225 = vst [vmem:[#allocation2 + $0x18] sm:$0xff] 0.0
      %226 = vst [vmem:[#allocation2 + $0x20] sm:$0xff] 0.0
      %227 = vst [vmem:[#allocation2 + $0x28] sm:$0xff] 0.0
      %228 = vst [vmem:[#allocation2 + $0x30] sm:$0xff] 0.0
      %229 = vst [vmem:[#allocation2 + $0x38] sm:$0xff] 0.0
      %230 = vst [vmem:[#allocation2 + $0x40] sm:$0xff] 0.0
      %231 = vst [vmem:[#allocation2 + $0x48] sm:$0xff] 0.0
      %232 = vst [vmem:[#allocation2 + $0x50] sm:$0xff] 0.0
      %233 = vst [vmem:[#allocation2 + $0x58] sm:$0xff] 0.0
      %234 = vst [vmem:[#allocation2 + $0x60] sm:$0xff] 0.0
      %235 = vst [vmem:[#allocation2 + $0x68] sm:$0xff] 0.0
      %236 = vst [vmem:[#allocation2 + $0x70] sm:$0xff] 0.0
      %237 = vst [vmem:[#allocation2 + $0x78] sm:$0xff] 0.0
      %238 = vst [vmem:[#allocation2 + $0x80] sm:$0xff] 0.0
      %239 = vst [vmem:[#allocation2 + $0x88] sm:$0xff] 0.0
      %240 = vst [vmem:[#allocation2 + $0x90] sm:$0xff] 0.0
      %241 = vst [vmem:[#allocation2 + $0x98] sm:$0xff] 0.0
      %242 = vst [vmem:[#allocation2 + $0xa0] sm:$0xff] 0.0
      %243 = vst [vmem:[#allocation2 + $0xa8] sm:$0xff] 0.0
      %244 = vst [vmem:[#allocation2 + $0xb0] sm:$0xff] 0.0
      %245 = vst [vmem:[#allocation2 + $0xb8] sm:$0xff] 0.0
      %246 = vst [vmem:[#allocation2 + $0xc0] sm:$0xff] 0.0
      %247 = vst [vmem:[#allocation2 + $0xc8] sm:$0xff] 0.0
      %248 = vst [vmem:[#allocation2 + $0xd0] sm:$0xff] 0.0
      %249 = vst [vmem:[#allocation2 + $0xd8] sm:$0xff] 0.0
      %250 = vst [vmem:[#allocation2 + $0xe0] sm:$0xff] 0.0
      %251 = vst [vmem:[#allocation2 + $0xe8] sm:$0xff] 0.0
      %252 = vst [vmem:[#allocation2 + $0xf0] sm:$0xff] 0.0
      %253 = vst [vmem:[#allocation2 + $0xf8] sm:$0xff] 0.0
      %v254 = vld [vmem:[%s206] sm:$0xff]
      %v255 = vld [vmem:[%s206 + $0x8] sm:$0xff]
      %v256 = vld [vmem:[%s206 + $0x18] sm:$0xff]
      %v257 = vld [vmem:[%s206 + $0x20] sm:$0xff]
      %v258 = vld [vmem:[%s206 + $0x30] sm:$0xff]
      %v259 = vld [vmem:[%s206 + $0x38] sm:$0xff]
      %v260 = vld [vmem:[%s206 + $0x48] sm:$0xff]
      %v261 = vld [vmem:[%s206 + $0x50] sm:$0xff]
      %v262 = vld [vmem:[%s206 + $0x60] sm:$0xff]
      %v263 = vld [vmem:[%s206 + $0x68] sm:$0xff]
      %v264 = vld [vmem:[%s206 + $0x78] sm:$0xff]
      %v265 = vld [vmem:[%s206 + $0x80] sm:$0xff]
      %v266 = vld [vmem:[%s206 + $0x90] sm:$0xff]
      %v267 = vld [vmem:[%s206 + $0x98] sm:$0xff]
      %v268 = vld [vmem:[%s206 + $0xa8] sm:$0xff]
      %v269 = vld [vmem:[%s206 + $0xb0] sm:$0xff]
      %v270 = vld [vmem:[%s206 + $0xc0] sm:$0xff]
      %v271 = vld [vmem:[%s206 + $0xc8] sm:$0xff]
      %v272 = vld [vmem:[%s206 + $0xd8] sm:$0xff]
      %v273 = vld [vmem:[%s206 + $0xe0] sm:$0xff]
      %v274 = vld [vmem:[%s206 + $0xf0] sm:$0xff]
      %v275 = vld [vmem:[%s206 + $0xf8] sm:$0xff]
      %v276 = vld [vmem:[%s206 + $0x108] sm:$0xff]
      %v277 = vld [vmem:[%s206 + $0x110] sm:$0xff]
      %v278 = vld [vmem:[%s206 + $0x120] sm:$0xff]
      %v279 = vld [vmem:[%s206 + $0x128] sm:$0xff]
      %v280 = vld [vmem:[%s206 + $0x138] sm:$0xff]
      %v281 = vld [vmem:[%s206 + $0x140] sm:$0xff]
      %v282 = vld [vmem:[%s206 + $0x150] sm:$0xff]
      %v283 = vld [vmem:[%s206 + $0x158] sm:$0xff]
      %v284 = vld [vmem:[%s206 + $0x168] sm:$0xff]
      %v285 = vld [vmem:[%s206 + $0x170] sm:$0xff]
      %v286 = vld [vmem:[#allocation2] sm:$0xff]
      %v287 = vld [vmem:[#allocation2 + $0x8] sm:$0xff]
      %v288 = vld [vmem:[#allocation2 + $0x10] sm:$0xff]
      %v289 = vld [vmem:[#allocation2 + $0x18] sm:$0xff]
      %v290 = vld [vmem:[#allocation2 + $0x20] sm:$0xff]
      %v291 = vld [vmem:[#allocation2 + $0x28] sm:$0xff]
      %v292 = vld [vmem:[#allocation2 + $0x30] sm:$0xff]
      %v293 = vld [vmem:[#allocation2 + $0x38] sm:$0xff]
      %v294 = vld [vmem:[#allocation2 + $0x40] sm:$0xff]
      %v295 = vld [vmem:[#allocation2 + $0x48] sm:$0xff]
      %v296 = vld [vmem:[#allocation2 + $0x50] sm:$0xff]
      %v297 = vld [vmem:[#allocation2 + $0x58] sm:$0xff]
      %v298 = vld [vmem:[#allocation2 + $0x60] sm:$0xff]
      %v299 = vld [vmem:[#allocation2 + $0x68] sm:$0xff]
      %v300 = vld [vmem:[#allocation2 + $0x70] sm:$0xff]
      %v301 = vld [vmem:[#allocation2 + $0x78] sm:$0xff]
      %v302 = vld [vmem:[#allocation2 + $0x80] sm:$0xff]
      %v303 = vld [vmem:[#allocation2 + $0x88] sm:$0xff]
      %v304 = vld [vmem:[#allocation2 + $0x90] sm:$0xff]
      %v305 = vld [vmem:[#allocation2 + $0x98] sm:$0xff]
      %v306 = vld [vmem:[#allocation2 + $0xa0] sm:$0xff]
      %v307 = vld [vmem:[#allocation2 + $0xa8] sm:$0xff]
      %v308 = vld [vmem:[#allocation2 + $0xb0] sm:$0xff]
      %v309 = vld [vmem:[#allocation2 + $0xb8] sm:$0xff]
      %v310 = vld [vmem:[#allocation2 + $0xc0] sm:$0xff]
      %v311 = vld [vmem:[#allocation2 + $0xc8] sm:$0xff]
      %v312 = vld [vmem:[#allocation2 + $0xd0] sm:$0xff]
      %v313 = vld [vmem:[#allocation2 + $0xd8] sm:$0xff]
      %v314 = vld [vmem:[#allocation2 + $0xe0] sm:$0xff]
      %v315 = vld [vmem:[#allocation2 + $0xe8] sm:$0xff]
      %v316 = vld [vmem:[#allocation2 + $0xf0] sm:$0xff]
      %v317 = vld [vmem:[#allocation2 + $0xf8] sm:$0xff]
      %v318 = vld [vmem:[%s210] sm:$0xf]
      %vm319 = vcmask 31744
      %v321 = vsel %vm319, %v254, 0
      %v324 = vsel %vm319, %v255, 0
      %v327 = vsel %vm319, %v256, 0
      %v330 = vsel %vm319, %v257, 0
      %v333 = vsel %vm319, %v258, 0
      %v336 = vsel %vm319, %v259, 0
      %v339 = vsel %vm319, %v260, 0
      %v342 = vsel %vm319, %v261, 0
      %v345 = vsel %vm319, %v262, 0
      %v348 = vsel %vm319, %v263, 0
      %v351 = vsel %vm319, %v264, 0
      %v354 = vsel %vm319, %v265, 0
      %v357 = vsel %vm319, %v266, 0
      %v360 = vsel %vm319, %v267, 0
      %v363 = vsel %vm319, %v268, 0
      %v366 = vsel %vm319, %v269, 0
      %v369 = vsel %vm319, %v270, 0
      %v372 = vsel %vm319, %v271, 0
      %v375 = vsel %vm319, %v272, 0
      %v378 = vsel %vm319, %v273, 0
      %v381 = vsel %vm319, %v274, 0
      %v384 = vsel %vm319, %v275, 0
      %v387 = vsel %vm319, %v276, 0
      %v390 = vsel %vm319, %v277, 0
      %v393 = vsel %vm319, %v278, 0
      %v396 = vsel %vm319, %v279, 0
      %v399 = vsel %vm319, %v280, 0
      %v402 = vsel %vm319, %v281, 0
      %v405 = vsel %vm319, %v282, 0
      %v408 = vsel %vm319, %v283, 0
      %v411 = vsel %vm319, %v284, 0
      %v414 = vsel %vm319, %v285, 0
      %vm416 = vcmask 1043456
      %v418 = vsel %vm416, %v318, 0
      %420 = vmatprep.subr.mxu0 0.0
      %421 = vmatpush1.msra.mxu0 %v418
      %422 = vmatprep.subr.mxu0 0.0
      %423 = vmatpush1.msra.mxu0 0.0
      %424 = vmatprep.subr.mxu0 0.0
      %425 = vmatpush1.msra.mxu0 0.0
      %426 = vmatprep.subr.mxu0 0.0
      %427 = vmatpush1.msra.mxu0 0.0
      %428 = vmatprep.subr.mxu0 0.0
      %429 = vmatpush1.msra.mxu0 0.0
      %430 = vmatprep.subr.mxu0 0.0
      %431 = vmatpush1.msra.mxu0 0.0
      %432 = vmatprep.subr.mxu0 0.0
      %433 = vmatpush1.msra.mxu0 0.0
      %434 = vmatprep.subr.mxu0 0.0
      %435 = vmatpush1.msra.mxu0 0.0
      %436 = vmatprep.subr.mxu0 0.0
      %437 = vmatpush1.msra.mxu0 0.0
      %438 = vmatprep.subr.mxu0 0.0
      %439 = vmatpush1.msra.mxu0 0.0
      %440 = vmatprep.subr.mxu0 0.0
      %441 = vmatpush1.msra.mxu0 0.0
      %442 = vmatprep.subr.mxu0 0.0
      %443 = vmatpush1.msra.mxu0 0.0
      %444 = vmatprep.subr.mxu0 0.0
      %445 = vmatpush1.msra.mxu0 0.0
      %446 = vmatprep.subr.mxu0 0.0
      %447 = vmatpush1.msra.mxu0 0.0
      %448 = vmatprep.subr.mxu0 0.0
      %449 = vmatpush1.msra.mxu0 0.0
      %450 = vmatprep.subr.mxu0 0.0
      %451 = vmatpush1.msra.mxu0 0.0
      %452 = vmatprep.subr.mxu0 0.0
      %453 = vmatpush1.msra.mxu0 0.0
      %454 = vmatprep.subr.mxu0 0.0
      %455 = vmatpush1.msra.mxu0 0.0
      %456 = vmatprep.subr.mxu0 0.0
      %457 = vmatpush1.msra.mxu0 0.0
      %458 = vmatprep.subr.mxu0 0.0
      %459 = vmatpush1.msra.mxu0 0.0
      %460 = vmatprep.subr.mxu0 0.0
      %461 = vmatpush1.msra.mxu0 0.0
      %462 = vmatprep.subr.mxu0 0.0
      %463 = vmatpush1.msra.mxu0 0.0
      %464 = vmatprep.subr.mxu0 0.0
      %465 = vmatpush1.msra.mxu0 0.0
      %466 = vmatprep.subr.mxu0 0.0
      %467 = vmatpush1.msra.mxu0 0.0
      %468 = vmatprep.subr.mxu0 0.0
      %469 = vmatpush1.msra.mxu0 0.0
      %470 = vmatprep.subr.mxu0 0.0
      %471 = vmatpush1.msra.mxu0 0.0
      %472 = vmatprep.subr.mxu0 0.0
      %473 = vmatpush1.msra.mxu0 0.0
      %474 = vmatprep.subr.mxu0 0.0
      %475 = vmatpush1.msra.mxu0 0.0
      %476 = vmatprep.subr.mxu0 0.0
      %477 = vmatpush1.msra.mxu0 0.0
      %478 = vmatprep.subr.mxu0 0.0
      %479 = vmatpush1.msra.mxu0 0.0
      %480 = vmatprep.subr.mxu0 0.0
      %481 = vmatpush1.msra.mxu0 0.0
      %482 = vmatprep.subr.mxu0 0.0
      %483 = vmatpush1.msra.mxu0 0.0
      %484 = vmatprep.mubr.f32.mxu0 0.0
      %485 = vmatmul.mubr.f32.gmra.mrb[0].mxu0 %v321
      %v486 = vpop.f32.mrb[0].mxu0
      %v487 = vadd.f32 0.0, %v486
      %v488 = vpop.f32.mrb[0].mxu0
      %489 = vmatprep.mubr.f32.mxu0 0.0
      %490 = vmatmul.mubr.f32.gmra.mrb[0].mxu0 %v324
      %v491 = vpop.f32.mrb[0].mxu0
      %v492 = vadd.f32 0.0, %v491
      %v493 = vpop.f32.mrb[0].mxu0
      %494 = vmatprep.mubr.f32.mxu0 0.0
      %495 = vmatmul.mubr.f32.gmra.mrb[0].mxu0 %v327
      %v496 = vpop.f32.mrb[0].mxu0
      %v497 = vadd.f32 0.0, %v496
      %v498 = vpop.f32.mrb[0].mxu0
      %499 = vmatprep.mubr.f32.mxu0 0.0
      %500 = vmatmul.mubr.f32.gmra.mrb[0].mxu0 %v330
      %v501 = vpop.f32.mrb[0].mxu0
      %v502 = vadd.f32 0.0, %v501
      %v503 = vpop.f32.mrb[0].mxu0
      %504 = vmatprep.mubr.f32.mxu0 0.0
      %505 = vmatmul.mubr.f32.gmra.mrb[0].mxu0 %v333
      %v506 = vpop.f32.mrb[0].mxu0
      %v507 = vadd.f32 0.0, %v506
      %v508 = vpop.f32.mrb[0].mxu0
      %509 = vmatprep.mubr.f32.mxu0 0.0
      %510 = vmatmul.mubr.f32.gmra.mrb[0].mxu0 %v336
      %v511 = vpop.f32.mrb[0].mxu0
      %v512 = vadd.f32 0.0, %v511
      %v513 = vpop.f32.mrb[0].mxu0
      %514 = vmatprep.mubr.f32.mxu0 0.0
      %515 = vmatmul.mubr.f32.gmra.mrb[0].mxu0 %v339
      %v516 = vpop.f32.mrb[0].mxu0
      %v517 = vadd.f32 0.0, %v516
      %v518 = vpop.f32.mrb[0].mxu0
      %519 = vmatprep.mubr.f32.mxu0 0.0
      %520 = vmatmul.mubr.f32.gmra.mrb[0].mxu0 %v342
      %v521 = vpop.f32.mrb[0].mxu0
      %v522 = vadd.f32 0.0, %v521
      %v523 = vpop.f32.mrb[0].mxu0
      %524 = vmatprep.mubr.f32.mxu0 0.0
      %525 = vmatmul.mubr.f32.gmra.mrb[0].mxu0 %v345
      %v526 = vpop.f32.mrb[0].mxu0
      %v527 = vadd.f32 0.0, %v526
      %v528 = vpop.f32.mrb[0].mxu0
      %529 = vmatprep.mubr.f32.mxu0 0.0
      %530 = vmatmul.mubr.f32.gmra.mrb[0].mxu0 %v348
      %v531 = vpop.f32.mrb[0].mxu0
      %v532 = vadd.f32 0.0, %v531
      %v533 = vpop.f32.mrb[0].mxu0
      %534 = vmatprep.mubr.f32.mxu0 0.0
      %535 = vmatmul.mubr.f32.gmra.mrb[0].mxu0 %v351
      %v536 = vpop.f32.mrb[0].mxu0
      %v537 = vadd.f32 0.0, %v536
      %v538 = vpop.f32.mrb[0].mxu0
      %539 = vmatprep.mubr.f32.mxu0 0.0
      %540 = vmatmul.mubr.f32.gmra.mrb[0].mxu0 %v354
      %v541 = vpop.f32.mrb[0].mxu0
      %v542 = vadd.f32 0.0, %v541
      %v543 = vpop.f32.mrb[0].mxu0
      %544 = vmatprep.mubr.f32.mxu0 0.0
      %545 = vmatmul.mubr.f32.gmra.mrb[0].mxu0 %v357
      %v546 = vpop.f32.mrb[0].mxu0
      %v547 = vadd.f32 0.0, %v546
      %v548 = vpop.f32.mrb[0].mxu0
      %549 = vmatprep.mubr.f32.mxu0 0.0
      %550 = vmatmul.mubr.f32.gmra.mrb[0].mxu0 %v360
      %v551 = vpop.f32.mrb[0].mxu0
      %v552 = vadd.f32 0.0, %v551
      %v553 = vpop.f32.mrb[0].mxu0
      %554 = vmatprep.mubr.f32.mxu0 0.0
      %555 = vmatmul.mubr.f32.gmra.mrb[0].mxu0 %v363
      %v556 = vpop.f32.mrb[0].mxu0
      %v557 = vadd.f32 0.0, %v556
      %v558 = vpop.f32.mrb[0].mxu0
      %559 = vmatprep.mubr.f32.mxu0 0.0
      %560 = vmatmul.mubr.f32.gmra.mrb[0].mxu0 %v366
      %v561 = vpop.f32.mrb[0].mxu0
      %v562 = vadd.f32 0.0, %v561
      %v563 = vpop.f32.mrb[0].mxu0
      %564 = vmatprep.mubr.f32.mxu0 0.0
      %565 = vmatmul.mubr.f32.gmra.mrb[0].mxu0 %v369
      %v566 = vpop.f32.mrb[0].mxu0
      %v567 = vadd.f32 0.0, %v566
      %v568 = vpop.f32.mrb[0].mxu0
      %569 = vmatprep.mubr.f32.mxu0 0.0
      %570 = vmatmul.mubr.f32.gmra.mrb[0].mxu0 %v372
      %v571 = vpop.f32.mrb[0].mxu0
      %v572 = vadd.f32 0.0, %v571
      %v573 = vpop.f32.mrb[0].mxu0
      %574 = vmatprep.mubr.f32.mxu0 0.0
      %575 = vmatmul.mubr.f32.gmra.mrb[0].mxu0 %v375
      %v576 = vpop.f32.mrb[0].mxu0
      %v577 = vadd.f32 0.0, %v576
      %v578 = vpop.f32.mrb[0].mxu0
      %579 = vmatprep.mubr.f32.mxu0 0.0
      %580 = vmatmul.mubr.f32.gmra.mrb[0].mxu0 %v378
      %v581 = vpop.f32.mrb[0].mxu0
      %v582 = vadd.f32 0.0, %v581
      %v583 = vpop.f32.mrb[0].mxu0
      %584 = vmatprep.mubr.f32.mxu0 0.0
      %585 = vmatmul.mubr.f32.gmra.mrb[0].mxu0 %v381
      %v586 = vpop.f32.mrb[0].mxu0
      %v587 = vadd.f32 0.0, %v586
      %v588 = vpop.f32.mrb[0].mxu0
      %589 = vmatprep.mubr.f32.mxu0 0.0
      %590 = vmatmul.mubr.f32.gmra.mrb[0].mxu0 %v384
      %v591 = vpop.f32.mrb[0].mxu0
      %v592 = vadd.f32 0.0, %v591
      %v593 = vpop.f32.mrb[0].mxu0
      %594 = vmatprep.mubr.f32.mxu0 0.0
      %595 = vmatmul.mubr.f32.gmra.mrb[0].mxu0 %v387
      %v596 = vpop.f32.mrb[0].mxu0
      %v597 = vadd.f32 0.0, %v596
      %v598 = vpop.f32.mrb[0].mxu0
      %599 = vmatprep.mubr.f32.mxu0 0.0
      %600 = vmatmul.mubr.f32.gmra.mrb[0].mxu0 %v390
      %v601 = vpop.f32.mrb[0].mxu0
      %v602 = vadd.f32 0.0, %v601
      %v603 = vpop.f32.mrb[0].mxu0
      %604 = vmatprep.mubr.f32.mxu0 0.0
      %605 = vmatmul.mubr.f32.gmra.mrb[0].mxu0 %v393
      %v606 = vpop.f32.mrb[0].mxu0
      %v607 = vadd.f32 0.0, %v606
      %v608 = vpop.f32.mrb[0].mxu0
      %609 = vmatprep.mubr.f32.mxu0 0.0
      %610 = vmatmul.mubr.f32.gmra.mrb[0].mxu0 %v396
      %v611 = vpop.f32.mrb[0].mxu0
      %v612 = vadd.f32 0.0, %v611
      %v613 = vpop.f32.mrb[0].mxu0
      %614 = vmatprep.mubr.f32.mxu0 0.0
      %615 = vmatmul.mubr.f32.gmra.mrb[0].mxu0 %v399
      %v616 = vpop.f32.mrb[0].mxu0
      %v617 = vadd.f32 0.0, %v616
      %v618 = vpop.f32.mrb[0].mxu0
      %619 = vmatprep.mubr.f32.mxu0 0.0
      %620 = vmatmul.mubr.f32.gmra.mrb[0].mxu0 %v402
      %v621 = vpop.f32.mrb[0].mxu0
      %v622 = vadd.f32 0.0, %v621
      %v623 = vpop.f32.mrb[0].mxu0
      %624 = vmatprep.mubr.f32.mxu0 0.0
      %625 = vmatmul.mubr.f32.gmra.mrb[0].mxu0 %v405
      %v626 = vpop.f32.mrb[0].mxu0
      %v627 = vadd.f32 0.0, %v626
      %v628 = vpop.f32.mrb[0].mxu0
      %629 = vmatprep.mubr.f32.mxu0 0.0
      %630 = vmatmul.mubr.f32.gmra.mrb[0].mxu0 %v408
      %v631 = vpop.f32.mrb[0].mxu0
      %v632 = vadd.f32 0.0, %v631
      %v633 = vpop.f32.mrb[0].mxu0
      %634 = vmatprep.mubr.f32.mxu0 0.0
      %635 = vmatmul.mubr.f32.gmra.mrb[0].mxu0 %v411
      %v636 = vpop.f32.mrb[0].mxu0
      %v637 = vadd.f32 0.0, %v636
      %v638 = vpop.f32.mrb[0].mxu0
      %639 = vmatprep.mubr.f32.mxu0 0.0
      %640 = vmatmul.mubr.f32.gmra.mrb[0].mxu0 %v414
      %v641 = vpop.f32.mrb[0].mxu0
      %v642 = vadd.f32 0.0, %v641
      %v643 = vpop.f32.mrb[0].mxu0
      %644 = vdwg.mxu0
      %v645 = vadd.f32 %v286, %v487
      %v646 = vadd.f32 %v287, %v492
      %v647 = vadd.f32 %v288, %v497
      %v648 = vadd.f32 %v289, %v502
      %v649 = vadd.f32 %v290, %v507
      %v650 = vadd.f32 %v291, %v512
      %v651 = vadd.f32 %v292, %v517
      %v652 = vadd.f32 %v293, %v522
      %v653 = vadd.f32 %v294, %v527
      %v654 = vadd.f32 %v295, %v532
      %v655 = vadd.f32 %v296, %v537
      %v656 = vadd.f32 %v297, %v542
      %v657 = vadd.f32 %v298, %v547
      %v658 = vadd.f32 %v299, %v552
      %v659 = vadd.f32 %v300, %v557
      %v660 = vadd.f32 %v301, %v562
      %v661 = vadd.f32 %v302, %v567
      %v662 = vadd.f32 %v303, %v572
      %v663 = vadd.f32 %v304, %v577
      %v664 = vadd.f32 %v305, %v582
      %v665 = vadd.f32 %v306, %v587
      %v666 = vadd.f32 %v307, %v592
      %v667 = vadd.f32 %v308, %v597
      %v668 = vadd.f32 %v309, %v602
      %v669 = vadd.f32 %v310, %v607
      %v670 = vadd.f32 %v311, %v612
      %v671 = vadd.f32 %v312, %v617
      %v672 = vadd.f32 %v313, %v622
      %v673 = vadd.f32 %v314, %v627
      %v674 = vadd.f32 %v315, %v632
      %v675 = vadd.f32 %v316, %v637
      %v676 = vadd.f32 %v317, %v642
      %677 = vst [vmem:[#allocation2] sm:$0xff] %v645
      %678 = vst [vmem:[#allocation2 + $0x8] sm:$0xff] %v646
      %679 = vst [vmem:[#allocation2 + $0x10] sm:$0xff] %v647
      %680 = vst [vmem:[#allocation2 + $0x18] sm:$0xff] %v648
      %681 = vst [vmem:[#allocation2 + $0x20] sm:$0xff] %v649
      %682 = vst [vmem:[#allocation2 + $0x28] sm:$0xff] %v650
      %683 = vst [vmem:[#allocation2 + $0x30] sm:$0xff] %v651
      %684 = vst [vmem:[#allocation2 + $0x38] sm:$0xff] %v652
      %685 = vst [vmem:[#allocation2 + $0x40] sm:$0xff] %v653
      %686 = vst [vmem:[#allocation2 + $0x48] sm:$0xff] %v654
      %687 = vst [vmem:[#allocation2 + $0x50] sm:$0xff] %v655
      %688 = vst [vmem:[#allocation2 + $0x58] sm:$0xff] %v656
      %689 = vst [vmem:[#allocation2 + $0x60] sm:$0xff] %v657
      %690 = vst [vmem:[#allocation2 + $0x68] sm:$0xff] %v658
      %691 = vst [vmem:[#allocation2 + $0x70] sm:$0xff] %v659
      %692 = vst [vmem:[#allocation2 + $0x78] sm:$0xff] %v660
      %693 = vst [vmem:[#allocation2 + $0x80] sm:$0xff] %v661
      %694 = vst [vmem:[#allocation2 + $0x88] sm:$0xff] %v662
      %695 = vst [vmem:[#allocation2 + $0x90] sm:$0xff] %v663
      %696 = vst [vmem:[#allocation2 + $0x98] sm:$0xff] %v664
      %697 = vst [vmem:[#allocation2 + $0xa0] sm:$0xff] %v665
      %698 = vst [vmem:[#allocation2 + $0xa8] sm:$0xff] %v666
      %699 = vst [vmem:[#allocation2 + $0xb0] sm:$0xff] %v667
      %700 = vst [vmem:[#allocation2 + $0xb8] sm:$0xff] %v668
      %701 = vst [vmem:[#allocation2 + $0xc0] sm:$0xff] %v669
      %702 = vst [vmem:[#allocation2 + $0xc8] sm:$0xff] %v670
      %703 = vst [vmem:[#allocation2 + $0xd0] sm:$0xff] %v671
      %704 = vst [vmem:[#allocation2 + $0xd8] sm:$0xff] %v672
      %705 = vst [vmem:[#allocation2 + $0xe0] sm:$0xff] %v673
      %706 = vst [vmem:[#allocation2 + $0xe8] sm:$0xff] %v674
      %707 = vst [vmem:[#allocation2 + $0xf0] sm:$0xff] %v675
      %708 = vst [vmem:[#allocation2 + $0xf8] sm:$0xff] %v676
      %v709 = vld [vmem:[%s206 + $0x1] sm:$0xff]
      %v710 = vld [vmem:[%s206 + $0x9] sm:$0xff]
      %v711 = vld [vmem:[%s206 + $0x19] sm:$0xff]
      %v712 = vld [vmem:[%s206 + $0x21] sm:$0xff]
      %v713 = vld [vmem:[%s206 + $0x31] sm:$0xff]
      %v714 = vld [vmem:[%s206 + $0x39] sm:$0xff]
      %v715 = vld [vmem:[%s206 + $0x49] sm:$0xff]
      %v716 = vld [vmem:[%s206 + $0x51] sm:$0xff]
      %v717 = vld [vmem:[%s206 + $0x61] sm:$0xff]
      %v718 = vld [vmem:[%s206 + $0x69] sm:$0xff]
      %v719 = vld [vmem:[%s206 + $0x79] sm:$0xff]
      %v720 = vld [vmem:[%s206 + $0x81] sm:$0xff]
      %v721 = vld [vmem:[%s206 + $0x91] sm:$0xff]
      %v722 = vld [vmem:[%s206 + $0x99] sm:$0xff]
      %v723 = vld [vmem:[%s206 + $0xa9] sm:$0xff]
      %v724 = vld [vmem:[%s206 + $0xb1] sm:$0xff]
      %v725 = vld [vmem:[%s206 + $0xc1] sm:$0xff]
      %v726 = vld [vmem:[%s206 + $0xc9] sm:$0xff]
      %v727 = vld [vmem:[%s206 + $0xd9] sm:$0xff]
      %v728 = vld [vmem:[%s206 + $0xe1] sm:$0xff]
      %v729 = vld [vmem:[%s206 + $0xf1] sm:$0xff]
      %v730 = vld [vmem:[%s206 + $0xf9] sm:$0xff]
      %v731 = vld [vmem:[%s206 + $0x109] sm:$0xff]
      %v732 = vld [vmem:[%s206 + $0x111] sm:$0xff]
      %v733 = vld [vmem:[%s206 + $0x121] sm:$0xff]
      %v734 = vld [vmem:[%s206 + $0x129] sm:$0xff]
      %v735 = vld [vmem:[%s206 + $0x139] sm:$0xff]
      %v736 = vld [vmem:[%s206 + $0x141] sm:$0xff]
      %v737 = vld [vmem:[%s206 + $0x151] sm:$0xff]
      %v738 = vld [vmem:[%s206 + $0x159] sm:$0xff]
      %v739 = vld [vmem:[%s206 + $0x169] sm:$0xff]
      %v740 = vld [vmem:[%s206 + $0x171] sm:$0xff]
      %v741 = vld [vmem:[#allocation2] sm:$0xff]
      %v742 = vld [vmem:[#allocation2 + $0x8] sm:$0xff]
      %v743 = vld [vmem:[#allocation2 + $0x10] sm:$0xff]
      %v744 = vld [vmem:[#allocation2 + $0x18] sm:$0xff]
      %v745 = vld [vmem:[#allocation2 + $0x20] sm:$0xff]
      %v746 = vld [vmem:[#allocation2 + $0x28] sm:$0xff]
      %v747 = vld [vmem:[#allocation2 + $0x30] sm:$0xff]
      %v748 = vld [vmem:[#allocation2 + $0x38] sm:$0xff]
      %v749 = vld [vmem:[#allocation2 + $0x40] sm:$0xff]
      %v750 = vld [vmem:[#allocation2 + $0x48] sm:$0xff]
      %v751 = vld [vmem:[#allocation2 + $0x50] sm:$0xff]
      %v752 = vld [vmem:[#allocation2 + $0x58] sm:$0xff]
      %v753 = vld [vmem:[#allocation2 + $0x60] sm:$0xff]
      %v754 = vld [vmem:[#allocation2 + $0x68] sm:$0xff]
      %v755 = vld [vmem:[#allocation2 + $0x70] sm:$0xff]
      %v756 = vld [vmem:[#allocation2 + $0x78] sm:$0xff]
      %v757 = vld [vmem:[#allocation2 + $0x80] sm:$0xff]
      %v758 = vld [vmem:[#allocation2 + $0x88] sm:$0xff]
      %v759 = vld [vmem:[#allocation2 + $0x90] sm:$0xff]
      %v760 = vld [vmem:[#allocation2 + $0x98] sm:$0xff]
      %v761 = vld [vmem:[#allocation2 + $0xa0] sm:$0xff]
      %v762 = vld [vmem:[#allocation2 + $0xa8] sm:$0xff]
      %v763 = vld [vmem:[#allocation2 + $0xb0] sm:$0xff]
      %v764 = vld [vmem:[#allocation2 + $0xb8] sm:$0xff]
      %v765 = vld [vmem:[#allocation2 + $0xc0] sm:$0xff]
      %v766 = vld [vmem:[#allocation2 + $0xc8] sm:$0xff]
      %v767 = vld [vmem:[#allocation2 + $0xd0] sm:$0xff]
      %v768 = vld [vmem:[#allocation2 + $0xd8] sm:$0xff]
      %v769 = vld [vmem:[#allocation2 + $0xe0] sm:$0xff]
      %v770 = vld [vmem:[#allocation2 + $0xe8] sm:$0xff]
      %v771 = vld [vmem:[#allocation2 + $0xf0] sm:$0xff]
      %v772 = vld [vmem:[#allocation2 + $0xf8] sm:$0xff]
      %s773 = scalar_lea.vmem %s210, 4
      %v774 = vld [vmem:[%s773] sm:$0xf]
      %v776 = vsel %vm319, %v709, 0
      %v779 = vsel %vm319, %v710, 0
      %v782 = vsel %vm319, %v711, 0
      %v785 = vsel %vm319, %v712, 0
      %v788 = vsel %vm319, %v713, 0
      %v791 = vsel %vm319, %v714, 0
      %v794 = vsel %vm319, %v715, 0
      %v797 = vsel %vm319, %v716, 0
      %v800 = vsel %vm319, %v717, 0
      %v803 = vsel %vm319, %v718, 0
      %v806 = vsel %vm319, %v719, 0
      %v809 = vsel %vm319, %v720, 0
      %v812 = vsel %vm319, %v721, 0
      %v815 = vsel %vm319, %v722, 0
      %v818 = vsel %vm319, %v723, 0
      %v821 = vsel %vm319, %v724, 0
      %v824 = vsel %vm319, %v725, 0
      %v827 = vsel %vm319, %v726, 0
      %v830 = vsel %vm319, %v727, 0
      %v833 = vsel %vm319, %v728, 0
      %v836 = vsel %vm319, %v729, 0
      %v839 = vsel %vm319, %v730, 0
      %v842 = vsel %vm319, %v731, 0
      %v845 = vsel %vm319, %v732, 0
      %v848 = vsel %vm319, %v733, 0
      %v851 = vsel %vm319, %v734, 0
      %v854 = vsel %vm319, %v735, 0
      %v857 = vsel %vm319, %v736, 0
      %v860 = vsel %vm319, %v737, 0
      %v863 = vsel %vm319, %v738, 0
      %v866 = vsel %vm319, %v739, 0
      %v869 = vsel %vm319, %v740, 0
      %v872 = vsel %vm416, %v774, 0
      %874 = vmatprep.subr.mxu0 0.0
      %875 = vmatpush1.msra.mxu0 %v872
      %876 = vmatprep.subr.mxu0 0.0
      %877 = vmatpush1.msra.mxu0 0.0
      %878 = vmatprep.subr.mxu0 0.0
      %879 = vmatpush1.msra.mxu0 0.0
      %880 = vmatprep.subr.mxu0 0.0
      %881 = vmatpush1.msra.mxu0 0.0
      %882 = vmatprep.subr.mxu0 0.0
      %883 = vmatpush1.msra.mxu0 0.0
      %884 = vmatprep.subr.mxu0 0.0
      %885 = vmatpush1.msra.mxu0 0.0
      %886 = vmatprep.subr.mxu0 0.0
      %887 = vmatpush1.msra.mxu0 0.0
      %888 = vmatprep.subr.mxu0 0.0
      %889 = vmatpush1.msra.mxu0 0.0
      %890 = vmatprep.subr.mxu0 0.0
      %891 = vmatpush1.msra.mxu0 0.0
      %892 = vmatprep.subr.mxu0 0.0
      %893 = vmatpush1.msra.mxu0 0.0
      %894 = vmatprep.subr.mxu0 0.0
      %895 = vmatpush1.msra.mxu0 0.0
      %896 = vmatprep.subr.mxu0 0.0
      %897 = vmatpush1.msra.mxu0 0.0
      %898 = vmatprep.subr.mxu0 0.0
      %899 = vmatpush1.msra.mxu0 0.0
      %900 = vmatprep.subr.mxu0 0.0
      %901 = vmatpush1.msra.mxu0 0.0
      %902 = vmatprep.subr.mxu0 0.0
      %903 = vmatpush1.msra.mxu0 0.0
      %904 = vmatprep.subr.mxu0 0.0
      %905 = vmatpush1.msra.mxu0 0.0
      %906 = vmatprep.subr.mxu0 0.0
      %907 = vmatpush1.msra.mxu0 0.0
      %908 = vmatprep.subr.mxu0 0.0
      %909 = vmatpush1.msra.mxu0 0.0
      %910 = vmatprep.subr.mxu0 0.0
      %911 = vmatpush1.msra.mxu0 0.0
      %912 = vmatprep.subr.mxu0 0.0
      %913 = vmatpush1.msra.mxu0 0.0
      %914 = vmatprep.subr.mxu0 0.0
      %915 = vmatpush1.msra.mxu0 0.0
      %916 = vmatprep.subr.mxu0 0.0
      %917 = vmatpush1.msra.mxu0 0.0
      %918 = vmatprep.subr.mxu0 0.0
      %919 = vmatpush1.msra.mxu0 0.0
      %920 = vmatprep.subr.mxu0 0.0
      %921 = vmatpush1.msra.mxu0 0.0
      %922 = vmatprep.subr.mxu0 0.0
      %923 = vmatpush1.msra.mxu0 0.0
      %924 = vmatprep.subr.mxu0 0.0
      %925 = vmatpush1.msra.mxu0 0.0
      %926 = vmatprep.subr.mxu0 0.0
      %927 = vmatpush1.msra.mxu0 0.0
      %928 = vmatprep.subr.mxu0 0.0
      %929 = vmatpush1.msra.mxu0 0.0
      %930 = vmatprep.subr.mxu0 0.0
      %931 = vmatpush1.msra.mxu0 0.0
      %932 = vmatprep.subr.mxu0 0.0
      %933 = vmatpush1.msra.mxu0 0.0
      %934 = vmatprep.subr.mxu0 0.0
      %935 = vmatpush1.msra.mxu0 0.0
      %936 = vmatprep.subr.mxu0 0.0
      %937 = vmatpush1.msra.mxu0 0.0
      %938 = vmatprep.mubr.f32.mxu0 0.0
      %939 = vmatmul.mubr.f32.gmra.mrb[0].mxu0 %v776
      %v940 = vpop.f32.mrb[0].mxu0
      %v941 = vadd.f32 0.0, %v940
      %v942 = vpop.f32.mrb[0].mxu0
      %943 = vmatprep.mubr.f32.mxu0 0.0
      %944 = vmatmul.mubr.f32.gmra.mrb[0].mxu0 %v779
      %v945 = vpop.f32.mrb[0].mxu0
      %v946 = vadd.f32 0.0, %v945
      %v947 = vpop.f32.mrb[0].mxu0
      %948 = vmatprep.mubr.f32.mxu0 0.0
      %949 = vmatmul.mubr.f32.gmra.mrb[0].mxu0 %v782
      %v950 = vpop.f32.mrb[0].mxu0
      %v951 = vadd.f32 0.0, %v950
      %v952 = vpop.f32.mrb[0].mxu0
      %953 = vmatprep.mubr.f32.mxu0 0.0
      %954 = vmatmul.mubr.f32.gmra.mrb[0].mxu0 %v785
      %v955 = vpop.f32.mrb[0].mxu0
      %v956 = vadd.f32 0.0, %v955
      %v957 = vpop.f32.mrb[0].mxu0
      %958 = vmatprep.mubr.f32.mxu0 0.0
      %959 = vmatmul.mubr.f32.gmra.mrb[0].mxu0 %v788
      %v960 = vpop.f32.mrb[0].mxu0
      %v961 = vadd.f32 0.0, %v960
      %v962 = vpop.f32.mrb[0].mxu0
      %963 = vmatprep.mubr.f32.mxu0 0.0
      %964 = vmatmul.mubr.f32.gmra.mrb[0].mxu0 %v791
      %v965 = vpop.f32.mrb[0].mxu0
      %v966 = vadd.f32 0.0, %v965
      %v967 = vpop.f32.mrb[0].mxu0
      %968 = vmatprep.mubr.f32.mxu0 0.0
      %969 = vmatmul.mubr.f32.gmra.mrb[0].mxu0 %v794
      %v970 = vpop.f32.mrb[0].mxu0
      %v971 = vadd.f32 0.0, %v970
      %v972 = vpop.f32.mrb[0].mxu0
      %973 = vmatprep.mubr.f32.mxu0 0.0
      %974 = vmatmul.mubr.f32.gmra.mrb[0].mxu0 %v797
      %v975 = vpop.f32.mrb[0].mxu0
      %v976 = vadd.f32 0.0, %v975
      %v977 = vpop.f32.mrb[0].mxu0
      %978 = vmatprep.mubr.f32.mxu0 0.0
      %979 = vmatmul.mubr.f32.gmra.mrb[0].mxu0 %v800
      %v980 = vpop.f32.mrb[0].mxu0
      %v981 = vadd.f32 0.0, %v980
      %v982 = vpop.f32.mrb[0].mxu0
      %983 = vmatprep.mubr.f32.mxu0 0.0
      %984 = vmatmul.mubr.f32.gmra.mrb[0].mxu0 %v803
      %v985 = vpop.f32.mrb[0].mxu0
      %v986 = vadd.f32 0.0, %v985
      %v987 = vpop.f32.mrb[0].mxu0
      %988 = vmatprep.mubr.f32.mxu0 0.0
      %989 = vmatmul.mubr.f32.gmra.mrb[0].mxu0 %v806
      %v990 = vpop.f32.mrb[0].mxu0
      %v991 = vadd.f32 0.0, %v990
      %v992 = vpop.f32.mrb[0].mxu0
      %993 = vmatprep.mubr.f32.mxu0 0.0
      %994 = vmatmul.mubr.f32.gmra.mrb[0].mxu0 %v809
      %v995 = vpop.f32.mrb[0].mxu0
      %v996 = vadd.f32 0.0, %v995
      %v997 = vpop.f32.mrb[0].mxu0
      %998 = vmatprep.mubr.f32.mxu0 0.0
      %999 = vmatmul.mubr.f32.gmra.mrb[0].mxu0 %v812
      %v1000 = vpop.f32.mrb[0].mxu0
      %v1001 = vadd.f32 0.0, %v1000
      %v1002 = vpop.f32.mrb[0].mxu0
      %1003 = vmatprep.mubr.f32.mxu0 0.0
      %1004 = vmatmul.mubr.f32.gmra.mrb[0].mxu0 %v815
      %v1005 = vpop.f32.mrb[0].mxu0
      %v1006 = vadd.f32 0.0, %v1005
      %v1007 = vpop.f32.mrb[0].mxu0
      %1008 = vmatprep.mubr.f32.mxu0 0.0
      %1009 = vmatmul.mubr.f32.gmra.mrb[0].mxu0 %v818
      %v1010 = vpop.f32.mrb[0].mxu0
      %v1011 = vadd.f32 0.0, %v1010
      %v1012 = vpop.f32.mrb[0].mxu0
      %1013 = vmatprep.mubr.f32.mxu0 0.0
      %1014 = vmatmul.mubr.f32.gmra.mrb[0].mxu0 %v821
      %v1015 = vpop.f32.mrb[0].mxu0
      %v1016 = vadd.f32 0.0, %v1015
      %v1017 = vpop.f32.mrb[0].mxu0
      %1018 = vmatprep.mubr.f32.mxu0 0.0
      %1019 = vmatmul.mubr.f32.gmra.mrb[0].mxu0 %v824
      %v1020 = vpop.f32.mrb[0].mxu0
      %v1021 = vadd.f32 0.0, %v1020
      %v1022 = vpop.f32.mrb[0].mxu0
      %1023 = vmatprep.mubr.f32.mxu0 0.0
      %1024 = vmatmul.mubr.f32.gmra.mrb[0].mxu0 %v827
      %v1025 = vpop.f32.mrb[0].mxu0
      %v1026 = vadd.f32 0.0, %v1025
      %v1027 = vpop.f32.mrb[0].mxu0
      %1028 = vmatprep.mubr.f32.mxu0 0.0
      %1029 = vmatmul.mubr.f32.gmra.mrb[0].mxu0 %v830
      %v1030 = vpop.f32.mrb[0].mxu0
      %v1031 = vadd.f32 0.0, %v1030
      %v1032 = vpop.f32.mrb[0].mxu0
      %1033 = vmatprep.mubr.f32.mxu0 0.0
      %1034 = vmatmul.mubr.f32.gmra.mrb[0].mxu0 %v833
      %v1035 = vpop.f32.mrb[0].mxu0
      %v1036 = vadd.f32 0.0, %v1035
      %v1037 = vpop.f32.mrb[0].mxu0
      %1038 = vmatprep.mubr.f32.mxu0 0.0
      %1039 = vmatmul.mubr.f32.gmra.mrb[0].mxu0 %v836
      %v1040 = vpop.f32.mrb[0].mxu0
      %v1041 = vadd.f32 0.0, %v1040
      %v1042 = vpop.f32.mrb[0].mxu0
      %1043 = vmatprep.mubr.f32.mxu0 0.0
      %1044 = vmatmul.mubr.f32.gmra.mrb[0].mxu0 %v839
      %v1045 = vpop.f32.mrb[0].mxu0
      %v1046 = vadd.f32 0.0, %v1045
      %v1047 = vpop.f32.mrb[0].mxu0
      %1048 = vmatprep.mubr.f32.mxu0 0.0
      %1049 = vmatmul.mubr.f32.gmra.mrb[0].mxu0 %v842
      %v1050 = vpop.f32.mrb[0].mxu0
      %v1051 = vadd.f32 0.0, %v1050
      %v1052 = vpop.f32.mrb[0].mxu0
      %1053 = vmatprep.mubr.f32.mxu0 0.0
      %1054 = vmatmul.mubr.f32.gmra.mrb[0].mxu0 %v845
      %v1055 = vpop.f32.mrb[0].mxu0
      %v1056 = vadd.f32 0.0, %v1055
      %v1057 = vpop.f32.mrb[0].mxu0
      %1058 = vmatprep.mubr.f32.mxu0 0.0
      %1059 = vmatmul.mubr.f32.gmra.mrb[0].mxu0 %v848
      %v1060 = vpop.f32.mrb[0].mxu0
      %v1061 = vadd.f32 0.0, %v1060
      %v1062 = vpop.f32.mrb[0].mxu0
      %1063 = vmatprep.mubr.f32.mxu0 0.0
      %1064 = vmatmul.mubr.f32.gmra.mrb[0].mxu0 %v851
      %v1065 = vpop.f32.mrb[0].mxu0
      %v1066 = vadd.f32 0.0, %v1065
      %v1067 = vpop.f32.mrb[0].mxu0
      %1068 = vmatprep.mubr.f32.mxu0 0.0
      %1069 = vmatmul.mubr.f32.gmra.mrb[0].mxu0 %v854
      %v1070 = vpop.f32.mrb[0].mxu0
      %v1071 = vadd.f32 0.0, %v1070
      %v1072 = vpop.f32.mrb[0].mxu0
      %1073 = vmatprep.mubr.f32.mxu0 0.0
      %1074 = vmatmul.mubr.f32.gmra.mrb[0].mxu0 %v857
      %v1075 = vpop.f32.mrb[0].mxu0
      %v1076 = vadd.f32 0.0, %v1075
      %v1077 = vpop.f32.mrb[0].mxu0
      %1078 = vmatprep.mubr.f32.mxu0 0.0
      %1079 = vmatmul.mubr.f32.gmra.mrb[0].mxu0 %v860
      %v1080 = vpop.f32.mrb[0].mxu0
      %v1081 = vadd.f32 0.0, %v1080
      %v1082 = vpop.f32.mrb[0].mxu0
      %1083 = vmatprep.mubr.f32.mxu0 0.0
      %1084 = vmatmul.mubr.f32.gmra.mrb[0].mxu0 %v863
      %v1085 = vpop.f32.mrb[0].mxu0
      %v1086 = vadd.f32 0.0, %v1085
      %v1087 = vpop.f32.mrb[0].mxu0
      %1088 = vmatprep.mubr.f32.mxu0 0.0
      %1089 = vmatmul.mubr.f32.gmra.mrb[0].mxu0 %v866
      %v1090 = vpop.f32.mrb[0].mxu0
      %v1091 = vadd.f32 0.0, %v1090
      %v1092 = vpop.f32.mrb[0].mxu0
      %1093 = vmatprep.mubr.f32.mxu0 0.0
      %1094 = vmatmul.mubr.f32.gmra.mrb[0].mxu0 %v869
      %v1095 = vpop.f32.mrb[0].mxu0
      %v1096 = vadd.f32 0.0, %v1095
      %v1097 = vpop.f32.mrb[0].mxu0
      %1098 = vdwg.mxu0
      %v1099 = vadd.f32 %v741, %v941
      %v1100 = vadd.f32 %v742, %v946
      %v1101 = vadd.f32 %v743, %v951
      %v1102 = vadd.f32 %v744, %v956
      %v1103 = vadd.f32 %v745, %v961
      %v1104 = vadd.f32 %v746, %v966
      %v1105 = vadd.f32 %v747, %v971
      %v1106 = vadd.f32 %v748, %v976
      %v1107 = vadd.f32 %v749, %v981
      %v1108 = vadd.f32 %v750, %v986
      %v1109 = vadd.f32 %v751, %v991
      %v1110 = vadd.f32 %v752, %v996
      %v1111 = vadd.f32 %v753, %v1001
      %v1112 = vadd.f32 %v754, %v1006
      %v1113 = vadd.f32 %v755, %v1011
      %v1114 = vadd.f32 %v756, %v1016
      %v1115 = vadd.f32 %v757, %v1021
      %v1116 = vadd.f32 %v758, %v1026
      %v1117 = vadd.f32 %v759, %v1031
      %v1118 = vadd.f32 %v760, %v1036
      %v1119 = vadd.f32 %v761, %v1041
      %v1120 = vadd.f32 %v762, %v1046
      %v1121 = vadd.f32 %v763, %v1051
      %v1122 = vadd.f32 %v764, %v1056
      %v1123 = vadd.f32 %v765, %v1061
      %v1124 = vadd.f32 %v766, %v1066
      %v1125 = vadd.f32 %v767, %v1071
      %v1126 = vadd.f32 %v768, %v1076
      %v1127 = vadd.f32 %v769, %v1081
      %v1128 = vadd.f32 %v770, %v1086
      %v1129 = vadd.f32 %v771, %v1091
      %v1130 = vadd.f32 %v772, %v1096
      %1131 = vst [vmem:[#allocation2] sm:$0xff] %v1099
      %1132 = vst [vmem:[#allocation2 + $0x8] sm:$0xff] %v1100
      %1133 = vst [vmem:[#allocation2 + $0x10] sm:$0xff] %v1101
      %1134 = vst [vmem:[#allocation2 + $0x18] sm:$0xff] %v1102
      %1135 = vst [vmem:[#allocation2 + $0x20] sm:$0xff] %v1103
      %1136 = vst [vmem:[#allocation2 + $0x28] sm:$0xff] %v1104
      %1137 = vst [vmem:[#allocation2 + $0x30] sm:$0xff] %v1105
      %1138 = vst [vmem:[#allocation2 + $0x38] sm:$0xff] %v1106
      %1139 = vst [vmem:[#allocation2 + $0x40] sm:$0xff] %v1107
      %1140 = vst [vmem:[#allocation2 + $0x48] sm:$0xff] %v1108
      %1141 = vst [vmem:[#allocation2 + $0x50] sm:$0xff] %v1109
      %1142 = vst [vmem:[#allocation2 + $0x58] sm:$0xff] %v1110
      %1143 = vst [vmem:[#allocation2 + $0x60] sm:$0xff] %v1111
      %1144 = vst [vmem:[#allocation2 + $0x68] sm:$0xff] %v1112
      %1145 = vst [vmem:[#allocation2 + $0x70] sm:$0xff] %v1113
      %1146 = vst [vmem:[#allocation2 + $0x78] sm:$0xff] %v1114
      %1147 = vst [vmem:[#allocation2 + $0x80] sm:$0xff] %v1115
      %1148 = vst [vmem:[#allocation2 + $0x88] sm:$0xff] %v1116
      %1149 = vst [vmem:[#allocation2 + $0x90] sm:$0xff] %v1117
      %1150 = vst [vmem:[#allocation2 + $0x98] sm:$0xff] %v1118
      %1151 = vst [vmem:[#allocation2 + $0xa0] sm:$0xff] %v1119
      %1152 = vst [vmem:[#allocation2 + $0xa8] sm:$0xff] %v1120
      %1153 = vst [vmem:[#allocation2 + $0xb0] sm:$0xff] %v1121
      %1154 = vst [vmem:[#allocation2 + $0xb8] sm:$0xff] %v1122
      %1155 = vst [vmem:[#allocation2 + $0xc0] sm:$0xff] %v1123
      %1156 = vst [vmem:[#allocation2 + $0xc8] sm:$0xff] %v1124
      %1157 = vst [vmem:[#allocation2 + $0xd0] sm:$0xff] %v1125
      %1158 = vst [vmem:[#allocation2 + $0xd8] sm:$0xff] %v1126
      %1159 = vst [vmem:[#allocation2 + $0xe0] sm:$0xff] %v1127
      %1160 = vst [vmem:[#allocation2 + $0xe8] sm:$0xff] %v1128
      %1161 = vst [vmem:[#allocation2 + $0xf0] sm:$0xff] %v1129
      %1162 = vst [vmem:[#allocation2 + $0xf8] sm:$0xff] %v1130
      %v1163 = vld [vmem:[%s206 + $0x2] sm:$0xff]
      %v1164 = vld [vmem:[%s206 + $0xa] sm:$0xff]
      %v1165 = vld [vmem:[%s206 + $0x1a] sm:$0xff]
      %v1166 = vld [vmem:[%s206 + $0x22] sm:$0xff]
      %v1167 = vld [vmem:[%s206 + $0x32] sm:$0xff]
      %v1168 = vld [vmem:[%s206 + $0x3a] sm:$0xff]
      %v1169 = vld [vmem:[%s206 + $0x4a] sm:$0xff]
      %v1170 = vld [vmem:[%s206 + $0x52] sm:$0xff]
      %v1171 = vld [vmem:[%s206 + $0x62] sm:$0xff]
      %v1172 = vld [vmem:[%s206 + $0x6a] sm:$0xff]
      %v1173 = vld [vmem:[%s206 + $0x7a] sm:$0xff]
      %v1174 = vld [vmem:[%s206 + $0x82] sm:$0xff]
      %v1175 = vld [vmem:[%s206 + $0x92] sm:$0xff]
      %v1176 = vld [vmem:[%s206 + $0x9a] sm:$0xff]
      %v1177 = vld [vmem:[%s206 + $0xaa] sm:$0xff]
      %v1178 = vld [vmem:[%s206 + $0xb2] sm:$0xff]
      %v1179 = vld [vmem:[%s206 + $0xc2] sm:$0xff]
      %v1180 = vld [vmem:[%s206 + $0xca] sm:$0xff]
      %v1181 = vld [vmem:[%s206 + $0xda] sm:$0xff]
      %v1182 = vld [vmem:[%s206 + $0xe2] sm:$0xff]
      %v1183 = vld [vmem:[%s206 + $0xf2] sm:$0xff]
      %v1184 = vld [vmem:[%s206 + $0xfa] sm:$0xff]
      %v1185 = vld [vmem:[%s206 + $0x10a] sm:$0xff]
      %v1186 = vld [vmem:[%s206 + $0x112] sm:$0xff]
      %v1187 = vld [vmem:[%s206 + $0x122] sm:$0xff]
      %v1188 = vld [vmem:[%s206 + $0x12a] sm:$0xff]
      %v1189 = vld [vmem:[%s206 + $0x13a] sm:$0xff]
      %v1190 = vld [vmem:[%s206 + $0x142] sm:$0xff]
      %v1191 = vld [vmem:[%s206 + $0x152] sm:$0xff]
      %v1192 = vld [vmem:[%s206 + $0x15a] sm:$0xff]
      %v1193 = vld [vmem:[%s206 + $0x16a] sm:$0xff]
      %v1194 = vld [vmem:[%s206 + $0x172] sm:$0xff]
      %v1195 = vld [vmem:[#allocation2] sm:$0xff]
      %v1196 = vld [vmem:[#allocation2 + $0x8] sm:$0xff]
      %v1197 = vld [vmem:[#allocation2 + $0x10] sm:$0xff]
      %v1198 = vld [vmem:[#allocation2 + $0x18] sm:$0xff]
      %v1199 = vld [vmem:[#allocation2 + $0x20] sm:$0xff]
      %v1200 = vld [vmem:[#allocation2 + $0x28] sm:$0xff]
      %v1201 = vld [vmem:[#allocation2 + $0x30] sm:$0xff]
      %v1202 = vld [vmem:[#allocation2 + $0x38] sm:$0xff]
      %v1203 = vld [vmem:[#allocation2 + $0x40] sm:$0xff]
      %v1204 = vld [vmem:[#allocation2 + $0x48] sm:$0xff]
      %v1205 = vld [vmem:[#allocation2 + $0x50] sm:$0xff]
      %v1206 = vld [vmem:[#allocation2 + $0x58] sm:$0xff]
      %v1207 = vld [vmem:[#allocation2 + $0x60] sm:$0xff]
      %v1208 = vld [vmem:[#allocation2 + $0x68] sm:$0xff]
      %v1209 = vld [vmem:[#allocation2 + $0x70] sm:$0xff]
      %v1210 = vld [vmem:[#allocation2 + $0x78] sm:$0xff]
      %v1211 = vld [vmem:[#allocation2 + $0x80] sm:$0xff]
      %v1212 = vld [vmem:[#allocation2 + $0x88] sm:$0xff]
      %v1213 = vld [vmem:[#allocation2 + $0x90] sm:$0xff]
      %v1214 = vld [vmem:[#allocation2 + $0x98] sm:$0xff]
      %v1215 = vld [vmem:[#allocation2 + $0xa0] sm:$0xff]
      %v1216 = vld [vmem:[#allocation2 + $0xa8] sm:$0xff]
      %v1217 = vld [vmem:[#allocation2 + $0xb0] sm:$0xff]
      %v1218 = vld [vmem:[#allocation2 + $0xb8] sm:$0xff]
      %v1219 = vld [vmem:[#allocation2 + $0xc0] sm:$0xff]
      %v1220 = vld [vmem:[#allocation2 + $0xc8] sm:$0xff]
      %v1221 = vld [vmem:[#allocation2 + $0xd0] sm:$0xff]
      %v1222 = vld [vmem:[#allocation2 + $0xd8] sm:$0xff]
      %v1223 = vld [vmem:[#allocation2 + $0xe0] sm:$0xff]
      %v1224 = vld [vmem:[#allocation2 + $0xe8] sm:$0xff]
      %v1225 = vld [vmem:[#allocation2 + $0xf0] sm:$0xff]
      %v1226 = vld [vmem:[#allocation2 + $0xf8] sm:$0xff]
      %s1227 = scalar_lea.vmem %s210, 8
      %v1228 = vld [vmem:[%s1227] sm:$0xf]
      %v1230 = vsel %vm319, %v1163, 0
      %v1233 = vsel %vm319, %v1164, 0
      %v1236 = vsel %vm319, %v1165, 0
      %v1239 = vsel %vm319, %v1166, 0
      %v1242 = vsel %vm319, %v1167, 0
      %v1245 = vsel %vm319, %v1168, 0
      %v1248 = vsel %vm319, %v1169, 0
      %v1251 = vsel %vm319, %v1170, 0
      %v1254 = vsel %vm319, %v1171, 0
      %v1257 = vsel %vm319, %v1172, 0
      %v1260 = vsel %vm319, %v1173, 0
      %v1263 = vsel %vm319, %v1174, 0
      %v1266 = vsel %vm319, %v1175, 0
      %v1269 = vsel %vm319, %v1176, 0
      %v1272 = vsel %vm319, %v1177, 0
      %v1275 = vsel %vm319, %v1178, 0
      %v1278 = vsel %vm319, %v1179, 0
      %v1281 = vsel %vm319, %v1180, 0
      %v1284 = vsel %vm319, %v1181, 0
      %v1287 = vsel %vm319, %v1182, 0
      %v1290 = vsel %vm319, %v1183, 0
      %v1293 = vsel %vm319, %v1184, 0
      %v1296 = vsel %vm319, %v1185, 0
      %v1299 = vsel %vm319, %v1186, 0
      %v1302 = vsel %vm319, %v1187, 0
      %v1305 = vsel %vm319, %v1188, 0
      %v1308 = vsel %vm319, %v1189, 0
      %v1311 = vsel %vm319, %v1190, 0
      %v1314 = vsel %vm319, %v1191, 0
      %v1317 = vsel %vm319, %v1192, 0
      %v1320 = vsel %vm319, %v1193, 0
      %v1323 = vsel %vm319, %v1194, 0
      %v1326 = vsel %vm416, %v1228, 0
      %1328 = vmatprep.subr.mxu0 0.0
      %1329 = vmatpush1.msra.mxu0 %v1326
      %1330 = vmatprep.subr.mxu0 0.0
      %1331 = vmatpush1.msra.mxu0 0.0
      %1332 = vmatprep.subr.mxu0 0.0
      %1333 = vmatpush1.msra.mxu0 0.0
      %1334 = vmatprep.subr.mxu0 0.0
      %1335 = vmatpush1.msra.mxu0 0.0
      %1336 = vmatprep.subr.mxu0 0.0
      %1337 = vmatpush1.msra.mxu0 0.0
      %1338 = vmatprep.subr.mxu0 0.0
      %1339 = vmatpush1.msra.mxu0 0.0
      %1340 = vmatprep.subr.mxu0 0.0
      %1341 = vmatpush1.msra.mxu0 0.0
      %1342 = vmatprep.subr.mxu0 0.0
      %1343 = vmatpush1.msra.mxu0 0.0
      %1344 = vmatprep.subr.mxu0 0.0
      %1345 = vmatpush1.msra.mxu0 0.0
      %1346 = vmatprep.subr.mxu0 0.0
      %1347 = vmatpush1.msra.mxu0 0.0
      %1348 = vmatprep.subr.mxu0 0.0
      %1349 = vmatpush1.msra.mxu0 0.0
      %1350 = vmatprep.subr.mxu0 0.0
      %1351 = vmatpush1.msra.mxu0 0.0
      %1352 = vmatprep.subr.mxu0 0.0
      %1353 = vmatpush1.msra.mxu0 0.0
      %1354 = vmatprep.subr.mxu0 0.0
      %1355 = vmatpush1.msra.mxu0 0.0
      %1356 = vmatprep.subr.mxu0 0.0
      %1357 = vmatpush1.msra.mxu0 0.0
      %1358 = vmatprep.subr.mxu0 0.0
      %1359 = vmatpush1.msra.mxu0 0.0
      %1360 = vmatprep.subr.mxu0 0.0
      %1361 = vmatpush1.msra.mxu0 0.0
      %1362 = vmatprep.subr.mxu0 0.0
      %1363 = vmatpush1.msra.mxu0 0.0
      %1364 = vmatprep.subr.mxu0 0.0
      %1365 = vmatpush1.msra.mxu0 0.0
      %1366 = vmatprep.subr.mxu0 0.0
      %1367 = vmatpush1.msra.mxu0 0.0
      %1368 = vmatprep.subr.mxu0 0.0
      %1369 = vmatpush1.msra.mxu0 0.0
      %1370 = vmatprep.subr.mxu0 0.0
      %1371 = vmatpush1.msra.mxu0 0.0
      %1372 = vmatprep.subr.mxu0 0.0
      %1373 = vmatpush1.msra.mxu0 0.0
      %1374 = vmatprep.subr.mxu0 0.0
      %1375 = vmatpush1.msra.mxu0 0.0
      %1376 = vmatprep.subr.mxu0 0.0
      %1377 = vmatpush1.msra.mxu0 0.0
      %1378 = vmatprep.subr.mxu0 0.0
      %1379 = vmatpush1.msra.mxu0 0.0
      %1380 = vmatprep.subr.mxu0 0.0
      %1381 = vmatpush1.msra.mxu0 0.0
      %1382 = vmatprep.subr.mxu0 0.0
      %1383 = vmatpush1.msra.mxu0 0.0
      %1384 = vmatprep.subr.mxu0 0.0
      %1385 = vmatpush1.msra.mxu0 0.0
      %1386 = vmatprep.subr.mxu0 0.0
      %1387 = vmatpush1.msra.mxu0 0.0
      %1388 = vmatprep.subr.mxu0 0.0
      %1389 = vmatpush1.msra.mxu0 0.0
      %1390 = vmatprep.subr.mxu0 0.0
      %1391 = vmatpush1.msra.mxu0 0.0
      %1392 = vmatprep.mubr.f32.mxu0 0.0
      %1393 = vmatmul.mubr.f32.gmra.mrb[0].mxu0 %v1230
      %v1394 = vpop.f32.mrb[0].mxu0
      %v1395 = vadd.f32 0.0, %v1394
      %v1396 = vpop.f32.mrb[0].mxu0
      %1397 = vmatprep.mubr.f32.mxu0 0.0
      %1398 = vmatmul.mubr.f32.gmra.mrb[0].mxu0 %v1233
      %v1399 = vpop.f32.mrb[0].mxu0
      %v1400 = vadd.f32 0.0, %v1399
      %v1401 = vpop.f32.mrb[0].mxu0
      %1402 = vmatprep.mubr.f32.mxu0 0.0
      %1403 = vmatmul.mubr.f32.gmra.mrb[0].mxu0 %v1236
      %v1404 = vpop.f32.mrb[0].mxu0
      %v1405 = vadd.f32 0.0, %v1404
      %v1406 = vpop.f32.mrb[0].mxu0
      %1407 = vmatprep.mubr.f32.mxu0 0.0
      %1408 = vmatmul.mubr.f32.gmra.mrb[0].mxu0 %v1239
      %v1409 = vpop.f32.mrb[0].mxu0
      %v1410 = vadd.f32 0.0, %v1409
      %v1411 = vpop.f32.mrb[0].mxu0
      %1412 = vmatprep.mubr.f32.mxu0 0.0
      %1413 = vmatmul.mubr.f32.gmra.mrb[0].mxu0 %v1242
      %v1414 = vpop.f32.mrb[0].mxu0
      %v1415 = vadd.f32 0.0, %v1414
      %v1416 = vpop.f32.mrb[0].mxu0
      %1417 = vmatprep.mubr.f32.mxu0 0.0
      %1418 = vmatmul.mubr.f32.gmra.mrb[0].mxu0 %v1245
      %v1419 = vpop.f32.mrb[0].mxu0
      %v1420 = vadd.f32 0.0, %v1419
      %v1421 = vpop.f32.mrb[0].mxu0
      %1422 = vmatprep.mubr.f32.mxu0 0.0
      %1423 = vmatmul.mubr.f32.gmra.mrb[0].mxu0 %v1248
      %v1424 = vpop.f32.mrb[0].mxu0
      %v1425 = vadd.f32 0.0, %v1424
      %v1426 = vpop.f32.mrb[0].mxu0
      %1427 = vmatprep.mubr.f32.mxu0 0.0
      %1428 = vmatmul.mubr.f32.gmra.mrb[0].mxu0 %v1251
      %v1429 = vpop.f32.mrb[0].mxu0
      %v1430 = vadd.f32 0.0, %v1429
      %v1431 = vpop.f32.mrb[0].mxu0
      %1432 = vmatprep.mubr.f32.mxu0 0.0
      %1433 = vmatmul.mubr.f32.gmra.mrb[0].mxu0 %v1254
      %v1434 = vpop.f32.mrb[0].mxu0
      %v1435 = vadd.f32 0.0, %v1434
      %v1436 = vpop.f32.mrb[0].mxu0
      %1437 = vmatprep.mubr.f32.mxu0 0.0
      %1438 = vmatmul.mubr.f32.gmra.mrb[0].mxu0 %v1257
      %v1439 = vpop.f32.mrb[0].mxu0
      %v1440 = vadd.f32 0.0, %v1439
      %v1441 = vpop.f32.mrb[0].mxu0
      %1442 = vmatprep.mubr.f32.mxu0 0.0
      %1443 = vmatmul.mubr.f32.gmra.mrb[0].mxu0 %v1260
      %v1444 = vpop.f32.mrb[0].mxu0
      %v1445 = vadd.f32 0.0, %v1444
      %v1446 = vpop.f32.mrb[0].mxu0
      %1447 = vmatprep.mubr.f32.mxu0 0.0
      %1448 = vmatmul.mubr.f32.gmra.mrb[0].mxu0 %v1263
      %v1449 = vpop.f32.mrb[0].mxu0
      %v1450 = vadd.f32 0.0, %v1449
      %v1451 = vpop.f32.mrb[0].mxu0
      %1452 = vmatprep.mubr.f32.mxu0 0.0
      %1453 = vmatmul.mubr.f32.gmra.mrb[0].mxu0 %v1266
      %v1454 = vpop.f32.mrb[0].mxu0
      %v1455 = vadd.f32 0.0, %v1454
      %v1456 = vpop.f32.mrb[0].mxu0
      %1457 = vmatprep.mubr.f32.mxu0 0.0
      %1458 = vmatmul.mubr.f32.gmra.mrb[0].mxu0 %v1269
      %v1459 = vpop.f32.mrb[0].mxu0
      %v1460 = vadd.f32 0.0, %v1459
      %v1461 = vpop.f32.mrb[0].mxu0
      %1462 = vmatprep.mubr.f32.mxu0 0.0
      %1463 = vmatmul.mubr.f32.gmra.mrb[0].mxu0 %v1272
      %v1464 = vpop.f32.mrb[0].mxu0
      %v1465 = vadd.f32 0.0, %v1464
      %v1466 = vpop.f32.mrb[0].mxu0
      %1467 = vmatprep.mubr.f32.mxu0 0.0
      %1468 = vmatmul.mubr.f32.gmra.mrb[0].mxu0 %v1275
      %v1469 = vpop.f32.mrb[0].mxu0
      %v1470 = vadd.f32 0.0, %v1469
      %v1471 = vpop.f32.mrb[0].mxu0
      %1472 = vmatprep.mubr.f32.mxu0 0.0
      %1473 = vmatmul.mubr.f32.gmra.mrb[0].mxu0 %v1278
      %v1474 = vpop.f32.mrb[0].mxu0
      %v1475 = vadd.f32 0.0, %v1474
      %v1476 = vpop.f32.mrb[0].mxu0
      %1477 = vmatprep.mubr.f32.mxu0 0.0
      %1478 = vmatmul.mubr.f32.gmra.mrb[0].mxu0 %v1281
      %v1479 = vpop.f32.mrb[0].mxu0
      %v1480 = vadd.f32 0.0, %v1479
      %v1481 = vpop.f32.mrb[0].mxu0
      %1482 = vmatprep.mubr.f32.mxu0 0.0
      %1483 = vmatmul.mubr.f32.gmra.mrb[0].mxu0 %v1284
      %v1484 = vpop.f32.mrb[0].mxu0
      %v1485 = vadd.f32 0.0, %v1484
      %v1486 = vpop.f32.mrb[0].mxu0
      %1487 = vmatprep.mubr.f32.mxu0 0.0
      %1488 = vmatmul.mubr.f32.gmra.mrb[0].mxu0 %v1287
      %v1489 = vpop.f32.mrb[0].mxu0
      %v1490 = vadd.f32 0.0, %v1489
      %v1491 = vpop.f32.mrb[0].mxu0
      %1492 = vmatprep.mubr.f32.mxu0 0.0
      %1493 = vmatmul.mubr.f32.gmra.mrb[0].mxu0 %v1290
      %v1494 = vpop.f32.mrb[0].mxu0
      %v1495 = vadd.f32 0.0, %v1494
      %v1496 = vpop.f32.mrb[0].mxu0
      %1497 = vmatprep.mubr.f32.mxu0 0.0
      %1498 = vmatmul.mubr.f32.gmra.mrb[0].mxu0 %v1293
      %v1499 = vpop.f32.mrb[0].mxu0
      %v1500 = vadd.f32 0.0, %v1499
      %v1501 = vpop.f32.mrb[0].mxu0
      %1502 = vmatprep.mubr.f32.mxu0 0.0
      %1503 = vmatmul.mubr.f32.gmra.mrb[0].mxu0 %v1296
      %v1504 = vpop.f32.mrb[0].mxu0
      %v1505 = vadd.f32 0.0, %v1504
      %v1506 = vpop.f32.mrb[0].mxu0
      %1507 = vmatprep.mubr.f32.mxu0 0.0
      %1508 = vmatmul.mubr.f32.gmra.mrb[0].mxu0 %v1299
      %v1509 = vpop.f32.mrb[0].mxu0
      %v1510 = vadd.f32 0.0, %v1509
      %v1511 = vpop.f32.mrb[0].mxu0
      %1512 = vmatprep.mubr.f32.mxu0 0.0
      %1513 = vmatmul.mubr.f32.gmra.mrb[0].mxu0 %v1302
      %v1514 = vpop.f32.mrb[0].mxu0
      %v1515 = vadd.f32 0.0, %v1514
      %v1516 = vpop.f32.mrb[0].mxu0
      %1517 = vmatprep.mubr.f32.mxu0 0.0
      %1518 = vmatmul.mubr.f32.gmra.mrb[0].mxu0 %v1305
      %v1519 = vpop.f32.mrb[0].mxu0
      %v1520 = vadd.f32 0.0, %v1519
      %v1521 = vpop.f32.mrb[0].mxu0
      %1522 = vmatprep.mubr.f32.mxu0 0.0
      %1523 = vmatmul.mubr.f32.gmra.mrb[0].mxu0 %v1308
      %v1524 = vpop.f32.mrb[0].mxu0
      %v1525 = vadd.f32 0.0, %v1524
      %v1526 = vpop.f32.mrb[0].mxu0
      %1527 = vmatprep.mubr.f32.mxu0 0.0
      %1528 = vmatmul.mubr.f32.gmra.mrb[0].mxu0 %v1311
      %v1529 = vpop.f32.mrb[0].mxu0
      %v1530 = vadd.f32 0.0, %v1529
      %v1531 = vpop.f32.mrb[0].mxu0
      %1532 = vmatprep.mubr.f32.mxu0 0.0
      %1533 = vmatmul.mubr.f32.gmra.mrb[0].mxu0 %v1314
      %v1534 = vpop.f32.mrb[0].mxu0
      %v1535 = vadd.f32 0.0, %v1534
      %v1536 = vpop.f32.mrb[0].mxu0
      %1537 = vmatprep.mubr.f32.mxu0 0.0
      %1538 = vmatmul.mubr.f32.gmra.mrb[0].mxu0 %v1317
      %v1539 = vpop.f32.mrb[0].mxu0
      %v1540 = vadd.f32 0.0, %v1539
      %v1541 = vpop.f32.mrb[0].mxu0
      %1542 = vmatprep.mubr.f32.mxu0 0.0
      %1543 = vmatmul.mubr.f32.gmra.mrb[0].mxu0 %v1320
      %v1544 = vpop.f32.mrb[0].mxu0
      %v1545 = vadd.f32 0.0, %v1544
      %v1546 = vpop.f32.mrb[0].mxu0
      %1547 = vmatprep.mubr.f32.mxu0 0.0
      %1548 = vmatmul.mubr.f32.gmra.mrb[0].mxu0 %v1323
      %v1549 = vpop.f32.mrb[0].mxu0
      %v1550 = vadd.f32 0.0, %v1549
      %v1551 = vpop.f32.mrb[0].mxu0
      %1552 = vdwg.mxu0
      %v1553 = vadd.f32 %v1195, %v1395
      %v1554 = vadd.f32 %v1196, %v1400
      %v1555 = vadd.f32 %v1197, %v1405
      %v1556 = vadd.f32 %v1198, %v1410
      %v1557 = vadd.f32 %v1199, %v1415
      %v1558 = vadd.f32 %v1200, %v1420
      %v1559 = vadd.f32 %v1201, %v1425
      %v1560 = vadd.f32 %v1202, %v1430
      %v1561 = vadd.f32 %v1203, %v1435
      %v1562 = vadd.f32 %v1204, %v1440
      %v1563 = vadd.f32 %v1205, %v1445
      %v1564 = vadd.f32 %v1206, %v1450
      %v1565 = vadd.f32 %v1207, %v1455
      %v1566 = vadd.f32 %v1208, %v1460
      %v1567 = vadd.f32 %v1209, %v1465
      %v1568 = vadd.f32 %v1210, %v1470
      %v1569 = vadd.f32 %v1211, %v1475
      %v1570 = vadd.f32 %v1212, %v1480
      %v1571 = vadd.f32 %v1213, %v1485
      %v1572 = vadd.f32 %v1214, %v1490
      %v1573 = vadd.f32 %v1215, %v1495
      %v1574 = vadd.f32 %v1216, %v1500
      %v1575 = vadd.f32 %v1217, %v1505
      %v1576 = vadd.f32 %v1218, %v1510
      %v1577 = vadd.f32 %v1219, %v1515
      %v1578 = vadd.f32 %v1220, %v1520
      %v1579 = vadd.f32 %v1221, %v1525
      %v1580 = vadd.f32 %v1222, %v1530
      %v1581 = vadd.f32 %v1223, %v1535
      %v1582 = vadd.f32 %v1224, %v1540
      %v1583 = vadd.f32 %v1225, %v1545
      %v1584 = vadd.f32 %v1226, %v1550
      %1585 = vst [vmem:[#allocation2] sm:$0xff] %v1553
      %1586 = vst [vmem:[#allocation2 + $0x8] sm:$0xff] %v1554
      %1587 = vst [vmem:[#allocation2 + $0x10] sm:$0xff] %v1555
      %1588 = vst [vmem:[#allocation2 + $0x18] sm:$0xff] %v1556
      %1589 = vst [vmem:[#allocation2 + $0x20] sm:$0xff] %v1557
      %1590 = vst [vmem:[#allocation2 + $0x28] sm:$0xff] %v1558
      %1591 = vst [vmem:[#allocation2 + $0x30] sm:$0xff] %v1559
      %1592 = vst [vmem:[#allocation2 + $0x38] sm:$0xff] %v1560
      %1593 = vst [vmem:[#allocation2 + $0x40] sm:$0xff] %v1561
      %1594 = vst [vmem:[#allocation2 + $0x48] sm:$0xff] %v1562
      %1595 = vst [vmem:[#allocation2 + $0x50] sm:$0xff] %v1563
      %1596 = vst [vmem:[#allocation2 + $0x58] sm:$0xff] %v1564
      %1597 = vst [vmem:[#allocation2 + $0x60] sm:$0xff] %v1565
      %1598 = vst [vmem:[#allocation2 + $0x68] sm:$0xff] %v1566
      %1599 = vst [vmem:[#allocation2 + $0x70] sm:$0xff] %v1567
      %1600 = vst [vmem:[#allocation2 + $0x78] sm:$0xff] %v1568
      %1601 = vst [vmem:[#allocation2 + $0x80] sm:$0xff] %v1569
      %1602 = vst [vmem:[#allocation2 + $0x88] sm:$0xff] %v1570
      %1603 = vst [vmem:[#allocation2 + $0x90] sm:$0xff] %v1571
      %1604 = vst [vmem:[#allocation2 + $0x98] sm:$0xff] %v1572
      %1605 = vst [vmem:[#allocation2 + $0xa0] sm:$0xff] %v1573
      %1606 = vst [vmem:[#allocation2 + $0xa8] sm:$0xff] %v1574
      %1607 = vst [vmem:[#allocation2 + $0xb0] sm:$0xff] %v1575
      %1608 = vst [vmem:[#allocation2 + $0xb8] sm:$0xff] %v1576
      %1609 = vst [vmem:[#allocation2 + $0xc0] sm:$0xff] %v1577
      %1610 = vst [vmem:[#allocation2 + $0xc8] sm:$0xff] %v1578
      %1611 = vst [vmem:[#allocation2 + $0xd0] sm:$0xff] %v1579
      %1612 = vst [vmem:[#allocation2 + $0xd8] sm:$0xff] %v1580
      %1613 = vst [vmem:[#allocation2 + $0xe0] sm:$0xff] %v1581
      %1614 = vst [vmem:[#allocation2 + $0xe8] sm:$0xff] %v1582
      %1615 = vst [vmem:[#allocation2 + $0xf0] sm:$0xff] %v1583
      %1616 = vst [vmem:[#allocation2 + $0xf8] sm:$0xff] %v1584
      %s1617 = scalar_lea.vmem %s206, 24
      %v1618 = vld [vmem:[%s1617] sm:$0xff]
      %v1619 = vld [vmem:[%s1617 + $0x8] sm:$0xff]
      %v1620 = vld [vmem:[%s1617 + $0x18] sm:$0xff]
      %v1621 = vld [vmem:[%s1617 + $0x20] sm:$0xff]
      %v1622 = vld [vmem:[%s1617 + $0x30] sm:$0xff]
      %v1623 = vld [vmem:[%s1617 + $0x38] sm:$0xff]
      %v1624 = vld [vmem:[%s1617 + $0x48] sm:$0xff]
      %v1625 = vld [vmem:[%s1617 + $0x50] sm:$0xff]
      %v1626 = vld [vmem:[%s1617 + $0x60] sm:$0xff]
      %v1627 = vld [vmem:[%s1617 + $0x68] sm:$0xff]
      %v1628 = vld [vmem:[%s1617 + $0x78] sm:$0xff]
      %v1629 = vld [vmem:[%s1617 + $0x80] sm:$0xff]
      %v1630 = vld [vmem:[%s1617 + $0x90] sm:$0xff]
      %v1631 = vld [vmem:[%s1617 + $0x98] sm:$0xff]
      %v1632 = vld [vmem:[%s1617 + $0xa8] sm:$0xff]
      %v1633 = vld [vmem:[%s1617 + $0xb0] sm:$0xff]
      %v1634 = vld [vmem:[%s1617 + $0xc0] sm:$0xff]
      %v1635 = vld [vmem:[%s1617 + $0xc8] sm:$0xff]
      %v1636 = vld [vmem:[%s1617 + $0xd8] sm:$0xff]
      %v1637 = vld [vmem:[%s1617 + $0xe0] sm:$0xff]
      %v1638 = vld [vmem:[%s1617 + $0xf0] sm:$0xff]
      %v1639 = vld [vmem:[%s1617 + $0xf8] sm:$0xff]
      %v1640 = vld [vmem:[%s1617 + $0x108] sm:$0xff]
      %v1641 = vld [vmem:[%s1617 + $0x110] sm:$0xff]
      %v1642 = vld [vmem:[%s1617 + $0x120] sm:$0xff]
      %v1643 = vld [vmem:[%s1617 + $0x128] sm:$0xff]
      %v1644 = vld [vmem:[%s1617 + $0x138] sm:$0xff]
      %v1645 = vld [vmem:[%s1617 + $0x140] sm:$0xff]
      %v1646 = vld [vmem:[%s1617 + $0x150] sm:$0xff]
      %v1647 = vld [vmem:[%s1617 + $0x158] sm:$0xff]
      %v1648 = vld [vmem:[%s1617 + $0x168] sm:$0xff]
      %v1649 = vld [vmem:[%s1617 + $0x170] sm:$0xff]
      %v1650 = vld [vmem:[#allocation2] sm:$0xff]
      %v1651 = vld [vmem:[#allocation2 + $0x8] sm:$0xff]
      %v1652 = vld [vmem:[#allocation2 + $0x10] sm:$0xff]
      %v1653 = vld [vmem:[#allocation2 + $0x18] sm:$0xff]
      %v1654 = vld [vmem:[#allocation2 + $0x20] sm:$0xff]
      %v1655 = vld [vmem:[#allocation2 + $0x28] sm:$0xff]
      %v1656 = vld [vmem:[#allocation2 + $0x30] sm:$0xff]
      %v1657 = vld [vmem:[#allocation2 + $0x38] sm:$0xff]
      %v1658 = vld [vmem:[#allocation2 + $0x40] sm:$0xff]
      %v1659 = vld [vmem:[#allocation2 + $0x48] sm:$0xff]
      %v1660 = vld [vmem:[#allocation2 + $0x50] sm:$0xff]
      %v1661 = vld [vmem:[#allocation2 + $0x58] sm:$0xff]
      %v1662 = vld [vmem:[#allocation2 + $0x60] sm:$0xff]
      %v1663 = vld [vmem:[#allocation2 + $0x68] sm:$0xff]
      %v1664 = vld [vmem:[#allocation2 + $0x70] sm:$0xff]
      %v1665 = vld [vmem:[#allocation2 + $0x78] sm:$0xff]
      %v1666 = vld [vmem:[#allocation2 + $0x80] sm:$0xff]
      %v1667 = vld [vmem:[#allocation2 + $0x88] sm:$0xff]
      %v1668 = vld [vmem:[#allocation2 + $0x90] sm:$0xff]
      %v1669 = vld [vmem:[#allocation2 + $0x98] sm:$0xff]
      %v1670 = vld [vmem:[#allocation2 + $0xa0] sm:$0xff]
      %v1671 = vld [vmem:[#allocation2 + $0xa8] sm:$0xff]
      %v1672 = vld [vmem:[#allocation2 + $0xb0] sm:$0xff]
      %v1673 = vld [vmem:[#allocation2 + $0xb8] sm:$0xff]
      %v1674 = vld [vmem:[#allocation2 + $0xc0] sm:$0xff]
      %v1675 = vld [vmem:[#allocation2 + $0xc8] sm:$0xff]
      %v1676 = vld [vmem:[#allocation2 + $0xd0] sm:$0xff]
      %v1677 = vld [vmem:[#allocation2 + $0xd8] sm:$0xff]
      %v1678 = vld [vmem:[#allocation2 + $0xe0] sm:$0xff]
      %v1679 = vld [vmem:[#allocation2 + $0xe8] sm:$0xff]
      %v1680 = vld [vmem:[#allocation2 + $0xf0] sm:$0xff]
      %v1681 = vld [vmem:[#allocation2 + $0xf8] sm:$0xff]
      %s1682 = scalar_lea.vmem %s210, 12
      %v1683 = vld [vmem:[%s1682] sm:$0xf]
      %v1685 = vsel %vm319, %v1618, 0
      %v1688 = vsel %vm319, %v1619, 0
      %v1691 = vsel %vm319, %v1620, 0
      %v1694 = vsel %vm319, %v1621, 0
      %v1697 = vsel %vm319, %v1622, 0
      %v1700 = vsel %vm319, %v1623, 0
      %v1703 = vsel %vm319, %v1624, 0
      %v1706 = vsel %vm319, %v1625, 0
      %v1709 = vsel %vm319, %v1626, 0
      %v1712 = vsel %vm319, %v1627, 0
      %v1715 = vsel %vm319, %v1628, 0
      %v1718 = vsel %vm319, %v1629, 0
      %v1721 = vsel %vm319, %v1630, 0
      %v1724 = vsel %vm319, %v1631, 0
      %v1727 = vsel %vm319, %v1632, 0
      %v1730 = vsel %vm319, %v1633, 0
      %v1733 = vsel %vm319, %v1634, 0
      %v1736 = vsel %vm319, %v1635, 0
      %v1739 = vsel %vm319, %v1636, 0
      %v1742 = vsel %vm319, %v1637, 0
      %v1745 = vsel %vm319, %v1638, 0
      %v1748 = vsel %vm319, %v1639, 0
      %v1751 = vsel %vm319, %v1640, 0
      %v1754 = vsel %vm319, %v1641, 0
      %v1757 = vsel %vm319, %v1642, 0
      %v1760 = vsel %vm319, %v1643, 0
      %v1763 = vsel %vm319, %v1644, 0
      %v1766 = vsel %vm319, %v1645, 0
      %v1769 = vsel %vm319, %v1646, 0
      %v1772 = vsel %vm319, %v1647, 0
      %v1775 = vsel %vm319, %v1648, 0
      %v1778 = vsel %vm319, %v1649, 0
      %v1781 = vsel %vm416, %v1683, 0
      %1783 = vmatprep.subr.mxu0 0.0
      %1784 = vmatpush1.msra.mxu0 %v1781
      %1785 = vmatprep.subr.mxu0 0.0
      %1786 = vmatpush1.msra.mxu0 0.0
      %1787 = vmatprep.subr.mxu0 0.0
      %1788 = vmatpush1.msra.mxu0 0.0
      %1789 = vmatprep.subr.mxu0 0.0
      %1790 = vmatpush1.msra.mxu0 0.0
      %1791 = vmatprep.subr.mxu0 0.0
      %1792 = vmatpush1.msra.mxu0 0.0
      %1793 = vmatprep.subr.mxu0 0.0
      %1794 = vmatpush1.msra.mxu0 0.0
      %1795 = vmatprep.subr.mxu0 0.0
      %1796 = vmatpush1.msra.mxu0 0.0
      %1797 = vmatprep.subr.mxu0 0.0
      %1798 = vmatpush1.msra.mxu0 0.0
      %1799 = vmatprep.subr.mxu0 0.0
      %1800 = vmatpush1.msra.mxu0 0.0
      %1801 = vmatprep.subr.mxu0 0.0
      %1802 = vmatpush1.msra.mxu0 0.0
      %1803 = vmatprep.subr.mxu0 0.0
      %1804 = vmatpush1.msra.mxu0 0.0
      %1805 = vmatprep.subr.mxu0 0.0
      %1806 = vmatpush1.msra.mxu0 0.0
      %1807 = vmatprep.subr.mxu0 0.0
      %1808 = vmatpush1.msra.mxu0 0.0
      %1809 = vmatprep.subr.mxu0 0.0
      %1810 = vmatpush1.msra.mxu0 0.0
      %1811 = vmatprep.subr.mxu0 0.0
      %1812 = vmatpush1.msra.mxu0 0.0
      %1813 = vmatprep.subr.mxu0 0.0
      %1814 = vmatpush1.msra.mxu0 0.0
      %1815 = vmatprep.subr.mxu0 0.0
      %1816 = vmatpush1.msra.mxu0 0.0
      %1817 = vmatprep.subr.mxu0 0.0
      %1818 = vmatpush1.msra.mxu0 0.0
      %1819 = vmatprep.subr.mxu0 0.0
      %1820 = vmatpush1.msra.mxu0 0.0
      %1821 = vmatprep.subr.mxu0 0.0
      %1822 = vmatpush1.msra.mxu0 0.0
      %1823 = vmatprep.subr.mxu0 0.0
      %1824 = vmatpush1.msra.mxu0 0.0
      %1825 = vmatprep.subr.mxu0 0.0
      %1826 = vmatpush1.msra.mxu0 0.0
      %1827 = vmatprep.subr.mxu0 0.0
      %1828 = vmatpush1.msra.mxu0 0.0
      %1829 = vmatprep.subr.mxu0 0.0
      %1830 = vmatpush1.msra.mxu0 0.0
      %1831 = vmatprep.subr.mxu0 0.0
      %1832 = vmatpush1.msra.mxu0 0.0
      %1833 = vmatprep.subr.mxu0 0.0
      %1834 = vmatpush1.msra.mxu0 0.0
      %1835 = vmatprep.subr.mxu0 0.0
      %1836 = vmatpush1.msra.mxu0 0.0
      %1837 = vmatprep.subr.mxu0 0.0
      %1838 = vmatpush1.msra.mxu0 0.0
      %1839 = vmatprep.subr.mxu0 0.0
      %1840 = vmatpush1.msra.mxu0 0.0
      %1841 = vmatprep.subr.mxu0 0.0
      %1842 = vmatpush1.msra.mxu0 0.0
      %1843 = vmatprep.subr.mxu0 0.0
      %1844 = vmatpush1.msra.mxu0 0.0
      %1845 = vmatprep.subr.mxu0 0.0
      %1846 = vmatpush1.msra.mxu0 0.0
      %1847 = vmatprep.mubr.f32.mxu0 0.0
      %1848 = vmatmul.mubr.f32.gmra.mrb[0].mxu0 %v1685
      %v1849 = vpop.f32.mrb[0].mxu0
      %v1850 = vadd.f32 0.0, %v1849
      %v1851 = vpop.f32.mrb[0].mxu0
      %1852 = vmatprep.mubr.f32.mxu0 0.0
      %1853 = vmatmul.mubr.f32.gmra.mrb[0].mxu0 %v1688
      %v1854 = vpop.f32.mrb[0].mxu0
      %v1855 = vadd.f32 0.0, %v1854
      %v1856 = vpop.f32.mrb[0].mxu0
      %1857 = vmatprep.mubr.f32.mxu0 0.0
      %1858 = vmatmul.mubr.f32.gmra.mrb[0].mxu0 %v1691
      %v1859 = vpop.f32.mrb[0].mxu0
      %v1860 = vadd.f32 0.0, %v1859
      %v1861 = vpop.f32.mrb[0].mxu0
      %1862 = vmatprep.mubr.f32.mxu0 0.0
      %1863 = vmatmul.mubr.f32.gmra.mrb[0].mxu0 %v1694
      %v1864 = vpop.f32.mrb[0].mxu0
      %v1865 = vadd.f32 0.0, %v1864
      %v1866 = vpop.f32.mrb[0].mxu0
      %1867 = vmatprep.mubr.f32.mxu0 0.0
      %1868 = vmatmul.mubr.f32.gmra.mrb[0].mxu0 %v1697
      %v1869 = vpop.f32.mrb[0].mxu0
      %v1870 = vadd.f32 0.0, %v1869
      %v1871 = vpop.f32.mrb[0].mxu0
      %1872 = vmatprep.mubr.f32.mxu0 0.0
      %1873 = vmatmul.mubr.f32.gmra.mrb[0].mxu0 %v1700
      %v1874 = vpop.f32.mrb[0].mxu0
      %v1875 = vadd.f32 0.0, %v1874
      %v1876 = vpop.f32.mrb[0].mxu0
      %1877 = vmatprep.mubr.f32.mxu0 0.0
      %1878 = vmatmul.mubr.f32.gmra.mrb[0].mxu0 %v1703
      %v1879 = vpop.f32.mrb[0].mxu0
      %v1880 = vadd.f32 0.0, %v1879
      %v1881 = vpop.f32.mrb[0].mxu0
      %1882 = vmatprep.mubr.f32.mxu0 0.0
      %1883 = vmatmul.mubr.f32.gmra.mrb[0].mxu0 %v1706
      %v1884 = vpop.f32.mrb[0].mxu0
      %v1885 = vadd.f32 0.0, %v1884
      %v1886 = vpop.f32.mrb[0].mxu0
      %1887 = vmatprep.mubr.f32.mxu0 0.0
      %1888 = vmatmul.mubr.f32.gmra.mrb[0].mxu0 %v1709
      %v1889 = vpop.f32.mrb[0].mxu0
      %v1890 = vadd.f32 0.0, %v1889
      %v1891 = vpop.f32.mrb[0].mxu0
      %1892 = vmatprep.mubr.f32.mxu0 0.0
      %1893 = vmatmul.mubr.f32.gmra.mrb[0].mxu0 %v1712
      %v1894 = vpop.f32.mrb[0].mxu0
      %v1895 = vadd.f32 0.0, %v1894
      %v1896 = vpop.f32.mrb[0].mxu0
      %1897 = vmatprep.mubr.f32.mxu0 0.0
      %1898 = vmatmul.mubr.f32.gmra.mrb[0].mxu0 %v1715
      %v1899 = vpop.f32.mrb[0].mxu0
      %v1900 = vadd.f32 0.0, %v1899
      %v1901 = vpop.f32.mrb[0].mxu0
      %1902 = vmatprep.mubr.f32.mxu0 0.0
      %1903 = vmatmul.mubr.f32.gmra.mrb[0].mxu0 %v1718
      %v1904 = vpop.f32.mrb[0].mxu0
      %v1905 = vadd.f32 0.0, %v1904
      %v1906 = vpop.f32.mrb[0].mxu0
      %1907 = vmatprep.mubr.f32.mxu0 0.0
      %1908 = vmatmul.mubr.f32.gmra.mrb[0].mxu0 %v1721
      %v1909 = vpop.f32.mrb[0].mxu0
      %v1910 = vadd.f32 0.0, %v1909
      %v1911 = vpop.f32.mrb[0].mxu0
      %1912 = vmatprep.mubr.f32.mxu0 0.0
      %1913 = vmatmul.mubr.f32.gmra.mrb[0].mxu0 %v1724
      %v1914 = vpop.f32.mrb[0].mxu0
      %v1915 = vadd.f32 0.0, %v1914
      %v1916 = vpop.f32.mrb[0].mxu0
      %1917 = vmatprep.mubr.f32.mxu0 0.0
      %1918 = vmatmul.mubr.f32.gmra.mrb[0].mxu0 %v1727
      %v1919 = vpop.f32.mrb[0].mxu0
      %v1920 = vadd.f32 0.0, %v1919
      %v1921 = vpop.f32.mrb[0].mxu0
      %1922 = vmatprep.mubr.f32.mxu0 0.0
      %1923 = vmatmul.mubr.f32.gmra.mrb[0].mxu0 %v1730
      %v1924 = vpop.f32.mrb[0].mxu0
      %v1925 = vadd.f32 0.0, %v1924
      %v1926 = vpop.f32.mrb[0].mxu0
      %1927 = vmatprep.mubr.f32.mxu0 0.0
      %1928 = vmatmul.mubr.f32.gmra.mrb[0].mxu0 %v1733
      %v1929 = vpop.f32.mrb[0].mxu0
      %v1930 = vadd.f32 0.0, %v1929
      %v1931 = vpop.f32.mrb[0].mxu0
      %1932 = vmatprep.mubr.f32.mxu0 0.0
      %1933 = vmatmul.mubr.f32.gmra.mrb[0].mxu0 %v1736
      %v1934 = vpop.f32.mrb[0].mxu0
      %v1935 = vadd.f32 0.0, %v1934
      %v1936 = vpop.f32.mrb[0].mxu0
      %1937 = vmatprep.mubr.f32.mxu0 0.0
      %1938 = vmatmul.mubr.f32.gmra.mrb[0].mxu0 %v1739
      %v1939 = vpop.f32.mrb[0].mxu0
      %v1940 = vadd.f32 0.0, %v1939
      %v1941 = vpop.f32.mrb[0].mxu0
      %1942 = vmatprep.mubr.f32.mxu0 0.0
      %1943 = vmatmul.mubr.f32.gmra.mrb[0].mxu0 %v1742
      %v1944 = vpop.f32.mrb[0].mxu0
      %v1945 = vadd.f32 0.0, %v1944
      %v1946 = vpop.f32.mrb[0].mxu0
      %1947 = vmatprep.mubr.f32.mxu0 0.0
      %1948 = vmatmul.mubr.f32.gmra.mrb[0].mxu0 %v1745
      %v1949 = vpop.f32.mrb[0].mxu0
      %v1950 = vadd.f32 0.0, %v1949
      %v1951 = vpop.f32.mrb[0].mxu0
      %1952 = vmatprep.mubr.f32.mxu0 0.0
      %1953 = vmatmul.mubr.f32.gmra.mrb[0].mxu0 %v1748
      %v1954 = vpop.f32.mrb[0].mxu0
      %v1955 = vadd.f32 0.0, %v1954
      %v1956 = vpop.f32.mrb[0].mxu0
      %1957 = vmatprep.mubr.f32.mxu0 0.0
      %1958 = vmatmul.mubr.f32.gmra.mrb[0].mxu0 %v1751
      %v1959 = vpop.f32.mrb[0].mxu0
      %v1960 = vadd.f32 0.0, %v1959
      %v1961 = vpop.f32.mrb[0].mxu0
      %1962 = vmatprep.mubr.f32.mxu0 0.0
      %1963 = vmatmul.mubr.f32.gmra.mrb[0].mxu0 %v1754
      %v1964 = vpop.f32.mrb[0].mxu0
      %v1965 = vadd.f32 0.0, %v1964
      %v1966 = vpop.f32.mrb[0].mxu0
      %1967 = vmatprep.mubr.f32.mxu0 0.0
      %1968 = vmatmul.mubr.f32.gmra.mrb[0].mxu0 %v1757
      %v1969 = vpop.f32.mrb[0].mxu0
      %v1970 = vadd.f32 0.0, %v1969
      %v1971 = vpop.f32.mrb[0].mxu0
      %1972 = vmatprep.mubr.f32.mxu0 0.0
      %1973 = vmatmul.mubr.f32.gmra.mrb[0].mxu0 %v1760
      %v1974 = vpop.f32.mrb[0].mxu0
      %v1975 = vadd.f32 0.0, %v1974
      %v1976 = vpop.f32.mrb[0].mxu0
      %1977 = vmatprep.mubr.f32.mxu0 0.0
      %1978 = vmatmul.mubr.f32.gmra.mrb[0].mxu0 %v1763
      %v1979 = vpop.f32.mrb[0].mxu0
      %v1980 = vadd.f32 0.0, %v1979
      %v1981 = vpop.f32.mrb[0].mxu0
      %1982 = vmatprep.mubr.f32.mxu0 0.0
      %1983 = vmatmul.mubr.f32.gmra.mrb[0].mxu0 %v1766
      %v1984 = vpop.f32.mrb[0].mxu0
      %v1985 = vadd.f32 0.0, %v1984
      %v1986 = vpop.f32.mrb[0].mxu0
      %1987 = vmatprep.mubr.f32.mxu0 0.0
      %1988 = vmatmul.mubr.f32.gmra.mrb[0].mxu0 %v1769
      %v1989 = vpop.f32.mrb[0].mxu0
      %v1990 = vadd.f32 0.0, %v1989
      %v1991 = vpop.f32.mrb[0].mxu0
      %1992 = vmatprep.mubr.f32.mxu0 0.0
      %1993 = vmatmul.mubr.f32.gmra.mrb[0].mxu0 %v1772
      %v1994 = vpop.f32.mrb[0].mxu0
      %v1995 = vadd.f32 0.0, %v1994
      %v1996 = vpop.f32.mrb[0].mxu0
      %1997 = vmatprep.mubr.f32.mxu0 0.0
      %1998 = vmatmul.mubr.f32.gmra.mrb[0].mxu0 %v1775
      %v1999 = vpop.f32.mrb[0].mxu0
      %v2000 = vadd.f32 0.0, %v1999
      %v2001 = vpop.f32.mrb[0].mxu0
      %2002 = vmatprep.mubr.f32.mxu0 0.0
      %2003 = vmatmul.mubr.f32.gmra.mrb[0].mxu0 %v1778
      %v2004 = vpop.f32.mrb[0].mxu0
      %v2005 = vadd.f32 0.0, %v2004
      %v2006 = vpop.f32.mrb[0].mxu0
      %2007 = vdwg.mxu0
      %v2008 = vadd.f32 %v1650, %v1850
      %v2009 = vadd.f32 %v1651, %v1855
      %v2010 = vadd.f32 %v1652, %v1860
      %v2011 = vadd.f32 %v1653, %v1865
      %v2012 = vadd.f32 %v1654, %v1870
      %v2013 = vadd.f32 %v1655, %v1875
      %v2014 = vadd.f32 %v1656, %v1880
      %v2015 = vadd.f32 %v1657, %v1885
      %v2016 = vadd.f32 %v1658, %v1890
      %v2017 = vadd.f32 %v1659, %v1895
      %v2018 = vadd.f32 %v1660, %v1900
      %v2019 = vadd.f32 %v1661, %v1905
      %v2020 = vadd.f32 %v1662, %v1910
      %v2021 = vadd.f32 %v1663, %v1915
      %v2022 = vadd.f32 %v1664, %v1920
      %v2023 = vadd.f32 %v1665, %v1925
      %v2024 = vadd.f32 %v1666, %v1930
      %v2025 = vadd.f32 %v1667, %v1935
      %v2026 = vadd.f32 %v1668, %v1940
      %v2027 = vadd.f32 %v1669, %v1945
      %v2028 = vadd.f32 %v1670, %v1950
      %v2029 = vadd.f32 %v1671, %v1955
      %v2030 = vadd.f32 %v1672, %v1960
      %v2031 = vadd.f32 %v1673, %v1965
      %v2032 = vadd.f32 %v1674, %v1970
      %v2033 = vadd.f32 %v1675, %v1975
      %v2034 = vadd.f32 %v1676, %v1980
      %v2035 = vadd.f32 %v1677, %v1985
      %v2036 = vadd.f32 %v1678, %v1990
      %v2037 = vadd.f32 %v1679, %v1995
      %v2038 = vadd.f32 %v1680, %v2000
      %v2039 = vadd.f32 %v1681, %v2005
      %2040 = vst [vmem:[#allocation2] sm:$0xff] %v2008
      %2041 = vst [vmem:[#allocation2 + $0x8] sm:$0xff] %v2009
      %2042 = vst [vmem:[#allocation2 + $0x10] sm:$0xff] %v2010
      %2043 = vst [vmem:[#allocation2 + $0x18] sm:$0xff] %v2011
      %2044 = vst [vmem:[#allocation2 + $0x20] sm:$0xff] %v2012
      %2045 = vst [vmem:[#allocation2 + $0x28] sm:$0xff] %v2013
      %2046 = vst [vmem:[#allocation2 + $0x30] sm:$0xff] %v2014
      %2047 = vst [vmem:[#allocation2 + $0x38] sm:$0xff] %v2015
      %2048 = vst [vmem:[#allocation2 + $0x40] sm:$0xff] %v2016
      %2049 = vst [vmem:[#allocation2 + $0x48] sm:$0xff] %v2017
      %2050 = vst [vmem:[#allocation2 + $0x50] sm:$0xff] %v2018
      %2051 = vst [vmem:[#allocation2 + $0x58] sm:$0xff] %v2019
      %2052 = vst [vmem:[#allocation2 + $0x60] sm:$0xff] %v2020
      %2053 = vst [vmem:[#allocation2 + $0x68] sm:$0xff] %v2021
      %2054 = vst [vmem:[#allocation2 + $0x70] sm:$0xff] %v2022
      %2055 = vst [vmem:[#allocation2 + $0x78] sm:$0xff] %v2023
      %2056 = vst [vmem:[#allocation2 + $0x80] sm:$0xff] %v2024
      %2057 = vst [vmem:[#allocation2 + $0x88] sm:$0xff] %v2025
      %2058 = vst [vmem:[#allocation2 + $0x90] sm:$0xff] %v2026
      %2059 = vst [vmem:[#allocation2 + $0x98] sm:$0xff] %v2027
      %2060 = vst [vmem:[#allocation2 + $0xa0] sm:$0xff] %v2028
      %2061 = vst [vmem:[#allocation2 + $0xa8] sm:$0xff] %v2029
      %2062 = vst [vmem:[#allocation2 + $0xb0] sm:$0xff] %v2030
      %2063 = vst [vmem:[#allocation2 + $0xb8] sm:$0xff] %v2031
      %2064 = vst [vmem:[#allocation2 + $0xc0] sm:$0xff] %v2032
      %2065 = vst [vmem:[#allocation2 + $0xc8] sm:$0xff] %v2033
      %2066 = vst [vmem:[#allocation2 + $0xd0] sm:$0xff] %v2034
      %2067 = vst [vmem:[#allocation2 + $0xd8] sm:$0xff] %v2035
      %2068 = vst [vmem:[#allocation2 + $0xe0] sm:$0xff] %v2036
      %2069 = vst [vmem:[#allocation2 + $0xe8] sm:$0xff] %v2037
      %2070 = vst [vmem:[#allocation2 + $0xf0] sm:$0xff] %v2038
      %2071 = vst [vmem:[#allocation2 + $0xf8] sm:$0xff] %v2039
      %v2072 = vld [vmem:[%s1617 + $0x1] sm:$0xff]
      %v2073 = vld [vmem:[%s1617 + $0x9] sm:$0xff]
      %v2074 = vld [vmem:[%s1617 + $0x19] sm:$0xff]
      %v2075 = vld [vmem:[%s1617 + $0x21] sm:$0xff]
      %v2076 = vld [vmem:[%s1617 + $0x31] sm:$0xff]
      %v2077 = vld [vmem:[%s1617 + $0x39] sm:$0xff]
      %v2078 = vld [vmem:[%s1617 + $0x49] sm:$0xff]
      %v2079 = vld [vmem:[%s1617 + $0x51] sm:$0xff]
      %v2080 = vld [vmem:[%s1617 + $0x61] sm:$0xff]
      %v2081 = vld [vmem:[%s1617 + $0x69] sm:$0xff]
      %v2082 = vld [vmem:[%s1617 + $0x79] sm:$0xff]
      %v2083 = vld [vmem:[%s1617 + $0x81] sm:$0xff]
      %v2084 = vld [vmem:[%s1617 + $0x91] sm:$0xff]
      %v2085 = vld [vmem:[%s1617 + $0x99] sm:$0xff]
      %v2086 = vld [vmem:[%s1617 + $0xa9] sm:$0xff]
      %v2087 = vld [vmem:[%s1617 + $0xb1] sm:$0xff]
      %v2088 = vld [vmem:[%s1617 + $0xc1] sm:$0xff]
      %v2089 = vld [vmem:[%s1617 + $0xc9] sm:$0xff]
      %v2090 = vld [vmem:[%s1617 + $0xd9] sm:$0xff]
      %v2091 = vld [vmem:[%s1617 + $0xe1] sm:$0xff]
      %v2092 = vld [vmem:[%s1617 + $0xf1] sm:$0xff]
      %v2093 = vld [vmem:[%s1617 + $0xf9] sm:$0xff]
      %v2094 = vld [vmem:[%s1617 + $0x109] sm:$0xff]
      %v2095 = vld [vmem:[%s1617 + $0x111] sm:$0xff]
      %v2096 = vld [vmem:[%s1617 + $0x121] sm:$0xff]
      %v2097 = vld [vmem:[%s1617 + $0x129] sm:$0xff]
      %v2098 = vld [vmem:[%s1617 + $0x139] sm:$0xff]
      %v2099 = vld [vmem:[%s1617 + $0x141] sm:$0xff]
      %v2100 = vld [vmem:[%s1617 + $0x151] sm:$0xff]
      %v2101 = vld [vmem:[%s1617 + $0x159] sm:$0xff]
      %v2102 = vld [vmem:[%s1617 + $0x169] sm:$0xff]
      %v2103 = vld [vmem:[%s1617 + $0x171] sm:$0xff]
      %v2104 = vld [vmem:[#allocation2] sm:$0xff]
      %v2105 = vld [vmem:[#allocation2 + $0x8] sm:$0xff]
      %v2106 = vld [vmem:[#allocation2 + $0x10] sm:$0xff]
      %v2107 = vld [vmem:[#allocation2 + $0x18] sm:$0xff]
      %v2108 = vld [vmem:[#allocation2 + $0x20] sm:$0xff]
      %v2109 = vld [vmem:[#allocation2 + $0x28] sm:$0xff]
      %v2110 = vld [vmem:[#allocation2 + $0x30] sm:$0xff]
      %v2111 = vld [vmem:[#allocation2 + $0x38] sm:$0xff]
      %v2112 = vld [vmem:[#allocation2 + $0x40] sm:$0xff]
      %v2113 = vld [vmem:[#allocation2 + $0x48] sm:$0xff]
      %v2114 = vld [vmem:[#allocation2 + $0x50] sm:$0xff]
      %v2115 = vld [vmem:[#allocation2 + $0x58] sm:$0xff]
      %v2116 = vld [vmem:[#allocation2 + $0x60] sm:$0xff]
      %v2117 = vld [vmem:[#allocation2 + $0x68] sm:$0xff]
      %v2118 = vld [vmem:[#allocation2 + $0x70] sm:$0xff]
      %v2119 = vld [vmem:[#allocation2 + $0x78] sm:$0xff]
      %v2120 = vld [vmem:[#allocation2 + $0x80] sm:$0xff]
      %v2121 = vld [vmem:[#allocation2 + $0x88] sm:$0xff]
      %v2122 = vld [vmem:[#allocation2 + $0x90] sm:$0xff]
      %v2123 = vld [vmem:[#allocation2 + $0x98] sm:$0xff]
      %v2124 = vld [vmem:[#allocation2 + $0xa0] sm:$0xff]
      %v2125 = vld [vmem:[#allocation2 + $0xa8] sm:$0xff]
      %v2126 = vld [vmem:[#allocation2 + $0xb0] sm:$0xff]
      %v2127 = vld [vmem:[#allocation2 + $0xb8] sm:$0xff]
      %v2128 = vld [vmem:[#allocation2 + $0xc0] sm:$0xff]
      %v2129 = vld [vmem:[#allocation2 + $0xc8] sm:$0xff]
      %v2130 = vld [vmem:[#allocation2 + $0xd0] sm:$0xff]
      %v2131 = vld [vmem:[#allocation2 + $0xd8] sm:$0xff]
      %v2132 = vld [vmem:[#allocation2 + $0xe0] sm:$0xff]
      %v2133 = vld [vmem:[#allocation2 + $0xe8] sm:$0xff]
      %v2134 = vld [vmem:[#allocation2 + $0xf0] sm:$0xff]
      %v2135 = vld [vmem:[#allocation2 + $0xf8] sm:$0xff]
      %s2136 = scalar_lea.vmem %s210, 16
      %v2137 = vld [vmem:[%s2136] sm:$0xf]
      %v2139 = vsel %vm319, %v2072, 0
      %v2142 = vsel %vm319, %v2073, 0
      %v2145 = vsel %vm319, %v2074, 0
      %v2148 = vsel %vm319, %v2075, 0
      %v2151 = vsel %vm319, %v2076, 0
      %v2154 = vsel %vm319, %v2077, 0
      %v2157 = vsel %vm319, %v2078, 0
      %v2160 = vsel %vm319, %v2079, 0
      %v2163 = vsel %vm319, %v2080, 0
      %v2166 = vsel %vm319, %v2081, 0
      %v2169 = vsel %vm319, %v2082, 0
      %v2172 = vsel %vm319, %v2083, 0
      %v2175 = vsel %vm319, %v2084, 0
      %v2178 = vsel %vm319, %v2085, 0
      %v2181 = vsel %vm319, %v2086, 0
      %v2184 = vsel %vm319, %v2087, 0
      %v2187 = vsel %vm319, %v2088, 0
      %v2190 = vsel %vm319, %v2089, 0
      %v2193 = vsel %vm319, %v2090, 0
      %v2196 = vsel %vm319, %v2091, 0
      %v2199 = vsel %vm319, %v2092, 0
      %v2202 = vsel %vm319, %v2093, 0
      %v2205 = vsel %vm319, %v2094, 0
      %v2208 = vsel %vm319, %v2095, 0
      %v2211 = vsel %vm319, %v2096, 0
      %v2214 = vsel %vm319, %v2097, 0
      %v2217 = vsel %vm319, %v2098, 0
      %v2220 = vsel %vm319, %v2099, 0
      %v2223 = vsel %vm319, %v2100, 0
      %v2226 = vsel %vm319, %v2101, 0
      %v2229 = vsel %vm319, %v2102, 0
      %v2232 = vsel %vm319, %v2103, 0
      %v2235 = vsel %vm416, %v2137, 0
      %2237 = vmatprep.subr.mxu0 0.0
      %2238 = vmatpush1.msra.mxu0 %v2235
      %2239 = vmatprep.subr.mxu0 0.0
      %2240 = vmatpush1.msra.mxu0 0.0
      %2241 = vmatprep.subr.mxu0 0.0
      %2242 = vmatpush1.msra.mxu0 0.0
      %2243 = vmatprep.subr.mxu0 0.0
      %2244 = vmatpush1.msra.mxu0 0.0
      %2245 = vmatprep.subr.mxu0 0.0
      %2246 = vmatpush1.msra.mxu0 0.0
      %2247 = vmatprep.subr.mxu0 0.0
      %2248 = vmatpush1.msra.mxu0 0.0
      %2249 = vmatprep.subr.mxu0 0.0
      %2250 = vmatpush1.msra.mxu0 0.0
      %2251 = vmatprep.subr.mxu0 0.0
      %2252 = vmatpush1.msra.mxu0 0.0
      %2253 = vmatprep.subr.mxu0 0.0
      %2254 = vmatpush1.msra.mxu0 0.0
      %2255 = vmatprep.subr.mxu0 0.0
      %2256 = vmatpush1.msra.mxu0 0.0
      %2257 = vmatprep.subr.mxu0 0.0
      %2258 = vmatpush1.msra.mxu0 0.0
      %2259 = vmatprep.subr.mxu0 0.0
      %2260 = vmatpush1.msra.mxu0 0.0
      %2261 = vmatprep.subr.mxu0 0.0
      %2262 = vmatpush1.msra.mxu0 0.0
      %2263 = vmatprep.subr.mxu0 0.0
      %2264 = vmatpush1.msra.mxu0 0.0
      %2265 = vmatprep.subr.mxu0 0.0
      %2266 = vmatpush1.msra.mxu0 0.0
      %2267 = vmatprep.subr.mxu0 0.0
      %2268 = vmatpush1.msra.mxu0 0.0
      %2269 = vmatprep.subr.mxu0 0.0
      %2270 = vmatpush1.msra.mxu0 0.0
      %2271 = vmatprep.subr.mxu0 0.0
      %2272 = vmatpush1.msra.mxu0 0.0
      %2273 = vmatprep.subr.mxu0 0.0
      %2274 = vmatpush1.msra.mxu0 0.0
      %2275 = vmatprep.subr.mxu0 0.0
      %2276 = vmatpush1.msra.mxu0 0.0
      %2277 = vmatprep.subr.mxu0 0.0
      %2278 = vmatpush1.msra.mxu0 0.0
      %2279 = vmatprep.subr.mxu0 0.0
      %2280 = vmatpush1.msra.mxu0 0.0
      %2281 = vmatprep.subr.mxu0 0.0
      %2282 = vmatpush1.msra.mxu0 0.0
      %2283 = vmatprep.subr.mxu0 0.0
      %2284 = vmatpush1.msra.mxu0 0.0
      %2285 = vmatprep.subr.mxu0 0.0
      %2286 = vmatpush1.msra.mxu0 0.0
      %2287 = vmatprep.subr.mxu0 0.0
      %2288 = vmatpush1.msra.mxu0 0.0
      %2289 = vmatprep.subr.mxu0 0.0
      %2290 = vmatpush1.msra.mxu0 0.0
      %2291 = vmatprep.subr.mxu0 0.0
      %2292 = vmatpush1.msra.mxu0 0.0
      %2293 = vmatprep.subr.mxu0 0.0
      %2294 = vmatpush1.msra.mxu0 0.0
      %2295 = vmatprep.subr.mxu0 0.0
      %2296 = vmatpush1.msra.mxu0 0.0
      %2297 = vmatprep.subr.mxu0 0.0
      %2298 = vmatpush1.msra.mxu0 0.0
      %2299 = vmatprep.subr.mxu0 0.0
      %2300 = vmatpush1.msra.mxu0 0.0
      %2301 = vmatprep.mubr.f32.mxu0 0.0
      %2302 = vmatmul.mubr.f32.gmra.mrb[0].mxu0 %v2139
      %v2303 = vpop.f32.mrb[0].mxu0
      %v2304 = vadd.f32 0.0, %v2303
      %v2305 = vpop.f32.mrb[0].mxu0
      %2306 = vmatprep.mubr.f32.mxu0 0.0
      %2307 = vmatmul.mubr.f32.gmra.mrb[0].mxu0 %v2142
      %v2308 = vpop.f32.mrb[0].mxu0
      %v2309 = vadd.f32 0.0, %v2308
      %v2310 = vpop.f32.mrb[0].mxu0
      %2311 = vmatprep.mubr.f32.mxu0 0.0
      %2312 = vmatmul.mubr.f32.gmra.mrb[0].mxu0 %v2145
      %v2313 = vpop.f32.mrb[0].mxu0
      %v2314 = vadd.f32 0.0, %v2313
      %v2315 = vpop.f32.mrb[0].mxu0
      %2316 = vmatprep.mubr.f32.mxu0 0.0
      %2317 = vmatmul.mubr.f32.gmra.mrb[0].mxu0 %v2148
      %v2318 = vpop.f32.mrb[0].mxu0
      %v2319 = vadd.f32 0.0, %v2318
      %v2320 = vpop.f32.mrb[0].mxu0
      %2321 = vmatprep.mubr.f32.mxu0 0.0
      %2322 = vmatmul.mubr.f32.gmra.mrb[0].mxu0 %v2151
      %v2323 = vpop.f32.mrb[0].mxu0
      %v2324 = vadd.f32 0.0, %v2323
      %v2325 = vpop.f32.mrb[0].mxu0
      %2326 = vmatprep.mubr.f32.mxu0 0.0
      %2327 = vmatmul.mubr.f32.gmra.mrb[0].mxu0 %v2154
      %v2328 = vpop.f32.mrb[0].mxu0
      %v2329 = vadd.f32 0.0, %v2328
      %v2330 = vpop.f32.mrb[0].mxu0
      %2331 = vmatprep.mubr.f32.mxu0 0.0
      %2332 = vmatmul.mubr.f32.gmra.mrb[0].mxu0 %v2157
      %v2333 = vpop.f32.mrb[0].mxu0
      %v2334 = vadd.f32 0.0, %v2333
      %v2335 = vpop.f32.mrb[0].mxu0
      %2336 = vmatprep.mubr.f32.mxu0 0.0
      %2337 = vmatmul.mubr.f32.gmra.mrb[0].mxu0 %v2160
      %v2338 = vpop.f32.mrb[0].mxu0
      %v2339 = vadd.f32 0.0, %v2338
      %v2340 = vpop.f32.mrb[0].mxu0
      %2341 = vmatprep.mubr.f32.mxu0 0.0
      %2342 = vmatmul.mubr.f32.gmra.mrb[0].mxu0 %v2163
      %v2343 = vpop.f32.mrb[0].mxu0
      %v2344 = vadd.f32 0.0, %v2343
      %v2345 = vpop.f32.mrb[0].mxu0
      %2346 = vmatprep.mubr.f32.mxu0 0.0
      %2347 = vmatmul.mubr.f32.gmra.mrb[0].mxu0 %v2166
      %v2348 = vpop.f32.mrb[0].mxu0
      %v2349 = vadd.f32 0.0, %v2348
      %v2350 = vpop.f32.mrb[0].mxu0
      %2351 = vmatprep.mubr.f32.mxu0 0.0
      %2352 = vmatmul.mubr.f32.gmra.mrb[0].mxu0 %v2169
      %v2353 = vpop.f32.mrb[0].mxu0
      %v2354 = vadd.f32 0.0, %v2353
      %v2355 = vpop.f32.mrb[0].mxu0
      %2356 = vmatprep.mubr.f32.mxu0 0.0
      %2357 = vmatmul.mubr.f32.gmra.mrb[0].mxu0 %v2172
      %v2358 = vpop.f32.mrb[0].mxu0
      %v2359 = vadd.f32 0.0, %v2358
      %v2360 = vpop.f32.mrb[0].mxu0
      %2361 = vmatprep.mubr.f32.mxu0 0.0
      %2362 = vmatmul.mubr.f32.gmra.mrb[0].mxu0 %v2175
      %v2363 = vpop.f32.mrb[0].mxu0
      %v2364 = vadd.f32 0.0, %v2363
      %v2365 = vpop.f32.mrb[0].mxu0
      %2366 = vmatprep.mubr.f32.mxu0 0.0
      %2367 = vmatmul.mubr.f32.gmra.mrb[0].mxu0 %v2178
      %v2368 = vpop.f32.mrb[0].mxu0
      %v2369 = vadd.f32 0.0, %v2368
      %v2370 = vpop.f32.mrb[0].mxu0
      %2371 = vmatprep.mubr.f32.mxu0 0.0
      %2372 = vmatmul.mubr.f32.gmra.mrb[0].mxu0 %v2181
      %v2373 = vpop.f32.mrb[0].mxu0
      %v2374 = vadd.f32 0.0, %v2373
      %v2375 = vpop.f32.mrb[0].mxu0
      %2376 = vmatprep.mubr.f32.mxu0 0.0
      %2377 = vmatmul.mubr.f32.gmra.mrb[0].mxu0 %v2184
      %v2378 = vpop.f32.mrb[0].mxu0
      %v2379 = vadd.f32 0.0, %v2378
      %v2380 = vpop.f32.mrb[0].mxu0
      %2381 = vmatprep.mubr.f32.mxu0 0.0
      %2382 = vmatmul.mubr.f32.gmra.mrb[0].mxu0 %v2187
      %v2383 = vpop.f32.mrb[0].mxu0
      %v2384 = vadd.f32 0.0, %v2383
      %v2385 = vpop.f32.mrb[0].mxu0
      %2386 = vmatprep.mubr.f32.mxu0 0.0
      %2387 = vmatmul.mubr.f32.gmra.mrb[0].mxu0 %v2190
      %v2388 = vpop.f32.mrb[0].mxu0
      %v2389 = vadd.f32 0.0, %v2388
      %v2390 = vpop.f32.mrb[0].mxu0
      %2391 = vmatprep.mubr.f32.mxu0 0.0
      %2392 = vmatmul.mubr.f32.gmra.mrb[0].mxu0 %v2193
      %v2393 = vpop.f32.mrb[0].mxu0
      %v2394 = vadd.f32 0.0, %v2393
      %v2395 = vpop.f32.mrb[0].mxu0
      %2396 = vmatprep.mubr.f32.mxu0 0.0
      %2397 = vmatmul.mubr.f32.gmra.mrb[0].mxu0 %v2196
      %v2398 = vpop.f32.mrb[0].mxu0
      %v2399 = vadd.f32 0.0, %v2398
      %v2400 = vpop.f32.mrb[0].mxu0
      %2401 = vmatprep.mubr.f32.mxu0 0.0
      %2402 = vmatmul.mubr.f32.gmra.mrb[0].mxu0 %v2199
      %v2403 = vpop.f32.mrb[0].mxu0
      %v2404 = vadd.f32 0.0, %v2403
      %v2405 = vpop.f32.mrb[0].mxu0
      %2406 = vmatprep.mubr.f32.mxu0 0.0
      %2407 = vmatmul.mubr.f32.gmra.mrb[0].mxu0 %v2202
      %v2408 = vpop.f32.mrb[0].mxu0
      %v2409 = vadd.f32 0.0, %v2408
      %v2410 = vpop.f32.mrb[0].mxu0
      %2411 = vmatprep.mubr.f32.mxu0 0.0
      %2412 = vmatmul.mubr.f32.gmra.mrb[0].mxu0 %v2205
      %v2413 = vpop.f32.mrb[0].mxu0
      %v2414 = vadd.f32 0.0, %v2413
      %v2415 = vpop.f32.mrb[0].mxu0
      %2416 = vmatprep.mubr.f32.mxu0 0.0
      %2417 = vmatmul.mubr.f32.gmra.mrb[0].mxu0 %v2208
      %v2418 = vpop.f32.mrb[0].mxu0
      %v2419 = vadd.f32 0.0, %v2418
      %v2420 = vpop.f32.mrb[0].mxu0
      %2421 = vmatprep.mubr.f32.mxu0 0.0
      %2422 = vmatmul.mubr.f32.gmra.mrb[0].mxu0 %v2211
      %v2423 = vpop.f32.mrb[0].mxu0
      %v2424 = vadd.f32 0.0, %v2423
      %v2425 = vpop.f32.mrb[0].mxu0
      %2426 = vmatprep.mubr.f32.mxu0 0.0
      %2427 = vmatmul.mubr.f32.gmra.mrb[0].mxu0 %v2214
      %v2428 = vpop.f32.mrb[0].mxu0
      %v2429 = vadd.f32 0.0, %v2428
      %v2430 = vpop.f32.mrb[0].mxu0
      %2431 = vmatprep.mubr.f32.mxu0 0.0
      %2432 = vmatmul.mubr.f32.gmra.mrb[0].mxu0 %v2217
      %v2433 = vpop.f32.mrb[0].mxu0
      %v2434 = vadd.f32 0.0, %v2433
      %v2435 = vpop.f32.mrb[0].mxu0
      %2436 = vmatprep.mubr.f32.mxu0 0.0
      %2437 = vmatmul.mubr.f32.gmra.mrb[0].mxu0 %v2220
      %v2438 = vpop.f32.mrb[0].mxu0
      %v2439 = vadd.f32 0.0, %v2438
      %v2440 = vpop.f32.mrb[0].mxu0
      %2441 = vmatprep.mubr.f32.mxu0 0.0
      %2442 = vmatmul.mubr.f32.gmra.mrb[0].mxu0 %v2223
      %v2443 = vpop.f32.mrb[0].mxu0
      %v2444 = vadd.f32 0.0, %v2443
      %v2445 = vpop.f32.mrb[0].mxu0
      %2446 = vmatprep.mubr.f32.mxu0 0.0
      %2447 = vmatmul.mubr.f32.gmra.mrb[0].mxu0 %v2226
      %v2448 = vpop.f32.mrb[0].mxu0
      %v2449 = vadd.f32 0.0, %v2448
      %v2450 = vpop.f32.mrb[0].mxu0
      %2451 = vmatprep.mubr.f32.mxu0 0.0
      %2452 = vmatmul.mubr.f32.gmra.mrb[0].mxu0 %v2229
      %v2453 = vpop.f32.mrb[0].mxu0
      %v2454 = vadd.f32 0.0, %v2453
      %v2455 = vpop.f32.mrb[0].mxu0
      %2456 = vmatprep.mubr.f32.mxu0 0.0
      %2457 = vmatmul.mubr.f32.gmra.mrb[0].mxu0 %v2232
      %v2458 = vpop.f32.mrb[0].mxu0
      %v2459 = vadd.f32 0.0, %v2458
      %v2460 = vpop.f32.mrb[0].mxu0
      %2461 = vdwg.mxu0
      %v2462 = vadd.f32 %v2104, %v2304
      %v2463 = vadd.f32 %v2105, %v2309
      %v2464 = vadd.f32 %v2106, %v2314
      %v2465 = vadd.f32 %v2107, %v2319
      %v2466 = vadd.f32 %v2108, %v2324
      %v2467 = vadd.f32 %v2109, %v2329
      %v2468 = vadd.f32 %v2110, %v2334
      %v2469 = vadd.f32 %v2111, %v2339
      %v2470 = vadd.f32 %v2112, %v2344
      %v2471 = vadd.f32 %v2113, %v2349
      %v2472 = vadd.f32 %v2114, %v2354
      %v2473 = vadd.f32 %v2115, %v2359
      %v2474 = vadd.f32 %v2116, %v2364
      %v2475 = vadd.f32 %v2117, %v2369
      %v2476 = vadd.f32 %v2118, %v2374
      %v2477 = vadd.f32 %v2119, %v2379
      %v2478 = vadd.f32 %v2120, %v2384
      %v2479 = vadd.f32 %v2121, %v2389
      %v2480 = vadd.f32 %v2122, %v2394
      %v2481 = vadd.f32 %v2123, %v2399
      %v2482 = vadd.f32 %v2124, %v2404
      %v2483 = vadd.f32 %v2125, %v2409
      %v2484 = vadd.f32 %v2126, %v2414
      %v2485 = vadd.f32 %v2127, %v2419
      %v2486 = vadd.f32 %v2128, %v2424
      %v2487 = vadd.f32 %v2129, %v2429
      %v2488 = vadd.f32 %v2130, %v2434
      %v2489 = vadd.f32 %v2131, %v2439
      %v2490 = vadd.f32 %v2132, %v2444
      %v2491 = vadd.f32 %v2133, %v2449
      %v2492 = vadd.f32 %v2134, %v2454
      %v2493 = vadd.f32 %v2135, %v2459
      %2494 = vst [vmem:[#allocation2] sm:$0xff] %v2462
      %2495 = vst [vmem:[#allocation2 + $0x8] sm:$0xff] %v2463
      %2496 = vst [vmem:[#allocation2 + $0x10] sm:$0xff] %v2464
      %2497 = vst [vmem:[#allocation2 + $0x18] sm:$0xff] %v2465
      %2498 = vst [vmem:[#allocation2 + $0x20] sm:$0xff] %v2466
      %2499 = vst [vmem:[#allocation2 + $0x28] sm:$0xff] %v2467
      %2500 = vst [vmem:[#allocation2 + $0x30] sm:$0xff] %v2468
      %2501 = vst [vmem:[#allocation2 + $0x38] sm:$0xff] %v2469
      %2502 = vst [vmem:[#allocation2 + $0x40] sm:$0xff] %v2470
      %2503 = vst [vmem:[#allocation2 + $0x48] sm:$0xff] %v2471
      %2504 = vst [vmem:[#allocation2 + $0x50] sm:$0xff] %v2472
      %2505 = vst [vmem:[#allocation2 + $0x58] sm:$0xff] %v2473
      %2506 = vst [vmem:[#allocation2 + $0x60] sm:$0xff] %v2474
      %2507 = vst [vmem:[#allocation2 + $0x68] sm:$0xff] %v2475
      %2508 = vst [vmem:[#allocation2 + $0x70] sm:$0xff] %v2476
      %2509 = vst [vmem:[#allocation2 + $0x78] sm:$0xff] %v2477
      %2510 = vst [vmem:[#allocation2 + $0x80] sm:$0xff] %v2478
      %2511 = vst [vmem:[#allocation2 + $0x88] sm:$0xff] %v2479
      %2512 = vst [vmem:[#allocation2 + $0x90] sm:$0xff] %v2480
      %2513 = vst [vmem:[#allocation2 + $0x98] sm:$0xff] %v2481
      %2514 = vst [vmem:[#allocation2 + $0xa0] sm:$0xff] %v2482
      %2515 = vst [vmem:[#allocation2 + $0xa8] sm:$0xff] %v2483
      %2516 = vst [vmem:[#allocation2 + $0xb0] sm:$0xff] %v2484
      %2517 = vst [vmem:[#allocation2 + $0xb8] sm:$0xff] %v2485
      %2518 = vst [vmem:[#allocation2 + $0xc0] sm:$0xff] %v2486
      %2519 = vst [vmem:[#allocation2 + $0xc8] sm:$0xff] %v2487
      %2520 = vst [vmem:[#allocation2 + $0xd0] sm:$0xff] %v2488
      %2521 = vst [vmem:[#allocation2 + $0xd8] sm:$0xff] %v2489
      %2522 = vst [vmem:[#allocation2 + $0xe0] sm:$0xff] %v2490
      %2523 = vst [vmem:[#allocation2 + $0xe8] sm:$0xff] %v2491
      %2524 = vst [vmem:[#allocation2 + $0xf0] sm:$0xff] %v2492
      %2525 = vst [vmem:[#allocation2 + $0xf8] sm:$0xff] %v2493
      %v2526 = vld [vmem:[%s1617 + $0x2] sm:$0xff]
      %v2527 = vld [vmem:[%s1617 + $0xa] sm:$0xff]
      %v2528 = vld [vmem:[%s1617 + $0x1a] sm:$0xff]
      %v2529 = vld [vmem:[%s1617 + $0x22] sm:$0xff]
      %v2530 = vld [vmem:[%s1617 + $0x32] sm:$0xff]
      %v2531 = vld [vmem:[%s1617 + $0x3a] sm:$0xff]
      %v2532 = vld [vmem:[%s1617 + $0x4a] sm:$0xff]
      %v2533 = vld [vmem:[%s1617 + $0x52] sm:$0xff]
      %v2534 = vld [vmem:[%s1617 + $0x62] sm:$0xff]
      %v2535 = vld [vmem:[%s1617 + $0x6a] sm:$0xff]
      %v2536 = vld [vmem:[%s1617 + $0x7a] sm:$0xff]
      %v2537 = vld [vmem:[%s1617 + $0x82] sm:$0xff]
      %v2538 = vld [vmem:[%s1617 + $0x92] sm:$0xff]
      %v2539 = vld [vmem:[%s1617 + $0x9a] sm:$0xff]
      %v2540 = vld [vmem:[%s1617 + $0xaa] sm:$0xff]
      %v2541 = vld [vmem:[%s1617 + $0xb2] sm:$0xff]
      %v2542 = vld [vmem:[%s1617 + $0xc2] sm:$0xff]
      %v2543 = vld [vmem:[%s1617 + $0xca] sm:$0xff]
      %v2544 = vld [vmem:[%s1617 + $0xda] sm:$0xff]
      %v2545 = vld [vmem:[%s1617 + $0xe2] sm:$0xff]
      %v2546 = vld [vmem:[%s1617 + $0xf2] sm:$0xff]
      %v2547 = vld [vmem:[%s1617 + $0xfa] sm:$0xff]
      %v2548 = vld [vmem:[%s1617 + $0x10a] sm:$0xff]
      %v2549 = vld [vmem:[%s1617 + $0x112] sm:$0xff]
      %v2550 = vld [vmem:[%s1617 + $0x122] sm:$0xff]
      %v2551 = vld [vmem:[%s1617 + $0x12a] sm:$0xff]
      %v2552 = vld [vmem:[%s1617 + $0x13a] sm:$0xff]
      %v2553 = vld [vmem:[%s1617 + $0x142] sm:$0xff]
      %v2554 = vld [vmem:[%s1617 + $0x152] sm:$0xff]
      %v2555 = vld [vmem:[%s1617 + $0x15a] sm:$0xff]
      %v2556 = vld [vmem:[%s1617 + $0x16a] sm:$0xff]
      %v2557 = vld [vmem:[%s1617 + $0x172] sm:$0xff]
      %v2558 = vld [vmem:[#allocation2] sm:$0xff]
      %v2559 = vld [vmem:[#allocation2 + $0x8] sm:$0xff]
      %v2560 = vld [vmem:[#allocation2 + $0x10] sm:$0xff]
      %v2561 = vld [vmem:[#allocation2 + $0x18] sm:$0xff]
      %v2562 = vld [vmem:[#allocation2 + $0x20] sm:$0xff]
      %v2563 = vld [vmem:[#allocation2 + $0x28] sm:$0xff]
      %v2564 = vld [vmem:[#allocation2 + $0x30] sm:$0xff]
      %v2565 = vld [vmem:[#allocation2 + $0x38] sm:$0xff]
      %v2566 = vld [vmem:[#allocation2 + $0x40] sm:$0xff]
      %v2567 = vld [vmem:[#allocation2 + $0x48] sm:$0xff]
      %v2568 = vld [vmem:[#allocation2 + $0x50] sm:$0xff]
      %v2569 = vld [vmem:[#allocation2 + $0x58] sm:$0xff]
      %v2570 = vld [vmem:[#allocation2 + $0x60] sm:$0xff]
      %v2571 = vld [vmem:[#allocation2 + $0x68] sm:$0xff]
      %v2572 = vld [vmem:[#allocation2 + $0x70] sm:$0xff]
      %v2573 = vld [vmem:[#allocation2 + $0x78] sm:$0xff]
      %v2574 = vld [vmem:[#allocation2 + $0x80] sm:$0xff]
      %v2575 = vld [vmem:[#allocation2 + $0x88] sm:$0xff]
      %v2576 = vld [vmem:[#allocation2 + $0x90] sm:$0xff]
      %v2577 = vld [vmem:[#allocation2 + $0x98] sm:$0xff]
      %v2578 = vld [vmem:[#allocation2 + $0xa0] sm:$0xff]
      %v2579 = vld [vmem:[#allocation2 + $0xa8] sm:$0xff]
      %v2580 = vld [vmem:[#allocation2 + $0xb0] sm:$0xff]
      %v2581 = vld [vmem:[#allocation2 + $0xb8] sm:$0xff]
      %v2582 = vld [vmem:[#allocation2 + $0xc0] sm:$0xff]
      %v2583 = vld [vmem:[#allocation2 + $0xc8] sm:$0xff]
      %v2584 = vld [vmem:[#allocation2 + $0xd0] sm:$0xff]
      %v2585 = vld [vmem:[#allocation2 + $0xd8] sm:$0xff]
      %v2586 = vld [vmem:[#allocation2 + $0xe0] sm:$0xff]
      %v2587 = vld [vmem:[#allocation2 + $0xe8] sm:$0xff]
      %v2588 = vld [vmem:[#allocation2 + $0xf0] sm:$0xff]
      %v2589 = vld [vmem:[#allocation2 + $0xf8] sm:$0xff]
      %s2590 = scalar_lea.vmem %s210, 20
      %v2591 = vld [vmem:[%s2590] sm:$0xf]
      %v2593 = vsel %vm319, %v2526, 0
      %v2596 = vsel %vm319, %v2527, 0
      %v2599 = vsel %vm319, %v2528, 0
      %v2602 = vsel %vm319, %v2529, 0
      %v2605 = vsel %vm319, %v2530, 0
      %v2608 = vsel %vm319, %v2531, 0
      %v2611 = vsel %vm319, %v2532, 0
      %v2614 = vsel %vm319, %v2533, 0
      %v2617 = vsel %vm319, %v2534, 0
      %v2620 = vsel %vm319, %v2535, 0
      %v2623 = vsel %vm319, %v2536, 0
      %v2626 = vsel %vm319, %v2537, 0
      %v2629 = vsel %vm319, %v2538, 0
      %v2632 = vsel %vm319, %v2539, 0
      %v2635 = vsel %vm319, %v2540, 0
      %v2638 = vsel %vm319, %v2541, 0
      %v2641 = vsel %vm319, %v2542, 0
      %v2644 = vsel %vm319, %v2543, 0
      %v2647 = vsel %vm319, %v2544, 0
      %v2650 = vsel %vm319, %v2545, 0
      %v2653 = vsel %vm319, %v2546, 0
      %v2656 = vsel %vm319, %v2547, 0
      %v2659 = vsel %vm319, %v2548, 0
      %v2662 = vsel %vm319, %v2549, 0
      %v2665 = vsel %vm319, %v2550, 0
      %v2668 = vsel %vm319, %v2551, 0
      %v2671 = vsel %vm319, %v2552, 0
      %v2674 = vsel %vm319, %v2553, 0
      %v2677 = vsel %vm319, %v2554, 0
      %v2680 = vsel %vm319, %v2555, 0
      %v2683 = vsel %vm319, %v2556, 0
      %v2686 = vsel %vm319, %v2557, 0
      %v2689 = vsel %vm416, %v2591, 0
      %2691 = vmatprep.subr.mxu0 0.0
      %2692 = vmatpush1.msra.mxu0 %v2689
      %2693 = vmatprep.subr.mxu0 0.0
      %2694 = vmatpush1.msra.mxu0 0.0
      %2695 = vmatprep.subr.mxu0 0.0
      %2696 = vmatpush1.msra.mxu0 0.0
      %2697 = vmatprep.subr.mxu0 0.0
      %2698 = vmatpush1.msra.mxu0 0.0
      %2699 = vmatprep.subr.mxu0 0.0
      %2700 = vmatpush1.msra.mxu0 0.0
      %2701 = vmatprep.subr.mxu0 0.0
      %2702 = vmatpush1.msra.mxu0 0.0
      %2703 = vmatprep.subr.mxu0 0.0
      %2704 = vmatpush1.msra.mxu0 0.0
      %2705 = vmatprep.subr.mxu0 0.0
      %2706 = vmatpush1.msra.mxu0 0.0
      %2707 = vmatprep.subr.mxu0 0.0
      %2708 = vmatpush1.msra.mxu0 0.0
      %2709 = vmatprep.subr.mxu0 0.0
      %2710 = vmatpush1.msra.mxu0 0.0
      %2711 = vmatprep.subr.mxu0 0.0
      %2712 = vmatpush1.msra.mxu0 0.0
      %2713 = vmatprep.subr.mxu0 0.0
      %2714 = vmatpush1.msra.mxu0 0.0
      %2715 = vmatprep.subr.mxu0 0.0
      %2716 = vmatpush1.msra.mxu0 0.0
      %2717 = vmatprep.subr.mxu0 0.0
      %2718 = vmatpush1.msra.mxu0 0.0
      %2719 = vmatprep.subr.mxu0 0.0
      %2720 = vmatpush1.msra.mxu0 0.0
      %2721 = vmatprep.subr.mxu0 0.0
      %2722 = vmatpush1.msra.mxu0 0.0
      %2723 = vmatprep.subr.mxu0 0.0
      %2724 = vmatpush1.msra.mxu0 0.0
      %2725 = vmatprep.subr.mxu0 0.0
      %2726 = vmatpush1.msra.mxu0 0.0
      %2727 = vmatprep.subr.mxu0 0.0
      %2728 = vmatpush1.msra.mxu0 0.0
      %2729 = vmatprep.subr.mxu0 0.0
      %2730 = vmatpush1.msra.mxu0 0.0
      %2731 = vmatprep.subr.mxu0 0.0
      %2732 = vmatpush1.msra.mxu0 0.0
      %2733 = vmatprep.subr.mxu0 0.0
      %2734 = vmatpush1.msra.mxu0 0.0
      %2735 = vmatprep.subr.mxu0 0.0
      %2736 = vmatpush1.msra.mxu0 0.0
      %2737 = vmatprep.subr.mxu0 0.0
      %2738 = vmatpush1.msra.mxu0 0.0
      %2739 = vmatprep.subr.mxu0 0.0
      %2740 = vmatpush1.msra.mxu0 0.0
      %2741 = vmatprep.subr.mxu0 0.0
      %2742 = vmatpush1.msra.mxu0 0.0
      %2743 = vmatprep.subr.mxu0 0.0
      %2744 = vmatpush1.msra.mxu0 0.0
      %2745 = vmatprep.subr.mxu0 0.0
      %2746 = vmatpush1.msra.mxu0 0.0
      %2747 = vmatprep.subr.mxu0 0.0
      %2748 = vmatpush1.msra.mxu0 0.0
      %2749 = vmatprep.subr.mxu0 0.0
      %2750 = vmatpush1.msra.mxu0 0.0
      %2751 = vmatprep.subr.mxu0 0.0
      %2752 = vmatpush1.msra.mxu0 0.0
      %2753 = vmatprep.subr.mxu0 0.0
      %2754 = vmatpush1.msra.mxu0 0.0
      %2755 = vmatprep.mubr.f32.mxu0 0.0
      %2756 = vmatmul.mubr.f32.gmra.mrb[0].mxu0 %v2593
      %v2757 = vpop.f32.mrb[0].mxu0
      %v2758 = vadd.f32 0.0, %v2757
      %v2759 = vpop.f32.mrb[0].mxu0
      %2760 = vmatprep.mubr.f32.mxu0 0.0
      %2761 = vmatmul.mubr.f32.gmra.mrb[0].mxu0 %v2596
      %v2762 = vpop.f32.mrb[0].mxu0
      %v2763 = vadd.f32 0.0, %v2762
      %v2764 = vpop.f32.mrb[0].mxu0
      %2765 = vmatprep.mubr.f32.mxu0 0.0
      %2766 = vmatmul.mubr.f32.gmra.mrb[0].mxu0 %v2599
      %v2767 = vpop.f32.mrb[0].mxu0
      %v2768 = vadd.f32 0.0, %v2767
      %v2769 = vpop.f32.mrb[0].mxu0
      %2770 = vmatprep.mubr.f32.mxu0 0.0
      %2771 = vmatmul.mubr.f32.gmra.mrb[0].mxu0 %v2602
      %v2772 = vpop.f32.mrb[0].mxu0
      %v2773 = vadd.f32 0.0, %v2772
      %v2774 = vpop.f32.mrb[0].mxu0
      %2775 = vmatprep.mubr.f32.mxu0 0.0
      %2776 = vmatmul.mubr.f32.gmra.mrb[0].mxu0 %v2605
      %v2777 = vpop.f32.mrb[0].mxu0
      %v2778 = vadd.f32 0.0, %v2777
      %v2779 = vpop.f32.mrb[0].mxu0
      %2780 = vmatprep.mubr.f32.mxu0 0.0
      %2781 = vmatmul.mubr.f32.gmra.mrb[0].mxu0 %v2608
      %v2782 = vpop.f32.mrb[0].mxu0
      %v2783 = vadd.f32 0.0, %v2782
      %v2784 = vpop.f32.mrb[0].mxu0
      %2785 = vmatprep.mubr.f32.mxu0 0.0
      %2786 = vmatmul.mubr.f32.gmra.mrb[0].mxu0 %v2611
      %v2787 = vpop.f32.mrb[0].mxu0
      %v2788 = vadd.f32 0.0, %v2787
      %v2789 = vpop.f32.mrb[0].mxu0
      %2790 = vmatprep.mubr.f32.mxu0 0.0
      %2791 = vmatmul.mubr.f32.gmra.mrb[0].mxu0 %v2614
      %v2792 = vpop.f32.mrb[0].mxu0
      %v2793 = vadd.f32 0.0, %v2792
      %v2794 = vpop.f32.mrb[0].mxu0
      %2795 = vmatprep.mubr.f32.mxu0 0.0
      %2796 = vmatmul.mubr.f32.gmra.mrb[0].mxu0 %v2617
      %v2797 = vpop.f32.mrb[0].mxu0
      %v2798 = vadd.f32 0.0, %v2797
      %v2799 = vpop.f32.mrb[0].mxu0
      %2800 = vmatprep.mubr.f32.mxu0 0.0
      %2801 = vmatmul.mubr.f32.gmra.mrb[0].mxu0 %v2620
      %v2802 = vpop.f32.mrb[0].mxu0
      %v2803 = vadd.f32 0.0, %v2802
      %v2804 = vpop.f32.mrb[0].mxu0
      %2805 = vmatprep.mubr.f32.mxu0 0.0
      %2806 = vmatmul.mubr.f32.gmra.mrb[0].mxu0 %v2623
      %v2807 = vpop.f32.mrb[0].mxu0
      %v2808 = vadd.f32 0.0, %v2807
      %v2809 = vpop.f32.mrb[0].mxu0
      %2810 = vmatprep.mubr.f32.mxu0 0.0
      %2811 = vmatmul.mubr.f32.gmra.mrb[0].mxu0 %v2626
      %v2812 = vpop.f32.mrb[0].mxu0
      %v2813 = vadd.f32 0.0, %v2812
      %v2814 = vpop.f32.mrb[0].mxu0
      %2815 = vmatprep.mubr.f32.mxu0 0.0
      %2816 = vmatmul.mubr.f32.gmra.mrb[0].mxu0 %v2629
      %v2817 = vpop.f32.mrb[0].mxu0
      %v2818 = vadd.f32 0.0, %v2817
      %v2819 = vpop.f32.mrb[0].mxu0
      %2820 = vmatprep.mubr.f32.mxu0 0.0
      %2821 = vmatmul.mubr.f32.gmra.mrb[0].mxu0 %v2632
      %v2822 = vpop.f32.mrb[0].mxu0
      %v2823 = vadd.f32 0.0, %v2822
      %v2824 = vpop.f32.mrb[0].mxu0
      %2825 = vmatprep.mubr.f32.mxu0 0.0
      %2826 = vmatmul.mubr.f32.gmra.mrb[0].mxu0 %v2635
      %v2827 = vpop.f32.mrb[0].mxu0
      %v2828 = vadd.f32 0.0, %v2827
      %v2829 = vpop.f32.mrb[0].mxu0
      %2830 = vmatprep.mubr.f32.mxu0 0.0
      %2831 = vmatmul.mubr.f32.gmra.mrb[0].mxu0 %v2638
      %v2832 = vpop.f32.mrb[0].mxu0
      %v2833 = vadd.f32 0.0, %v2832
      %v2834 = vpop.f32.mrb[0].mxu0
      %2835 = vmatprep.mubr.f32.mxu0 0.0
      %2836 = vmatmul.mubr.f32.gmra.mrb[0].mxu0 %v2641
      %v2837 = vpop.f32.mrb[0].mxu0
      %v2838 = vadd.f32 0.0, %v2837
      %v2839 = vpop.f32.mrb[0].mxu0
      %2840 = vmatprep.mubr.f32.mxu0 0.0
      %2841 = vmatmul.mubr.f32.gmra.mrb[0].mxu0 %v2644
      %v2842 = vpop.f32.mrb[0].mxu0
      %v2843 = vadd.f32 0.0, %v2842
      %v2844 = vpop.f32.mrb[0].mxu0
      %2845 = vmatprep.mubr.f32.mxu0 0.0
      %2846 = vmatmul.mubr.f32.gmra.mrb[0].mxu0 %v2647
      %v2847 = vpop.f32.mrb[0].mxu0
      %v2848 = vadd.f32 0.0, %v2847
      %v2849 = vpop.f32.mrb[0].mxu0
      %2850 = vmatprep.mubr.f32.mxu0 0.0
      %2851 = vmatmul.mubr.f32.gmra.mrb[0].mxu0 %v2650
      %v2852 = vpop.f32.mrb[0].mxu0
      %v2853 = vadd.f32 0.0, %v2852
      %v2854 = vpop.f32.mrb[0].mxu0
      %2855 = vmatprep.mubr.f32.mxu0 0.0
      %2856 = vmatmul.mubr.f32.gmra.mrb[0].mxu0 %v2653
      %v2857 = vpop.f32.mrb[0].mxu0
      %v2858 = vadd.f32 0.0, %v2857
      %v2859 = vpop.f32.mrb[0].mxu0
      %2860 = vmatprep.mubr.f32.mxu0 0.0
      %2861 = vmatmul.mubr.f32.gmra.mrb[0].mxu0 %v2656
      %v2862 = vpop.f32.mrb[0].mxu0
      %v2863 = vadd.f32 0.0, %v2862
      %v2864 = vpop.f32.mrb[0].mxu0
      %2865 = vmatprep.mubr.f32.mxu0 0.0
      %2866 = vmatmul.mubr.f32.gmra.mrb[0].mxu0 %v2659
      %v2867 = vpop.f32.mrb[0].mxu0
      %v2868 = vadd.f32 0.0, %v2867
      %v2869 = vpop.f32.mrb[0].mxu0
      %2870 = vmatprep.mubr.f32.mxu0 0.0
      %2871 = vmatmul.mubr.f32.gmra.mrb[0].mxu0 %v2662
      %v2872 = vpop.f32.mrb[0].mxu0
      %v2873 = vadd.f32 0.0, %v2872
      %v2874 = vpop.f32.mrb[0].mxu0
      %2875 = vmatprep.mubr.f32.mxu0 0.0
      %2876 = vmatmul.mubr.f32.gmra.mrb[0].mxu0 %v2665
      %v2877 = vpop.f32.mrb[0].mxu0
      %v2878 = vadd.f32 0.0, %v2877
      %v2879 = vpop.f32.mrb[0].mxu0
      %2880 = vmatprep.mubr.f32.mxu0 0.0
      %2881 = vmatmul.mubr.f32.gmra.mrb[0].mxu0 %v2668
      %v2882 = vpop.f32.mrb[0].mxu0
      %v2883 = vadd.f32 0.0, %v2882
      %v2884 = vpop.f32.mrb[0].mxu0
      %2885 = vmatprep.mubr.f32.mxu0 0.0
      %2886 = vmatmul.mubr.f32.gmra.mrb[0].mxu0 %v2671
      %v2887 = vpop.f32.mrb[0].mxu0
      %v2888 = vadd.f32 0.0, %v2887
      %v2889 = vpop.f32.mrb[0].mxu0
      %2890 = vmatprep.mubr.f32.mxu0 0.0
      %2891 = vmatmul.mubr.f32.gmra.mrb[0].mxu0 %v2674
      %v2892 = vpop.f32.mrb[0].mxu0
      %v2893 = vadd.f32 0.0, %v2892
      %v2894 = vpop.f32.mrb[0].mxu0
      %2895 = vmatprep.mubr.f32.mxu0 0.0
      %2896 = vmatmul.mubr.f32.gmra.mrb[0].mxu0 %v2677
      %v2897 = vpop.f32.mrb[0].mxu0
      %v2898 = vadd.f32 0.0, %v2897
      %v2899 = vpop.f32.mrb[0].mxu0
      %2900 = vmatprep.mubr.f32.mxu0 0.0
      %2901 = vmatmul.mubr.f32.gmra.mrb[0].mxu0 %v2680
      %v2902 = vpop.f32.mrb[0].mxu0
      %v2903 = vadd.f32 0.0, %v2902
      %v2904 = vpop.f32.mrb[0].mxu0
      %2905 = vmatprep.mubr.f32.mxu0 0.0
      %2906 = vmatmul.mubr.f32.gmra.mrb[0].mxu0 %v2683
      %v2907 = vpop.f32.mrb[0].mxu0
      %v2908 = vadd.f32 0.0, %v2907
      %v2909 = vpop.f32.mrb[0].mxu0
      %2910 = vmatprep.mubr.f32.mxu0 0.0
      %2911 = vmatmul.mubr.f32.gmra.mrb[0].mxu0 %v2686
      %v2912 = vpop.f32.mrb[0].mxu0
      %v2913 = vadd.f32 0.0, %v2912
      %v2914 = vpop.f32.mrb[0].mxu0
      %2915 = vdwg.mxu0
      %v2916 = vadd.f32 %v2558, %v2758
      %v2917 = vadd.f32 %v2559, %v2763
      %v2918 = vadd.f32 %v2560, %v2768
      %v2919 = vadd.f32 %v2561, %v2773
      %v2920 = vadd.f32 %v2562, %v2778
      %v2921 = vadd.f32 %v2563, %v2783
      %v2922 = vadd.f32 %v2564, %v2788
      %v2923 = vadd.f32 %v2565, %v2793
      %v2924 = vadd.f32 %v2566, %v2798
      %v2925 = vadd.f32 %v2567, %v2803
      %v2926 = vadd.f32 %v2568, %v2808
      %v2927 = vadd.f32 %v2569, %v2813
      %v2928 = vadd.f32 %v2570, %v2818
      %v2929 = vadd.f32 %v2571, %v2823
      %v2930 = vadd.f32 %v2572, %v2828
      %v2931 = vadd.f32 %v2573, %v2833
      %v2932 = vadd.f32 %v2574, %v2838
      %v2933 = vadd.f32 %v2575, %v2843
      %v2934 = vadd.f32 %v2576, %v2848
      %v2935 = vadd.f32 %v2577, %v2853
      %v2936 = vadd.f32 %v2578, %v2858
      %v2937 = vadd.f32 %v2579, %v2863
      %v2938 = vadd.f32 %v2580, %v2868
      %v2939 = vadd.f32 %v2581, %v2873
      %v2940 = vadd.f32 %v2582, %v2878
      %v2941 = vadd.f32 %v2583, %v2883
      %v2942 = vadd.f32 %v2584, %v2888
      %v2943 = vadd.f32 %v2585, %v2893
      %v2944 = vadd.f32 %v2586, %v2898
      %v2945 = vadd.f32 %v2587, %v2903
      %v2946 = vadd.f32 %v2588, %v2908
      %v2947 = vadd.f32 %v2589, %v2913
      %2948 = vst [vmem:[#allocation2] sm:$0xff] %v2916
      %2949 = vst [vmem:[#allocation2 + $0x8] sm:$0xff] %v2917
      %2950 = vst [vmem:[#allocation2 + $0x10] sm:$0xff] %v2918
      %2951 = vst [vmem:[#allocation2 + $0x18] sm:$0xff] %v2919
      %2952 = vst [vmem:[#allocation2 + $0x20] sm:$0xff] %v2920
      %2953 = vst [vmem:[#allocation2 + $0x28] sm:$0xff] %v2921
      %2954 = vst [vmem:[#allocation2 + $0x30] sm:$0xff] %v2922
      %2955 = vst [vmem:[#allocation2 + $0x38] sm:$0xff] %v2923
      %2956 = vst [vmem:[#allocation2 + $0x40] sm:$0xff] %v2924
      %2957 = vst [vmem:[#allocation2 + $0x48] sm:$0xff] %v2925
      %2958 = vst [vmem:[#allocation2 + $0x50] sm:$0xff] %v2926
      %2959 = vst [vmem:[#allocation2 + $0x58] sm:$0xff] %v2927
      %2960 = vst [vmem:[#allocation2 + $0x60] sm:$0xff] %v2928
      %2961 = vst [vmem:[#allocation2 + $0x68] sm:$0xff] %v2929
      %2962 = vst [vmem:[#allocation2 + $0x70] sm:$0xff] %v2930
      %2963 = vst [vmem:[#allocation2 + $0x78] sm:$0xff] %v2931
      %2964 = vst [vmem:[#allocation2 + $0x80] sm:$0xff] %v2932
      %2965 = vst [vmem:[#allocation2 + $0x88] sm:$0xff] %v2933
      %2966 = vst [vmem:[#allocation2 + $0x90] sm:$0xff] %v2934
      %2967 = vst [vmem:[#allocation2 + $0x98] sm:$0xff] %v2935
      %2968 = vst [vmem:[#allocation2 + $0xa0] sm:$0xff] %v2936
      %2969 = vst [vmem:[#allocation2 + $0xa8] sm:$0xff] %v2937
      %2970 = vst [vmem:[#allocation2 + $0xb0] sm:$0xff] %v2938
      %2971 = vst [vmem:[#allocation2 + $0xb8] sm:$0xff] %v2939
      %2972 = vst [vmem:[#allocation2 + $0xc0] sm:$0xff] %v2940
      %2973 = vst [vmem:[#allocation2 + $0xc8] sm:$0xff] %v2941
      %2974 = vst [vmem:[#allocation2 + $0xd0] sm:$0xff] %v2942
      %2975 = vst [vmem:[#allocation2 + $0xd8] sm:$0xff] %v2943
      %2976 = vst [vmem:[#allocation2 + $0xe0] sm:$0xff] %v2944
      %2977 = vst [vmem:[#allocation2 + $0xe8] sm:$0xff] %v2945
      %2978 = vst [vmem:[#allocation2 + $0xf0] sm:$0xff] %v2946
      %2979 = vst [vmem:[#allocation2 + $0xf8] sm:$0xff] %v2947
      %s2980 = scalar_lea.vmem %s206, 48
      %v2981 = vld [vmem:[%s2980] sm:$0xff]
      %v2982 = vld [vmem:[%s2980 + $0x8] sm:$0xff]
      %v2983 = vld [vmem:[%s2980 + $0x18] sm:$0xff]
      %v2984 = vld [vmem:[%s2980 + $0x20] sm:$0xff]
      %v2985 = vld [vmem:[%s2980 + $0x30] sm:$0xff]
      %v2986 = vld [vmem:[%s2980 + $0x38] sm:$0xff]
      %v2987 = vld [vmem:[%s2980 + $0x48] sm:$0xff]
      %v2988 = vld [vmem:[%s2980 + $0x50] sm:$0xff]
      %v2989 = vld [vmem:[%s2980 + $0x60] sm:$0xff]
      %v2990 = vld [vmem:[%s2980 + $0x68] sm:$0xff]
      %v2991 = vld [vmem:[%s2980 + $0x78] sm:$0xff]
      %v2992 = vld [vmem:[%s2980 + $0x80] sm:$0xff]
      %v2993 = vld [vmem:[%s2980 + $0x90] sm:$0xff]
      %v2994 = vld [vmem:[%s2980 + $0x98] sm:$0xff]
      %v2995 = vld [vmem:[%s2980 + $0xa8] sm:$0xff]
      %v2996 = vld [vmem:[%s2980 + $0xb0] sm:$0xff]
      %v2997 = vld [vmem:[%s2980 + $0xc0] sm:$0xff]
      %v2998 = vld [vmem:[%s2980 + $0xc8] sm:$0xff]
      %v2999 = vld [vmem:[%s2980 + $0xd8] sm:$0xff]
      %v3000 = vld [vmem:[%s2980 + $0xe0] sm:$0xff]
      %v3001 = vld [vmem:[%s2980 + $0xf0] sm:$0xff]
      %v3002 = vld [vmem:[%s2980 + $0xf8] sm:$0xff]
      %v3003 = vld [vmem:[%s2980 + $0x108] sm:$0xff]
      %v3004 = vld [vmem:[%s2980 + $0x110] sm:$0xff]
      %v3005 = vld [vmem:[%s2980 + $0x120] sm:$0xff]
      %v3006 = vld [vmem:[%s2980 + $0x128] sm:$0xff]
      %v3007 = vld [vmem:[%s2980 + $0x138] sm:$0xff]
      %v3008 = vld [vmem:[%s2980 + $0x140] sm:$0xff]
      %v3009 = vld [vmem:[%s2980 + $0x150] sm:$0xff]
      %v3010 = vld [vmem:[%s2980 + $0x158] sm:$0xff]
      %v3011 = vld [vmem:[%s2980 + $0x168] sm:$0xff]
      %v3012 = vld [vmem:[%s2980 + $0x170] sm:$0xff]
      %v3013 = vld [vmem:[#allocation2] sm:$0xff]
      %v3014 = vld [vmem:[#allocation2 + $0x8] sm:$0xff]
      %v3015 = vld [vmem:[#allocation2 + $0x10] sm:$0xff]
      %v3016 = vld [vmem:[#allocation2 + $0x18] sm:$0xff]
      %v3017 = vld [vmem:[#allocation2 + $0x20] sm:$0xff]
      %v3018 = vld [vmem:[#allocation2 + $0x28] sm:$0xff]
      %v3019 = vld [vmem:[#allocation2 + $0x30] sm:$0xff]
      %v3020 = vld [vmem:[#allocation2 + $0x38] sm:$0xff]
      %v3021 = vld [vmem:[#allocation2 + $0x40] sm:$0xff]
      %v3022 = vld [vmem:[#allocation2 + $0x48] sm:$0xff]
      %v3023 = vld [vmem:[#allocation2 + $0x50] sm:$0xff]
      %v3024 = vld [vmem:[#allocation2 + $0x58] sm:$0xff]
      %v3025 = vld [vmem:[#allocation2 + $0x60] sm:$0xff]
      %v3026 = vld [vmem:[#allocation2 + $0x68] sm:$0xff]
      %v3027 = vld [vmem:[#allocation2 + $0x70] sm:$0xff]
      %v3028 = vld [vmem:[#allocation2 + $0x78] sm:$0xff]
      %v3029 = vld [vmem:[#allocation2 + $0x80] sm:$0xff]
      %v3030 = vld [vmem:[#allocation2 + $0x88] sm:$0xff]
      %v3031 = vld [vmem:[#allocation2 + $0x90] sm:$0xff]
      %v3032 = vld [vmem:[#allocation2 + $0x98] sm:$0xff]
      %v3033 = vld [vmem:[#allocation2 + $0xa0] sm:$0xff]
      %v3034 = vld [vmem:[#allocation2 + $0xa8] sm:$0xff]
      %v3035 = vld [vmem:[#allocation2 + $0xb0] sm:$0xff]
      %v3036 = vld [vmem:[#allocation2 + $0xb8] sm:$0xff]
      %v3037 = vld [vmem:[#allocation2 + $0xc0] sm:$0xff]
      %v3038 = vld [vmem:[#allocation2 + $0xc8] sm:$0xff]
      %v3039 = vld [vmem:[#allocation2 + $0xd0] sm:$0xff]
      %v3040 = vld [vmem:[#allocation2 + $0xd8] sm:$0xff]
      %v3041 = vld [vmem:[#allocation2 + $0xe0] sm:$0xff]
      %v3042 = vld [vmem:[#allocation2 + $0xe8] sm:$0xff]
      %v3043 = vld [vmem:[#allocation2 + $0xf0] sm:$0xff]
      %v3044 = vld [vmem:[#allocation2 + $0xf8] sm:$0xff]
      %s3045 = scalar_lea.vmem %s210, 24
      %v3046 = vld [vmem:[%s3045] sm:$0xf]
      %v3048 = vsel %vm319, %v2981, 0
      %v3051 = vsel %vm319, %v2982, 0
      %v3054 = vsel %vm319, %v2983, 0
      %v3057 = vsel %vm319, %v2984, 0
      %v3060 = vsel %vm319, %v2985, 0
      %v3063 = vsel %vm319, %v2986, 0
      %v3066 = vsel %vm319, %v2987, 0
      %v3069 = vsel %vm319, %v2988, 0
      %v3072 = vsel %vm319, %v2989, 0
      %v3075 = vsel %vm319, %v2990, 0
      %v3078 = vsel %vm319, %v2991, 0
      %v3081 = vsel %vm319, %v2992, 0
      %v3084 = vsel %vm319, %v2993, 0
      %v3087 = vsel %vm319, %v2994, 0
      %v3090 = vsel %vm319, %v2995, 0
      %v3093 = vsel %vm319, %v2996, 0
      %v3096 = vsel %vm319, %v2997, 0
      %v3099 = vsel %vm319, %v2998, 0
      %v3102 = vsel %vm319, %v2999, 0
      %v3105 = vsel %vm319, %v3000, 0
      %v3108 = vsel %vm319, %v3001, 0
      %v3111 = vsel %vm319, %v3002, 0
      %v3114 = vsel %vm319, %v3003, 0
      %v3117 = vsel %vm319, %v3004, 0
      %v3120 = vsel %vm319, %v3005, 0
      %v3123 = vsel %vm319, %v3006, 0
      %v3126 = vsel %vm319, %v3007, 0
      %v3129 = vsel %vm319, %v3008, 0
      %v3132 = vsel %vm319, %v3009, 0
      %v3135 = vsel %vm319, %v3010, 0
      %v3138 = vsel %vm319, %v3011, 0
      %v3141 = vsel %vm319, %v3012, 0
      %v3144 = vsel %vm416, %v3046, 0
      %3146 = vmatprep.subr.mxu0 0.0
      %3147 = vmatpush1.msra.mxu0 %v3144
      %3148 = vmatprep.subr.mxu0 0.0
      %3149 = vmatpush1.msra.mxu0 0.0
      %3150 = vmatprep.subr.mxu0 0.0
      %3151 = vmatpush1.msra.mxu0 0.0
      %3152 = vmatprep.subr.mxu0 0.0
      %3153 = vmatpush1.msra.mxu0 0.0
      %3154 = vmatprep.subr.mxu0 0.0
      %3155 = vmatpush1.msra.mxu0 0.0
      %3156 = vmatprep.subr.mxu0 0.0
      %3157 = vmatpush1.msra.mxu0 0.0
      %3158 = vmatprep.subr.mxu0 0.0
      %3159 = vmatpush1.msra.mxu0 0.0
      %3160 = vmatprep.subr.mxu0 0.0
      %3161 = vmatpush1.msra.mxu0 0.0
      %3162 = vmatprep.subr.mxu0 0.0
      %3163 = vmatpush1.msra.mxu0 0.0
      %3164 = vmatprep.subr.mxu0 0.0
      %3165 = vmatpush1.msra.mxu0 0.0
      %3166 = vmatprep.subr.mxu0 0.0
      %3167 = vmatpush1.msra.mxu0 0.0
      %3168 = vmatprep.subr.mxu0 0.0
      %3169 = vmatpush1.msra.mxu0 0.0
      %3170 = vmatprep.subr.mxu0 0.0
      %3171 = vmatpush1.msra.mxu0 0.0
      %3172 = vmatprep.subr.mxu0 0.0
      %3173 = vmatpush1.msra.mxu0 0.0
      %3174 = vmatprep.subr.mxu0 0.0
      %3175 = vmatpush1.msra.mxu0 0.0
      %3176 = vmatprep.subr.mxu0 0.0
      %3177 = vmatpush1.msra.mxu0 0.0
      %3178 = vmatprep.subr.mxu0 0.0
      %3179 = vmatpush1.msra.mxu0 0.0
      %3180 = vmatprep.subr.mxu0 0.0
      %3181 = vmatpush1.msra.mxu0 0.0
      %3182 = vmatprep.subr.mxu0 0.0
      %3183 = vmatpush1.msra.mxu0 0.0
      %3184 = vmatprep.subr.mxu0 0.0
      %3185 = vmatpush1.msra.mxu0 0.0
      %3186 = vmatprep.subr.mxu0 0.0
      %3187 = vmatpush1.msra.mxu0 0.0
      %3188 = vmatprep.subr.mxu0 0.0
      %3189 = vmatpush1.msra.mxu0 0.0
      %3190 = vmatprep.subr.mxu0 0.0
      %3191 = vmatpush1.msra.mxu0 0.0
      %3192 = vmatprep.subr.mxu0 0.0
      %3193 = vmatpush1.msra.mxu0 0.0
      %3194 = vmatprep.subr.mxu0 0.0
      %3195 = vmatpush1.msra.mxu0 0.0
      %3196 = vmatprep.subr.mxu0 0.0
      %3197 = vmatpush1.msra.mxu0 0.0
      %3198 = vmatprep.subr.mxu0 0.0
      %3199 = vmatpush1.msra.mxu0 0.0
      %3200 = vmatprep.subr.mxu0 0.0
      %3201 = vmatpush1.msra.mxu0 0.0
      %3202 = vmatprep.subr.mxu0 0.0
      %3203 = vmatpush1.msra.mxu0 0.0
      %3204 = vmatprep.subr.mxu0 0.0
      %3205 = vmatpush1.msra.mxu0 0.0
      %3206 = vmatprep.subr.mxu0 0.0
      %3207 = vmatpush1.msra.mxu0 0.0
      %3208 = vmatprep.subr.mxu0 0.0
      %3209 = vmatpush1.msra.mxu0 0.0
      %3210 = vmatprep.mubr.f32.mxu0 0.0
      %3211 = vmatmul.mubr.f32.gmra.mrb[0].mxu0 %v3048
      %v3212 = vpop.f32.mrb[0].mxu0
      %v3213 = vadd.f32 0.0, %v3212
      %v3214 = vpop.f32.mrb[0].mxu0
      %3215 = vmatprep.mubr.f32.mxu0 0.0
      %3216 = vmatmul.mubr.f32.gmra.mrb[0].mxu0 %v3051
      %v3217 = vpop.f32.mrb[0].mxu0
      %v3218 = vadd.f32 0.0, %v3217
      %v3219 = vpop.f32.mrb[0].mxu0
      %3220 = vmatprep.mubr.f32.mxu0 0.0
      %3221 = vmatmul.mubr.f32.gmra.mrb[0].mxu0 %v3054
      %v3222 = vpop.f32.mrb[0].mxu0
      %v3223 = vadd.f32 0.0, %v3222
      %v3224 = vpop.f32.mrb[0].mxu0
      %3225 = vmatprep.mubr.f32.mxu0 0.0
      %3226 = vmatmul.mubr.f32.gmra.mrb[0].mxu0 %v3057
      %v3227 = vpop.f32.mrb[0].mxu0
      %v3228 = vadd.f32 0.0, %v3227
      %v3229 = vpop.f32.mrb[0].mxu0
      %3230 = vmatprep.mubr.f32.mxu0 0.0
      %3231 = vmatmul.mubr.f32.gmra.mrb[0].mxu0 %v3060
      %v3232 = vpop.f32.mrb[0].mxu0
      %v3233 = vadd.f32 0.0, %v3232
      %v3234 = vpop.f32.mrb[0].mxu0
      %3235 = vmatprep.mubr.f32.mxu0 0.0
      %3236 = vmatmul.mubr.f32.gmra.mrb[0].mxu0 %v3063
      %v3237 = vpop.f32.mrb[0].mxu0
      %v3238 = vadd.f32 0.0, %v3237
      %v3239 = vpop.f32.mrb[0].mxu0
      %3240 = vmatprep.mubr.f32.mxu0 0.0
      %3241 = vmatmul.mubr.f32.gmra.mrb[0].mxu0 %v3066
      %v3242 = vpop.f32.mrb[0].mxu0
      %v3243 = vadd.f32 0.0, %v3242
      %v3244 = vpop.f32.mrb[0].mxu0
      %3245 = vmatprep.mubr.f32.mxu0 0.0
      %3246 = vmatmul.mubr.f32.gmra.mrb[0].mxu0 %v3069
      %v3247 = vpop.f32.mrb[0].mxu0
      %v3248 = vadd.f32 0.0, %v3247
      %v3249 = vpop.f32.mrb[0].mxu0
      %3250 = vmatprep.mubr.f32.mxu0 0.0
      %3251 = vmatmul.mubr.f32.gmra.mrb[0].mxu0 %v3072
      %v3252 = vpop.f32.mrb[0].mxu0
      %v3253 = vadd.f32 0.0, %v3252
      %v3254 = vpop.f32.mrb[0].mxu0
      %3255 = vmatprep.mubr.f32.mxu0 0.0
      %3256 = vmatmul.mubr.f32.gmra.mrb[0].mxu0 %v3075
      %v3257 = vpop.f32.mrb[0].mxu0
      %v3258 = vadd.f32 0.0, %v3257
      %v3259 = vpop.f32.mrb[0].mxu0
      %3260 = vmatprep.mubr.f32.mxu0 0.0
      %3261 = vmatmul.mubr.f32.gmra.mrb[0].mxu0 %v3078
      %v3262 = vpop.f32.mrb[0].mxu0
      %v3263 = vadd.f32 0.0, %v3262
      %v3264 = vpop.f32.mrb[0].mxu0
      %3265 = vmatprep.mubr.f32.mxu0 0.0
      %3266 = vmatmul.mubr.f32.gmra.mrb[0].mxu0 %v3081
      %v3267 = vpop.f32.mrb[0].mxu0
      %v3268 = vadd.f32 0.0, %v3267
      %v3269 = vpop.f32.mrb[0].mxu0
      %3270 = vmatprep.mubr.f32.mxu0 0.0
      %3271 = vmatmul.mubr.f32.gmra.mrb[0].mxu0 %v3084
      %v3272 = vpop.f32.mrb[0].mxu0
      %v3273 = vadd.f32 0.0, %v3272
      %v3274 = vpop.f32.mrb[0].mxu0
      %3275 = vmatprep.mubr.f32.mxu0 0.0
      %3276 = vmatmul.mubr.f32.gmra.mrb[0].mxu0 %v3087
      %v3277 = vpop.f32.mrb[0].mxu0
      %v3278 = vadd.f32 0.0, %v3277
      %v3279 = vpop.f32.mrb[0].mxu0
      %3280 = vmatprep.mubr.f32.mxu0 0.0
      %3281 = vmatmul.mubr.f32.gmra.mrb[0].mxu0 %v3090
      %v3282 = vpop.f32.mrb[0].mxu0
      %v3283 = vadd.f32 0.0, %v3282
      %v3284 = vpop.f32.mrb[0].mxu0
      %3285 = vmatprep.mubr.f32.mxu0 0.0
      %3286 = vmatmul.mubr.f32.gmra.mrb[0].mxu0 %v3093
      %v3287 = vpop.f32.mrb[0].mxu0
      %v3288 = vadd.f32 0.0, %v3287
      %v3289 = vpop.f32.mrb[0].mxu0
      %3290 = vmatprep.mubr.f32.mxu0 0.0
      %3291 = vmatmul.mubr.f32.gmra.mrb[0].mxu0 %v3096
      %v3292 = vpop.f32.mrb[0].mxu0
      %v3293 = vadd.f32 0.0, %v3292
      %v3294 = vpop.f32.mrb[0].mxu0
      %3295 = vmatprep.mubr.f32.mxu0 0.0
      %3296 = vmatmul.mubr.f32.gmra.mrb[0].mxu0 %v3099
      %v3297 = vpop.f32.mrb[0].mxu0
      %v3298 = vadd.f32 0.0, %v3297
      %v3299 = vpop.f32.mrb[0].mxu0
      %3300 = vmatprep.mubr.f32.mxu0 0.0
      %3301 = vmatmul.mubr.f32.gmra.mrb[0].mxu0 %v3102
      %v3302 = vpop.f32.mrb[0].mxu0
      %v3303 = vadd.f32 0.0, %v3302
      %v3304 = vpop.f32.mrb[0].mxu0
      %3305 = vmatprep.mubr.f32.mxu0 0.0
      %3306 = vmatmul.mubr.f32.gmra.mrb[0].mxu0 %v3105
      %v3307 = vpop.f32.mrb[0].mxu0
      %v3308 = vadd.f32 0.0, %v3307
      %v3309 = vpop.f32.mrb[0].mxu0
      %3310 = vmatprep.mubr.f32.mxu0 0.0
      %3311 = vmatmul.mubr.f32.gmra.mrb[0].mxu0 %v3108
      %v3312 = vpop.f32.mrb[0].mxu0
      %v3313 = vadd.f32 0.0, %v3312
      %v3314 = vpop.f32.mrb[0].mxu0
      %3315 = vmatprep.mubr.f32.mxu0 0.0
      %3316 = vmatmul.mubr.f32.gmra.mrb[0].mxu0 %v3111
      %v3317 = vpop.f32.mrb[0].mxu0
      %v3318 = vadd.f32 0.0, %v3317
      %v3319 = vpop.f32.mrb[0].mxu0
      %3320 = vmatprep.mubr.f32.mxu0 0.0
      %3321 = vmatmul.mubr.f32.gmra.mrb[0].mxu0 %v3114
      %v3322 = vpop.f32.mrb[0].mxu0
      %v3323 = vadd.f32 0.0, %v3322
      %v3324 = vpop.f32.mrb[0].mxu0
      %3325 = vmatprep.mubr.f32.mxu0 0.0
      %3326 = vmatmul.mubr.f32.gmra.mrb[0].mxu0 %v3117
      %v3327 = vpop.f32.mrb[0].mxu0
      %v3328 = vadd.f32 0.0, %v3327
      %v3329 = vpop.f32.mrb[0].mxu0
      %3330 = vmatprep.mubr.f32.mxu0 0.0
      %3331 = vmatmul.mubr.f32.gmra.mrb[0].mxu0 %v3120
      %v3332 = vpop.f32.mrb[0].mxu0
      %v3333 = vadd.f32 0.0, %v3332
      %v3334 = vpop.f32.mrb[0].mxu0
      %3335 = vmatprep.mubr.f32.mxu0 0.0
      %3336 = vmatmul.mubr.f32.gmra.mrb[0].mxu0 %v3123
      %v3337 = vpop.f32.mrb[0].mxu0
      %v3338 = vadd.f32 0.0, %v3337
      %v3339 = vpop.f32.mrb[0].mxu0
      %3340 = vmatprep.mubr.f32.mxu0 0.0
      %3341 = vmatmul.mubr.f32.gmra.mrb[0].mxu0 %v3126
      %v3342 = vpop.f32.mrb[0].mxu0
      %v3343 = vadd.f32 0.0, %v3342
      %v3344 = vpop.f32.mrb[0].mxu0
      %3345 = vmatprep.mubr.f32.mxu0 0.0
      %3346 = vmatmul.mubr.f32.gmra.mrb[0].mxu0 %v3129
      %v3347 = vpop.f32.mrb[0].mxu0
      %v3348 = vadd.f32 0.0, %v3347
      %v3349 = vpop.f32.mrb[0].mxu0
      %3350 = vmatprep.mubr.f32.mxu0 0.0
      %3351 = vmatmul.mubr.f32.gmra.mrb[0].mxu0 %v3132
      %v3352 = vpop.f32.mrb[0].mxu0
      %v3353 = vadd.f32 0.0, %v3352
      %v3354 = vpop.f32.mrb[0].mxu0
      %3355 = vmatprep.mubr.f32.mxu0 0.0
      %3356 = vmatmul.mubr.f32.gmra.mrb[0].mxu0 %v3135
      %v3357 = vpop.f32.mrb[0].mxu0
      %v3358 = vadd.f32 0.0, %v3357
      %v3359 = vpop.f32.mrb[0].mxu0
      %3360 = vmatprep.mubr.f32.mxu0 0.0
      %3361 = vmatmul.mubr.f32.gmra.mrb[0].mxu0 %v3138
      %v3362 = vpop.f32.mrb[0].mxu0
      %v3363 = vadd.f32 0.0, %v3362
      %v3364 = vpop.f32.mrb[0].mxu0
      %3365 = vmatprep.mubr.f32.mxu0 0.0
      %3366 = vmatmul.mubr.f32.gmra.mrb[0].mxu0 %v3141
      %v3367 = vpop.f32.mrb[0].mxu0
      %v3368 = vadd.f32 0.0, %v3367
      %v3369 = vpop.f32.mrb[0].mxu0
      %3370 = vdwg.mxu0
      %v3371 = vadd.f32 %v3013, %v3213
      %v3372 = vadd.f32 %v3014, %v3218
      %v3373 = vadd.f32 %v3015, %v3223
      %v3374 = vadd.f32 %v3016, %v3228
      %v3375 = vadd.f32 %v3017, %v3233
      %v3376 = vadd.f32 %v3018, %v3238
      %v3377 = vadd.f32 %v3019, %v3243
      %v3378 = vadd.f32 %v3020, %v3248
      %v3379 = vadd.f32 %v3021, %v3253
      %v3380 = vadd.f32 %v3022, %v3258
      %v3381 = vadd.f32 %v3023, %v3263
      %v3382 = vadd.f32 %v3024, %v3268
      %v3383 = vadd.f32 %v3025, %v3273
      %v3384 = vadd.f32 %v3026, %v3278
      %v3385 = vadd.f32 %v3027, %v3283
      %v3386 = vadd.f32 %v3028, %v3288
      %v3387 = vadd.f32 %v3029, %v3293
      %v3388 = vadd.f32 %v3030, %v3298
      %v3389 = vadd.f32 %v3031, %v3303
      %v3390 = vadd.f32 %v3032, %v3308
      %v3391 = vadd.f32 %v3033, %v3313
      %v3392 = vadd.f32 %v3034, %v3318
      %v3393 = vadd.f32 %v3035, %v3323
      %v3394 = vadd.f32 %v3036, %v3328
      %v3395 = vadd.f32 %v3037, %v3333
      %v3396 = vadd.f32 %v3038, %v3338
      %v3397 = vadd.f32 %v3039, %v3343
      %v3398 = vadd.f32 %v3040, %v3348
      %v3399 = vadd.f32 %v3041, %v3353
      %v3400 = vadd.f32 %v3042, %v3358
      %v3401 = vadd.f32 %v3043, %v3363
      %v3402 = vadd.f32 %v3044, %v3368
      %3403 = vst [vmem:[#allocation2] sm:$0xff] %v3371
      %3404 = vst [vmem:[#allocation2 + $0x8] sm:$0xff] %v3372
      %3405 = vst [vmem:[#allocation2 + $0x10] sm:$0xff] %v3373
      %3406 = vst [vmem:[#allocation2 + $0x18] sm:$0xff] %v3374
      %3407 = vst [vmem:[#allocation2 + $0x20] sm:$0xff] %v3375
      %3408 = vst [vmem:[#allocation2 + $0x28] sm:$0xff] %v3376
      %3409 = vst [vmem:[#allocation2 + $0x30] sm:$0xff] %v3377
      %3410 = vst [vmem:[#allocation2 + $0x38] sm:$0xff] %v3378
      %3411 = vst [vmem:[#allocation2 + $0x40] sm:$0xff] %v3379
      %3412 = vst [vmem:[#allocation2 + $0x48] sm:$0xff] %v3380
      %3413 = vst [vmem:[#allocation2 + $0x50] sm:$0xff] %v3381
      %3414 = vst [vmem:[#allocation2 + $0x58] sm:$0xff] %v3382
      %3415 = vst [vmem:[#allocation2 + $0x60] sm:$0xff] %v3383
      %3416 = vst [vmem:[#allocation2 + $0x68] sm:$0xff] %v3384
      %3417 = vst [vmem:[#allocation2 + $0x70] sm:$0xff] %v3385
      %3418 = vst [vmem:[#allocation2 + $0x78] sm:$0xff] %v3386
      %3419 = vst [vmem:[#allocation2 + $0x80] sm:$0xff] %v3387
      %3420 = vst [vmem:[#allocation2 + $0x88] sm:$0xff] %v3388
      %3421 = vst [vmem:[#allocation2 + $0x90] sm:$0xff] %v3389
      %3422 = vst [vmem:[#allocation2 + $0x98] sm:$0xff] %v3390
      %3423 = vst [vmem:[#allocation2 + $0xa0] sm:$0xff] %v3391
      %3424 = vst [vmem:[#allocation2 + $0xa8] sm:$0xff] %v3392
      %3425 = vst [vmem:[#allocation2 + $0xb0] sm:$0xff] %v3393
      %3426 = vst [vmem:[#allocation2 + $0xb8] sm:$0xff] %v3394
      %3427 = vst [vmem:[#allocation2 + $0xc0] sm:$0xff] %v3395
      %3428 = vst [vmem:[#allocation2 + $0xc8] sm:$0xff] %v3396
      %3429 = vst [vmem:[#allocation2 + $0xd0] sm:$0xff] %v3397
      %3430 = vst [vmem:[#allocation2 + $0xd8] sm:$0xff] %v3398
      %3431 = vst [vmem:[#allocation2 + $0xe0] sm:$0xff] %v3399
      %3432 = vst [vmem:[#allocation2 + $0xe8] sm:$0xff] %v3400
      %3433 = vst [vmem:[#allocation2 + $0xf0] sm:$0xff] %v3401
      %3434 = vst [vmem:[#allocation2 + $0xf8] sm:$0xff] %v3402
      %v3435 = vld [vmem:[%s2980 + $0x1] sm:$0xff]
      %v3436 = vld [vmem:[%s2980 + $0x9] sm:$0xff]
      %v3437 = vld [vmem:[%s2980 + $0x19] sm:$0xff]
      %v3438 = vld [vmem:[%s2980 + $0x21] sm:$0xff]
      %v3439 = vld [vmem:[%s2980 + $0x31] sm:$0xff]
      %v3440 = vld [vmem:[%s2980 + $0x39] sm:$0xff]
      %v3441 = vld [vmem:[%s2980 + $0x49] sm:$0xff]
      %v3442 = vld [vmem:[%s2980 + $0x51] sm:$0xff]
      %v3443 = vld [vmem:[%s2980 + $0x61] sm:$0xff]
      %v3444 = vld [vmem:[%s2980 + $0x69] sm:$0xff]
      %v3445 = vld [vmem:[%s2980 + $0x79] sm:$0xff]
      %v3446 = vld [vmem:[%s2980 + $0x81] sm:$0xff]
      %v3447 = vld [vmem:[%s2980 + $0x91] sm:$0xff]
      %v3448 = vld [vmem:[%s2980 + $0x99] sm:$0xff]
      %v3449 = vld [vmem:[%s2980 + $0xa9] sm:$0xff]
      %v3450 = vld [vmem:[%s2980 + $0xb1] sm:$0xff]
      %v3451 = vld [vmem:[%s2980 + $0xc1] sm:$0xff]
      %v3452 = vld [vmem:[%s2980 + $0xc9] sm:$0xff]
      %v3453 = vld [vmem:[%s2980 + $0xd9] sm:$0xff]
      %v3454 = vld [vmem:[%s2980 + $0xe1] sm:$0xff]
      %v3455 = vld [vmem:[%s2980 + $0xf1] sm:$0xff]
      %v3456 = vld [vmem:[%s2980 + $0xf9] sm:$0xff]
      %v3457 = vld [vmem:[%s2980 + $0x109] sm:$0xff]
      %v3458 = vld [vmem:[%s2980 + $0x111] sm:$0xff]
      %v3459 = vld [vmem:[%s2980 + $0x121] sm:$0xff]
      %v3460 = vld [vmem:[%s2980 + $0x129] sm:$0xff]
      %v3461 = vld [vmem:[%s2980 + $0x139] sm:$0xff]
      %v3462 = vld [vmem:[%s2980 + $0x141] sm:$0xff]
      %v3463 = vld [vmem:[%s2980 + $0x151] sm:$0xff]
      %v3464 = vld [vmem:[%s2980 + $0x159] sm:$0xff]
      %v3465 = vld [vmem:[%s2980 + $0x169] sm:$0xff]
      %v3466 = vld [vmem:[%s2980 + $0x171] sm:$0xff]
      %v3467 = vld [vmem:[#allocation2] sm:$0xff]
      %v3468 = vld [vmem:[#allocation2 + $0x8] sm:$0xff]
      %v3469 = vld [vmem:[#allocation2 + $0x10] sm:$0xff]
      %v3470 = vld [vmem:[#allocation2 + $0x18] sm:$0xff]
      %v3471 = vld [vmem:[#allocation2 + $0x20] sm:$0xff]
      %v3472 = vld [vmem:[#allocation2 + $0x28] sm:$0xff]
      %v3473 = vld [vmem:[#allocation2 + $0x30] sm:$0xff]
      %v3474 = vld [vmem:[#allocation2 + $0x38] sm:$0xff]
      %v3475 = vld [vmem:[#allocation2 + $0x40] sm:$0xff]
      %v3476 = vld [vmem:[#allocation2 + $0x48] sm:$0xff]
      %v3477 = vld [vmem:[#allocation2 + $0x50] sm:$0xff]
      %v3478 = vld [vmem:[#allocation2 + $0x58] sm:$0xff]
      %v3479 = vld [vmem:[#allocation2 + $0x60] sm:$0xff]
      %v3480 = vld [vmem:[#allocation2 + $0x68] sm:$0xff]
      %v3481 = vld [vmem:[#allocation2 + $0x70] sm:$0xff]
      %v3482 = vld [vmem:[#allocation2 + $0x78] sm:$0xff]
      %v3483 = vld [vmem:[#allocation2 + $0x80] sm:$0xff]
      %v3484 = vld [vmem:[#allocation2 + $0x88] sm:$0xff]
      %v3485 = vld [vmem:[#allocation2 + $0x90] sm:$0xff]
      %v3486 = vld [vmem:[#allocation2 + $0x98] sm:$0xff]
      %v3487 = vld [vmem:[#allocation2 + $0xa0] sm:$0xff]
      %v3488 = vld [vmem:[#allocation2 + $0xa8] sm:$0xff]
      %v3489 = vld [vmem:[#allocation2 + $0xb0] sm:$0xff]
      %v3490 = vld [vmem:[#allocation2 + $0xb8] sm:$0xff]
      %v3491 = vld [vmem:[#allocation2 + $0xc0] sm:$0xff]
      %v3492 = vld [vmem:[#allocation2 + $0xc8] sm:$0xff]
      %v3493 = vld [vmem:[#allocation2 + $0xd0] sm:$0xff]
      %v3494 = vld [vmem:[#allocation2 + $0xd8] sm:$0xff]
      %v3495 = vld [vmem:[#allocation2 + $0xe0] sm:$0xff]
      %v3496 = vld [vmem:[#allocation2 + $0xe8] sm:$0xff]
      %v3497 = vld [vmem:[#allocation2 + $0xf0] sm:$0xff]
      %v3498 = vld [vmem:[#allocation2 + $0xf8] sm:$0xff]
      %s3499 = scalar_lea.vmem %s210, 28
      %v3500 = vld [vmem:[%s3499] sm:$0xf]
      %v3502 = vsel %vm319, %v3435, 0
      %v3505 = vsel %vm319, %v3436, 0
      %v3508 = vsel %vm319, %v3437, 0
      %v3511 = vsel %vm319, %v3438, 0
      %v3514 = vsel %vm319, %v3439, 0
      %v3517 = vsel %vm319, %v3440, 0
      %v3520 = vsel %vm319, %v3441, 0
      %v3523 = vsel %vm319, %v3442, 0
      %v3526 = vsel %vm319, %v3443, 0
      %v3529 = vsel %vm319, %v3444, 0
      %v3532 = vsel %vm319, %v3445, 0
      %v3535 = vsel %vm319, %v3446, 0
      %v3538 = vsel %vm319, %v3447, 0
      %v3541 = vsel %vm319, %v3448, 0
      %v3544 = vsel %vm319, %v3449, 0
      %v3547 = vsel %vm319, %v3450, 0
      %v3550 = vsel %vm319, %v3451, 0
      %v3553 = vsel %vm319, %v3452, 0
      %v3556 = vsel %vm319, %v3453, 0
      %v3559 = vsel %vm319, %v3454, 0
      %v3562 = vsel %vm319, %v3455, 0
      %v3565 = vsel %vm319, %v3456, 0
      %v3568 = vsel %vm319, %v3457, 0
      %v3571 = vsel %vm319, %v3458, 0
      %v3574 = vsel %vm319, %v3459, 0
      %v3577 = vsel %vm319, %v3460, 0
      %v3580 = vsel %vm319, %v3461, 0
      %v3583 = vsel %vm319, %v3462, 0
      %v3586 = vsel %vm319, %v3463, 0
      %v3589 = vsel %vm319, %v3464, 0
      %v3592 = vsel %vm319, %v3465, 0
      %v3595 = vsel %vm319, %v3466, 0
      %v3598 = vsel %vm416, %v3500, 0
      %3600 = vmatprep.subr.mxu0 0.0
      %3601 = vmatpush1.msra.mxu0 %v3598
      %3602 = vmatprep.subr.mxu0 0.0
      %3603 = vmatpush1.msra.mxu0 0.0
      %3604 = vmatprep.subr.mxu0 0.0
      %3605 = vmatpush1.msra.mxu0 0.0
      %3606 = vmatprep.subr.mxu0 0.0
      %3607 = vmatpush1.msra.mxu0 0.0
      %3608 = vmatprep.subr.mxu0 0.0
      %3609 = vmatpush1.msra.mxu0 0.0
      %3610 = vmatprep.subr.mxu0 0.0
      %3611 = vmatpush1.msra.mxu0 0.0
      %3612 = vmatprep.subr.mxu0 0.0
      %3613 = vmatpush1.msra.mxu0 0.0
      %3614 = vmatprep.subr.mxu0 0.0
      %3615 = vmatpush1.msra.mxu0 0.0
      %3616 = vmatprep.subr.mxu0 0.0
      %3617 = vmatpush1.msra.mxu0 0.0
      %3618 = vmatprep.subr.mxu0 0.0
      %3619 = vmatpush1.msra.mxu0 0.0
      %3620 = vmatprep.subr.mxu0 0.0
      %3621 = vmatpush1.msra.mxu0 0.0
      %3622 = vmatprep.subr.mxu0 0.0
      %3623 = vmatpush1.msra.mxu0 0.0
      %3624 = vmatprep.subr.mxu0 0.0
      %3625 = vmatpush1.msra.mxu0 0.0
      %3626 = vmatprep.subr.mxu0 0.0
      %3627 = vmatpush1.msra.mxu0 0.0
      %3628 = vmatprep.subr.mxu0 0.0
      %3629 = vmatpush1.msra.mxu0 0.0
      %3630 = vmatprep.subr.mxu0 0.0
      %3631 = vmatpush1.msra.mxu0 0.0
      %3632 = vmatprep.subr.mxu0 0.0
      %3633 = vmatpush1.msra.mxu0 0.0
      %3634 = vmatprep.subr.mxu0 0.0
      %3635 = vmatpush1.msra.mxu0 0.0
      %3636 = vmatprep.subr.mxu0 0.0
      %3637 = vmatpush1.msra.mxu0 0.0
      %3638 = vmatprep.subr.mxu0 0.0
      %3639 = vmatpush1.msra.mxu0 0.0
      %3640 = vmatprep.subr.mxu0 0.0
      %3641 = vmatpush1.msra.mxu0 0.0
      %3642 = vmatprep.subr.mxu0 0.0
      %3643 = vmatpush1.msra.mxu0 0.0
      %3644 = vmatprep.subr.mxu0 0.0
      %3645 = vmatpush1.msra.mxu0 0.0
      %3646 = vmatprep.subr.mxu0 0.0
      %3647 = vmatpush1.msra.mxu0 0.0
      %3648 = vmatprep.subr.mxu0 0.0
      %3649 = vmatpush1.msra.mxu0 0.0
      %3650 = vmatprep.subr.mxu0 0.0
      %3651 = vmatpush1.msra.mxu0 0.0
      %3652 = vmatprep.subr.mxu0 0.0
      %3653 = vmatpush1.msra.mxu0 0.0
      %3654 = vmatprep.subr.mxu0 0.0
      %3655 = vmatpush1.msra.mxu0 0.0
      %3656 = vmatprep.subr.mxu0 0.0
      %3657 = vmatpush1.msra.mxu0 0.0
      %3658 = vmatprep.subr.mxu0 0.0
      %3659 = vmatpush1.msra.mxu0 0.0
      %3660 = vmatprep.subr.mxu0 0.0
      %3661 = vmatpush1.msra.mxu0 0.0
      %3662 = vmatprep.subr.mxu0 0.0
      %3663 = vmatpush1.msra.mxu0 0.0
      %3664 = vmatprep.mubr.f32.mxu0 0.0
      %3665 = vmatmul.mubr.f32.gmra.mrb[0].mxu0 %v3502
      %v3666 = vpop.f32.mrb[0].mxu0
      %v3667 = vadd.f32 0.0, %v3666
      %v3668 = vpop.f32.mrb[0].mxu0
      %3669 = vmatprep.mubr.f32.mxu0 0.0
      %3670 = vmatmul.mubr.f32.gmra.mrb[0].mxu0 %v3505
      %v3671 = vpop.f32.mrb[0].mxu0
      %v3672 = vadd.f32 0.0, %v3671
      %v3673 = vpop.f32.mrb[0].mxu0
      %3674 = vmatprep.mubr.f32.mxu0 0.0
      %3675 = vmatmul.mubr.f32.gmra.mrb[0].mxu0 %v3508
      %v3676 = vpop.f32.mrb[0].mxu0
      %v3677 = vadd.f32 0.0, %v3676
      %v3678 = vpop.f32.mrb[0].mxu0
      %3679 = vmatprep.mubr.f32.mxu0 0.0
      %3680 = vmatmul.mubr.f32.gmra.mrb[0].mxu0 %v3511
      %v3681 = vpop.f32.mrb[0].mxu0
      %v3682 = vadd.f32 0.0, %v3681
      %v3683 = vpop.f32.mrb[0].mxu0
      %3684 = vmatprep.mubr.f32.mxu0 0.0
      %3685 = vmatmul.mubr.f32.gmra.mrb[0].mxu0 %v3514
      %v3686 = vpop.f32.mrb[0].mxu0
      %v3687 = vadd.f32 0.0, %v3686
      %v3688 = vpop.f32.mrb[0].mxu0
      %3689 = vmatprep.mubr.f32.mxu0 0.0
      %3690 = vmatmul.mubr.f32.gmra.mrb[0].mxu0 %v3517
      %v3691 = vpop.f32.mrb[0].mxu0
      %v3692 = vadd.f32 0.0, %v3691
      %v3693 = vpop.f32.mrb[0].mxu0
      %3694 = vmatprep.mubr.f32.mxu0 0.0
      %3695 = vmatmul.mubr.f32.gmra.mrb[0].mxu0 %v3520
      %v3696 = vpop.f32.mrb[0].mxu0
      %v3697 = vadd.f32 0.0, %v3696
      %v3698 = vpop.f32.mrb[0].mxu0
      %3699 = vmatprep.mubr.f32.mxu0 0.0
      %3700 = vmatmul.mubr.f32.gmra.mrb[0].mxu0 %v3523
      %v3701 = vpop.f32.mrb[0].mxu0
      %v3702 = vadd.f32 0.0, %v3701
      %v3703 = vpop.f32.mrb[0].mxu0
      %3704 = vmatprep.mubr.f32.mxu0 0.0
      %3705 = vmatmul.mubr.f32.gmra.mrb[0].mxu0 %v3526
      %v3706 = vpop.f32.mrb[0].mxu0
      %v3707 = vadd.f32 0.0, %v3706
      %v3708 = vpop.f32.mrb[0].mxu0
      %3709 = vmatprep.mubr.f32.mxu0 0.0
      %3710 = vmatmul.mubr.f32.gmra.mrb[0].mxu0 %v3529
      %v3711 = vpop.f32.mrb[0].mxu0
      %v3712 = vadd.f32 0.0, %v3711
      %v3713 = vpop.f32.mrb[0].mxu0
      %3714 = vmatprep.mubr.f32.mxu0 0.0
      %3715 = vmatmul.mubr.f32.gmra.mrb[0].mxu0 %v3532
      %v3716 = vpop.f32.mrb[0].mxu0
      %v3717 = vadd.f32 0.0, %v3716
      %v3718 = vpop.f32.mrb[0].mxu0
      %3719 = vmatprep.mubr.f32.mxu0 0.0
      %3720 = vmatmul.mubr.f32.gmra.mrb[0].mxu0 %v3535
      %v3721 = vpop.f32.mrb[0].mxu0
      %v3722 = vadd.f32 0.0, %v3721
      %v3723 = vpop.f32.mrb[0].mxu0
      %3724 = vmatprep.mubr.f32.mxu0 0.0
      %3725 = vmatmul.mubr.f32.gmra.mrb[0].mxu0 %v3538
      %v3726 = vpop.f32.mrb[0].mxu0
      %v3727 = vadd.f32 0.0, %v3726
      %v3728 = vpop.f32.mrb[0].mxu0
      %3729 = vmatprep.mubr.f32.mxu0 0.0
      %3730 = vmatmul.mubr.f32.gmra.mrb[0].mxu0 %v3541
      %v3731 = vpop.f32.mrb[0].mxu0
      %v3732 = vadd.f32 0.0, %v3731
      %v3733 = vpop.f32.mrb[0].mxu0
      %3734 = vmatprep.mubr.f32.mxu0 0.0
      %3735 = vmatmul.mubr.f32.gmra.mrb[0].mxu0 %v3544
      %v3736 = vpop.f32.mrb[0].mxu0
      %v3737 = vadd.f32 0.0, %v3736
      %v3738 = vpop.f32.mrb[0].mxu0
      %3739 = vmatprep.mubr.f32.mxu0 0.0
      %3740 = vmatmul.mubr.f32.gmra.mrb[0].mxu0 %v3547
      %v3741 = vpop.f32.mrb[0].mxu0
      %v3742 = vadd.f32 0.0, %v3741
      %v3743 = vpop.f32.mrb[0].mxu0
      %3744 = vmatprep.mubr.f32.mxu0 0.0
      %3745 = vmatmul.mubr.f32.gmra.mrb[0].mxu0 %v3550
      %v3746 = vpop.f32.mrb[0].mxu0
      %v3747 = vadd.f32 0.0, %v3746
      %v3748 = vpop.f32.mrb[0].mxu0
      %3749 = vmatprep.mubr.f32.mxu0 0.0
      %3750 = vmatmul.mubr.f32.gmra.mrb[0].mxu0 %v3553
      %v3751 = vpop.f32.mrb[0].mxu0
      %v3752 = vadd.f32 0.0, %v3751
      %v3753 = vpop.f32.mrb[0].mxu0
      %3754 = vmatprep.mubr.f32.mxu0 0.0
      %3755 = vmatmul.mubr.f32.gmra.mrb[0].mxu0 %v3556
      %v3756 = vpop.f32.mrb[0].mxu0
      %v3757 = vadd.f32 0.0, %v3756
      %v3758 = vpop.f32.mrb[0].mxu0
      %3759 = vmatprep.mubr.f32.mxu0 0.0
      %3760 = vmatmul.mubr.f32.gmra.mrb[0].mxu0 %v3559
      %v3761 = vpop.f32.mrb[0].mxu0
      %v3762 = vadd.f32 0.0, %v3761
      %v3763 = vpop.f32.mrb[0].mxu0
      %3764 = vmatprep.mubr.f32.mxu0 0.0
      %3765 = vmatmul.mubr.f32.gmra.mrb[0].mxu0 %v3562
      %v3766 = vpop.f32.mrb[0].mxu0
      %v3767 = vadd.f32 0.0, %v3766
      %v3768 = vpop.f32.mrb[0].mxu0
      %3769 = vmatprep.mubr.f32.mxu0 0.0
      %3770 = vmatmul.mubr.f32.gmra.mrb[0].mxu0 %v3565
      %v3771 = vpop.f32.mrb[0].mxu0
      %v3772 = vadd.f32 0.0, %v3771
      %v3773 = vpop.f32.mrb[0].mxu0
      %3774 = vmatprep.mubr.f32.mxu0 0.0
      %3775 = vmatmul.mubr.f32.gmra.mrb[0].mxu0 %v3568
      %v3776 = vpop.f32.mrb[0].mxu0
      %v3777 = vadd.f32 0.0, %v3776
      %v3778 = vpop.f32.mrb[0].mxu0
      %3779 = vmatprep.mubr.f32.mxu0 0.0
      %3780 = vmatmul.mubr.f32.gmra.mrb[0].mxu0 %v3571
      %v3781 = vpop.f32.mrb[0].mxu0
      %v3782 = vadd.f32 0.0, %v3781
      %v3783 = vpop.f32.mrb[0].mxu0
      %3784 = vmatprep.mubr.f32.mxu0 0.0
      %3785 = vmatmul.mubr.f32.gmra.mrb[0].mxu0 %v3574
      %v3786 = vpop.f32.mrb[0].mxu0
      %v3787 = vadd.f32 0.0, %v3786
      %v3788 = vpop.f32.mrb[0].mxu0
      %3789 = vmatprep.mubr.f32.mxu0 0.0
      %3790 = vmatmul.mubr.f32.gmra.mrb[0].mxu0 %v3577
      %v3791 = vpop.f32.mrb[0].mxu0
      %v3792 = vadd.f32 0.0, %v3791
      %v3793 = vpop.f32.mrb[0].mxu0
      %3794 = vmatprep.mubr.f32.mxu0 0.0
      %3795 = vmatmul.mubr.f32.gmra.mrb[0].mxu0 %v3580
      %v3796 = vpop.f32.mrb[0].mxu0
      %v3797 = vadd.f32 0.0, %v3796
      %v3798 = vpop.f32.mrb[0].mxu0
      %3799 = vmatprep.mubr.f32.mxu0 0.0
      %3800 = vmatmul.mubr.f32.gmra.mrb[0].mxu0 %v3583
      %v3801 = vpop.f32.mrb[0].mxu0
      %v3802 = vadd.f32 0.0, %v3801
      %v3803 = vpop.f32.mrb[0].mxu0
      %3804 = vmatprep.mubr.f32.mxu0 0.0
      %3805 = vmatmul.mubr.f32.gmra.mrb[0].mxu0 %v3586
      %v3806 = vpop.f32.mrb[0].mxu0
      %v3807 = vadd.f32 0.0, %v3806
      %v3808 = vpop.f32.mrb[0].mxu0
      %3809 = vmatprep.mubr.f32.mxu0 0.0
      %3810 = vmatmul.mubr.f32.gmra.mrb[0].mxu0 %v3589
      %v3811 = vpop.f32.mrb[0].mxu0
      %v3812 = vadd.f32 0.0, %v3811
      %v3813 = vpop.f32.mrb[0].mxu0
      %3814 = vmatprep.mubr.f32.mxu0 0.0
      %3815 = vmatmul.mubr.f32.gmra.mrb[0].mxu0 %v3592
      %v3816 = vpop.f32.mrb[0].mxu0
      %v3817 = vadd.f32 0.0, %v3816
      %v3818 = vpop.f32.mrb[0].mxu0
      %3819 = vmatprep.mubr.f32.mxu0 0.0
      %3820 = vmatmul.mubr.f32.gmra.mrb[0].mxu0 %v3595
      %v3821 = vpop.f32.mrb[0].mxu0
      %v3822 = vadd.f32 0.0, %v3821
      %v3823 = vpop.f32.mrb[0].mxu0
      %3824 = vdwg.mxu0
      %v3825 = vadd.f32 %v3467, %v3667
      %v3826 = vadd.f32 %v3468, %v3672
      %v3827 = vadd.f32 %v3469, %v3677
      %v3828 = vadd.f32 %v3470, %v3682
      %v3829 = vadd.f32 %v3471, %v3687
      %v3830 = vadd.f32 %v3472, %v3692
      %v3831 = vadd.f32 %v3473, %v3697
      %v3832 = vadd.f32 %v3474, %v3702
      %v3833 = vadd.f32 %v3475, %v3707
      %v3834 = vadd.f32 %v3476, %v3712
      %v3835 = vadd.f32 %v3477, %v3717
      %v3836 = vadd.f32 %v3478, %v3722
      %v3837 = vadd.f32 %v3479, %v3727
      %v3838 = vadd.f32 %v3480, %v3732
      %v3839 = vadd.f32 %v3481, %v3737
      %v3840 = vadd.f32 %v3482, %v3742
      %v3841 = vadd.f32 %v3483, %v3747
      %v3842 = vadd.f32 %v3484, %v3752
      %v3843 = vadd.f32 %v3485, %v3757
      %v3844 = vadd.f32 %v3486, %v3762
      %v3845 = vadd.f32 %v3487, %v3767
      %v3846 = vadd.f32 %v3488, %v3772
      %v3847 = vadd.f32 %v3489, %v3777
      %v3848 = vadd.f32 %v3490, %v3782
      %v3849 = vadd.f32 %v3491, %v3787
      %v3850 = vadd.f32 %v3492, %v3792
      %v3851 = vadd.f32 %v3493, %v3797
      %v3852 = vadd.f32 %v3494, %v3802
      %v3853 = vadd.f32 %v3495, %v3807
      %v3854 = vadd.f32 %v3496, %v3812
      %v3855 = vadd.f32 %v3497, %v3817
      %v3856 = vadd.f32 %v3498, %v3822
      %3857 = vst [vmem:[#allocation2] sm:$0xff] %v3825
      %3858 = vst [vmem:[#allocation2 + $0x8] sm:$0xff] %v3826
      %3859 = vst [vmem:[#allocation2 + $0x10] sm:$0xff] %v3827
      %3860 = vst [vmem:[#allocation2 + $0x18] sm:$0xff] %v3828
      %3861 = vst [vmem:[#allocation2 + $0x20] sm:$0xff] %v3829
      %3862 = vst [vmem:[#allocation2 + $0x28] sm:$0xff] %v3830
      %3863 = vst [vmem:[#allocation2 + $0x30] sm:$0xff] %v3831
      %3864 = vst [vmem:[#allocation2 + $0x38] sm:$0xff] %v3832
      %3865 = vst [vmem:[#allocation2 + $0x40] sm:$0xff] %v3833
      %3866 = vst [vmem:[#allocation2 + $0x48] sm:$0xff] %v3834
      %3867 = vst [vmem:[#allocation2 + $0x50] sm:$0xff] %v3835
      %3868 = vst [vmem:[#allocation2 + $0x58] sm:$0xff] %v3836
      %3869 = vst [vmem:[#allocation2 + $0x60] sm:$0xff] %v3837
      %3870 = vst [vmem:[#allocation2 + $0x68] sm:$0xff] %v3838
      %3871 = vst [vmem:[#allocation2 + $0x70] sm:$0xff] %v3839
      %3872 = vst [vmem:[#allocation2 + $0x78] sm:$0xff] %v3840
      %3873 = vst [vmem:[#allocation2 + $0x80] sm:$0xff] %v3841
      %3874 = vst [vmem:[#allocation2 + $0x88] sm:$0xff] %v3842
      %3875 = vst [vmem:[#allocation2 + $0x90] sm:$0xff] %v3843
      %3876 = vst [vmem:[#allocation2 + $0x98] sm:$0xff] %v3844
      %3877 = vst [vmem:[#allocation2 + $0xa0] sm:$0xff] %v3845
      %3878 = vst [vmem:[#allocation2 + $0xa8] sm:$0xff] %v3846
      %3879 = vst [vmem:[#allocation2 + $0xb0] sm:$0xff] %v3847
      %3880 = vst [vmem:[#allocation2 + $0xb8] sm:$0xff] %v3848
      %3881 = vst [vmem:[#allocation2 + $0xc0] sm:$0xff] %v3849
      %3882 = vst [vmem:[#allocation2 + $0xc8] sm:$0xff] %v3850
      %3883 = vst [vmem:[#allocation2 + $0xd0] sm:$0xff] %v3851
      %3884 = vst [vmem:[#allocation2 + $0xd8] sm:$0xff] %v3852
      %3885 = vst [vmem:[#allocation2 + $0xe0] sm:$0xff] %v3853
      %3886 = vst [vmem:[#allocation2 + $0xe8] sm:$0xff] %v3854
      %3887 = vst [vmem:[#allocation2 + $0xf0] sm:$0xff] %v3855
      %3888 = vst [vmem:[#allocation2 + $0xf8] sm:$0xff] %v3856
      %v3889 = vld [vmem:[%s2980 + $0x2] sm:$0xff]
      %v3890 = vld [vmem:[%s2980 + $0xa] sm:$0xff]
      %v3891 = vld [vmem:[%s2980 + $0x1a] sm:$0xff]
      %v3892 = vld [vmem:[%s2980 + $0x22] sm:$0xff]
      %v3893 = vld [vmem:[%s2980 + $0x32] sm:$0xff]
      %v3894 = vld [vmem:[%s2980 + $0x3a] sm:$0xff]
      %v3895 = vld [vmem:[%s2980 + $0x4a] sm:$0xff]
      %v3896 = vld [vmem:[%s2980 + $0x52] sm:$0xff]
      %v3897 = vld [vmem:[%s2980 + $0x62] sm:$0xff]
      %v3898 = vld [vmem:[%s2980 + $0x6a] sm:$0xff]
      %v3899 = vld [vmem:[%s2980 + $0x7a] sm:$0xff]
      %v3900 = vld [vmem:[%s2980 + $0x82] sm:$0xff]
      %v3901 = vld [vmem:[%s2980 + $0x92] sm:$0xff]
      %v3902 = vld [vmem:[%s2980 + $0x9a] sm:$0xff]
      %v3903 = vld [vmem:[%s2980 + $0xaa] sm:$0xff]
      %v3904 = vld [vmem:[%s2980 + $0xb2] sm:$0xff]
      %v3905 = vld [vmem:[%s2980 + $0xc2] sm:$0xff]
      %v3906 = vld [vmem:[%s2980 + $0xca] sm:$0xff]
      %v3907 = vld [vmem:[%s2980 + $0xda] sm:$0xff]
      %v3908 = vld [vmem:[%s2980 + $0xe2] sm:$0xff]
      %v3909 = vld [vmem:[%s2980 + $0xf2] sm:$0xff]
      %v3910 = vld [vmem:[%s2980 + $0xfa] sm:$0xff]
      %v3911 = vld [vmem:[%s2980 + $0x10a] sm:$0xff]
      %v3912 = vld [vmem:[%s2980 + $0x112] sm:$0xff]
      %v3913 = vld [vmem:[%s2980 + $0x122] sm:$0xff]
      %v3914 = vld [vmem:[%s2980 + $0x12a] sm:$0xff]
      %v3915 = vld [vmem:[%s2980 + $0x13a] sm:$0xff]
      %v3916 = vld [vmem:[%s2980 + $0x142] sm:$0xff]
      %v3917 = vld [vmem:[%s2980 + $0x152] sm:$0xff]
      %v3918 = vld [vmem:[%s2980 + $0x15a] sm:$0xff]
      %v3919 = vld [vmem:[%s2980 + $0x16a] sm:$0xff]
      %v3920 = vld [vmem:[%s2980 + $0x172] sm:$0xff]
      %v3921 = vld [vmem:[#allocation2] sm:$0xff]
      %v3922 = vld [vmem:[#allocation2 + $0x8] sm:$0xff]
      %v3923 = vld [vmem:[#allocation2 + $0x10] sm:$0xff]
      %v3924 = vld [vmem:[#allocation2 + $0x18] sm:$0xff]
      %v3925 = vld [vmem:[#allocation2 + $0x20] sm:$0xff]
      %v3926 = vld [vmem:[#allocation2 + $0x28] sm:$0xff]
      %v3927 = vld [vmem:[#allocation2 + $0x30] sm:$0xff]
      %v3928 = vld [vmem:[#allocation2 + $0x38] sm:$0xff]
      %v3929 = vld [vmem:[#allocation2 + $0x40] sm:$0xff]
      %v3930 = vld [vmem:[#allocation2 + $0x48] sm:$0xff]
      %v3931 = vld [vmem:[#allocation2 + $0x50] sm:$0xff]
      %v3932 = vld [vmem:[#allocation2 + $0x58] sm:$0xff]
      %v3933 = vld [vmem:[#allocation2 + $0x60] sm:$0xff]
      %v3934 = vld [vmem:[#allocation2 + $0x68] sm:$0xff]
      %v3935 = vld [vmem:[#allocation2 + $0x70] sm:$0xff]
      %v3936 = vld [vmem:[#allocation2 + $0x78] sm:$0xff]
      %v3937 = vld [vmem:[#allocation2 + $0x80] sm:$0xff]
      %v3938 = vld [vmem:[#allocation2 + $0x88] sm:$0xff]
      %v3939 = vld [vmem:[#allocation2 + $0x90] sm:$0xff]
      %v3940 = vld [vmem:[#allocation2 + $0x98] sm:$0xff]
      %v3941 = vld [vmem:[#allocation2 + $0xa0] sm:$0xff]
      %v3942 = vld [vmem:[#allocation2 + $0xa8] sm:$0xff]
      %v3943 = vld [vmem:[#allocation2 + $0xb0] sm:$0xff]
      %v3944 = vld [vmem:[#allocation2 + $0xb8] sm:$0xff]
      %v3945 = vld [vmem:[#allocation2 + $0xc0] sm:$0xff]
      %v3946 = vld [vmem:[#allocation2 + $0xc8] sm:$0xff]
      %v3947 = vld [vmem:[#allocation2 + $0xd0] sm:$0xff]
      %v3948 = vld [vmem:[#allocation2 + $0xd8] sm:$0xff]
      %v3949 = vld [vmem:[#allocation2 + $0xe0] sm:$0xff]
      %v3950 = vld [vmem:[#allocation2 + $0xe8] sm:$0xff]
      %v3951 = vld [vmem:[#allocation2 + $0xf0] sm:$0xff]
      %v3952 = vld [vmem:[#allocation2 + $0xf8] sm:$0xff]
      %s3953 = scalar_lea.vmem %s210, 32
      %v3954 = vld [vmem:[%s3953] sm:$0xf]
      %v3956 = vsel %vm319, %v3889, 0
      %v3959 = vsel %vm319, %v3890, 0
      %v3962 = vsel %vm319, %v3891, 0
      %v3965 = vsel %vm319, %v3892, 0
      %v3968 = vsel %vm319, %v3893, 0
      %v3971 = vsel %vm319, %v3894, 0
      %v3974 = vsel %vm319, %v3895, 0
      %v3977 = vsel %vm319, %v3896, 0
      %v3980 = vsel %vm319, %v3897, 0
      %v3983 = vsel %vm319, %v3898, 0
      %v3986 = vsel %vm319, %v3899, 0
      %v3989 = vsel %vm319, %v3900, 0
      %v3992 = vsel %vm319, %v3901, 0
      %v3995 = vsel %vm319, %v3902, 0
      %v3998 = vsel %vm319, %v3903, 0
      %v4001 = vsel %vm319, %v3904, 0
      %v4004 = vsel %vm319, %v3905, 0
      %v4007 = vsel %vm319, %v3906, 0
      %v4010 = vsel %vm319, %v3907, 0
      %v4013 = vsel %vm319, %v3908, 0
      %v4016 = vsel %vm319, %v3909, 0
      %v4019 = vsel %vm319, %v3910, 0
      %v4022 = vsel %vm319, %v3911, 0
      %v4025 = vsel %vm319, %v3912, 0
      %v4028 = vsel %vm319, %v3913, 0
      %v4031 = vsel %vm319, %v3914, 0
      %v4034 = vsel %vm319, %v3915, 0
      %v4037 = vsel %vm319, %v3916, 0
      %v4040 = vsel %vm319, %v3917, 0
      %v4043 = vsel %vm319, %v3918, 0
      %v4046 = vsel %vm319, %v3919, 0
      %v4049 = vsel %vm319, %v3920, 0
      %v4052 = vsel %vm416, %v3954, 0
      %4054 = vmatprep.subr.mxu0 0.0
      %4055 = vmatpush1.msra.mxu0 %v4052
      %4056 = vmatprep.subr.mxu0 0.0
      %4057 = vmatpush1.msra.mxu0 0.0
      %4058 = vmatprep.subr.mxu0 0.0
      %4059 = vmatpush1.msra.mxu0 0.0
      %4060 = vmatprep.subr.mxu0 0.0
      %4061 = vmatpush1.msra.mxu0 0.0
      %4062 = vmatprep.subr.mxu0 0.0
      %4063 = vmatpush1.msra.mxu0 0.0
      %4064 = vmatprep.subr.mxu0 0.0
      %4065 = vmatpush1.msra.mxu0 0.0
      %4066 = vmatprep.subr.mxu0 0.0
      %4067 = vmatpush1.msra.mxu0 0.0
      %4068 = vmatprep.subr.mxu0 0.0
      %4069 = vmatpush1.msra.mxu0 0.0
      %4070 = vmatprep.subr.mxu0 0.0
      %4071 = vmatpush1.msra.mxu0 0.0
      %4072 = vmatprep.subr.mxu0 0.0
      %4073 = vmatpush1.msra.mxu0 0.0
      %4074 = vmatprep.subr.mxu0 0.0
      %4075 = vmatpush1.msra.mxu0 0.0
      %4076 = vmatprep.subr.mxu0 0.0
      %4077 = vmatpush1.msra.mxu0 0.0
      %4078 = vmatprep.subr.mxu0 0.0
      %4079 = vmatpush1.msra.mxu0 0.0
      %4080 = vmatprep.subr.mxu0 0.0
      %4081 = vmatpush1.msra.mxu0 0.0
      %4082 = vmatprep.subr.mxu0 0.0
      %4083 = vmatpush1.msra.mxu0 0.0
      %4084 = vmatprep.subr.mxu0 0.0
      %4085 = vmatpush1.msra.mxu0 0.0
      %4086 = vmatprep.subr.mxu0 0.0
      %4087 = vmatpush1.msra.mxu0 0.0
      %4088 = vmatprep.subr.mxu0 0.0
      %4089 = vmatpush1.msra.mxu0 0.0
      %4090 = vmatprep.subr.mxu0 0.0
      %4091 = vmatpush1.msra.mxu0 0.0
      %4092 = vmatprep.subr.mxu0 0.0
      %4093 = vmatpush1.msra.mxu0 0.0
      %4094 = vmatprep.subr.mxu0 0.0
      %4095 = vmatpush1.msra.mxu0 0.0
      %4096 = vmatprep.subr.mxu0 0.0
      %4097 = vmatpush1.msra.mxu0 0.0
      %4098 = vmatprep.subr.mxu0 0.0
      %4099 = vmatpush1.msra.mxu0 0.0
      %4100 = vmatprep.subr.mxu0 0.0
      %4101 = vmatpush1.msra.mxu0 0.0
      %4102 = vmatprep.subr.mxu0 0.0
      %4103 = vmatpush1.msra.mxu0 0.0
      %4104 = vmatprep.subr.mxu0 0.0
      %4105 = vmatpush1.msra.mxu0 0.0
      %4106 = vmatprep.subr.mxu0 0.0
      %4107 = vmatpush1.msra.mxu0 0.0
      %4108 = vmatprep.subr.mxu0 0.0
      %4109 = vmatpush1.msra.mxu0 0.0
      %4110 = vmatprep.subr.mxu0 0.0
      %4111 = vmatpush1.msra.mxu0 0.0
      %4112 = vmatprep.subr.mxu0 0.0
      %4113 = vmatpush1.msra.mxu0 0.0
      %4114 = vmatprep.subr.mxu0 0.0
      %4115 = vmatpush1.msra.mxu0 0.0
      %4116 = vmatprep.subr.mxu0 0.0
      %4117 = vmatpush1.msra.mxu0 0.0
      %4118 = vmatprep.mubr.f32.mxu0 0.0
      %4119 = vmatmul.mubr.f32.gmra.mrb[0].mxu0 %v3956
      %v4120 = vpop.f32.mrb[0].mxu0
      %v4121 = vadd.f32 0.0, %v4120
      %v4122 = vpop.f32.mrb[0].mxu0
      %4123 = vmatprep.mubr.f32.mxu0 0.0
      %4124 = vmatmul.mubr.f32.gmra.mrb[0].mxu0 %v3959
      %v4125 = vpop.f32.mrb[0].mxu0
      %v4126 = vadd.f32 0.0, %v4125
      %v4127 = vpop.f32.mrb[0].mxu0
      %4128 = vmatprep.mubr.f32.mxu0 0.0
      %4129 = vmatmul.mubr.f32.gmra.mrb[0].mxu0 %v3962
      %v4130 = vpop.f32.mrb[0].mxu0
      %v4131 = vadd.f32 0.0, %v4130
      %v4132 = vpop.f32.mrb[0].mxu0
      %4133 = vmatprep.mubr.f32.mxu0 0.0
      %4134 = vmatmul.mubr.f32.gmra.mrb[0].mxu0 %v3965
      %v4135 = vpop.f32.mrb[0].mxu0
      %v4136 = vadd.f32 0.0, %v4135
      %v4137 = vpop.f32.mrb[0].mxu0
      %4138 = vmatprep.mubr.f32.mxu0 0.0
      %4139 = vmatmul.mubr.f32.gmra.mrb[0].mxu0 %v3968
      %v4140 = vpop.f32.mrb[0].mxu0
      %v4141 = vadd.f32 0.0, %v4140
      %v4142 = vpop.f32.mrb[0].mxu0
      %4143 = vmatprep.mubr.f32.mxu0 0.0
      %4144 = vmatmul.mubr.f32.gmra.mrb[0].mxu0 %v3971
      %v4145 = vpop.f32.mrb[0].mxu0
      %v4146 = vadd.f32 0.0, %v4145
      %v4147 = vpop.f32.mrb[0].mxu0
      %4148 = vmatprep.mubr.f32.mxu0 0.0
      %4149 = vmatmul.mubr.f32.gmra.mrb[0].mxu0 %v3974
      %v4150 = vpop.f32.mrb[0].mxu0
      %v4151 = vadd.f32 0.0, %v4150
      %v4152 = vpop.f32.mrb[0].mxu0
      %4153 = vmatprep.mubr.f32.mxu0 0.0
      %4154 = vmatmul.mubr.f32.gmra.mrb[0].mxu0 %v3977
      %v4155 = vpop.f32.mrb[0].mxu0
      %v4156 = vadd.f32 0.0, %v4155
      %v4157 = vpop.f32.mrb[0].mxu0
      %4158 = vmatprep.mubr.f32.mxu0 0.0
      %4159 = vmatmul.mubr.f32.gmra.mrb[0].mxu0 %v3980
      %v4160 = vpop.f32.mrb[0].mxu0
      %v4161 = vadd.f32 0.0, %v4160
      %v4162 = vpop.f32.mrb[0].mxu0
      %4163 = vmatprep.mubr.f32.mxu0 0.0
      %4164 = vmatmul.mubr.f32.gmra.mrb[0].mxu0 %v3983
      %v4165 = vpop.f32.mrb[0].mxu0
      %v4166 = vadd.f32 0.0, %v4165
      %v4167 = vpop.f32.mrb[0].mxu0
      %4168 = vmatprep.mubr.f32.mxu0 0.0
      %4169 = vmatmul.mubr.f32.gmra.mrb[0].mxu0 %v3986
      %v4170 = vpop.f32.mrb[0].mxu0
      %v4171 = vadd.f32 0.0, %v4170
      %v4172 = vpop.f32.mrb[0].mxu0
      %4173 = vmatprep.mubr.f32.mxu0 0.0
      %4174 = vmatmul.mubr.f32.gmra.mrb[0].mxu0 %v3989
      %v4175 = vpop.f32.mrb[0].mxu0
      %v4176 = vadd.f32 0.0, %v4175
      %v4177 = vpop.f32.mrb[0].mxu0
      %4178 = vmatprep.mubr.f32.mxu0 0.0
      %4179 = vmatmul.mubr.f32.gmra.mrb[0].mxu0 %v3992
      %v4180 = vpop.f32.mrb[0].mxu0
      %v4181 = vadd.f32 0.0, %v4180
      %v4182 = vpop.f32.mrb[0].mxu0
      %4183 = vmatprep.mubr.f32.mxu0 0.0
      %4184 = vmatmul.mubr.f32.gmra.mrb[0].mxu0 %v3995
      %v4185 = vpop.f32.mrb[0].mxu0
      %v4186 = vadd.f32 0.0, %v4185
      %v4187 = vpop.f32.mrb[0].mxu0
      %4188 = vmatprep.mubr.f32.mxu0 0.0
      %4189 = vmatmul.mubr.f32.gmra.mrb[0].mxu0 %v3998
      %v4190 = vpop.f32.mrb[0].mxu0
      %v4191 = vadd.f32 0.0, %v4190
      %v4192 = vpop.f32.mrb[0].mxu0
      %4193 = vmatprep.mubr.f32.mxu0 0.0
      %4194 = vmatmul.mubr.f32.gmra.mrb[0].mxu0 %v4001
      %v4195 = vpop.f32.mrb[0].mxu0
      %v4196 = vadd.f32 0.0, %v4195
      %v4197 = vpop.f32.mrb[0].mxu0
      %4198 = vmatprep.mubr.f32.mxu0 0.0
      %4199 = vmatmul.mubr.f32.gmra.mrb[0].mxu0 %v4004
      %v4200 = vpop.f32.mrb[0].mxu0
      %v4201 = vadd.f32 0.0, %v4200
      %v4202 = vpop.f32.mrb[0].mxu0
      %4203 = vmatprep.mubr.f32.mxu0 0.0
      %4204 = vmatmul.mubr.f32.gmra.mrb[0].mxu0 %v4007
      %v4205 = vpop.f32.mrb[0].mxu0
      %v4206 = vadd.f32 0.0, %v4205
      %v4207 = vpop.f32.mrb[0].mxu0
      %4208 = vmatprep.mubr.f32.mxu0 0.0
      %4209 = vmatmul.mubr.f32.gmra.mrb[0].mxu0 %v4010
      %v4210 = vpop.f32.mrb[0].mxu0
      %v4211 = vadd.f32 0.0, %v4210
      %v4212 = vpop.f32.mrb[0].mxu0
      %4213 = vmatprep.mubr.f32.mxu0 0.0
      %4214 = vmatmul.mubr.f32.gmra.mrb[0].mxu0 %v4013
      %v4215 = vpop.f32.mrb[0].mxu0
      %v4216 = vadd.f32 0.0, %v4215
      %v4217 = vpop.f32.mrb[0].mxu0
      %4218 = vmatprep.mubr.f32.mxu0 0.0
      %4219 = vmatmul.mubr.f32.gmra.mrb[0].mxu0 %v4016
      %v4220 = vpop.f32.mrb[0].mxu0
      %v4221 = vadd.f32 0.0, %v4220
      %v4222 = vpop.f32.mrb[0].mxu0
      %4223 = vmatprep.mubr.f32.mxu0 0.0
      %4224 = vmatmul.mubr.f32.gmra.mrb[0].mxu0 %v4019
      %v4225 = vpop.f32.mrb[0].mxu0
      %v4226 = vadd.f32 0.0, %v4225
      %v4227 = vpop.f32.mrb[0].mxu0
      %4228 = vmatprep.mubr.f32.mxu0 0.0
      %4229 = vmatmul.mubr.f32.gmra.mrb[0].mxu0 %v4022
      %v4230 = vpop.f32.mrb[0].mxu0
      %v4231 = vadd.f32 0.0, %v4230
      %v4232 = vpop.f32.mrb[0].mxu0
      %4233 = vmatprep.mubr.f32.mxu0 0.0
      %4234 = vmatmul.mubr.f32.gmra.mrb[0].mxu0 %v4025
      %v4235 = vpop.f32.mrb[0].mxu0
      %v4236 = vadd.f32 0.0, %v4235
      %v4237 = vpop.f32.mrb[0].mxu0
      %4238 = vmatprep.mubr.f32.mxu0 0.0
      %4239 = vmatmul.mubr.f32.gmra.mrb[0].mxu0 %v4028
      %v4240 = vpop.f32.mrb[0].mxu0
      %v4241 = vadd.f32 0.0, %v4240
      %v4242 = vpop.f32.mrb[0].mxu0
      %4243 = vmatprep.mubr.f32.mxu0 0.0
      %4244 = vmatmul.mubr.f32.gmra.mrb[0].mxu0 %v4031
      %v4245 = vpop.f32.mrb[0].mxu0
      %v4246 = vadd.f32 0.0, %v4245
      %v4247 = vpop.f32.mrb[0].mxu0
      %4248 = vmatprep.mubr.f32.mxu0 0.0
      %4249 = vmatmul.mubr.f32.gmra.mrb[0].mxu0 %v4034
      %v4250 = vpop.f32.mrb[0].mxu0
      %v4251 = vadd.f32 0.0, %v4250
      %v4252 = vpop.f32.mrb[0].mxu0
      %4253 = vmatprep.mubr.f32.mxu0 0.0
      %4254 = vmatmul.mubr.f32.gmra.mrb[0].mxu0 %v4037
      %v4255 = vpop.f32.mrb[0].mxu0
      %v4256 = vadd.f32 0.0, %v4255
      %v4257 = vpop.f32.mrb[0].mxu0
      %4258 = vmatprep.mubr.f32.mxu0 0.0
      %4259 = vmatmul.mubr.f32.gmra.mrb[0].mxu0 %v4040
      %v4260 = vpop.f32.mrb[0].mxu0
      %v4261 = vadd.f32 0.0, %v4260
      %v4262 = vpop.f32.mrb[0].mxu0
      %4263 = vmatprep.mubr.f32.mxu0 0.0
      %4264 = vmatmul.mubr.f32.gmra.mrb[0].mxu0 %v4043
      %v4265 = vpop.f32.mrb[0].mxu0
      %v4266 = vadd.f32 0.0, %v4265
      %v4267 = vpop.f32.mrb[0].mxu0
      %4268 = vmatprep.mubr.f32.mxu0 0.0
      %4269 = vmatmul.mubr.f32.gmra.mrb[0].mxu0 %v4046
      %v4270 = vpop.f32.mrb[0].mxu0
      %v4271 = vadd.f32 0.0, %v4270
      %v4272 = vpop.f32.mrb[0].mxu0
      %4273 = vmatprep.mubr.f32.mxu0 0.0
      %4274 = vmatmul.mubr.f32.gmra.mrb[0].mxu0 %v4049
      %v4275 = vpop.f32.mrb[0].mxu0
      %v4276 = vadd.f32 0.0, %v4275
      %v4277 = vpop.f32.mrb[0].mxu0
      %4278 = vdwg.mxu0
      %v4279 = vadd.f32 %v3921, %v4121
      %v4280 = vadd.f32 %v3922, %v4126
      %v4281 = vadd.f32 %v3923, %v4131
      %v4282 = vadd.f32 %v3924, %v4136
      %v4283 = vadd.f32 %v3925, %v4141
      %v4284 = vadd.f32 %v3926, %v4146
      %v4285 = vadd.f32 %v3927, %v4151
      %v4286 = vadd.f32 %v3928, %v4156
      %v4287 = vadd.f32 %v3929, %v4161
      %v4288 = vadd.f32 %v3930, %v4166
      %v4289 = vadd.f32 %v3931, %v4171
      %v4290 = vadd.f32 %v3932, %v4176
      %v4291 = vadd.f32 %v3933, %v4181
      %v4292 = vadd.f32 %v3934, %v4186
      %v4293 = vadd.f32 %v3935, %v4191
      %v4294 = vadd.f32 %v3936, %v4196
      %v4295 = vadd.f32 %v3937, %v4201
      %v4296 = vadd.f32 %v3938, %v4206
      %v4297 = vadd.f32 %v3939, %v4211
      %v4298 = vadd.f32 %v3940, %v4216
      %v4299 = vadd.f32 %v3941, %v4221
      %v4300 = vadd.f32 %v3942, %v4226
      %v4301 = vadd.f32 %v3943, %v4231
      %v4302 = vadd.f32 %v3944, %v4236
      %v4303 = vadd.f32 %v3945, %v4241
      %v4304 = vadd.f32 %v3946, %v4246
      %v4305 = vadd.f32 %v3947, %v4251
      %v4306 = vadd.f32 %v3948, %v4256
      %v4307 = vadd.f32 %v3949, %v4261
      %v4308 = vadd.f32 %v3950, %v4266
      %v4309 = vadd.f32 %v3951, %v4271
      %v4310 = vadd.f32 %v3952, %v4276
      %4311 = vst [vmem:[#allocation2] sm:$0xff] %v4279
      %4312 = vst [vmem:[#allocation2 + $0x8] sm:$0xff] %v4280
      %4313 = vst [vmem:[#allocation2 + $0x10] sm:$0xff] %v4281
      %4314 = vst [vmem:[#allocation2 + $0x18] sm:$0xff] %v4282
      %4315 = vst [vmem:[#allocation2 + $0x20] sm:$0xff] %v4283
      %4316 = vst [vmem:[#allocation2 + $0x28] sm:$0xff] %v4284
      %4317 = vst [vmem:[#allocation2 + $0x30] sm:$0xff] %v4285
      %4318 = vst [vmem:[#allocation2 + $0x38] sm:$0xff] %v4286
      %4319 = vst [vmem:[#allocation2 + $0x40] sm:$0xff] %v4287
      %4320 = vst [vmem:[#allocation2 + $0x48] sm:$0xff] %v4288
      %4321 = vst [vmem:[#allocation2 + $0x50] sm:$0xff] %v4289
      %4322 = vst [vmem:[#allocation2 + $0x58] sm:$0xff] %v4290
      %4323 = vst [vmem:[#allocation2 + $0x60] sm:$0xff] %v4291
      %4324 = vst [vmem:[#allocation2 + $0x68] sm:$0xff] %v4292
      %4325 = vst [vmem:[#allocation2 + $0x70] sm:$0xff] %v4293
      %4326 = vst [vmem:[#allocation2 + $0x78] sm:$0xff] %v4294
      %4327 = vst [vmem:[#allocation2 + $0x80] sm:$0xff] %v4295
      %4328 = vst [vmem:[#allocation2 + $0x88] sm:$0xff] %v4296
      %4329 = vst [vmem:[#allocation2 + $0x90] sm:$0xff] %v4297
      %4330 = vst [vmem:[#allocation2 + $0x98] sm:$0xff] %v4298
      %4331 = vst [vmem:[#allocation2 + $0xa0] sm:$0xff] %v4299
      %4332 = vst [vmem:[#allocation2 + $0xa8] sm:$0xff] %v4300
      %4333 = vst [vmem:[#allocation2 + $0xb0] sm:$0xff] %v4301
      %4334 = vst [vmem:[#allocation2 + $0xb8] sm:$0xff] %v4302
      %4335 = vst [vmem:[#allocation2 + $0xc0] sm:$0xff] %v4303
      %4336 = vst [vmem:[#allocation2 + $0xc8] sm:$0xff] %v4304
      %4337 = vst [vmem:[#allocation2 + $0xd0] sm:$0xff] %v4305
      %4338 = vst [vmem:[#allocation2 + $0xd8] sm:$0xff] %v4306
      %4339 = vst [vmem:[#allocation2 + $0xe0] sm:$0xff] %v4307
      %4340 = vst [vmem:[#allocation2 + $0xe8] sm:$0xff] %v4308
      %4341 = vst [vmem:[#allocation2 + $0xf0] sm:$0xff] %v4309
      %4342 = vst [vmem:[#allocation2 + $0xf8] sm:$0xff] %v4310
      %v4343 = vld [vmem:[%s213] sm:$0x1]
      %v4344 = vld [vmem:[#allocation2] sm:$0xff]
      %v4345 = vld [vmem:[#allocation2 + $0x8] sm:$0xff]
      %v4346 = vld [vmem:[#allocation2 + $0x10] sm:$0xff]
      %v4347 = vld [vmem:[#allocation2 + $0x18] sm:$0xff]
      %v4348 = vld [vmem:[#allocation2 + $0x20] sm:$0xff]
      %v4349 = vld [vmem:[#allocation2 + $0x28] sm:$0xff]
      %v4350 = vld [vmem:[#allocation2 + $0x30] sm:$0xff]
      %v4351 = vld [vmem:[#allocation2 + $0x38] sm:$0xff]
      %v4352 = vld [vmem:[#allocation2 + $0x40] sm:$0xff]
      %v4353 = vld [vmem:[#allocation2 + $0x48] sm:$0xff]
      %v4354 = vld [vmem:[#allocation2 + $0x50] sm:$0xff]
      %v4355 = vld [vmem:[#allocation2 + $0x58] sm:$0xff]
      %v4356 = vld [vmem:[#allocation2 + $0x60] sm:$0xff]
      %v4357 = vld [vmem:[#allocation2 + $0x68] sm:$0xff]
      %v4358 = vld [vmem:[#allocation2 + $0x70] sm:$0xff]
      %v4359 = vld [vmem:[#allocation2 + $0x78] sm:$0xff]
      %v4360 = vld [vmem:[#allocation2 + $0x80] sm:$0xff]
      %v4361 = vld [vmem:[#allocation2 + $0x88] sm:$0xff]
      %v4362 = vld [vmem:[#allocation2 + $0x90] sm:$0xff]
      %v4363 = vld [vmem:[#allocation2 + $0x98] sm:$0xff]
      %v4364 = vld [vmem:[#allocation2 + $0xa0] sm:$0xff]
      %v4365 = vld [vmem:[#allocation2 + $0xa8] sm:$0xff]
      %v4366 = vld [vmem:[#allocation2 + $0xb0] sm:$0xff]
      %v4367 = vld [vmem:[#allocation2 + $0xb8] sm:$0xff]
      %v4368 = vld [vmem:[#allocation2 + $0xc0] sm:$0xff]
      %v4369 = vld [vmem:[#allocation2 + $0xc8] sm:$0xff]
      %v4370 = vld [vmem:[#allocation2 + $0xd0] sm:$0xff]
      %v4371 = vld [vmem:[#allocation2 + $0xd8] sm:$0xff]
      %v4372 = vld [vmem:[#allocation2 + $0xe0] sm:$0xff]
      %v4373 = vld [vmem:[#allocation2 + $0xe8] sm:$0xff]
      %v4374 = vld [vmem:[#allocation2 + $0xf0] sm:$0xff]
      %v4375 = vld [vmem:[#allocation2 + $0xf8] sm:$0xff]
      %v4377 = vlaneseq
      %v4378 = vshrl.u32 %v4377, 7
      %v4379 = vsub.s32 0, %v4378
      %v4380 = vrot.slane %v4343, %v4379
      %v4382 = vadd.f32 %v4344, %v4380
      %v4383 = vadd.f32 %v4345, %v4380
      %v4384 = vadd.f32 %v4346, %v4380
      %v4385 = vadd.f32 %v4347, %v4380
      %v4386 = vadd.f32 %v4348, %v4380
      %v4387 = vadd.f32 %v4349, %v4380
      %v4388 = vadd.f32 %v4350, %v4380
      %v4389 = vadd.f32 %v4351, %v4380
      %v4390 = vadd.f32 %v4352, %v4380
      %v4391 = vadd.f32 %v4353, %v4380
      %v4392 = vadd.f32 %v4354, %v4380
      %v4393 = vadd.f32 %v4355, %v4380
      %v4394 = vadd.f32 %v4356, %v4380
      %v4395 = vadd.f32 %v4357, %v4380
      %v4396 = vadd.f32 %v4358, %v4380
      %v4397 = vadd.f32 %v4359, %v4380
      %v4398 = vadd.f32 %v4360, %v4380
      %v4399 = vadd.f32 %v4361, %v4380
      %v4400 = vadd.f32 %v4362, %v4380
      %v4401 = vadd.f32 %v4363, %v4380
      %v4402 = vadd.f32 %v4364, %v4380
      %v4403 = vadd.f32 %v4365, %v4380
      %v4404 = vadd.f32 %v4366, %v4380
      %v4405 = vadd.f32 %v4367, %v4380
      %v4406 = vadd.f32 %v4368, %v4380
      %v4407 = vadd.f32 %v4369, %v4380
      %v4408 = vadd.f32 %v4370, %v4380
      %v4409 = vadd.f32 %v4371, %v4380
      %v4410 = vadd.f32 %v4372, %v4380
      %v4411 = vadd.f32 %v4373, %v4380
      %v4412 = vadd.f32 %v4374, %v4380
      %v4413 = vadd.f32 %v4375, %v4380
      %v4414 = vmax.f32 %v4382, 0.0
      %v4415 = vmax.f32 %v4383, 0.0
      %v4416 = vmax.f32 %v4384, 0.0
      %v4417 = vmax.f32 %v4385, 0.0
      %v4418 = vmax.f32 %v4386, 0.0
      %v4419 = vmax.f32 %v4387, 0.0
      %v4420 = vmax.f32 %v4388, 0.0
      %v4421 = vmax.f32 %v4389, 0.0
      %v4422 = vmax.f32 %v4390, 0.0
      %v4423 = vmax.f32 %v4391, 0.0
      %v4424 = vmax.f32 %v4392, 0.0
      %v4425 = vmax.f32 %v4393, 0.0
      %v4426 = vmax.f32 %v4394, 0.0
      %v4427 = vmax.f32 %v4395, 0.0
      %v4428 = vmax.f32 %v4396, 0.0
      %v4429 = vmax.f32 %v4397, 0.0
      %v4430 = vmax.f32 %v4398, 0.0
      %v4431 = vmax.f32 %v4399, 0.0
      %v4432 = vmax.f32 %v4400, 0.0
      %v4433 = vmax.f32 %v4401, 0.0
      %v4434 = vmax.f32 %v4402, 0.0
      %v4435 = vmax.f32 %v4403, 0.0
      %v4436 = vmax.f32 %v4404, 0.0
      %v4437 = vmax.f32 %v4405, 0.0
      %v4438 = vmax.f32 %v4406, 0.0
      %v4439 = vmax.f32 %v4407, 0.0
      %v4440 = vmax.f32 %v4408, 0.0
      %v4441 = vmax.f32 %v4409, 0.0
      %v4442 = vmax.f32 %v4410, 0.0
      %v4443 = vmax.f32 %v4411, 0.0
      %v4444 = vmax.f32 %v4412, 0.0
      %v4445 = vmax.f32 %v4413, 0.0
      %4446 = vst [vmem:[%s221] sm:$0xff] 0.0
      %4447 = vst [vmem:[%s221 + $0x8] sm:$0xff] 0.0
      %4448 = vst [vmem:[%s221 + $0x10] sm:$0x3] 0.0
      %4449 = vst [vmem:[%s221 + $0x18] sm:$0xff] 0.0
      %4450 = vst [vmem:[%s221 + $0x20] sm:$0xff] 0.0
      %4451 = vst [vmem:[%s221 + $0x28] sm:$0x3] 0.0
      %4452 = vst [vmem:[%s221 + $0x30] sm:$0xff] 0.0
      %4453 = vst [vmem:[%s221 + $0x38] sm:$0xff] 0.0
      %4454 = vst [vmem:[%s221 + $0x40] sm:$0x3] 0.0
      %4455 = vst [vmem:[%s221 + $0x48] sm:$0xff] 0.0
      %4456 = vst [vmem:[%s221 + $0x50] sm:$0xff] 0.0
      %4457 = vst [vmem:[%s221 + $0x58] sm:$0x3] 0.0
      %4458 = vst [vmem:[%s221 + $0x60] sm:$0xff] 0.0
      %4459 = vst [vmem:[%s221 + $0x68] sm:$0xff] 0.0
      %4460 = vst [vmem:[%s221 + $0x70] sm:$0x3] 0.0
      %4461 = vst [vmem:[%s221 + $0x78] sm:$0xff] 0.0
      %4462 = vst [vmem:[%s221 + $0x80] sm:$0xff] 0.0
      %4463 = vst [vmem:[%s221 + $0x88] sm:$0x3] 0.0
      %4464 = vst [vmem:[%s221 + $0x90] sm:$0xff] 0.0
      %4465 = vst [vmem:[%s221 + $0x98] sm:$0xff] 0.0
      %4466 = vst [vmem:[%s221 + $0xa0] sm:$0x3] 0.0
      %4467 = vst [vmem:[%s221 + $0xa8] sm:$0xff] 0.0
      %4468 = vst [vmem:[%s221 + $0xb0] sm:$0xff] 0.0
      %4469 = vst [vmem:[%s221 + $0xb8] sm:$0x3] 0.0
      %4470 = vst [vmem:[%s221 + $0xc0] sm:$0xff] 0.0
      %4471 = vst [vmem:[%s221 + $0xc8] sm:$0xff] 0.0
      %4472 = vst [vmem:[%s221 + $0xd0] sm:$0x3] 0.0
      %4473 = vst [vmem:[%s221 + $0xd8] sm:$0xff] 0.0
      %4474 = vst [vmem:[%s221 + $0xe0] sm:$0xff] 0.0
      %4475 = vst [vmem:[%s221 + $0xe8] sm:$0x3] 0.0
      %4476 = vst [vmem:[%s221 + $0xf0] sm:$0xff] 0.0
      %4477 = vst [vmem:[%s221 + $0xf8] sm:$0xff] 0.0
      %4478 = vst [vmem:[%s221 + $0x100] sm:$0x3] 0.0
      %4479 = vst [vmem:[%s221 + $0x108] sm:$0xff] 0.0
      %4480 = vst [vmem:[%s221 + $0x110] sm:$0xff] 0.0
      %4481 = vst [vmem:[%s221 + $0x118] sm:$0x3] 0.0
      %4482 = vst [vmem:[%s221 + $0x120] sm:$0xff] 0.0
      %4483 = vst [vmem:[%s221 + $0x128] sm:$0xff] 0.0
      %4484 = vst [vmem:[%s221 + $0x130] sm:$0x3] 0.0
      %4485 = vst [vmem:[%s221 + $0x138] sm:$0xff] 0.0
      %4486 = vst [vmem:[%s221 + $0x140] sm:$0xff] 0.0
      %4487 = vst [vmem:[%s221 + $0x148] sm:$0x3] 0.0
      %4488 = vst [vmem:[%s221 + $0x150] sm:$0xff] 0.0
      %4489 = vst [vmem:[%s221 + $0x158] sm:$0xff] 0.0
      %4490 = vst [vmem:[%s221 + $0x160] sm:$0x3] 0.0
      %4491 = vst [vmem:[%s221 + $0x168] sm:$0xff] 0.0
      %4492 = vst [vmem:[%s221 + $0x170] sm:$0xff] 0.0
      %4493 = vst [vmem:[%s221 + $0x178] sm:$0x3] 0.0
      %4494 = vst [vmem:[%s221 + $0x180] sm:$0xff] 0.0
      %4495 = vst [vmem:[%s221 + $0x188] sm:$0xff] 0.0
      %4496 = vst [vmem:[%s221 + $0x190] sm:$0x3] 0.0
      %4497 = vst [vmem:[%s221 + $0x198] sm:$0xff] 0.0
      %4498 = vst [vmem:[%s221 + $0x1a0] sm:$0xff] 0.0
      %4499 = vst [vmem:[%s221 + $0x1a8] sm:$0x3] 0.0
      %s4500 = scalar_lea.vmem %s221, 24
      %4501 = vst [vmem:[%s4500 + $0x1] sm:$0xff] %v4414
      %4502 = vst [vmem:[%s4500 + $0x9] sm:$0xff] %v4415
      %4503 = vst [vmem:[%s4500 + $0x19] sm:$0xff] %v4416
      %4504 = vst [vmem:[%s4500 + $0x21] sm:$0xff] %v4417
      %4505 = vst [vmem:[%s4500 + $0x31] sm:$0xff] %v4418
      %4506 = vst [vmem:[%s4500 + $0x39] sm:$0xff] %v4419
      %4507 = vst [vmem:[%s4500 + $0x49] sm:$0xff] %v4420
      %4508 = vst [vmem:[%s4500 + $0x51] sm:$0xff] %v4421
      %4509 = vst [vmem:[%s4500 + $0x61] sm:$0xff] %v4422
      %4510 = vst [vmem:[%s4500 + $0x69] sm:$0xff] %v4423
      %4511 = vst [vmem:[%s4500 + $0x79] sm:$0xff] %v4424
      %4512 = vst [vmem:[%s4500 + $0x81] sm:$0xff] %v4425
      %4513 = vst [vmem:[%s4500 + $0x91] sm:$0xff] %v4426
      %4514 = vst [vmem:[%s4500 + $0x99] sm:$0xff] %v4427
      %4515 = vst [vmem:[%s4500 + $0xa9] sm:$0xff] %v4428
      %4516 = vst [vmem:[%s4500 + $0xb1] sm:$0xff] %v4429
      %4517 = vst [vmem:[%s4500 + $0xc1] sm:$0xff] %v4430
      %4518 = vst [vmem:[%s4500 + $0xc9] sm:$0xff] %v4431
      %4519 = vst [vmem:[%s4500 + $0xd9] sm:$0xff] %v4432
      %4520 = vst [vmem:[%s4500 + $0xe1] sm:$0xff] %v4433
      %4521 = vst [vmem:[%s4500 + $0xf1] sm:$0xff] %v4434
      %4522 = vst [vmem:[%s4500 + $0xf9] sm:$0xff] %v4435
      %4523 = vst [vmem:[%s4500 + $0x109] sm:$0xff] %v4436
      %4524 = vst [vmem:[%s4500 + $0x111] sm:$0xff] %v4437
      %4525 = vst [vmem:[%s4500 + $0x121] sm:$0xff] %v4438
      %4526 = vst [vmem:[%s4500 + $0x129] sm:$0xff] %v4439
      %4527 = vst [vmem:[%s4500 + $0x139] sm:$0xff] %v4440
      %4528 = vst [vmem:[%s4500 + $0x141] sm:$0xff] %v4441
      %4529 = vst [vmem:[%s4500 + $0x151] sm:$0xff] %v4442
      %4530 = vst [vmem:[%s4500 + $0x159] sm:$0xff] %v4443
      %4531 = vst [vmem:[%s4500 + $0x169] sm:$0xff] %v4444
      %4532 = vst [vmem:[%s4500 + $0x171] sm:$0xff] %v4445
      %p4533 = scmp.lt.s32.totalorder %s18, 1
      %s4534 = scalar_select %p4533, %s18, 1
      %p4535 = scmp.lt.s32.totalorder %s19, 0
      %s4536 = scalar_select %p4535, %s19, 0
      %s4537 = smul.addr %s4534, 54
      %s4538 = sadd.s32 %s4536, %s4537
      %s4539 = smul.addr %s4538, 8
      %s4540 = scalar_lea.vmem %s3, %s4539
      // Predicated region
      $region33: #{vgg_block_forward.3} parent=31 // pred_check
        %p4541 = pneg %p124
      $region34: #{vgg_block_forward.3} parent=31 // pred_check_branch
        %4543 = sbr.rel (%p4541) target = $region36
      $region35: #{vgg_block_forward.3} parent=31 // pred_region
        _
      $region36: #{vgg_block_forward.3} parent=31 // pred_fallthru
        _
    $region32: #{vgg_block_forward.3} parent=5 // pred_fallthru
      _
    %p4544 = scmp.le.s32.totalorder 2, %s9
    // Predicated region
    $region37: #{vgg_block_forward.3} parent=5 // pred_check
      %p4545 = pneg %p4544
    $region38: #{vgg_block_forward.3} parent=5 // pred_check_branch
      %4547 = sbr.rel (%p4545) target = $region40
    $region39: #{vgg_block_forward.3} parent=5 // pred_region
      %s4548 = ssub.s32 %s9, 2
      // Predicated region
      $region41: #{vgg_block_forward.3} parent=39 // pred_check
        %p4549 = pneg %p130
      $region42: #{vgg_block_forward.3} parent=39 // pred_check_branch
        %4551 = sbr.rel (%p4549) target = $region44
      $region43: #{vgg_block_forward.3} parent=39 // pred_region
        %p4552 = scmp.lt.s32.totalorder %s20, 1
        %s4553 = scalar_select %p4552, %s20, 1
        %p4554 = scmp.lt.s32.totalorder %s21, 0
        %s4555 = scalar_select %p4554, %s21, 0
        %s4556 = smul.addr %s4553, 54
        %s4557 = sadd.s32 %s4555, %s4556
        %s4558 = smul.addr %s4557, 8
        %s4559 = scalar_lea.vmem %s3, %s4558
      $region44: #{vgg_block_forward.3} parent=39 // pred_fallthru
        _
    $region40: #{vgg_block_forward.3} parent=5 // pred_fallthru
      _
  $region6: #{vgg_block_forward.3} parent=0 // loop_footer
    %s13 = sadd.s32 1, %s9
  $region7: #{vgg_block_forward.3} parent=0 // loop_footer_branch
    %8 = sbr.rel target = $region3
  $region8: #{vgg_block_forward.3} parent=0 // loop_exit
    _

</llo_original>
